<compile_context>
chip_gen: v7x
topology: tpu7x:2x2x1
jax: 0.10.0
libtpu: 0.0.40
codegen_flags: <defaults>
</compile_context>

<pallas_src>
import math

import jax
import jax.numpy as jnp
from jax.experimental import pallas as pl
from jax.experimental.pallas import tpu as pltpu

N_LAYERS = 2
N_HEADS = 8            # nn.TransformerEncoderLayer(..., nhead=8)
FF_DIM = 2048          # nn.TransformerEncoderLayer default dim_feedforward
LN_EPS = 1e-5          # nn.LayerNorm default eps


def _layer_norm(x, gamma, beta):
    mu = jnp.mean(x, axis=-1, keepdims=True)
    xc = x - mu
    var = jnp.mean(xc * xc, axis=-1, keepdims=True)
    return xc * jax.lax.rsqrt(var + LN_EPS) * gamma + beta


def _make_kernel(batch, seq, hidden, n_heads):
    dh = hidden // n_heads
    scale = 1.0 / math.sqrt(dh)
    bf16 = jnp.bfloat16
    f32 = jnp.float32

    def kernel(x_ref, wqkv_ref, bqkv_ref, wo_ref, bo_ref,
               g1_ref, be1_ref, w1_ref, bff1_ref, w2_ref, bff2_ref,
               g2_ref, be2_ref, wp_ref, bp_ref, wmt_ref, bm_ref,
               o_ref, h_scr):
        layer = pl.program_id(0)

        # ---------- carry init (first layer only) ----------
        @pl.when(layer == 0)
        def _():
            h_scr[...] = x_ref[...]

        h = h_scr[...]                              # (B*S, H) f32
        h_bf = h.astype(bf16)                       # one cast per layer

        # ---------- multi-head self-attention ----------
        # wqkv_ref: (3, NH, H, dh) bf16 (head-major slabs, leading-axis indexed)
        # bqkv_ref: (3, NH, 1, dh) f32
        # wo_ref  : (NH, dh, H) bf16
        proj = [None] * batch                       # per-batch (S, H) accumulators
        for hd in range(n_heads):
            q = (jnp.dot(h_bf, wqkv_ref[0, hd], preferred_element_type=f32)
                 + bqkv_ref[0, hd]).astype(bf16)    # (B*S, dh)
            k = (jnp.dot(h_bf, wqkv_ref[1, hd], preferred_element_type=f32)
                 + bqkv_ref[1, hd]).astype(bf16)
            v = (jnp.dot(h_bf, wqkv_ref[2, hd], preferred_element_type=f32)
                 + bqkv_ref[2, hd]).astype(bf16)
            wo_h = wo_ref[hd]                       # (dh, H) bf16
            for b in range(batch):
                lo = b * seq                        # sublane-aligned (S % 8 == 0)
                qb = q[lo:lo + seq]                 # (S, dh)
                kb = k[lo:lo + seq]
                vb = v[lo:lo + seq]
                # scores: contract head dims directly (no materialized transpose)
                s = jax.lax.dot_general(
                    qb, kb, (((1,), (1,)), ((), ())),
                    preferred_element_type=f32) * scale            # (S, S)
                s = s - jnp.max(s, axis=-1, keepdims=True)
                p = jnp.exp(s)
                p = p * pl.reciprocal(jnp.sum(p, axis=-1, keepdims=True),
                                      approx=True)
                ctx = jnp.dot(p.astype(bf16), vb,
                              preferred_element_type=f32)           # (S, dh)
                contrib = jnp.dot(ctx.astype(bf16), wo_h,
                                  preferred_element_type=f32)       # (S, H)
                proj[b] = contrib if proj[b] is None else proj[b] + contrib

        attn = jnp.concatenate(proj, axis=0) + bo_ref[...]          # (B*S, H)
        h = _layer_norm(h + attn, g1_ref[...], be1_ref[...])

        # ---------- feed-forward (ReLU) ----------
        ff = jnp.dot(h.astype(bf16), w1_ref[...],
                     preferred_element_type=f32) + bff1_ref[...]    # (B*S, FF)
        ff = jnp.maximum(ff, 0.0)
        ff = jnp.dot(ff.astype(bf16), w2_ref[...],
                     preferred_element_type=f32) + bff2_ref[...]    # (B*S, H)
        h = _layer_norm(h + ff, g2_ref[...], be2_ref[...])

        h_scr[...] = h                              # carry to next layer

        # ---------- BertPooler + matcher (last layer only, batched) ----------
        @pl.when(layer == pl.num_programs(0) - 1)
        def _():
            tok0 = jnp.concatenate(
                [h[b * seq:b * seq + 1, :] for b in range(batch)], axis=0)  # (B, H)
            pooled = jnp.tanh(
                jnp.dot(tok0, wp_ref[...], preferred_element_type=f32) + bp_ref[...])
            o_ref[...] = (jnp.dot(pooled, wmt_ref[...], preferred_element_type=f32)
                          + bm_ref[...])                                     # (B, 1)

    return kernel


def self_attention_head(features, attention_mask, params):
    """features: (B, S, H) float32. attention_mask is accepted but unused, matching
    the reference forward (it is never passed to the encoder)."""
    del attention_mask
    B, S, H = features.shape
    dh = H // N_HEADS
    (wqkv, bqkv, wo, bo, g1, be1, w1, bff1, w2, bff2, g2, be2,
     wp, bp, wm, bm) = params

    # Wrapper-side layout plumbing (perf review): flatten batch into rows, repack the
    # QKV / out-proj weights into head-major leading-axis slabs, cast big matmul
    # operands to bf16, transpose the matcher weight for a single (B,H)@(H,1) matmul.
    x2 = features.reshape(B * S, H)
    wqkv_heads = (wqkv.reshape(N_LAYERS, H, 3, N_HEADS, dh)
                  .transpose(0, 2, 3, 1, 4).astype(jnp.bfloat16))   # (L, 3, NH, H, dh)
    bqkv_heads = bqkv.reshape(N_LAYERS, 3, N_HEADS, 1, dh)          # (L, 3, NH, 1, dh)
    wo_heads = wo.reshape(N_LAYERS, N_HEADS, dh, H).astype(jnp.bfloat16)
    w1_bf = w1.astype(jnp.bfloat16)
    w2_bf = w2.astype(jnp.bfloat16)
    wm_t = wm.T                                                     # (H, 1)

    def layer_spec(tail):
        # Per-layer block: leading layer dim squeezed, full extent in all other dims.
        return pl.BlockSpec((None,) + tail,
                            lambda l, _n=len(tail): (l,) + (0,) * _n)

    def resident(shape):
        # Constant block index -> fetched once, stays resident across the layer grid.
        return pl.BlockSpec(shape, lambda l, _n=len(shape): (0,) * _n)

    in_specs = [
        resident((B * S, H)),                                       # features (flattened)
        layer_spec((3, N_HEADS, H, dh)),                            # in-proj weight slabs
        layer_spec((3, N_HEADS, 1, dh)),                            # in-proj bias slabs
        layer_spec((N_HEADS, dh, H)),                               # out-proj weight slabs
        layer_spec((1, H)),                                         # out-proj bias
        layer_spec((1, H)), layer_spec((1, H)),                     # norm1 gamma/beta
        layer_spec((H, FF_DIM)), layer_spec((1, FF_DIM)),           # linear1
        layer_spec((FF_DIM, H)), layer_spec((1, H)),                # linear2
        layer_spec((1, H)), layer_spec((1, H)),                     # norm2 gamma/beta
        resident((H, H)), resident((1, H)),                         # pooler
        resident((H, 1)), resident((1, 1)),                         # matcher (W^T, b)
    ]

    kernel = _make_kernel(B, S, H, N_HEADS)
    out = pl.pallas_call(
        kernel,
        out_shape=jax.ShapeDtypeStruct((B, 1), jnp.float32),
        grid_spec=pltpu.PrefetchScalarGridSpec(
            num_scalar_prefetch=0,
            grid=(N_LAYERS,),                                       # one step per layer
            in_specs=in_specs,
            out_specs=pl.BlockSpec((B, 1), lambda l: (0, 0)),
            scratch_shapes=[pltpu.VMEM((B * S, H), jnp.float32)],   # layer carry
        ),
        compiler_params=pltpu.CompilerParams(
            dimension_semantics=("arbitrary",)),
    )(x2, wqkv_heads, bqkv_heads, wo_heads, bo, g1, be1, w1_bf, bff1,
      w2_bf, bff2, g2, be2, wp, bp, wm_t, bm)
    return out[:, 0]                                                # (B,)


def init_params(key, hidden, n_heads=N_HEADS, n_layers=N_LAYERS, ff_dim=FF_DIM):
    """Deterministic synthetic parameters (xavier-uniform weights, zero biases,
    identity layernorm)."""
    def xavier(k, shape):
        fan_in, fan_out = shape[-2], shape[-1]
        lim = math.sqrt(6.0 / (fan_in + fan_out))
        return jax.random.uniform(k, shape, jnp.float32, -lim, lim)

    ks = jax.random.split(key, 6)
    wqkv = xavier(ks[0], (n_layers, hidden, 3 * hidden))
    bqkv = jnp.zeros((n_layers, 1, 3 * hidden), jnp.float32)
    wo = xavier(ks[1], (n_layers, hidden, hidden))
    bo = jnp.zeros((n_layers, 1, hidden), jnp.float32)
    g1 = jnp.ones((n_layers, 1, hidden), jnp.float32)
    be1 = jnp.zeros((n_layers, 1, hidden), jnp.float32)
    w1 = xavier(ks[2], (n_layers, hidden, ff_dim))
    bff1 = jnp.zeros((n_layers, 1, ff_dim), jnp.float32)
    w2 = xavier(ks[3], (n_layers, ff_dim, hidden))
    bff2 = jnp.zeros((n_layers, 1, hidden), jnp.float32)
    g2 = jnp.ones((n_layers, 1, hidden), jnp.float32)
    be2 = jnp.zeros((n_layers, 1, hidden), jnp.float32)
    wp = xavier(ks[4], (hidden, hidden))
    bp = jnp.zeros((1, hidden), jnp.float32)
    wm = xavier(ks[5], (1, hidden))           # Linear(H, 1).weight, shape (1, H)
    bm = jnp.zeros((1, 1), jnp.float32)
    return (wqkv, bqkv, wo, bo, g1, be1, w1, bff1, w2, bff2, g2, be2, wp, bp, wm, bm)


if __name__ == "__main__":
    B, S, H = 2, 16, 32          # hidden=32, nhead=8 -> head_dim=4
    root = jax.random.PRNGKey(0)
    k_feat, k_param = jax.random.split(root)

    features = jax.random.normal(k_feat, (B, S, H), dtype=jnp.float32)
    attention_mask = jnp.ones((B, S), dtype=jnp.float32)   # unused (interface fidelity)
    params = init_params(k_param, H)

    cls = self_attention_head(features, attention_mask, params)
    cls = jax.block_until_ready(cls)
    assert cls.shape == (B,)
    print("KERNEL_OK")
</pallas_src>

<mosaic_0001>
module attributes {stable_mosaic.version = 11 : i64} {
  func.func @kernel(%arg0: i32, %arg1: memref<32x32xf32, #tpu.memory_space<vmem>>, %arg2: memref<1x3x8x32x4xbf16, #tpu.memory_space<vmem>>, %arg3: memref<1x3x8x1x4xf32, #tpu.memory_space<vmem>>, %arg4: memref<1x8x4x32xbf16, #tpu.memory_space<vmem>>, %arg5: memref<1x1x32xf32, #tpu.memory_space<vmem>>, %arg6: memref<1x1x32xf32, #tpu.memory_space<vmem>>, %arg7: memref<1x1x32xf32, #tpu.memory_space<vmem>>, %arg8: memref<1x32x2048xbf16, #tpu.memory_space<vmem>>, %arg9: memref<1x1x2048xf32, #tpu.memory_space<vmem>>, %arg10: memref<1x2048x32xbf16, #tpu.memory_space<vmem>>, %arg11: memref<1x1x32xf32, #tpu.memory_space<vmem>>, %arg12: memref<1x1x32xf32, #tpu.memory_space<vmem>>, %arg13: memref<1x1x32xf32, #tpu.memory_space<vmem>>, %arg14: memref<32x32xf32, #tpu.memory_space<vmem>>, %arg15: memref<1x32xf32, #tpu.memory_space<vmem>>, %arg16: memref<32x1xf32, #tpu.memory_space<vmem>>, %arg17: memref<1x1xf32, #tpu.memory_space<vmem>>, %arg18: memref<2x1xf32, #tpu.memory_space<vmem>>, %arg19: memref<32x32xf32, #tpu.memory_space<vmem>>) attributes {dimension_semantics = [#tpu.dimension_semantics<arbitrary>], iteration_bounds = array<i64: 2>, scalar_prefetch = 0 : i64, scratch_operands = 1 : i64, tpu.core_type = #tpu.core_type<tc>, window_params = [{pipeline_mode = #tpu.pipeline_mode<synchronous>, transform_indices = @transform_0, window_bounds = array<i64: 32, 32>}, {transform_indices = @transform_1, window_bounds = array<i64: 1, 3, 8, 32, 4>}, {transform_indices = @transform_2, window_bounds = array<i64: 1, 3, 8, 1, 4>}, {transform_indices = @transform_3, window_bounds = array<i64: 1, 8, 4, 32>}, {transform_indices = @transform_4, window_bounds = array<i64: 1, 1, 32>}, {transform_indices = @transform_5, window_bounds = array<i64: 1, 1, 32>}, {transform_indices = @transform_6, window_bounds = array<i64: 1, 1, 32>}, {transform_indices = @transform_7, window_bounds = array<i64: 1, 32, 2048>}, {transform_indices = @transform_8, window_bounds = array<i64: 1, 1, 2048>}, {transform_indices = @transform_9, window_bounds = array<i64: 1, 2048, 32>}, {transform_indices = @transform_10, window_bounds = array<i64: 1, 1, 32>}, {transform_indices = @transform_11, window_bounds = array<i64: 1, 1, 32>}, {transform_indices = @transform_12, window_bounds = array<i64: 1, 1, 32>}, {pipeline_mode = #tpu.pipeline_mode<synchronous>, transform_indices = @transform_13, window_bounds = array<i64: 32, 32>}, {pipeline_mode = #tpu.pipeline_mode<synchronous>, transform_indices = @transform_14, window_bounds = array<i64: 1, 32>}, {pipeline_mode = #tpu.pipeline_mode<synchronous>, transform_indices = @transform_15, window_bounds = array<i64: 32, 1>}, {pipeline_mode = #tpu.pipeline_mode<synchronous>, transform_indices = @transform_16, window_bounds = array<i64: 1, 1>}, {pipeline_mode = #tpu.pipeline_mode<synchronous>, transform_indices = @transform_17, window_bounds = array<i64: 2, 1>}]} {
    %c0_i32 = arith.constant 0 : i32
    %0 = arith.cmpi eq, %arg0, %c0_i32 : i32
    %1 = arith.extui %0 : i1 to i32
    %c0_i32_0 = arith.constant 0 : i32
    %2 = arith.cmpi ne, %1, %c0_i32_0 : i32
    scf.if %2 {
      %c0_429 = arith.constant 0 : index
      %c0_430 = arith.constant 0 : index
      %624 = vector.load %arg1[%c0_429, %c0_430] : memref<32x32xf32, #tpu.memory_space<vmem>>, vector<32x32xf32>
      %c0_431 = arith.constant 0 : index
      %c0_432 = arith.constant 0 : index
      %625 = vector.load %arg19[%c0_431, %c0_432] : memref<32x32xf32, #tpu.memory_space<vmem>>, vector<32x32xf32>
      tpu.vector_store %arg19[%c0_431, %c0_432], %624 {strides = array<i32>} : memref<32x32xf32, #tpu.memory_space<vmem>>, vector<32x32xf32>,
    } else {
    }
    %c0 = arith.constant 0 : index
    %c0_1 = arith.constant 0 : index
    %3 = vector.load %arg19[%c0, %c0_1] : memref<32x32xf32, #tpu.memory_space<vmem>>, vector<32x32xf32>
    %4 = arith.truncf %3 : vector<32x32xf32> to vector<32x32xbf16>
    %c0_2 = arith.constant 0 : index
    %c0_3 = arith.constant 0 : index
    %c0_4 = arith.constant 0 : index
    %c0_5 = arith.constant 0 : index
    %c0_6 = arith.constant 0 : index
    %5 = vector.load %arg2[%c0_2, %c0_3, %c0_4, %c0_5, %c0_6] : memref<1x3x8x32x4xbf16, #tpu.memory_space<vmem>>, vector<1x1x1x32x4xbf16>
    %6 = vector.shape_cast %5 : vector<1x1x1x32x4xbf16> to vector<32x4xbf16>
    %cst = arith.constant dense<0.000000e+00> : vector<32x4xf32>
    %7 = tpu.matmul %4, %6, %cst {dimension_numbers = #tpu.dot_dimension_numbers<[1], [0], [0], [1], [0, 0, 1, 1], [], []>} : vector<32x32xbf16>, vector<32x4xbf16>, vector<32x4xf32> -> vector<32x4xf32>
    %c0_7 = arith.constant 0 : index
    %c0_8 = arith.constant 0 : index
    %c0_9 = arith.constant 0 : index
    %c0_10 = arith.constant 0 : index
    %c0_11 = arith.constant 0 : index
    %8 = vector.load %arg3[%c0_7, %c0_8, %c0_9, %c0_10, %c0_11] : memref<1x3x8x1x4xf32, #tpu.memory_space<vmem>>, vector<1x1x1x1x4xf32>
    %9 = vector.shape_cast %8 : vector<1x1x1x1x4xf32> to vector<1x4xf32>
    %10 = vector.broadcast %9 : vector<1x4xf32> to vector<32x4xf32>
    %11 = arith.addf %7, %10 : vector<32x4xf32>
    %12 = arith.truncf %11 : vector<32x4xf32> to vector<32x4xbf16>
    %c0_12 = arith.constant 0 : index
    %c1 = arith.constant 1 : index
    %c0_13 = arith.constant 0 : index
    %c0_14 = arith.constant 0 : index
    %c0_15 = arith.constant 0 : index
    %13 = vector.load %arg2[%c0_12, %c1, %c0_13, %c0_14, %c0_15] : memref<1x3x8x32x4xbf16, #tpu.memory_space<vmem>>, vector<1x1x1x32x4xbf16>
    %14 = vector.shape_cast %13 : vector<1x1x1x32x4xbf16> to vector<32x4xbf16>
    %cst_16 = arith.constant dense<0.000000e+00> : vector<32x4xf32>
    %15 = tpu.matmul %4, %14, %cst_16 {dimension_numbers = #tpu.dot_dimension_numbers<[1], [0], [0], [1], [0, 0, 1, 1], [], []>} : vector<32x32xbf16>, vector<32x4xbf16>, vector<32x4xf32> -> vector<32x4xf32>
    %c0_17 = arith.constant 0 : index
    %c1_18 = arith.constant 1 : index
    %c0_19 = arith.constant 0 : index
    %c0_20 = arith.constant 0 : index
    %c0_21 = arith.constant 0 : index
    %16 = vector.load %arg3[%c0_17, %c1_18, %c0_19, %c0_20, %c0_21] : memref<1x3x8x1x4xf32, #tpu.memory_space<vmem>>, vector<1x1x1x1x4xf32>
    %17 = vector.shape_cast %16 : vector<1x1x1x1x4xf32> to vector<1x4xf32>
    %18 = vector.broadcast %17 : vector<1x4xf32> to vector<32x4xf32>
    %19 = arith.addf %15, %18 : vector<32x4xf32>
    %20 = arith.truncf %19 : vector<32x4xf32> to vector<32x4xbf16>
    %c0_22 = arith.constant 0 : index
    %c2 = arith.constant 2 : index
    %c0_23 = arith.constant 0 : index
    %c0_24 = arith.constant 0 : index
    %c0_25 = arith.constant 0 : index
    %21 = vector.load %arg2[%c0_22, %c2, %c0_23, %c0_24, %c0_25] : memref<1x3x8x32x4xbf16, #tpu.memory_space<vmem>>, vector<1x1x1x32x4xbf16>
    %22 = vector.shape_cast %21 : vector<1x1x1x32x4xbf16> to vector<32x4xbf16>
    %cst_26 = arith.constant dense<0.000000e+00> : vector<32x4xf32>
    %23 = tpu.matmul %4, %22, %cst_26 {dimension_numbers = #tpu.dot_dimension_numbers<[1], [0], [0], [1], [0, 0, 1, 1], [], []>} : vector<32x32xbf16>, vector<32x4xbf16>, vector<32x4xf32> -> vector<32x4xf32>
    %c0_27 = arith.constant 0 : index
    %c2_28 = arith.constant 2 : index
    %c0_29 = arith.constant 0 : index
    %c0_30 = arith.constant 0 : index
    %c0_31 = arith.constant 0 : index
    %24 = vector.load %arg3[%c0_27, %c2_28, %c0_29, %c0_30, %c0_31] : memref<1x3x8x1x4xf32, #tpu.memory_space<vmem>>, vector<1x1x1x1x4xf32>
    %25 = vector.shape_cast %24 : vector<1x1x1x1x4xf32> to vector<1x4xf32>
    %26 = vector.broadcast %25 : vector<1x4xf32> to vector<32x4xf32>
    %27 = arith.addf %23, %26 : vector<32x4xf32>
    %28 = arith.truncf %27 : vector<32x4xf32> to vector<32x4xbf16>
    %c0_32 = arith.constant 0 : index
    %c0_33 = arith.constant 0 : index
    %c0_34 = arith.constant 0 : index
    %c0_35 = arith.constant 0 : index
    %29 = vector.load %arg4[%c0_32, %c0_33, %c0_34, %c0_35] : memref<1x8x4x32xbf16, #tpu.memory_space<vmem>>, vector<1x1x4x32xbf16>
    %30 = vector.shape_cast %29 : vector<1x1x4x32xbf16> to vector<4x32xbf16>
    %31 = vector.extract_strided_slice %12 {offsets = [0, 0], sizes = [16, 4], strides = [1, 1]} : vector<32x4xbf16> to vector<16x4xbf16>
    %32 = vector.extract_strided_slice %20 {offsets = [0, 0], sizes = [16, 4], strides = [1, 1]} : vector<32x4xbf16> to vector<16x4xbf16>
    %33 = vector.extract_strided_slice %28 {offsets = [0, 0], sizes = [16, 4], strides = [1, 1]} : vector<32x4xbf16> to vector<16x4xbf16>
    %cst_36 = arith.constant dense<0.000000e+00> : vector<16x16xf32>
    %34 = tpu.matmul %31, %32, %cst_36 {dimension_numbers = #tpu.dot_dimension_numbers<[1], [1], [0], [0], [0, 0, 1, 0], [], []>} : vector<16x4xbf16>, vector<16x4xbf16>, vector<16x16xf32> -> vector<16x16xf32>
    %cst_37 = arith.constant 5.000000e-01 : f32
    %35 = vector.broadcast %cst_37 : f32 to vector<16x16xf32>
    %36 = arith.mulf %34, %35 : vector<16x16xf32>
    %cst_38 = arith.constant dense<0xFF800000> : vector<16xf32>
    %37 = vector.multi_reduction <maximumf>, %36, %cst_38 [1] : vector<16x16xf32> to vector<16xf32>
    %38 = vector.shape_cast %37 : vector<16xf32> to vector<16x1xf32>
    %39 = vector.broadcast %38 : vector<16x1xf32> to vector<16x16xf32>
    %40 = arith.subf %36, %39 : vector<16x16xf32>
    %41 = math.exp %40 : vector<16x16xf32>
    %cst_39 = arith.constant dense<0.000000e+00> : vector<16xf32>
    %42 = vector.multi_reduction <add>, %41, %cst_39 [1] : vector<16x16xf32> to vector<16xf32>
    %43 = vector.shape_cast %42 : vector<16xf32> to vector<16x1xf32>
    %44 = tpu.reciprocal %43 {approx = true} : vector<16x1xf32> -> vector<16x1xf32>
    %45 = vector.broadcast %44 : vector<16x1xf32> to vector<16x16xf32>
    %46 = arith.mulf %41, %45 : vector<16x16xf32>
    %47 = arith.truncf %46 : vector<16x16xf32> to vector<16x16xbf16>
    %cst_40 = arith.constant dense<0.000000e+00> : vector<16x4xf32>
    %48 = tpu.matmul %47, %33, %cst_40 {dimension_numbers = #tpu.dot_dimension_numbers<[1], [0], [0], [1], [0, 0, 1, 1], [], []>} : vector<16x16xbf16>, vector<16x4xbf16>, vector<16x4xf32> -> vector<16x4xf32>
    %49 = arith.truncf %48 : vector<16x4xf32> to vector<16x4xbf16>
    %cst_41 = arith.constant dense<0.000000e+00> : vector<16x32xf32>
    %50 = tpu.matmul %49, %30, %cst_41 {dimension_numbers = #tpu.dot_dimension_numbers<[1], [0], [0], [1], [0, 0, 1, 1], [], []>} : vector<16x4xbf16>, vector<4x32xbf16>, vector<16x32xf32> -> vector<16x32xf32>
    %51 = vector.extract_strided_slice %12 {offsets = [16, 0], sizes = [16, 4], strides = [1, 1]} : vector<32x4xbf16> to vector<16x4xbf16>
    %52 = vector.extract_strided_slice %20 {offsets = [16, 0], sizes = [16, 4], strides = [1, 1]} : vector<32x4xbf16> to vector<16x4xbf16>
    %53 = vector.extract_strided_slice %28 {offsets = [16, 0], sizes = [16, 4], strides = [1, 1]} : vector<32x4xbf16> to vector<16x4xbf16>
    %cst_42 = arith.constant dense<0.000000e+00> : vector<16x16xf32>
    %54 = tpu.matmul %51, %52, %cst_42 {dimension_numbers = #tpu.dot_dimension_numbers<[1], [1], [0], [0], [0, 0, 1, 0], [], []>} : vector<16x4xbf16>, vector<16x4xbf16>, vector<16x16xf32> -> vector<16x16xf32>
    %cst_43 = arith.constant 5.000000e-01 : f32
    %55 = vector.broadcast %cst_43 : f32 to vector<16x16xf32>
    %56 = arith.mulf %54, %55 : vector<16x16xf32>
    %cst_44 = arith.constant dense<0xFF800000> : vector<16xf32>
    %57 = vector.multi_reduction <maximumf>, %56, %cst_44 [1] : vector<16x16xf32> to vector<16xf32>
    %58 = vector.shape_cast %57 : vector<16xf32> to vector<16x1xf32>
    %59 = vector.broadcast %58 : vector<16x1xf32> to vector<16x16xf32>
    %60 = arith.subf %56, %59 : vector<16x16xf32>
    %61 = math.exp %60 : vector<16x16xf32>
    %cst_45 = arith.constant dense<0.000000e+00> : vector<16xf32>
    %62 = vector.multi_reduction <add>, %61, %cst_45 [1] : vector<16x16xf32> to vector<16xf32>
    %63 = vector.shape_cast %62 : vector<16xf32> to vector<16x1xf32>
    %64 = tpu.reciprocal %63 {approx = true} : vector<16x1xf32> -> vector<16x1xf32>
    %65 = vector.broadcast %64 : vector<16x1xf32> to vector<16x16xf32>
    %66 = arith.mulf %61, %65 : vector<16x16xf32>
    %67 = arith.truncf %66 : vector<16x16xf32> to vector<16x16xbf16>
    %cst_46 = arith.constant dense<0.000000e+00> : vector<16x4xf32>
    %68 = tpu.matmul %67, %53, %cst_46 {dimension_numbers = #tpu.dot_dimension_numbers<[1], [0], [0], [1], [0, 0, 1, 1], [], []>} : vector<16x16xbf16>, vector<16x4xbf16>, vector<16x4xf32> -> vector<16x4xf32>
    %69 = arith.truncf %68 : vector<16x4xf32> to vector<16x4xbf16>
    %cst_47 = arith.constant dense<0.000000e+00> : vector<16x32xf32>
    %70 = tpu.matmul %69, %30, %cst_47 {dimension_numbers = #tpu.dot_dimension_numbers<[1], [0], [0], [1], [0, 0, 1, 1], [], []>} : vector<16x4xbf16>, vector<4x32xbf16>, vector<16x32xf32> -> vector<16x32xf32>
    %c0_48 = arith.constant 0 : index
    %c0_49 = arith.constant 0 : index
    %c1_50 = arith.constant 1 : index
    %c0_51 = arith.constant 0 : index
    %c0_52 = arith.constant 0 : index
    %71 = vector.load %arg2[%c0_48, %c0_49, %c1_50, %c0_51, %c0_52] : memref<1x3x8x32x4xbf16, #tpu.memory_space<vmem>>, vector<1x1x1x32x4xbf16>
    %72 = vector.shape_cast %71 : vector<1x1x1x32x4xbf16> to vector<32x4xbf16>
    %cst_53 = arith.constant dense<0.000000e+00> : vector<32x4xf32>
    %73 = tpu.matmul %4, %72, %cst_53 {dimension_numbers = #tpu.dot_dimension_numbers<[1], [0], [0], [1], [0, 0, 1, 1], [], []>} : vector<32x32xbf16>, vector<32x4xbf16>, vector<32x4xf32> -> vector<32x4xf32>
    %c0_54 = arith.constant 0 : index
    %c0_55 = arith.constant 0 : index
    %c1_56 = arith.constant 1 : index
    %c0_57 = arith.constant 0 : index
    %c0_58 = arith.constant 0 : index
    %74 = vector.load %arg3[%c0_54, %c0_55, %c1_56, %c0_57, %c0_58] : memref<1x3x8x1x4xf32, #tpu.memory_space<vmem>>, vector<1x1x1x1x4xf32>
    %75 = vector.shape_cast %74 : vector<1x1x1x1x4xf32> to vector<1x4xf32>
    %76 = vector.broadcast %75 : vector<1x4xf32> to vector<32x4xf32>
    %77 = arith.addf %73, %76 : vector<32x4xf32>
    %78 = arith.truncf %77 : vector<32x4xf32> to vector<32x4xbf16>
    %c0_59 = arith.constant 0 : index
    %c1_60 = arith.constant 1 : index
    %c1_61 = arith.constant 1 : index
    %c0_62 = arith.constant 0 : index
    %c0_63 = arith.constant 0 : index
    %79 = vector.load %arg2[%c0_59, %c1_60, %c1_61, %c0_62, %c0_63] : memref<1x3x8x32x4xbf16, #tpu.memory_space<vmem>>, vector<1x1x1x32x4xbf16>
    %80 = vector.shape_cast %79 : vector<1x1x1x32x4xbf16> to vector<32x4xbf16>
    %cst_64 = arith.constant dense<0.000000e+00> : vector<32x4xf32>
    %81 = tpu.matmul %4, %80, %cst_64 {dimension_numbers = #tpu.dot_dimension_numbers<[1], [0], [0], [1], [0, 0, 1, 1], [], []>} : vector<32x32xbf16>, vector<32x4xbf16>, vector<32x4xf32> -> vector<32x4xf32>
    %c0_65 = arith.constant 0 : index
    %c1_66 = arith.constant 1 : index
    %c1_67 = arith.constant 1 : index
    %c0_68 = arith.constant 0 : index
    %c0_69 = arith.constant 0 : index
    %82 = vector.load %arg3[%c0_65, %c1_66, %c1_67, %c0_68, %c0_69] : memref<1x3x8x1x4xf32, #tpu.memory_space<vmem>>, vector<1x1x1x1x4xf32>
    %83 = vector.shape_cast %82 : vector<1x1x1x1x4xf32> to vector<1x4xf32>
    %84 = vector.broadcast %83 : vector<1x4xf32> to vector<32x4xf32>
    %85 = arith.addf %81, %84 : vector<32x4xf32>
    %86 = arith.truncf %85 : vector<32x4xf32> to vector<32x4xbf16>
    %c0_70 = arith.constant 0 : index
    %c2_71 = arith.constant 2 : index
    %c1_72 = arith.constant 1 : index
    %c0_73 = arith.constant 0 : index
    %c0_74 = arith.constant 0 : index
    %87 = vector.load %arg2[%c0_70, %c2_71, %c1_72, %c0_73, %c0_74] : memref<1x3x8x32x4xbf16, #tpu.memory_space<vmem>>, vector<1x1x1x32x4xbf16>
    %88 = vector.shape_cast %87 : vector<1x1x1x32x4xbf16> to vector<32x4xbf16>
    %cst_75 = arith.constant dense<0.000000e+00> : vector<32x4xf32>
    %89 = tpu.matmul %4, %88, %cst_75 {dimension_numbers = #tpu.dot_dimension_numbers<[1], [0], [0], [1], [0, 0, 1, 1], [], []>} : vector<32x32xbf16>, vector<32x4xbf16>, vector<32x4xf32> -> vector<32x4xf32>
    %c0_76 = arith.constant 0 : index
    %c2_77 = arith.constant 2 : index
    %c1_78 = arith.constant 1 : index
    %c0_79 = arith.constant 0 : index
    %c0_80 = arith.constant 0 : index
    %90 = vector.load %arg3[%c0_76, %c2_77, %c1_78, %c0_79, %c0_80] : memref<1x3x8x1x4xf32, #tpu.memory_space<vmem>>, vector<1x1x1x1x4xf32>
    %91 = vector.shape_cast %90 : vector<1x1x1x1x4xf32> to vector<1x4xf32>
    %92 = vector.broadcast %91 : vector<1x4xf32> to vector<32x4xf32>
    %93 = arith.addf %89, %92 : vector<32x4xf32>
    %94 = arith.truncf %93 : vector<32x4xf32> to vector<32x4xbf16>
    %c0_81 = arith.constant 0 : index
    %c1_82 = arith.constant 1 : index
    %c0_83 = arith.constant 0 : index
    %c0_84 = arith.constant 0 : index
    %95 = vector.load %arg4[%c0_81, %c1_82, %c0_83, %c0_84] : memref<1x8x4x32xbf16, #tpu.memory_space<vmem>>, vector<1x1x4x32xbf16>
    %96 = vector.shape_cast %95 : vector<1x1x4x32xbf16> to vector<4x32xbf16>
    %97 = vector.extract_strided_slice %78 {offsets = [0, 0], sizes = [16, 4], strides = [1, 1]} : vector<32x4xbf16> to vector<16x4xbf16>
    %98 = vector.extract_strided_slice %86 {offsets = [0, 0], sizes = [16, 4], strides = [1, 1]} : vector<32x4xbf16> to vector<16x4xbf16>
    %99 = vector.extract_strided_slice %94 {offsets = [0, 0], sizes = [16, 4], strides = [1, 1]} : vector<32x4xbf16> to vector<16x4xbf16>
    %cst_85 = arith.constant dense<0.000000e+00> : vector<16x16xf32>
    %100 = tpu.matmul %97, %98, %cst_85 {dimension_numbers = #tpu.dot_dimension_numbers<[1], [1], [0], [0], [0, 0, 1, 0], [], []>} : vector<16x4xbf16>, vector<16x4xbf16>, vector<16x16xf32> -> vector<16x16xf32>
    %cst_86 = arith.constant 5.000000e-01 : f32
    %101 = vector.broadcast %cst_86 : f32 to vector<16x16xf32>
    %102 = arith.mulf %100, %101 : vector<16x16xf32>
    %cst_87 = arith.constant dense<0xFF800000> : vector<16xf32>
    %103 = vector.multi_reduction <maximumf>, %102, %cst_87 [1] : vector<16x16xf32> to vector<16xf32>
    %104 = vector.shape_cast %103 : vector<16xf32> to vector<16x1xf32>
    %105 = vector.broadcast %104 : vector<16x1xf32> to vector<16x16xf32>
    %106 = arith.subf %102, %105 : vector<16x16xf32>
    %107 = math.exp %106 : vector<16x16xf32>
    %cst_88 = arith.constant dense<0.000000e+00> : vector<16xf32>
    %108 = vector.multi_reduction <add>, %107, %cst_88 [1] : vector<16x16xf32> to vector<16xf32>
    %109 = vector.shape_cast %108 : vector<16xf32> to vector<16x1xf32>
    %110 = tpu.reciprocal %109 {approx = true} : vector<16x1xf32> -> vector<16x1xf32>
    %111 = vector.broadcast %110 : vector<16x1xf32> to vector<16x16xf32>
    %112 = arith.mulf %107, %111 : vector<16x16xf32>
    %113 = arith.truncf %112 : vector<16x16xf32> to vector<16x16xbf16>
    %cst_89 = arith.constant dense<0.000000e+00> : vector<16x4xf32>
    %114 = tpu.matmul %113, %99, %cst_89 {dimension_numbers = #tpu.dot_dimension_numbers<[1], [0], [0], [1], [0, 0, 1, 1], [], []>} : vector<16x16xbf16>, vector<16x4xbf16>, vector<16x4xf32> -> vector<16x4xf32>
    %115 = arith.truncf %114 : vector<16x4xf32> to vector<16x4xbf16>
    %cst_90 = arith.constant dense<0.000000e+00> : vector<16x32xf32>
    %116 = tpu.matmul %115, %96, %cst_90 {dimension_numbers = #tpu.dot_dimension_numbers<[1], [0], [0], [1], [0, 0, 1, 1], [], []>} : vector<16x4xbf16>, vector<4x32xbf16>, vector<16x32xf32> -> vector<16x32xf32>
    %117 = arith.addf %50, %116 : vector<16x32xf32>
    %118 = vector.extract_strided_slice %78 {offsets = [16, 0], sizes = [16, 4], strides = [1, 1]} : vector<32x4xbf16> to vector<16x4xbf16>
    %119 = vector.extract_strided_slice %86 {offsets = [16, 0], sizes = [16, 4], strides = [1, 1]} : vector<32x4xbf16> to vector<16x4xbf16>
    %120 = vector.extract_strided_slice %94 {offsets = [16, 0], sizes = [16, 4], strides = [1, 1]} : vector<32x4xbf16> to vector<16x4xbf16>
    %cst_91 = arith.constant dense<0.000000e+00> : vector<16x16xf32>
    %121 = tpu.matmul %118, %119, %cst_91 {dimension_numbers = #tpu.dot_dimension_numbers<[1], [1], [0], [0], [0, 0, 1, 0], [], []>} : vector<16x4xbf16>, vector<16x4xbf16>, vector<16x16xf32> -> vector<16x16xf32>
    %cst_92 = arith.constant 5.000000e-01 : f32
    %122 = vector.broadcast %cst_92 : f32 to vector<16x16xf32>
    %123 = arith.mulf %121, %122 : vector<16x16xf32>
    %cst_93 = arith.constant dense<0xFF800000> : vector<16xf32>
    %124 = vector.multi_reduction <maximumf>, %123, %cst_93 [1] : vector<16x16xf32> to vector<16xf32>
    %125 = vector.shape_cast %124 : vector<16xf32> to vector<16x1xf32>
    %126 = vector.broadcast %125 : vector<16x1xf32> to vector<16x16xf32>
    %127 = arith.subf %123, %126 : vector<16x16xf32>
    %128 = math.exp %127 : vector<16x16xf32>
    %cst_94 = arith.constant dense<0.000000e+00> : vector<16xf32>
    %129 = vector.multi_reduction <add>, %128, %cst_94 [1] : vector<16x16xf32> to vector<16xf32>
    %130 = vector.shape_cast %129 : vector<16xf32> to vector<16x1xf32>
    %131 = tpu.reciprocal %130 {approx = true} : vector<16x1xf32> -> vector<16x1xf32>
    %132 = vector.broadcast %131 : vector<16x1xf32> to vector<16x16xf32>
    %133 = arith.mulf %128, %132 : vector<16x16xf32>
    %134 = arith.truncf %133 : vector<16x16xf32> to vector<16x16xbf16>
    %cst_95 = arith.constant dense<0.000000e+00> : vector<16x4xf32>
    %135 = tpu.matmul %134, %120, %cst_95 {dimension_numbers = #tpu.dot_dimension_numbers<[1], [0], [0], [1], [0, 0, 1, 1], [], []>} : vector<16x16xbf16>, vector<16x4xbf16>, vector<16x4xf32> -> vector<16x4xf32>
    %136 = arith.truncf %135 : vector<16x4xf32> to vector<16x4xbf16>
    %cst_96 = arith.constant dense<0.000000e+00> : vector<16x32xf32>
    %137 = tpu.matmul %136, %96, %cst_96 {dimension_numbers = #tpu.dot_dimension_numbers<[1], [0], [0], [1], [0, 0, 1, 1], [], []>} : vector<16x4xbf16>, vector<4x32xbf16>, vector<16x32xf32> -> vector<16x32xf32>
    %138 = arith.addf %70, %137 : vector<16x32xf32>
    %c0_97 = arith.constant 0 : index
    %c0_98 = arith.constant 0 : index
    %c2_99 = arith.constant 2 : index
    %c0_100 = arith.constant 0 : index
    %c0_101 = arith.constant 0 : index
    %139 = vector.load %arg2[%c0_97, %c0_98, %c2_99, %c0_100, %c0_101] : memref<1x3x8x32x4xbf16, #tpu.memory_space<vmem>>, vector<1x1x1x32x4xbf16>
    %140 = vector.shape_cast %139 : vector<1x1x1x32x4xbf16> to vector<32x4xbf16>
    %cst_102 = arith.constant dense<0.000000e+00> : vector<32x4xf32>
    %141 = tpu.matmul %4, %140, %cst_102 {dimension_numbers = #tpu.dot_dimension_numbers<[1], [0], [0], [1], [0, 0, 1, 1], [], []>} : vector<32x32xbf16>, vector<32x4xbf16>, vector<32x4xf32> -> vector<32x4xf32>
    %c0_103 = arith.constant 0 : index
    %c0_104 = arith.constant 0 : index
    %c2_105 = arith.constant 2 : index
    %c0_106 = arith.constant 0 : index
    %c0_107 = arith.constant 0 : index
    %142 = vector.load %arg3[%c0_103, %c0_104, %c2_105, %c0_106, %c0_107] : memref<1x3x8x1x4xf32, #tpu.memory_space<vmem>>, vector<1x1x1x1x4xf32>
    %143 = vector.shape_cast %142 : vector<1x1x1x1x4xf32> to vector<1x4xf32>
    %144 = vector.broadcast %143 : vector<1x4xf32> to vector<32x4xf32>
    %145 = arith.addf %141, %144 : vector<32x4xf32>
    %146 = arith.truncf %145 : vector<32x4xf32> to vector<32x4xbf16>
    %c0_108 = arith.constant 0 : index
    %c1_109 = arith.constant 1 : index
    %c2_110 = arith.constant 2 : index
    %c0_111 = arith.constant 0 : index
    %c0_112 = arith.constant 0 : index
    %147 = vector.load %arg2[%c0_108, %c1_109, %c2_110, %c0_111, %c0_112] : memref<1x3x8x32x4xbf16, #tpu.memory_space<vmem>>, vector<1x1x1x32x4xbf16>
    %148 = vector.shape_cast %147 : vector<1x1x1x32x4xbf16> to vector<32x4xbf16>
    %cst_113 = arith.constant dense<0.000000e+00> : vector<32x4xf32>
    %149 = tpu.matmul %4, %148, %cst_113 {dimension_numbers = #tpu.dot_dimension_numbers<[1], [0], [0], [1], [0, 0, 1, 1], [], []>} : vector<32x32xbf16>, vector<32x4xbf16>, vector<32x4xf32> -> vector<32x4xf32>
    %c0_114 = arith.constant 0 : index
    %c1_115 = arith.constant 1 : index
    %c2_116 = arith.constant 2 : index
    %c0_117 = arith.constant 0 : index
    %c0_118 = arith.constant 0 : index
    %150 = vector.load %arg3[%c0_114, %c1_115, %c2_116, %c0_117, %c0_118] : memref<1x3x8x1x4xf32, #tpu.memory_space<vmem>>, vector<1x1x1x1x4xf32>
    %151 = vector.shape_cast %150 : vector<1x1x1x1x4xf32> to vector<1x4xf32>
    %152 = vector.broadcast %151 : vector<1x4xf32> to vector<32x4xf32>
    %153 = arith.addf %149, %152 : vector<32x4xf32>
    %154 = arith.truncf %153 : vector<32x4xf32> to vector<32x4xbf16>
    %c0_119 = arith.constant 0 : index
    %c2_120 = arith.constant 2 : index
    %c2_121 = arith.constant 2 : index
    %c0_122 = arith.constant 0 : index
    %c0_123 = arith.constant 0 : index
    %155 = vector.load %arg2[%c0_119, %c2_120, %c2_121, %c0_122, %c0_123] : memref<1x3x8x32x4xbf16, #tpu.memory_space<vmem>>, vector<1x1x1x32x4xbf16>
    %156 = vector.shape_cast %155 : vector<1x1x1x32x4xbf16> to vector<32x4xbf16>
    %cst_124 = arith.constant dense<0.000000e+00> : vector<32x4xf32>
    %157 = tpu.matmul %4, %156, %cst_124 {dimension_numbers = #tpu.dot_dimension_numbers<[1], [0], [0], [1], [0, 0, 1, 1], [], []>} : vector<32x32xbf16>, vector<32x4xbf16>, vector<32x4xf32> -> vector<32x4xf32>
    %c0_125 = arith.constant 0 : index
    %c2_126 = arith.constant 2 : index
    %c2_127 = arith.constant 2 : index
    %c0_128 = arith.constant 0 : index
    %c0_129 = arith.constant 0 : index
    %158 = vector.load %arg3[%c0_125, %c2_126, %c2_127, %c0_128, %c0_129] : memref<1x3x8x1x4xf32, #tpu.memory_space<vmem>>, vector<1x1x1x1x4xf32>
    %159 = vector.shape_cast %158 : vector<1x1x1x1x4xf32> to vector<1x4xf32>
    %160 = vector.broadcast %159 : vector<1x4xf32> to vector<32x4xf32>
    %161 = arith.addf %157, %160 : vector<32x4xf32>
    %162 = arith.truncf %161 : vector<32x4xf32> to vector<32x4xbf16>
    %c0_130 = arith.constant 0 : index
    %c2_131 = arith.constant 2 : index
    %c0_132 = arith.constant 0 : index
    %c0_133 = arith.constant 0 : index
    %163 = vector.load %arg4[%c0_130, %c2_131, %c0_132, %c0_133] : memref<1x8x4x32xbf16, #tpu.memory_space<vmem>>, vector<1x1x4x32xbf16>
    %164 = vector.shape_cast %163 : vector<1x1x4x32xbf16> to vector<4x32xbf16>
    %165 = vector.extract_strided_slice %146 {offsets = [0, 0], sizes = [16, 4], strides = [1, 1]} : vector<32x4xbf16> to vector<16x4xbf16>
    %166 = vector.extract_strided_slice %154 {offsets = [0, 0], sizes = [16, 4], strides = [1, 1]} : vector<32x4xbf16> to vector<16x4xbf16>
    %167 = vector.extract_strided_slice %162 {offsets = [0, 0], sizes = [16, 4], strides = [1, 1]} : vector<32x4xbf16> to vector<16x4xbf16>
    %cst_134 = arith.constant dense<0.000000e+00> : vector<16x16xf32>
    %168 = tpu.matmul %165, %166, %cst_134 {dimension_numbers = #tpu.dot_dimension_numbers<[1], [1], [0], [0], [0, 0, 1, 0], [], []>} : vector<16x4xbf16>, vector<16x4xbf16>, vector<16x16xf32> -> vector<16x16xf32>
    %cst_135 = arith.constant 5.000000e-01 : f32
    %169 = vector.broadcast %cst_135 : f32 to vector<16x16xf32>
    %170 = arith.mulf %168, %169 : vector<16x16xf32>
    %cst_136 = arith.constant dense<0xFF800000> : vector<16xf32>
    %171 = vector.multi_reduction <maximumf>, %170, %cst_136 [1] : vector<16x16xf32> to vector<16xf32>
    %172 = vector.shape_cast %171 : vector<16xf32> to vector<16x1xf32>
    %173 = vector.broadcast %172 : vector<16x1xf32> to vector<16x16xf32>
    %174 = arith.subf %170, %173 : vector<16x16xf32>
    %175 = math.exp %174 : vector<16x16xf32>
    %cst_137 = arith.constant dense<0.000000e+00> : vector<16xf32>
    %176 = vector.multi_reduction <add>, %175, %cst_137 [1] : vector<16x16xf32> to vector<16xf32>
    %177 = vector.shape_cast %176 : vector<16xf32> to vector<16x1xf32>
    %178 = tpu.reciprocal %177 {approx = true} : vector<16x1xf32> -> vector<16x1xf32>
    %179 = vector.broadcast %178 : vector<16x1xf32> to vector<16x16xf32>
    %180 = arith.mulf %175, %179 : vector<16x16xf32>
    %181 = arith.truncf %180 : vector<16x16xf32> to vector<16x16xbf16>
    %cst_138 = arith.constant dense<0.000000e+00> : vector<16x4xf32>
    %182 = tpu.matmul %181, %167, %cst_138 {dimension_numbers = #tpu.dot_dimension_numbers<[1], [0], [0], [1], [0, 0, 1, 1], [], []>} : vector<16x16xbf16>, vector<16x4xbf16>, vector<16x4xf32> -> vector<16x4xf32>
    %183 = arith.truncf %182 : vector<16x4xf32> to vector<16x4xbf16>
    %cst_139 = arith.constant dense<0.000000e+00> : vector<16x32xf32>
    %184 = tpu.matmul %183, %164, %cst_139 {dimension_numbers = #tpu.dot_dimension_numbers<[1], [0], [0], [1], [0, 0, 1, 1], [], []>} : vector<16x4xbf16>, vector<4x32xbf16>, vector<16x32xf32> -> vector<16x32xf32>
    %185 = arith.addf %117, %184 : vector<16x32xf32>
    %186 = vector.extract_strided_slice %146 {offsets = [16, 0], sizes = [16, 4], strides = [1, 1]} : vector<32x4xbf16> to vector<16x4xbf16>
    %187 = vector.extract_strided_slice %154 {offsets = [16, 0], sizes = [16, 4], strides = [1, 1]} : vector<32x4xbf16> to vector<16x4xbf16>
    %188 = vector.extract_strided_slice %162 {offsets = [16, 0], sizes = [16, 4], strides = [1, 1]} : vector<32x4xbf16> to vector<16x4xbf16>
    %cst_140 = arith.constant dense<0.000000e+00> : vector<16x16xf32>
    %189 = tpu.matmul %186, %187, %cst_140 {dimension_numbers = #tpu.dot_dimension_numbers<[1], [1], [0], [0], [0, 0, 1, 0], [], []>} : vector<16x4xbf16>, vector<16x4xbf16>, vector<16x16xf32> -> vector<16x16xf32>
    %cst_141 = arith.constant 5.000000e-01 : f32
    %190 = vector.broadcast %cst_141 : f32 to vector<16x16xf32>
    %191 = arith.mulf %189, %190 : vector<16x16xf32>
    %cst_142 = arith.constant dense<0xFF800000> : vector<16xf32>
    %192 = vector.multi_reduction <maximumf>, %191, %cst_142 [1] : vector<16x16xf32> to vector<16xf32>
    %193 = vector.shape_cast %192 : vector<16xf32> to vector<16x1xf32>
    %194 = vector.broadcast %193 : vector<16x1xf32> to vector<16x16xf32>
    %195 = arith.subf %191, %194 : vector<16x16xf32>
    %196 = math.exp %195 : vector<16x16xf32>
    %cst_143 = arith.constant dense<0.000000e+00> : vector<16xf32>
    %197 = vector.multi_reduction <add>, %196, %cst_143 [1] : vector<16x16xf32> to vector<16xf32>
    %198 = vector.shape_cast %197 : vector<16xf32> to vector<16x1xf32>
    %199 = tpu.reciprocal %198 {approx = true} : vector<16x1xf32> -> vector<16x1xf32>
    %200 = vector.broadcast %199 : vector<16x1xf32> to vector<16x16xf32>
    %201 = arith.mulf %196, %200 : vector<16x16xf32>
    %202 = arith.truncf %201 : vector<16x16xf32> to vector<16x16xbf16>
    %cst_144 = arith.constant dense<0.000000e+00> : vector<16x4xf32>
    %203 = tpu.matmul %202, %188, %cst_144 {dimension_numbers = #tpu.dot_dimension_numbers<[1], [0], [0], [1], [0, 0, 1, 1], [], []>} : vector<16x16xbf16>, vector<16x4xbf16>, vector<16x4xf32> -> vector<16x4xf32>
    %204 = arith.truncf %203 : vector<16x4xf32> to vector<16x4xbf16>
    %cst_145 = arith.constant dense<0.000000e+00> : vector<16x32xf32>
    %205 = tpu.matmul %204, %164, %cst_145 {dimension_numbers = #tpu.dot_dimension_numbers<[1], [0], [0], [1], [0, 0, 1, 1], [], []>} : vector<16x4xbf16>, vector<4x32xbf16>, vector<16x32xf32> -> vector<16x32xf32>
    %206 = arith.addf %138, %205 : vector<16x32xf32>
    %c0_146 = arith.constant 0 : index
    %c0_147 = arith.constant 0 : index
    %c3 = arith.constant 3 : index
    %c0_148 = arith.constant 0 : index
    %c0_149 = arith.constant 0 : index
    %207 = vector.load %arg2[%c0_146, %c0_147, %c3, %c0_148, %c0_149] : memref<1x3x8x32x4xbf16, #tpu.memory_space<vmem>>, vector<1x1x1x32x4xbf16>
    %208 = vector.shape_cast %207 : vector<1x1x1x32x4xbf16> to vector<32x4xbf16>
    %cst_150 = arith.constant dense<0.000000e+00> : vector<32x4xf32>
    %209 = tpu.matmul %4, %208, %cst_150 {dimension_numbers = #tpu.dot_dimension_numbers<[1], [0], [0], [1], [0, 0, 1, 1], [], []>} : vector<32x32xbf16>, vector<32x4xbf16>, vector<32x4xf32> -> vector<32x4xf32>
    %c0_151 = arith.constant 0 : index
    %c0_152 = arith.constant 0 : index
    %c3_153 = arith.constant 3 : index
    %c0_154 = arith.constant 0 : index
    %c0_155 = arith.constant 0 : index
    %210 = vector.load %arg3[%c0_151, %c0_152, %c3_153, %c0_154, %c0_155] : memref<1x3x8x1x4xf32, #tpu.memory_space<vmem>>, vector<1x1x1x1x4xf32>
    %211 = vector.shape_cast %210 : vector<1x1x1x1x4xf32> to vector<1x4xf32>
    %212 = vector.broadcast %211 : vector<1x4xf32> to vector<32x4xf32>
    %213 = arith.addf %209, %212 : vector<32x4xf32>
    %214 = arith.truncf %213 : vector<32x4xf32> to vector<32x4xbf16>
    %c0_156 = arith.constant 0 : index
    %c1_157 = arith.constant 1 : index
    %c3_158 = arith.constant 3 : index
    %c0_159 = arith.constant 0 : index
    %c0_160 = arith.constant 0 : index
    %215 = vector.load %arg2[%c0_156, %c1_157, %c3_158, %c0_159, %c0_160] : memref<1x3x8x32x4xbf16, #tpu.memory_space<vmem>>, vector<1x1x1x32x4xbf16>
    %216 = vector.shape_cast %215 : vector<1x1x1x32x4xbf16> to vector<32x4xbf16>
    %cst_161 = arith.constant dense<0.000000e+00> : vector<32x4xf32>
    %217 = tpu.matmul %4, %216, %cst_161 {dimension_numbers = #tpu.dot_dimension_numbers<[1], [0], [0], [1], [0, 0, 1, 1], [], []>} : vector<32x32xbf16>, vector<32x4xbf16>, vector<32x4xf32> -> vector<32x4xf32>
    %c0_162 = arith.constant 0 : index
    %c1_163 = arith.constant 1 : index
    %c3_164 = arith.constant 3 : index
    %c0_165 = arith.constant 0 : index
    %c0_166 = arith.constant 0 : index
    %218 = vector.load %arg3[%c0_162, %c1_163, %c3_164, %c0_165, %c0_166] : memref<1x3x8x1x4xf32, #tpu.memory_space<vmem>>, vector<1x1x1x1x4xf32>
    %219 = vector.shape_cast %218 : vector<1x1x1x1x4xf32> to vector<1x4xf32>
    %220 = vector.broadcast %219 : vector<1x4xf32> to vector<32x4xf32>
    %221 = arith.addf %217, %220 : vector<32x4xf32>
    %222 = arith.truncf %221 : vector<32x4xf32> to vector<32x4xbf16>
    %c0_167 = arith.constant 0 : index
    %c2_168 = arith.constant 2 : index
    %c3_169 = arith.constant 3 : index
    %c0_170 = arith.constant 0 : index
    %c0_171 = arith.constant 0 : index
    %223 = vector.load %arg2[%c0_167, %c2_168, %c3_169, %c0_170, %c0_171] : memref<1x3x8x32x4xbf16, #tpu.memory_space<vmem>>, vector<1x1x1x32x4xbf16>
    %224 = vector.shape_cast %223 : vector<1x1x1x32x4xbf16> to vector<32x4xbf16>
    %cst_172 = arith.constant dense<0.000000e+00> : vector<32x4xf32>
    %225 = tpu.matmul %4, %224, %cst_172 {dimension_numbers = #tpu.dot_dimension_numbers<[1], [0], [0], [1], [0, 0, 1, 1], [], []>} : vector<32x32xbf16>, vector<32x4xbf16>, vector<32x4xf32> -> vector<32x4xf32>
    %c0_173 = arith.constant 0 : index
    %c2_174 = arith.constant 2 : index
    %c3_175 = arith.constant 3 : index
    %c0_176 = arith.constant 0 : index
    %c0_177 = arith.constant 0 : index
    %226 = vector.load %arg3[%c0_173, %c2_174, %c3_175, %c0_176, %c0_177] : memref<1x3x8x1x4xf32, #tpu.memory_space<vmem>>, vector<1x1x1x1x4xf32>
    %227 = vector.shape_cast %226 : vector<1x1x1x1x4xf32> to vector<1x4xf32>
    %228 = vector.broadcast %227 : vector<1x4xf32> to vector<32x4xf32>
    %229 = arith.addf %225, %228 : vector<32x4xf32>
    %230 = arith.truncf %229 : vector<32x4xf32> to vector<32x4xbf16>
    %c0_178 = arith.constant 0 : index
    %c3_179 = arith.constant 3 : index
    %c0_180 = arith.constant 0 : index
    %c0_181 = arith.constant 0 : index
    %231 = vector.load %arg4[%c0_178, %c3_179, %c0_180, %c0_181] : memref<1x8x4x32xbf16, #tpu.memory_space<vmem>>, vector<1x1x4x32xbf16>
    %232 = vector.shape_cast %231 : vector<1x1x4x32xbf16> to vector<4x32xbf16>
    %233 = vector.extract_strided_slice %214 {offsets = [0, 0], sizes = [16, 4], strides = [1, 1]} : vector<32x4xbf16> to vector<16x4xbf16>
    %234 = vector.extract_strided_slice %222 {offsets = [0, 0], sizes = [16, 4], strides = [1, 1]} : vector<32x4xbf16> to vector<16x4xbf16>
    %235 = vector.extract_strided_slice %230 {offsets = [0, 0], sizes = [16, 4], strides = [1, 1]} : vector<32x4xbf16> to vector<16x4xbf16>
    %cst_182 = arith.constant dense<0.000000e+00> : vector<16x16xf32>
    %236 = tpu.matmul %233, %234, %cst_182 {dimension_numbers = #tpu.dot_dimension_numbers<[1], [1], [0], [0], [0, 0, 1, 0], [], []>} : vector<16x4xbf16>, vector<16x4xbf16>, vector<16x16xf32> -> vector<16x16xf32>
    %cst_183 = arith.constant 5.000000e-01 : f32
    %237 = vector.broadcast %cst_183 : f32 to vector<16x16xf32>
    %238 = arith.mulf %236, %237 : vector<16x16xf32>
    %cst_184 = arith.constant dense<0xFF800000> : vector<16xf32>
    %239 = vector.multi_reduction <maximumf>, %238, %cst_184 [1] : vector<16x16xf32> to vector<16xf32>
    %240 = vector.shape_cast %239 : vector<16xf32> to vector<16x1xf32>
    %241 = vector.broadcast %240 : vector<16x1xf32> to vector<16x16xf32>
    %242 = arith.subf %238, %241 : vector<16x16xf32>
    %243 = math.exp %242 : vector<16x16xf32>
    %cst_185 = arith.constant dense<0.000000e+00> : vector<16xf32>
    %244 = vector.multi_reduction <add>, %243, %cst_185 [1] : vector<16x16xf32> to vector<16xf32>
    %245 = vector.shape_cast %244 : vector<16xf32> to vector<16x1xf32>
    %246 = tpu.reciprocal %245 {approx = true} : vector<16x1xf32> -> vector<16x1xf32>
    %247 = vector.broadcast %246 : vector<16x1xf32> to vector<16x16xf32>
    %248 = arith.mulf %243, %247 : vector<16x16xf32>
    %249 = arith.truncf %248 : vector<16x16xf32> to vector<16x16xbf16>
    %cst_186 = arith.constant dense<0.000000e+00> : vector<16x4xf32>
    %250 = tpu.matmul %249, %235, %cst_186 {dimension_numbers = #tpu.dot_dimension_numbers<[1], [0], [0], [1], [0, 0, 1, 1], [], []>} : vector<16x16xbf16>, vector<16x4xbf16>, vector<16x4xf32> -> vector<16x4xf32>
    %251 = arith.truncf %250 : vector<16x4xf32> to vector<16x4xbf16>
    %cst_187 = arith.constant dense<0.000000e+00> : vector<16x32xf32>
    %252 = tpu.matmul %251, %232, %cst_187 {dimension_numbers = #tpu.dot_dimension_numbers<[1], [0], [0], [1], [0, 0, 1, 1], [], []>} : vector<16x4xbf16>, vector<4x32xbf16>, vector<16x32xf32> -> vector<16x32xf32>
    %253 = arith.addf %185, %252 : vector<16x32xf32>
    %254 = vector.extract_strided_slice %214 {offsets = [16, 0], sizes = [16, 4], strides = [1, 1]} : vector<32x4xbf16> to vector<16x4xbf16>
    %255 = vector.extract_strided_slice %222 {offsets = [16, 0], sizes = [16, 4], strides = [1, 1]} : vector<32x4xbf16> to vector<16x4xbf16>
    %256 = vector.extract_strided_slice %230 {offsets = [16, 0], sizes = [16, 4], strides = [1, 1]} : vector<32x4xbf16> to vector<16x4xbf16>
    %cst_188 = arith.constant dense<0.000000e+00> : vector<16x16xf32>
    %257 = tpu.matmul %254, %255, %cst_188 {dimension_numbers = #tpu.dot_dimension_numbers<[1], [1], [0], [0], [0, 0, 1, 0], [], []>} : vector<16x4xbf16>, vector<16x4xbf16>, vector<16x16xf32> -> vector<16x16xf32>
    %cst_189 = arith.constant 5.000000e-01 : f32
    %258 = vector.broadcast %cst_189 : f32 to vector<16x16xf32>
    %259 = arith.mulf %257, %258 : vector<16x16xf32>
    %cst_190 = arith.constant dense<0xFF800000> : vector<16xf32>
    %260 = vector.multi_reduction <maximumf>, %259, %cst_190 [1] : vector<16x16xf32> to vector<16xf32>
    %261 = vector.shape_cast %260 : vector<16xf32> to vector<16x1xf32>
    %262 = vector.broadcast %261 : vector<16x1xf32> to vector<16x16xf32>
    %263 = arith.subf %259, %262 : vector<16x16xf32>
    %264 = math.exp %263 : vector<16x16xf32>
    %cst_191 = arith.constant dense<0.000000e+00> : vector<16xf32>
    %265 = vector.multi_reduction <add>, %264, %cst_191 [1] : vector<16x16xf32> to vector<16xf32>
    %266 = vector.shape_cast %265 : vector<16xf32> to vector<16x1xf32>
    %267 = tpu.reciprocal %266 {approx = true} : vector<16x1xf32> -> vector<16x1xf32>
    %268 = vector.broadcast %267 : vector<16x1xf32> to vector<16x16xf32>
    %269 = arith.mulf %264, %268 : vector<16x16xf32>
    %270 = arith.truncf %269 : vector<16x16xf32> to vector<16x16xbf16>
    %cst_192 = arith.constant dense<0.000000e+00> : vector<16x4xf32>
    %271 = tpu.matmul %270, %256, %cst_192 {dimension_numbers = #tpu.dot_dimension_numbers<[1], [0], [0], [1], [0, 0, 1, 1], [], []>} : vector<16x16xbf16>, vector<16x4xbf16>, vector<16x4xf32> -> vector<16x4xf32>
    %272 = arith.truncf %271 : vector<16x4xf32> to vector<16x4xbf16>
    %cst_193 = arith.constant dense<0.000000e+00> : vector<16x32xf32>
    %273 = tpu.matmul %272, %232, %cst_193 {dimension_numbers = #tpu.dot_dimension_numbers<[1], [0], [0], [1], [0, 0, 1, 1], [], []>} : vector<16x4xbf16>, vector<4x32xbf16>, vector<16x32xf32> -> vector<16x32xf32>
    %274 = arith.addf %206, %273 : vector<16x32xf32>
    %c0_194 = arith.constant 0 : index
    %c0_195 = arith.constant 0 : index
    %c4 = arith.constant 4 : index
    %c0_196 = arith.constant 0 : index
    %c0_197 = arith.constant 0 : index
    %275 = vector.load %arg2[%c0_194, %c0_195, %c4, %c0_196, %c0_197] : memref<1x3x8x32x4xbf16, #tpu.memory_space<vmem>>, vector<1x1x1x32x4xbf16>
    %276 = vector.shape_cast %275 : vector<1x1x1x32x4xbf16> to vector<32x4xbf16>
    %cst_198 = arith.constant dense<0.000000e+00> : vector<32x4xf32>
    %277 = tpu.matmul %4, %276, %cst_198 {dimension_numbers = #tpu.dot_dimension_numbers<[1], [0], [0], [1], [0, 0, 1, 1], [], []>} : vector<32x32xbf16>, vector<32x4xbf16>, vector<32x4xf32> -> vector<32x4xf32>
    %c0_199 = arith.constant 0 : index
    %c0_200 = arith.constant 0 : index
    %c4_201 = arith.constant 4 : index
    %c0_202 = arith.constant 0 : index
    %c0_203 = arith.constant 0 : index
    %278 = vector.load %arg3[%c0_199, %c0_200, %c4_201, %c0_202, %c0_203] : memref<1x3x8x1x4xf32, #tpu.memory_space<vmem>>, vector<1x1x1x1x4xf32>
    %279 = vector.shape_cast %278 : vector<1x1x1x1x4xf32> to vector<1x4xf32>
    %280 = vector.broadcast %279 : vector<1x4xf32> to vector<32x4xf32>
    %281 = arith.addf %277, %280 : vector<32x4xf32>
    %282 = arith.truncf %281 : vector<32x4xf32> to vector<32x4xbf16>
    %c0_204 = arith.constant 0 : index
    %c1_205 = arith.constant 1 : index
    %c4_206 = arith.constant 4 : index
    %c0_207 = arith.constant 0 : index
    %c0_208 = arith.constant 0 : index
    %283 = vector.load %arg2[%c0_204, %c1_205, %c4_206, %c0_207, %c0_208] : memref<1x3x8x32x4xbf16, #tpu.memory_space<vmem>>, vector<1x1x1x32x4xbf16>
    %284 = vector.shape_cast %283 : vector<1x1x1x32x4xbf16> to vector<32x4xbf16>
    %cst_209 = arith.constant dense<0.000000e+00> : vector<32x4xf32>
    %285 = tpu.matmul %4, %284, %cst_209 {dimension_numbers = #tpu.dot_dimension_numbers<[1], [0], [0], [1], [0, 0, 1, 1], [], []>} : vector<32x32xbf16>, vector<32x4xbf16>, vector<32x4xf32> -> vector<32x4xf32>
    %c0_210 = arith.constant 0 : index
    %c1_211 = arith.constant 1 : index
    %c4_212 = arith.constant 4 : index
    %c0_213 = arith.constant 0 : index
    %c0_214 = arith.constant 0 : index
    %286 = vector.load %arg3[%c0_210, %c1_211, %c4_212, %c0_213, %c0_214] : memref<1x3x8x1x4xf32, #tpu.memory_space<vmem>>, vector<1x1x1x1x4xf32>
    %287 = vector.shape_cast %286 : vector<1x1x1x1x4xf32> to vector<1x4xf32>
    %288 = vector.broadcast %287 : vector<1x4xf32> to vector<32x4xf32>
    %289 = arith.addf %285, %288 : vector<32x4xf32>
    %290 = arith.truncf %289 : vector<32x4xf32> to vector<32x4xbf16>
    %c0_215 = arith.constant 0 : index
    %c2_216 = arith.constant 2 : index
    %c4_217 = arith.constant 4 : index
    %c0_218 = arith.constant 0 : index
    %c0_219 = arith.constant 0 : index
    %291 = vector.load %arg2[%c0_215, %c2_216, %c4_217, %c0_218, %c0_219] : memref<1x3x8x32x4xbf16, #tpu.memory_space<vmem>>, vector<1x1x1x32x4xbf16>
    %292 = vector.shape_cast %291 : vector<1x1x1x32x4xbf16> to vector<32x4xbf16>
    %cst_220 = arith.constant dense<0.000000e+00> : vector<32x4xf32>
    %293 = tpu.matmul %4, %292, %cst_220 {dimension_numbers = #tpu.dot_dimension_numbers<[1], [0], [0], [1], [0, 0, 1, 1], [], []>} : vector<32x32xbf16>, vector<32x4xbf16>, vector<32x4xf32> -> vector<32x4xf32>
    %c0_221 = arith.constant 0 : index
    %c2_222 = arith.constant 2 : index
    %c4_223 = arith.constant 4 : index
    %c0_224 = arith.constant 0 : index
    %c0_225 = arith.constant 0 : index
    %294 = vector.load %arg3[%c0_221, %c2_222, %c4_223, %c0_224, %c0_225] : memref<1x3x8x1x4xf32, #tpu.memory_space<vmem>>, vector<1x1x1x1x4xf32>
    %295 = vector.shape_cast %294 : vector<1x1x1x1x4xf32> to vector<1x4xf32>
    %296 = vector.broadcast %295 : vector<1x4xf32> to vector<32x4xf32>
    %297 = arith.addf %293, %296 : vector<32x4xf32>
    %298 = arith.truncf %297 : vector<32x4xf32> to vector<32x4xbf16>
    %c0_226 = arith.constant 0 : index
    %c4_227 = arith.constant 4 : index
    %c0_228 = arith.constant 0 : index
    %c0_229 = arith.constant 0 : index
    %299 = vector.load %arg4[%c0_226, %c4_227, %c0_228, %c0_229] : memref<1x8x4x32xbf16, #tpu.memory_space<vmem>>, vector<1x1x4x32xbf16>
    %300 = vector.shape_cast %299 : vector<1x1x4x32xbf16> to vector<4x32xbf16>
    %301 = vector.extract_strided_slice %282 {offsets = [0, 0], sizes = [16, 4], strides = [1, 1]} : vector<32x4xbf16> to vector<16x4xbf16>
    %302 = vector.extract_strided_slice %290 {offsets = [0, 0], sizes = [16, 4], strides = [1, 1]} : vector<32x4xbf16> to vector<16x4xbf16>
    %303 = vector.extract_strided_slice %298 {offsets = [0, 0], sizes = [16, 4], strides = [1, 1]} : vector<32x4xbf16> to vector<16x4xbf16>
    %cst_230 = arith.constant dense<0.000000e+00> : vector<16x16xf32>
    %304 = tpu.matmul %301, %302, %cst_230 {dimension_numbers = #tpu.dot_dimension_numbers<[1], [1], [0], [0], [0, 0, 1, 0], [], []>} : vector<16x4xbf16>, vector<16x4xbf16>, vector<16x16xf32> -> vector<16x16xf32>
    %cst_231 = arith.constant 5.000000e-01 : f32
    %305 = vector.broadcast %cst_231 : f32 to vector<16x16xf32>
    %306 = arith.mulf %304, %305 : vector<16x16xf32>
    %cst_232 = arith.constant dense<0xFF800000> : vector<16xf32>
    %307 = vector.multi_reduction <maximumf>, %306, %cst_232 [1] : vector<16x16xf32> to vector<16xf32>
    %308 = vector.shape_cast %307 : vector<16xf32> to vector<16x1xf32>
    %309 = vector.broadcast %308 : vector<16x1xf32> to vector<16x16xf32>
    %310 = arith.subf %306, %309 : vector<16x16xf32>
    %311 = math.exp %310 : vector<16x16xf32>
    %cst_233 = arith.constant dense<0.000000e+00> : vector<16xf32>
    %312 = vector.multi_reduction <add>, %311, %cst_233 [1] : vector<16x16xf32> to vector<16xf32>
    %313 = vector.shape_cast %312 : vector<16xf32> to vector<16x1xf32>
    %314 = tpu.reciprocal %313 {approx = true} : vector<16x1xf32> -> vector<16x1xf32>
    %315 = vector.broadcast %314 : vector<16x1xf32> to vector<16x16xf32>
    %316 = arith.mulf %311, %315 : vector<16x16xf32>
    %317 = arith.truncf %316 : vector<16x16xf32> to vector<16x16xbf16>
    %cst_234 = arith.constant dense<0.000000e+00> : vector<16x4xf32>
    %318 = tpu.matmul %317, %303, %cst_234 {dimension_numbers = #tpu.dot_dimension_numbers<[1], [0], [0], [1], [0, 0, 1, 1], [], []>} : vector<16x16xbf16>, vector<16x4xbf16>, vector<16x4xf32> -> vector<16x4xf32>
    %319 = arith.truncf %318 : vector<16x4xf32> to vector<16x4xbf16>
    %cst_235 = arith.constant dense<0.000000e+00> : vector<16x32xf32>
    %320 = tpu.matmul %319, %300, %cst_235 {dimension_numbers = #tpu.dot_dimension_numbers<[1], [0], [0], [1], [0, 0, 1, 1], [], []>} : vector<16x4xbf16>, vector<4x32xbf16>, vector<16x32xf32> -> vector<16x32xf32>
    %321 = arith.addf %253, %320 : vector<16x32xf32>
    %322 = vector.extract_strided_slice %282 {offsets = [16, 0], sizes = [16, 4], strides = [1, 1]} : vector<32x4xbf16> to vector<16x4xbf16>
    %323 = vector.extract_strided_slice %290 {offsets = [16, 0], sizes = [16, 4], strides = [1, 1]} : vector<32x4xbf16> to vector<16x4xbf16>
    %324 = vector.extract_strided_slice %298 {offsets = [16, 0], sizes = [16, 4], strides = [1, 1]} : vector<32x4xbf16> to vector<16x4xbf16>
    %cst_236 = arith.constant dense<0.000000e+00> : vector<16x16xf32>
    %325 = tpu.matmul %322, %323, %cst_236 {dimension_numbers = #tpu.dot_dimension_numbers<[1], [1], [0], [0], [0, 0, 1, 0], [], []>} : vector<16x4xbf16>, vector<16x4xbf16>, vector<16x16xf32> -> vector<16x16xf32>
    %cst_237 = arith.constant 5.000000e-01 : f32
    %326 = vector.broadcast %cst_237 : f32 to vector<16x16xf32>
    %327 = arith.mulf %325, %326 : vector<16x16xf32>
    %cst_238 = arith.constant dense<0xFF800000> : vector<16xf32>
    %328 = vector.multi_reduction <maximumf>, %327, %cst_238 [1] : vector<16x16xf32> to vector<16xf32>
    %329 = vector.shape_cast %328 : vector<16xf32> to vector<16x1xf32>
    %330 = vector.broadcast %329 : vector<16x1xf32> to vector<16x16xf32>
    %331 = arith.subf %327, %330 : vector<16x16xf32>
    %332 = math.exp %331 : vector<16x16xf32>
    %cst_239 = arith.constant dense<0.000000e+00> : vector<16xf32>
    %333 = vector.multi_reduction <add>, %332, %cst_239 [1] : vector<16x16xf32> to vector<16xf32>
    %334 = vector.shape_cast %333 : vector<16xf32> to vector<16x1xf32>
    %335 = tpu.reciprocal %334 {approx = true} : vector<16x1xf32> -> vector<16x1xf32>
    %336 = vector.broadcast %335 : vector<16x1xf32> to vector<16x16xf32>
    %337 = arith.mulf %332, %336 : vector<16x16xf32>
    %338 = arith.truncf %337 : vector<16x16xf32> to vector<16x16xbf16>
    %cst_240 = arith.constant dense<0.000000e+00> : vector<16x4xf32>
    %339 = tpu.matmul %338, %324, %cst_240 {dimension_numbers = #tpu.dot_dimension_numbers<[1], [0], [0], [1], [0, 0, 1, 1], [], []>} : vector<16x16xbf16>, vector<16x4xbf16>, vector<16x4xf32> -> vector<16x4xf32>
    %340 = arith.truncf %339 : vector<16x4xf32> to vector<16x4xbf16>
    %cst_241 = arith.constant dense<0.000000e+00> : vector<16x32xf32>
    %341 = tpu.matmul %340, %300, %cst_241 {dimension_numbers = #tpu.dot_dimension_numbers<[1], [0], [0], [1], [0, 0, 1, 1], [], []>} : vector<16x4xbf16>, vector<4x32xbf16>, vector<16x32xf32> -> vector<16x32xf32>
    %342 = arith.addf %274, %341 : vector<16x32xf32>
    %c0_242 = arith.constant 0 : index
    %c0_243 = arith.constant 0 : index
    %c5 = arith.constant 5 : index
    %c0_244 = arith.constant 0 : index
    %c0_245 = arith.constant 0 : index
    %343 = vector.load %arg2[%c0_242, %c0_243, %c5, %c0_244, %c0_245] : memref<1x3x8x32x4xbf16, #tpu.memory_space<vmem>>, vector<1x1x1x32x4xbf16>
    %344 = vector.shape_cast %343 : vector<1x1x1x32x4xbf16> to vector<32x4xbf16>
    %cst_246 = arith.constant dense<0.000000e+00> : vector<32x4xf32>
    %345 = tpu.matmul %4, %344, %cst_246 {dimension_numbers = #tpu.dot_dimension_numbers<[1], [0], [0], [1], [0, 0, 1, 1], [], []>} : vector<32x32xbf16>, vector<32x4xbf16>, vector<32x4xf32> -> vector<32x4xf32>
    %c0_247 = arith.constant 0 : index
    %c0_248 = arith.constant 0 : index
    %c5_249 = arith.constant 5 : index
    %c0_250 = arith.constant 0 : index
    %c0_251 = arith.constant 0 : index
    %346 = vector.load %arg3[%c0_247, %c0_248, %c5_249, %c0_250, %c0_251] : memref<1x3x8x1x4xf32, #tpu.memory_space<vmem>>, vector<1x1x1x1x4xf32>
    %347 = vector.shape_cast %346 : vector<1x1x1x1x4xf32> to vector<1x4xf32>
    %348 = vector.broadcast %347 : vector<1x4xf32> to vector<32x4xf32>
    %349 = arith.addf %345, %348 : vector<32x4xf32>
    %350 = arith.truncf %349 : vector<32x4xf32> to vector<32x4xbf16>
    %c0_252 = arith.constant 0 : index
    %c1_253 = arith.constant 1 : index
    %c5_254 = arith.constant 5 : index
    %c0_255 = arith.constant 0 : index
    %c0_256 = arith.constant 0 : index
    %351 = vector.load %arg2[%c0_252, %c1_253, %c5_254, %c0_255, %c0_256] : memref<1x3x8x32x4xbf16, #tpu.memory_space<vmem>>, vector<1x1x1x32x4xbf16>
    %352 = vector.shape_cast %351 : vector<1x1x1x32x4xbf16> to vector<32x4xbf16>
    %cst_257 = arith.constant dense<0.000000e+00> : vector<32x4xf32>
    %353 = tpu.matmul %4, %352, %cst_257 {dimension_numbers = #tpu.dot_dimension_numbers<[1], [0], [0], [1], [0, 0, 1, 1], [], []>} : vector<32x32xbf16>, vector<32x4xbf16>, vector<32x4xf32> -> vector<32x4xf32>
    %c0_258 = arith.constant 0 : index
    %c1_259 = arith.constant 1 : index
    %c5_260 = arith.constant 5 : index
    %c0_261 = arith.constant 0 : index
    %c0_262 = arith.constant 0 : index
    %354 = vector.load %arg3[%c0_258, %c1_259, %c5_260, %c0_261, %c0_262] : memref<1x3x8x1x4xf32, #tpu.memory_space<vmem>>, vector<1x1x1x1x4xf32>
    %355 = vector.shape_cast %354 : vector<1x1x1x1x4xf32> to vector<1x4xf32>
    %356 = vector.broadcast %355 : vector<1x4xf32> to vector<32x4xf32>
    %357 = arith.addf %353, %356 : vector<32x4xf32>
    %358 = arith.truncf %357 : vector<32x4xf32> to vector<32x4xbf16>
    %c0_263 = arith.constant 0 : index
    %c2_264 = arith.constant 2 : index
    %c5_265 = arith.constant 5 : index
    %c0_266 = arith.constant 0 : index
    %c0_267 = arith.constant 0 : index
    %359 = vector.load %arg2[%c0_263, %c2_264, %c5_265, %c0_266, %c0_267] : memref<1x3x8x32x4xbf16, #tpu.memory_space<vmem>>, vector<1x1x1x32x4xbf16>
    %360 = vector.shape_cast %359 : vector<1x1x1x32x4xbf16> to vector<32x4xbf16>
    %cst_268 = arith.constant dense<0.000000e+00> : vector<32x4xf32>
    %361 = tpu.matmul %4, %360, %cst_268 {dimension_numbers = #tpu.dot_dimension_numbers<[1], [0], [0], [1], [0, 0, 1, 1], [], []>} : vector<32x32xbf16>, vector<32x4xbf16>, vector<32x4xf32> -> vector<32x4xf32>
    %c0_269 = arith.constant 0 : index
    %c2_270 = arith.constant 2 : index
    %c5_271 = arith.constant 5 : index
    %c0_272 = arith.constant 0 : index
    %c0_273 = arith.constant 0 : index
    %362 = vector.load %arg3[%c0_269, %c2_270, %c5_271, %c0_272, %c0_273] : memref<1x3x8x1x4xf32, #tpu.memory_space<vmem>>, vector<1x1x1x1x4xf32>
    %363 = vector.shape_cast %362 : vector<1x1x1x1x4xf32> to vector<1x4xf32>
    %364 = vector.broadcast %363 : vector<1x4xf32> to vector<32x4xf32>
    %365 = arith.addf %361, %364 : vector<32x4xf32>
    %366 = arith.truncf %365 : vector<32x4xf32> to vector<32x4xbf16>
    %c0_274 = arith.constant 0 : index
    %c5_275 = arith.constant 5 : index
    %c0_276 = arith.constant 0 : index
    %c0_277 = arith.constant 0 : index
    %367 = vector.load %arg4[%c0_274, %c5_275, %c0_276, %c0_277] : memref<1x8x4x32xbf16, #tpu.memory_space<vmem>>, vector<1x1x4x32xbf16>
    %368 = vector.shape_cast %367 : vector<1x1x4x32xbf16> to vector<4x32xbf16>
    %369 = vector.extract_strided_slice %350 {offsets = [0, 0], sizes = [16, 4], strides = [1, 1]} : vector<32x4xbf16> to vector<16x4xbf16>
    %370 = vector.extract_strided_slice %358 {offsets = [0, 0], sizes = [16, 4], strides = [1, 1]} : vector<32x4xbf16> to vector<16x4xbf16>
    %371 = vector.extract_strided_slice %366 {offsets = [0, 0], sizes = [16, 4], strides = [1, 1]} : vector<32x4xbf16> to vector<16x4xbf16>
    %cst_278 = arith.constant dense<0.000000e+00> : vector<16x16xf32>
    %372 = tpu.matmul %369, %370, %cst_278 {dimension_numbers = #tpu.dot_dimension_numbers<[1], [1], [0], [0], [0, 0, 1, 0], [], []>} : vector<16x4xbf16>, vector<16x4xbf16>, vector<16x16xf32> -> vector<16x16xf32>
    %cst_279 = arith.constant 5.000000e-01 : f32
    %373 = vector.broadcast %cst_279 : f32 to vector<16x16xf32>
    %374 = arith.mulf %372, %373 : vector<16x16xf32>
    %cst_280 = arith.constant dense<0xFF800000> : vector<16xf32>
    %375 = vector.multi_reduction <maximumf>, %374, %cst_280 [1] : vector<16x16xf32> to vector<16xf32>
    %376 = vector.shape_cast %375 : vector<16xf32> to vector<16x1xf32>
    %377 = vector.broadcast %376 : vector<16x1xf32> to vector<16x16xf32>
    %378 = arith.subf %374, %377 : vector<16x16xf32>
    %379 = math.exp %378 : vector<16x16xf32>
    %cst_281 = arith.constant dense<0.000000e+00> : vector<16xf32>
    %380 = vector.multi_reduction <add>, %379, %cst_281 [1] : vector<16x16xf32> to vector<16xf32>
    %381 = vector.shape_cast %380 : vector<16xf32> to vector<16x1xf32>
    %382 = tpu.reciprocal %381 {approx = true} : vector<16x1xf32> -> vector<16x1xf32>
    %383 = vector.broadcast %382 : vector<16x1xf32> to vector<16x16xf32>
    %384 = arith.mulf %379, %383 : vector<16x16xf32>
    %385 = arith.truncf %384 : vector<16x16xf32> to vector<16x16xbf16>
    %cst_282 = arith.constant dense<0.000000e+00> : vector<16x4xf32>
    %386 = tpu.matmul %385, %371, %cst_282 {dimension_numbers = #tpu.dot_dimension_numbers<[1], [0], [0], [1], [0, 0, 1, 1], [], []>} : vector<16x16xbf16>, vector<16x4xbf16>, vector<16x4xf32> -> vector<16x4xf32>
    %387 = arith.truncf %386 : vector<16x4xf32> to vector<16x4xbf16>
    %cst_283 = arith.constant dense<0.000000e+00> : vector<16x32xf32>
    %388 = tpu.matmul %387, %368, %cst_283 {dimension_numbers = #tpu.dot_dimension_numbers<[1], [0], [0], [1], [0, 0, 1, 1], [], []>} : vector<16x4xbf16>, vector<4x32xbf16>, vector<16x32xf32> -> vector<16x32xf32>
    %389 = arith.addf %321, %388 : vector<16x32xf32>
    %390 = vector.extract_strided_slice %350 {offsets = [16, 0], sizes = [16, 4], strides = [1, 1]} : vector<32x4xbf16> to vector<16x4xbf16>
    %391 = vector.extract_strided_slice %358 {offsets = [16, 0], sizes = [16, 4], strides = [1, 1]} : vector<32x4xbf16> to vector<16x4xbf16>
    %392 = vector.extract_strided_slice %366 {offsets = [16, 0], sizes = [16, 4], strides = [1, 1]} : vector<32x4xbf16> to vector<16x4xbf16>
    %cst_284 = arith.constant dense<0.000000e+00> : vector<16x16xf32>
    %393 = tpu.matmul %390, %391, %cst_284 {dimension_numbers = #tpu.dot_dimension_numbers<[1], [1], [0], [0], [0, 0, 1, 0], [], []>} : vector<16x4xbf16>, vector<16x4xbf16>, vector<16x16xf32> -> vector<16x16xf32>
    %cst_285 = arith.constant 5.000000e-01 : f32
    %394 = vector.broadcast %cst_285 : f32 to vector<16x16xf32>
    %395 = arith.mulf %393, %394 : vector<16x16xf32>
    %cst_286 = arith.constant dense<0xFF800000> : vector<16xf32>
    %396 = vector.multi_reduction <maximumf>, %395, %cst_286 [1] : vector<16x16xf32> to vector<16xf32>
    %397 = vector.shape_cast %396 : vector<16xf32> to vector<16x1xf32>
    %398 = vector.broadcast %397 : vector<16x1xf32> to vector<16x16xf32>
    %399 = arith.subf %395, %398 : vector<16x16xf32>
    %400 = math.exp %399 : vector<16x16xf32>
    %cst_287 = arith.constant dense<0.000000e+00> : vector<16xf32>
    %401 = vector.multi_reduction <add>, %400, %cst_287 [1] : vector<16x16xf32> to vector<16xf32>
    %402 = vector.shape_cast %401 : vector<16xf32> to vector<16x1xf32>
    %403 = tpu.reciprocal %402 {approx = true} : vector<16x1xf32> -> vector<16x1xf32>
    %404 = vector.broadcast %403 : vector<16x1xf32> to vector<16x16xf32>
    %405 = arith.mulf %400, %404 : vector<16x16xf32>
    %406 = arith.truncf %405 : vector<16x16xf32> to vector<16x16xbf16>
    %cst_288 = arith.constant dense<0.000000e+00> : vector<16x4xf32>
    %407 = tpu.matmul %406, %392, %cst_288 {dimension_numbers = #tpu.dot_dimension_numbers<[1], [0], [0], [1], [0, 0, 1, 1], [], []>} : vector<16x16xbf16>, vector<16x4xbf16>, vector<16x4xf32> -> vector<16x4xf32>
    %408 = arith.truncf %407 : vector<16x4xf32> to vector<16x4xbf16>
    %cst_289 = arith.constant dense<0.000000e+00> : vector<16x32xf32>
    %409 = tpu.matmul %408, %368, %cst_289 {dimension_numbers = #tpu.dot_dimension_numbers<[1], [0], [0], [1], [0, 0, 1, 1], [], []>} : vector<16x4xbf16>, vector<4x32xbf16>, vector<16x32xf32> -> vector<16x32xf32>
    %410 = arith.addf %342, %409 : vector<16x32xf32>
    %c0_290 = arith.constant 0 : index
    %c0_291 = arith.constant 0 : index
    %c6 = arith.constant 6 : index
    %c0_292 = arith.constant 0 : index
    %c0_293 = arith.constant 0 : index
    %411 = vector.load %arg2[%c0_290, %c0_291, %c6, %c0_292, %c0_293] : memref<1x3x8x32x4xbf16, #tpu.memory_space<vmem>>, vector<1x1x1x32x4xbf16>
    %412 = vector.shape_cast %411 : vector<1x1x1x32x4xbf16> to vector<32x4xbf16>
    %cst_294 = arith.constant dense<0.000000e+00> : vector<32x4xf32>
    %413 = tpu.matmul %4, %412, %cst_294 {dimension_numbers = #tpu.dot_dimension_numbers<[1], [0], [0], [1], [0, 0, 1, 1], [], []>} : vector<32x32xbf16>, vector<32x4xbf16>, vector<32x4xf32> -> vector<32x4xf32>
    %c0_295 = arith.constant 0 : index
    %c0_296 = arith.constant 0 : index
    %c6_297 = arith.constant 6 : index
    %c0_298 = arith.constant 0 : index
    %c0_299 = arith.constant 0 : index
    %414 = vector.load %arg3[%c0_295, %c0_296, %c6_297, %c0_298, %c0_299] : memref<1x3x8x1x4xf32, #tpu.memory_space<vmem>>, vector<1x1x1x1x4xf32>
    %415 = vector.shape_cast %414 : vector<1x1x1x1x4xf32> to vector<1x4xf32>
    %416 = vector.broadcast %415 : vector<1x4xf32> to vector<32x4xf32>
    %417 = arith.addf %413, %416 : vector<32x4xf32>
    %418 = arith.truncf %417 : vector<32x4xf32> to vector<32x4xbf16>
    %c0_300 = arith.constant 0 : index
    %c1_301 = arith.constant 1 : index
    %c6_302 = arith.constant 6 : index
    %c0_303 = arith.constant 0 : index
    %c0_304 = arith.constant 0 : index
    %419 = vector.load %arg2[%c0_300, %c1_301, %c6_302, %c0_303, %c0_304] : memref<1x3x8x32x4xbf16, #tpu.memory_space<vmem>>, vector<1x1x1x32x4xbf16>
    %420 = vector.shape_cast %419 : vector<1x1x1x32x4xbf16> to vector<32x4xbf16>
    %cst_305 = arith.constant dense<0.000000e+00> : vector<32x4xf32>
    %421 = tpu.matmul %4, %420, %cst_305 {dimension_numbers = #tpu.dot_dimension_numbers<[1], [0], [0], [1], [0, 0, 1, 1], [], []>} : vector<32x32xbf16>, vector<32x4xbf16>, vector<32x4xf32> -> vector<32x4xf32>
    %c0_306 = arith.constant 0 : index
    %c1_307 = arith.constant 1 : index
    %c6_308 = arith.constant 6 : index
    %c0_309 = arith.constant 0 : index
    %c0_310 = arith.constant 0 : index
    %422 = vector.load %arg3[%c0_306, %c1_307, %c6_308, %c0_309, %c0_310] : memref<1x3x8x1x4xf32, #tpu.memory_space<vmem>>, vector<1x1x1x1x4xf32>
    %423 = vector.shape_cast %422 : vector<1x1x1x1x4xf32> to vector<1x4xf32>
    %424 = vector.broadcast %423 : vector<1x4xf32> to vector<32x4xf32>
    %425 = arith.addf %421, %424 : vector<32x4xf32>
    %426 = arith.truncf %425 : vector<32x4xf32> to vector<32x4xbf16>
    %c0_311 = arith.constant 0 : index
    %c2_312 = arith.constant 2 : index
    %c6_313 = arith.constant 6 : index
    %c0_314 = arith.constant 0 : index
    %c0_315 = arith.constant 0 : index
    %427 = vector.load %arg2[%c0_311, %c2_312, %c6_313, %c0_314, %c0_315] : memref<1x3x8x32x4xbf16, #tpu.memory_space<vmem>>, vector<1x1x1x32x4xbf16>
    %428 = vector.shape_cast %427 : vector<1x1x1x32x4xbf16> to vector<32x4xbf16>
    %cst_316 = arith.constant dense<0.000000e+00> : vector<32x4xf32>
    %429 = tpu.matmul %4, %428, %cst_316 {dimension_numbers = #tpu.dot_dimension_numbers<[1], [0], [0], [1], [0, 0, 1, 1], [], []>} : vector<32x32xbf16>, vector<32x4xbf16>, vector<32x4xf32> -> vector<32x4xf32>
    %c0_317 = arith.constant 0 : index
    %c2_318 = arith.constant 2 : index
    %c6_319 = arith.constant 6 : index
    %c0_320 = arith.constant 0 : index
    %c0_321 = arith.constant 0 : index
    %430 = vector.load %arg3[%c0_317, %c2_318, %c6_319, %c0_320, %c0_321] : memref<1x3x8x1x4xf32, #tpu.memory_space<vmem>>, vector<1x1x1x1x4xf32>
    %431 = vector.shape_cast %430 : vector<1x1x1x1x4xf32> to vector<1x4xf32>
    %432 = vector.broadcast %431 : vector<1x4xf32> to vector<32x4xf32>
    %433 = arith.addf %429, %432 : vector<32x4xf32>
    %434 = arith.truncf %433 : vector<32x4xf32> to vector<32x4xbf16>
    %c0_322 = arith.constant 0 : index
    %c6_323 = arith.constant 6 : index
    %c0_324 = arith.constant 0 : index
    %c0_325 = arith.constant 0 : index
    %435 = vector.load %arg4[%c0_322, %c6_323, %c0_324, %c0_325] : memref<1x8x4x32xbf16, #tpu.memory_space<vmem>>, vector<1x1x4x32xbf16>
    %436 = vector.shape_cast %435 : vector<1x1x4x32xbf16> to vector<4x32xbf16>
    %437 = vector.extract_strided_slice %418 {offsets = [0, 0], sizes = [16, 4], strides = [1, 1]} : vector<32x4xbf16> to vector<16x4xbf16>
    %438 = vector.extract_strided_slice %426 {offsets = [0, 0], sizes = [16, 4], strides = [1, 1]} : vector<32x4xbf16> to vector<16x4xbf16>
    %439 = vector.extract_strided_slice %434 {offsets = [0, 0], sizes = [16, 4], strides = [1, 1]} : vector<32x4xbf16> to vector<16x4xbf16>
    %cst_326 = arith.constant dense<0.000000e+00> : vector<16x16xf32>
    %440 = tpu.matmul %437, %438, %cst_326 {dimension_numbers = #tpu.dot_dimension_numbers<[1], [1], [0], [0], [0, 0, 1, 0], [], []>} : vector<16x4xbf16>, vector<16x4xbf16>, vector<16x16xf32> -> vector<16x16xf32>
    %cst_327 = arith.constant 5.000000e-01 : f32
    %441 = vector.broadcast %cst_327 : f32 to vector<16x16xf32>
    %442 = arith.mulf %440, %441 : vector<16x16xf32>
    %cst_328 = arith.constant dense<0xFF800000> : vector<16xf32>
    %443 = vector.multi_reduction <maximumf>, %442, %cst_328 [1] : vector<16x16xf32> to vector<16xf32>
    %444 = vector.shape_cast %443 : vector<16xf32> to vector<16x1xf32>
    %445 = vector.broadcast %444 : vector<16x1xf32> to vector<16x16xf32>
    %446 = arith.subf %442, %445 : vector<16x16xf32>
    %447 = math.exp %446 : vector<16x16xf32>
    %cst_329 = arith.constant dense<0.000000e+00> : vector<16xf32>
    %448 = vector.multi_reduction <add>, %447, %cst_329 [1] : vector<16x16xf32> to vector<16xf32>
    %449 = vector.shape_cast %448 : vector<16xf32> to vector<16x1xf32>
    %450 = tpu.reciprocal %449 {approx = true} : vector<16x1xf32> -> vector<16x1xf32>
    %451 = vector.broadcast %450 : vector<16x1xf32> to vector<16x16xf32>
    %452 = arith.mulf %447, %451 : vector<16x16xf32>
    %453 = arith.truncf %452 : vector<16x16xf32> to vector<16x16xbf16>
    %cst_330 = arith.constant dense<0.000000e+00> : vector<16x4xf32>
    %454 = tpu.matmul %453, %439, %cst_330 {dimension_numbers = #tpu.dot_dimension_numbers<[1], [0], [0], [1], [0, 0, 1, 1], [], []>} : vector<16x16xbf16>, vector<16x4xbf16>, vector<16x4xf32> -> vector<16x4xf32>
    %455 = arith.truncf %454 : vector<16x4xf32> to vector<16x4xbf16>
    %cst_331 = arith.constant dense<0.000000e+00> : vector<16x32xf32>
    %456 = tpu.matmul %455, %436, %cst_331 {dimension_numbers = #tpu.dot_dimension_numbers<[1], [0], [0], [1], [0, 0, 1, 1], [], []>} : vector<16x4xbf16>, vector<4x32xbf16>, vector<16x32xf32> -> vector<16x32xf32>
    %457 = arith.addf %389, %456 : vector<16x32xf32>
    %458 = vector.extract_strided_slice %418 {offsets = [16, 0], sizes = [16, 4], strides = [1, 1]} : vector<32x4xbf16> to vector<16x4xbf16>
    %459 = vector.extract_strided_slice %426 {offsets = [16, 0], sizes = [16, 4], strides = [1, 1]} : vector<32x4xbf16> to vector<16x4xbf16>
    %460 = vector.extract_strided_slice %434 {offsets = [16, 0], sizes = [16, 4], strides = [1, 1]} : vector<32x4xbf16> to vector<16x4xbf16>
    %cst_332 = arith.constant dense<0.000000e+00> : vector<16x16xf32>
    %461 = tpu.matmul %458, %459, %cst_332 {dimension_numbers = #tpu.dot_dimension_numbers<[1], [1], [0], [0], [0, 0, 1, 0], [], []>} : vector<16x4xbf16>, vector<16x4xbf16>, vector<16x16xf32> -> vector<16x16xf32>
    %cst_333 = arith.constant 5.000000e-01 : f32
    %462 = vector.broadcast %cst_333 : f32 to vector<16x16xf32>
    %463 = arith.mulf %461, %462 : vector<16x16xf32>
    %cst_334 = arith.constant dense<0xFF800000> : vector<16xf32>
    %464 = vector.multi_reduction <maximumf>, %463, %cst_334 [1] : vector<16x16xf32> to vector<16xf32>
    %465 = vector.shape_cast %464 : vector<16xf32> to vector<16x1xf32>
    %466 = vector.broadcast %465 : vector<16x1xf32> to vector<16x16xf32>
    %467 = arith.subf %463, %466 : vector<16x16xf32>
    %468 = math.exp %467 : vector<16x16xf32>
    %cst_335 = arith.constant dense<0.000000e+00> : vector<16xf32>
    %469 = vector.multi_reduction <add>, %468, %cst_335 [1] : vector<16x16xf32> to vector<16xf32>
    %470 = vector.shape_cast %469 : vector<16xf32> to vector<16x1xf32>
    %471 = tpu.reciprocal %470 {approx = true} : vector<16x1xf32> -> vector<16x1xf32>
    %472 = vector.broadcast %471 : vector<16x1xf32> to vector<16x16xf32>
    %473 = arith.mulf %468, %472 : vector<16x16xf32>
    %474 = arith.truncf %473 : vector<16x16xf32> to vector<16x16xbf16>
    %cst_336 = arith.constant dense<0.000000e+00> : vector<16x4xf32>
    %475 = tpu.matmul %474, %460, %cst_336 {dimension_numbers = #tpu.dot_dimension_numbers<[1], [0], [0], [1], [0, 0, 1, 1], [], []>} : vector<16x16xbf16>, vector<16x4xbf16>, vector<16x4xf32> -> vector<16x4xf32>
    %476 = arith.truncf %475 : vector<16x4xf32> to vector<16x4xbf16>
    %cst_337 = arith.constant dense<0.000000e+00> : vector<16x32xf32>
    %477 = tpu.matmul %476, %436, %cst_337 {dimension_numbers = #tpu.dot_dimension_numbers<[1], [0], [0], [1], [0, 0, 1, 1], [], []>} : vector<16x4xbf16>, vector<4x32xbf16>, vector<16x32xf32> -> vector<16x32xf32>
    %478 = arith.addf %410, %477 : vector<16x32xf32>
    %c0_338 = arith.constant 0 : index
    %c0_339 = arith.constant 0 : index
    %c7 = arith.constant 7 : index
    %c0_340 = arith.constant 0 : index
    %c0_341 = arith.constant 0 : index
    %479 = vector.load %arg2[%c0_338, %c0_339, %c7, %c0_340, %c0_341] : memref<1x3x8x32x4xbf16, #tpu.memory_space<vmem>>, vector<1x1x1x32x4xbf16>
    %480 = vector.shape_cast %479 : vector<1x1x1x32x4xbf16> to vector<32x4xbf16>
    %cst_342 = arith.constant dense<0.000000e+00> : vector<32x4xf32>
    %481 = tpu.matmul %4, %480, %cst_342 {dimension_numbers = #tpu.dot_dimension_numbers<[1], [0], [0], [1], [0, 0, 1, 1], [], []>} : vector<32x32xbf16>, vector<32x4xbf16>, vector<32x4xf32> -> vector<32x4xf32>
    %c0_343 = arith.constant 0 : index
    %c0_344 = arith.constant 0 : index
    %c7_345 = arith.constant 7 : index
    %c0_346 = arith.constant 0 : index
    %c0_347 = arith.constant 0 : index
    %482 = vector.load %arg3[%c0_343, %c0_344, %c7_345, %c0_346, %c0_347] : memref<1x3x8x1x4xf32, #tpu.memory_space<vmem>>, vector<1x1x1x1x4xf32>
    %483 = vector.shape_cast %482 : vector<1x1x1x1x4xf32> to vector<1x4xf32>
    %484 = vector.broadcast %483 : vector<1x4xf32> to vector<32x4xf32>
    %485 = arith.addf %481, %484 : vector<32x4xf32>
    %486 = arith.truncf %485 : vector<32x4xf32> to vector<32x4xbf16>
    %c0_348 = arith.constant 0 : index
    %c1_349 = arith.constant 1 : index
    %c7_350 = arith.constant 7 : index
    %c0_351 = arith.constant 0 : index
    %c0_352 = arith.constant 0 : index
    %487 = vector.load %arg2[%c0_348, %c1_349, %c7_350, %c0_351, %c0_352] : memref<1x3x8x32x4xbf16, #tpu.memory_space<vmem>>, vector<1x1x1x32x4xbf16>
    %488 = vector.shape_cast %487 : vector<1x1x1x32x4xbf16> to vector<32x4xbf16>
    %cst_353 = arith.constant dense<0.000000e+00> : vector<32x4xf32>
    %489 = tpu.matmul %4, %488, %cst_353 {dimension_numbers = #tpu.dot_dimension_numbers<[1], [0], [0], [1], [0, 0, 1, 1], [], []>} : vector<32x32xbf16>, vector<32x4xbf16>, vector<32x4xf32> -> vector<32x4xf32>
    %c0_354 = arith.constant 0 : index
    %c1_355 = arith.constant 1 : index
    %c7_356 = arith.constant 7 : index
    %c0_357 = arith.constant 0 : index
    %c0_358 = arith.constant 0 : index
    %490 = vector.load %arg3[%c0_354, %c1_355, %c7_356, %c0_357, %c0_358] : memref<1x3x8x1x4xf32, #tpu.memory_space<vmem>>, vector<1x1x1x1x4xf32>
    %491 = vector.shape_cast %490 : vector<1x1x1x1x4xf32> to vector<1x4xf32>
    %492 = vector.broadcast %491 : vector<1x4xf32> to vector<32x4xf32>
    %493 = arith.addf %489, %492 : vector<32x4xf32>
    %494 = arith.truncf %493 : vector<32x4xf32> to vector<32x4xbf16>
    %c0_359 = arith.constant 0 : index
    %c2_360 = arith.constant 2 : index
    %c7_361 = arith.constant 7 : index
    %c0_362 = arith.constant 0 : index
    %c0_363 = arith.constant 0 : index
    %495 = vector.load %arg2[%c0_359, %c2_360, %c7_361, %c0_362, %c0_363] : memref<1x3x8x32x4xbf16, #tpu.memory_space<vmem>>, vector<1x1x1x32x4xbf16>
    %496 = vector.shape_cast %495 : vector<1x1x1x32x4xbf16> to vector<32x4xbf16>
    %cst_364 = arith.constant dense<0.000000e+00> : vector<32x4xf32>
    %497 = tpu.matmul %4, %496, %cst_364 {dimension_numbers = #tpu.dot_dimension_numbers<[1], [0], [0], [1], [0, 0, 1, 1], [], []>} : vector<32x32xbf16>, vector<32x4xbf16>, vector<32x4xf32> -> vector<32x4xf32>
    %c0_365 = arith.constant 0 : index
    %c2_366 = arith.constant 2 : index
    %c7_367 = arith.constant 7 : index
    %c0_368 = arith.constant 0 : index
    %c0_369 = arith.constant 0 : index
    %498 = vector.load %arg3[%c0_365, %c2_366, %c7_367, %c0_368, %c0_369] : memref<1x3x8x1x4xf32, #tpu.memory_space<vmem>>, vector<1x1x1x1x4xf32>
    %499 = vector.shape_cast %498 : vector<1x1x1x1x4xf32> to vector<1x4xf32>
    %500 = vector.broadcast %499 : vector<1x4xf32> to vector<32x4xf32>
    %501 = arith.addf %497, %500 : vector<32x4xf32>
    %502 = arith.truncf %501 : vector<32x4xf32> to vector<32x4xbf16>
    %c0_370 = arith.constant 0 : index
    %c7_371 = arith.constant 7 : index
    %c0_372 = arith.constant 0 : index
    %c0_373 = arith.constant 0 : index
    %503 = vector.load %arg4[%c0_370, %c7_371, %c0_372, %c0_373] : memref<1x8x4x32xbf16, #tpu.memory_space<vmem>>, vector<1x1x4x32xbf16>
    %504 = vector.shape_cast %503 : vector<1x1x4x32xbf16> to vector<4x32xbf16>
    %505 = vector.extract_strided_slice %486 {offsets = [0, 0], sizes = [16, 4], strides = [1, 1]} : vector<32x4xbf16> to vector<16x4xbf16>
    %506 = vector.extract_strided_slice %494 {offsets = [0, 0], sizes = [16, 4], strides = [1, 1]} : vector<32x4xbf16> to vector<16x4xbf16>
    %507 = vector.extract_strided_slice %502 {offsets = [0, 0], sizes = [16, 4], strides = [1, 1]} : vector<32x4xbf16> to vector<16x4xbf16>
    %cst_374 = arith.constant dense<0.000000e+00> : vector<16x16xf32>
    %508 = tpu.matmul %505, %506, %cst_374 {dimension_numbers = #tpu.dot_dimension_numbers<[1], [1], [0], [0], [0, 0, 1, 0], [], []>} : vector<16x4xbf16>, vector<16x4xbf16>, vector<16x16xf32> -> vector<16x16xf32>
    %cst_375 = arith.constant 5.000000e-01 : f32
    %509 = vector.broadcast %cst_375 : f32 to vector<16x16xf32>
    %510 = arith.mulf %508, %509 : vector<16x16xf32>
    %cst_376 = arith.constant dense<0xFF800000> : vector<16xf32>
    %511 = vector.multi_reduction <maximumf>, %510, %cst_376 [1] : vector<16x16xf32> to vector<16xf32>
    %512 = vector.shape_cast %511 : vector<16xf32> to vector<16x1xf32>
    %513 = vector.broadcast %512 : vector<16x1xf32> to vector<16x16xf32>
    %514 = arith.subf %510, %513 : vector<16x16xf32>
    %515 = math.exp %514 : vector<16x16xf32>
    %cst_377 = arith.constant dense<0.000000e+00> : vector<16xf32>
    %516 = vector.multi_reduction <add>, %515, %cst_377 [1] : vector<16x16xf32> to vector<16xf32>
    %517 = vector.shape_cast %516 : vector<16xf32> to vector<16x1xf32>
    %518 = tpu.reciprocal %517 {approx = true} : vector<16x1xf32> -> vector<16x1xf32>
    %519 = vector.broadcast %518 : vector<16x1xf32> to vector<16x16xf32>
    %520 = arith.mulf %515, %519 : vector<16x16xf32>
    %521 = arith.truncf %520 : vector<16x16xf32> to vector<16x16xbf16>
    %cst_378 = arith.constant dense<0.000000e+00> : vector<16x4xf32>
    %522 = tpu.matmul %521, %507, %cst_378 {dimension_numbers = #tpu.dot_dimension_numbers<[1], [0], [0], [1], [0, 0, 1, 1], [], []>} : vector<16x16xbf16>, vector<16x4xbf16>, vector<16x4xf32> -> vector<16x4xf32>
    %523 = arith.truncf %522 : vector<16x4xf32> to vector<16x4xbf16>
    %cst_379 = arith.constant dense<0.000000e+00> : vector<16x32xf32>
    %524 = tpu.matmul %523, %504, %cst_379 {dimension_numbers = #tpu.dot_dimension_numbers<[1], [0], [0], [1], [0, 0, 1, 1], [], []>} : vector<16x4xbf16>, vector<4x32xbf16>, vector<16x32xf32> -> vector<16x32xf32>
    %525 = arith.addf %457, %524 : vector<16x32xf32>
    %526 = vector.extract_strided_slice %486 {offsets = [16, 0], sizes = [16, 4], strides = [1, 1]} : vector<32x4xbf16> to vector<16x4xbf16>
    %527 = vector.extract_strided_slice %494 {offsets = [16, 0], sizes = [16, 4], strides = [1, 1]} : vector<32x4xbf16> to vector<16x4xbf16>
    %528 = vector.extract_strided_slice %502 {offsets = [16, 0], sizes = [16, 4], strides = [1, 1]} : vector<32x4xbf16> to vector<16x4xbf16>
    %cst_380 = arith.constant dense<0.000000e+00> : vector<16x16xf32>
    %529 = tpu.matmul %526, %527, %cst_380 {dimension_numbers = #tpu.dot_dimension_numbers<[1], [1], [0], [0], [0, 0, 1, 0], [], []>} : vector<16x4xbf16>, vector<16x4xbf16>, vector<16x16xf32> -> vector<16x16xf32>
    %cst_381 = arith.constant 5.000000e-01 : f32
    %530 = vector.broadcast %cst_381 : f32 to vector<16x16xf32>
    %531 = arith.mulf %529, %530 : vector<16x16xf32>
    %cst_382 = arith.constant dense<0xFF800000> : vector<16xf32>
    %532 = vector.multi_reduction <maximumf>, %531, %cst_382 [1] : vector<16x16xf32> to vector<16xf32>
    %533 = vector.shape_cast %532 : vector<16xf32> to vector<16x1xf32>
    %534 = vector.broadcast %533 : vector<16x1xf32> to vector<16x16xf32>
    %535 = arith.subf %531, %534 : vector<16x16xf32>
    %536 = math.exp %535 : vector<16x16xf32>
    %cst_383 = arith.constant dense<0.000000e+00> : vector<16xf32>
    %537 = vector.multi_reduction <add>, %536, %cst_383 [1] : vector<16x16xf32> to vector<16xf32>
    %538 = vector.shape_cast %537 : vector<16xf32> to vector<16x1xf32>
    %539 = tpu.reciprocal %538 {approx = true} : vector<16x1xf32> -> vector<16x1xf32>
    %540 = vector.broadcast %539 : vector<16x1xf32> to vector<16x16xf32>
    %541 = arith.mulf %536, %540 : vector<16x16xf32>
    %542 = arith.truncf %541 : vector<16x16xf32> to vector<16x16xbf16>
    %cst_384 = arith.constant dense<0.000000e+00> : vector<16x4xf32>
    %543 = tpu.matmul %542, %528, %cst_384 {dimension_numbers = #tpu.dot_dimension_numbers<[1], [0], [0], [1], [0, 0, 1, 1], [], []>} : vector<16x16xbf16>, vector<16x4xbf16>, vector<16x4xf32> -> vector<16x4xf32>
    %544 = arith.truncf %543 : vector<16x4xf32> to vector<16x4xbf16>
    %cst_385 = arith.constant dense<0.000000e+00> : vector<16x32xf32>
    %545 = tpu.matmul %544, %504, %cst_385 {dimension_numbers = #tpu.dot_dimension_numbers<[1], [0], [0], [1], [0, 0, 1, 1], [], []>} : vector<16x4xbf16>, vector<4x32xbf16>, vector<16x32xf32> -> vector<16x32xf32>
    %546 = arith.addf %478, %545 : vector<16x32xf32>
    %547 = tpu.concatenate %525, %546 in 0 : vector<16x32xf32>, vector<16x32xf32> -> vector<32x32xf32>
    %c0_386 = arith.constant 0 : index
    %c0_387 = arith.constant 0 : index
    %c0_388 = arith.constant 0 : index
    %548 = vector.load %arg5[%c0_386, %c0_387, %c0_388] : memref<1x1x32xf32, #tpu.memory_space<vmem>>, vector<1x1x32xf32>
    %549 = vector.shape_cast %548 : vector<1x1x32xf32> to vector<1x32xf32>
    %550 = vector.broadcast %549 : vector<1x32xf32> to vector<32x32xf32>
    %551 = arith.addf %547, %550 : vector<32x32xf32>
    %552 = arith.addf %3, %551 : vector<32x32xf32>
    %c0_389 = arith.constant 0 : index
    %c0_390 = arith.constant 0 : index
    %c0_391 = arith.constant 0 : index
    %553 = vector.load %arg6[%c0_389, %c0_390, %c0_391] : memref<1x1x32xf32, #tpu.memory_space<vmem>>, vector<1x1x32xf32>
    %554 = vector.shape_cast %553 : vector<1x1x32xf32> to vector<1x32xf32>
    %c0_392 = arith.constant 0 : index
    %c0_393 = arith.constant 0 : index
    %c0_394 = arith.constant 0 : index
    %555 = vector.load %arg7[%c0_392, %c0_393, %c0_394] : memref<1x1x32xf32, #tpu.memory_space<vmem>>, vector<1x1x32xf32>
    %556 = vector.shape_cast %555 : vector<1x1x32xf32> to vector<1x32xf32>
    %cst_395 = arith.constant dense<0.000000e+00> : vector<32xf32>
    %557 = vector.multi_reduction <add>, %552, %cst_395 [1] : vector<32x32xf32> to vector<32xf32>
    %558 = vector.shape_cast %557 : vector<32xf32> to vector<32x1xf32>
    %cst_396 = arith.constant 3.200000e+01 : f32
    %559 = vector.broadcast %cst_396 : f32 to vector<32x1xf32>
    %560 = arith.divf %558, %559 : vector<32x1xf32>
    %561 = vector.broadcast %560 : vector<32x1xf32> to vector<32x32xf32>
    %562 = arith.subf %552, %561 : vector<32x32xf32>
    %563 = arith.mulf %562, %562 : vector<32x32xf32>
    %cst_397 = arith.constant dense<0.000000e+00> : vector<32xf32>
    %564 = vector.multi_reduction <add>, %563, %cst_397 [1] : vector<32x32xf32> to vector<32xf32>
    %565 = vector.shape_cast %564 : vector<32xf32> to vector<32x1xf32>
    %cst_398 = arith.constant 3.200000e+01 : f32
    %566 = vector.broadcast %cst_398 : f32 to vector<32x1xf32>
    %567 = arith.divf %565, %566 : vector<32x1xf32>
    %cst_399 = arith.constant 9.99999974E-6 : f32
    %568 = vector.broadcast %cst_399 : f32 to vector<32x1xf32>
    %569 = arith.addf %567, %568 : vector<32x1xf32>
    %570 = math.rsqrt %569 : vector<32x1xf32>
    %571 = vector.broadcast %570 : vector<32x1xf32> to vector<32x32xf32>
    %572 = arith.mulf %562, %571 : vector<32x32xf32>
    %573 = vector.broadcast %554 : vector<1x32xf32> to vector<32x32xf32>
    %574 = arith.mulf %572, %573 : vector<32x32xf32>
    %575 = vector.broadcast %556 : vector<1x32xf32> to vector<32x32xf32>
    %576 = arith.addf %574, %575 : vector<32x32xf32>
    %577 = arith.truncf %576 : vector<32x32xf32> to vector<32x32xbf16>
    %c0_400 = arith.constant 0 : index
    %c0_401 = arith.constant 0 : index
    %c0_402 = arith.constant 0 : index
    %578 = vector.load %arg8[%c0_400, %c0_401, %c0_402] : memref<1x32x2048xbf16, #tpu.memory_space<vmem>>, vector<1x32x2048xbf16>
    %579 = vector.shape_cast %578 : vector<1x32x2048xbf16> to vector<32x2048xbf16>
    %cst_403 = arith.constant dense<0.000000e+00> : vector<32x2048xf32>
    %580 = tpu.matmul %577, %579, %cst_403 {dimension_numbers = #tpu.dot_dimension_numbers<[1], [0], [0], [1], [0, 0, 1, 1], [], []>} : vector<32x32xbf16>, vector<32x2048xbf16>, vector<32x2048xf32> -> vector<32x2048xf32>
    %c0_404 = arith.constant 0 : index
    %c0_405 = arith.constant 0 : index
    %c0_406 = arith.constant 0 : index
    %581 = vector.load %arg9[%c0_404, %c0_405, %c0_406] : memref<1x1x2048xf32, #tpu.memory_space<vmem>>, vector<1x1x2048xf32>
    %582 = vector.shape_cast %581 : vector<1x1x2048xf32> to vector<1x2048xf32>
    %583 = vector.broadcast %582 : vector<1x2048xf32> to vector<32x2048xf32>
    %584 = arith.addf %580, %583 : vector<32x2048xf32>
    %cst_407 = arith.constant 0.000000e+00 : f32
    %585 = vector.broadcast %cst_407 : f32 to vector<32x2048xf32>
    %586 = arith.maximumf %584, %585 : vector<32x2048xf32>
    %587 = arith.truncf %586 : vector<32x2048xf32> to vector<32x2048xbf16>
    %c0_408 = arith.constant 0 : index
    %c0_409 = arith.constant 0 : index
    %c0_410 = arith.constant 0 : index
    %588 = vector.load %arg10[%c0_408, %c0_409, %c0_410] : memref<1x2048x32xbf16, #tpu.memory_space<vmem>>, vector<1x2048x32xbf16>
    %589 = vector.shape_cast %588 : vector<1x2048x32xbf16> to vector<2048x32xbf16>
    %cst_411 = arith.constant dense<0.000000e+00> : vector<32x32xf32>
    %590 = tpu.matmul %587, %589, %cst_411 {dimension_numbers = #tpu.dot_dimension_numbers<[1], [0], [0], [1], [0, 0, 1, 1], [], []>} : vector<32x2048xbf16>, vector<2048x32xbf16>, vector<32x32xf32> -> vector<32x32xf32>
    %c0_412 = arith.constant 0 : index
    %c0_413 = arith.constant 0 : index
    %c0_414 = arith.constant 0 : index
    %591 = vector.load %arg11[%c0_412, %c0_413, %c0_414] : memref<1x1x32xf32, #tpu.memory_space<vmem>>, vector<1x1x32xf32>
    %592 = vector.shape_cast %591 : vector<1x1x32xf32> to vector<1x32xf32>
    %593 = vector.broadcast %592 : vector<1x32xf32> to vector<32x32xf32>
    %594 = arith.addf %590, %593 : vector<32x32xf32>
    %595 = arith.addf %576, %594 : vector<32x32xf32>
    %c0_415 = arith.constant 0 : index
    %c0_416 = arith.constant 0 : index
    %c0_417 = arith.constant 0 : index
    %596 = vector.load %arg12[%c0_415, %c0_416, %c0_417] : memref<1x1x32xf32, #tpu.memory_space<vmem>>, vector<1x1x32xf32>
    %597 = vector.shape_cast %596 : vector<1x1x32xf32> to vector<1x32xf32>
    %c0_418 = arith.constant 0 : index
    %c0_419 = arith.constant 0 : index
    %c0_420 = arith.constant 0 : index
    %598 = vector.load %arg13[%c0_418, %c0_419, %c0_420] : memref<1x1x32xf32, #tpu.memory_space<vmem>>, vector<1x1x32xf32>
    %599 = vector.shape_cast %598 : vector<1x1x32xf32> to vector<1x32xf32>
    %cst_421 = arith.constant dense<0.000000e+00> : vector<32xf32>
    %600 = vector.multi_reduction <add>, %595, %cst_421 [1] : vector<32x32xf32> to vector<32xf32>
    %601 = vector.shape_cast %600 : vector<32xf32> to vector<32x1xf32>
    %cst_422 = arith.constant 3.200000e+01 : f32
    %602 = vector.broadcast %cst_422 : f32 to vector<32x1xf32>
    %603 = arith.divf %601, %602 : vector<32x1xf32>
    %604 = vector.broadcast %603 : vector<32x1xf32> to vector<32x32xf32>
    %605 = arith.subf %595, %604 : vector<32x32xf32>
    %606 = arith.mulf %605, %605 : vector<32x32xf32>
    %cst_423 = arith.constant dense<0.000000e+00> : vector<32xf32>
    %607 = vector.multi_reduction <add>, %606, %cst_423 [1] : vector<32x32xf32> to vector<32xf32>
    %608 = vector.shape_cast %607 : vector<32xf32> to vector<32x1xf32>
    %cst_424 = arith.constant 3.200000e+01 : f32
    %609 = vector.broadcast %cst_424 : f32 to vector<32x1xf32>
    %610 = arith.divf %608, %609 : vector<32x1xf32>
    %cst_425 = arith.constant 9.99999974E-6 : f32
    %611 = vector.broadcast %cst_425 : f32 to vector<32x1xf32>
    %612 = arith.addf %610, %611 : vector<32x1xf32>
    %613 = math.rsqrt %612 : vector<32x1xf32>
    %614 = vector.broadcast %613 : vector<32x1xf32> to vector<32x32xf32>
    %615 = arith.mulf %605, %614 : vector<32x32xf32>
    %616 = vector.broadcast %597 : vector<1x32xf32> to vector<32x32xf32>
    %617 = arith.mulf %615, %616 : vector<32x32xf32>
    %618 = vector.broadcast %599 : vector<1x32xf32> to vector<32x32xf32>
    %619 = arith.addf %617, %618 : vector<32x32xf32>
    %c0_426 = arith.constant 0 : index
    %c0_427 = arith.constant 0 : index
    %620 = vector.load %arg19[%c0_426, %c0_427] : memref<32x32xf32, #tpu.memory_space<vmem>>, vector<32x32xf32>
    tpu.vector_store %arg19[%c0_426, %c0_427], %619 {strides = array<i32>} : memref<32x32xf32, #tpu.memory_space<vmem>>, vector<32x32xf32>,
    %c1_i32 = arith.constant 1 : i32
    %621 = arith.cmpi eq, %arg0, %c1_i32 : i32
    %622 = arith.extui %621 : i1 to i32
    %c0_i32_428 = arith.constant 0 : i32
    %623 = arith.cmpi ne, %622, %c0_i32_428 : i32
    scf.if %623 {
      %624 = vector.extract_strided_slice %619 {offsets = [0, 0], sizes = [1, 32], strides = [1, 1]} : vector<32x32xf32> to vector<1x32xf32>
      %625 = vector.extract_strided_slice %619 {offsets = [16, 0], sizes = [1, 32], strides = [1, 1]} : vector<32x32xf32> to vector<1x32xf32>
      %626 = tpu.concatenate %624, %625 in 0 : vector<1x32xf32>, vector<1x32xf32> -> vector<2x32xf32>
      %c0_429 = arith.constant 0 : index
      %c0_430 = arith.constant 0 : index
      %627 = vector.load %arg14[%c0_429, %c0_430] : memref<32x32xf32, #tpu.memory_space<vmem>>, vector<32x32xf32>
      %cst_431 = arith.constant dense<0.000000e+00> : vector<2x32xf32>
      %628 = tpu.matmul %626, %627, %cst_431 {dimension_numbers = #tpu.dot_dimension_numbers<[1], [0], [0], [1], [0, 0, 1, 1], [], []>} : vector<2x32xf32>, vector<32x32xf32>, vector<2x32xf32> -> vector<2x32xf32>
      %c0_432 = arith.constant 0 : index
      %c0_433 = arith.constant 0 : index
      %629 = vector.load %arg15[%c0_432, %c0_433] : memref<1x32xf32, #tpu.memory_space<vmem>>, vector<1x32xf32>
      %630 = vector.broadcast %629 : vector<1x32xf32> to vector<2x32xf32>
      %631 = arith.addf %628, %630 : vector<2x32xf32>
      %632 = math.tanh %631 : vector<2x32xf32>
      %c0_434 = arith.constant 0 : index
      %c0_435 = arith.constant 0 : index
      %633 = vector.load %arg16[%c0_434, %c0_435] : memref<32x1xf32, #tpu.memory_space<vmem>>, vector<32x1xf32>
      %cst_436 = arith.constant dense<0.000000e+00> : vector<2x1xf32>
      %634 = tpu.matmul %632, %633, %cst_436 {dimension_numbers = #tpu.dot_dimension_numbers<[1], [0], [0], [1], [0, 0, 1, 1], [], []>} : vector<2x32xf32>, vector<32x1xf32>, vector<2x1xf32> -> vector<2x1xf32>
      %c0_437 = arith.constant 0 : index
      %c0_438 = arith.constant 0 : index
      %635 = vector.load %arg17[%c0_437, %c0_438] : memref<1x1xf32, #tpu.memory_space<vmem>>, vector<1x1xf32>
      %636 = vector.broadcast %635 : vector<1x1xf32> to vector<2x1xf32>
      %637 = arith.addf %634, %636 : vector<2x1xf32>
      %c0_439 = arith.constant 0 : index
      %c0_440 = arith.constant 0 : index
      %638 = vector.load %arg18[%c0_439, %c0_440] : memref<2x1xf32, #tpu.memory_space<vmem>>, vector<2x1xf32>
      tpu.vector_store %arg18[%c0_439, %c0_440], %637 {strides = array<i32>} : memref<2x1xf32, #tpu.memory_space<vmem>>, vector<2x1xf32>,
    } else {
    }
    return
  }
  func.func @transform_0(%arg0: i32) -> (i32, i32) {
    %c0_i32 = arith.constant 0 : i32
    %c0_i32_0 = arith.constant 0 : i32
    %c0_i32_1 = arith.constant 0 : i32
    return %c0_i32, %c0_i32_0 : i32, i32
  }
  func.func @transform_1(%arg0: i32) -> (i32, i32, i32, i32, i32) {
    %c0_i32 = arith.constant 0 : i32
    %c0_i32_0 = arith.constant 0 : i32
    %c0_i32_1 = arith.constant 0 : i32
    %c0_i32_2 = arith.constant 0 : i32
    %c0_i32_3 = arith.constant 0 : i32
    return %arg0, %c0_i32, %c0_i32_0, %c0_i32_1, %c0_i32_2 : i32, i32, i32, i32, i32
  }
  func.func @transform_2(%arg0: i32) -> (i32, i32, i32, i32, i32) {
    %c0_i32 = arith.constant 0 : i32
    %c0_i32_0 = arith.constant 0 : i32
    %c0_i32_1 = arith.constant 0 : i32
    %c0_i32_2 = arith.constant 0 : i32
    %c0_i32_3 = arith.constant 0 : i32
    return %arg0, %c0_i32, %c0_i32_0, %c0_i32_1, %c0_i32_2 : i32, i32, i32, i32, i32
  }
  func.func @transform_3(%arg0: i32) -> (i32, i32, i32, i32) {
    %c0_i32 = arith.constant 0 : i32
    %c0_i32_0 = arith.constant 0 : i32
    %c0_i32_1 = arith.constant 0 : i32
    %c0_i32_2 = arith.constant 0 : i32
    return %arg0, %c0_i32, %c0_i32_0, %c0_i32_1 : i32, i32, i32, i32
  }
  func.func @transform_4(%arg0: i32) -> (i32, i32, i32) {
    %c0_i32 = arith.constant 0 : i32
    %c0_i32_0 = arith.constant 0 : i32
    %c0_i32_1 = arith.constant 0 : i32
    return %arg0, %c0_i32, %c0_i32_0 : i32, i32, i32
  }
  func.func @transform_5(%arg0: i32) -> (i32, i32, i32) {
    %c0_i32 = arith.constant 0 : i32
    %c0_i32_0 = arith.constant 0 : i32
    %c0_i32_1 = arith.constant 0 : i32
    return %arg0, %c0_i32, %c0_i32_0 : i32, i32, i32
  }
  func.func @transform_6(%arg0: i32) -> (i32, i32, i32) {
    %c0_i32 = arith.constant 0 : i32
    %c0_i32_0 = arith.constant 0 : i32
    %c0_i32_1 = arith.constant 0 : i32
    return %arg0, %c0_i32, %c0_i32_0 : i32, i32, i32
  }
  func.func @transform_7(%arg0: i32) -> (i32, i32, i32) {
    %c0_i32 = arith.constant 0 : i32
    %c0_i32_0 = arith.constant 0 : i32
    %c0_i32_1 = arith.constant 0 : i32
    return %arg0, %c0_i32, %c0_i32_0 : i32, i32, i32
  }
  func.func @transform_8(%arg0: i32) -> (i32, i32, i32) {
    %c0_i32 = arith.constant 0 : i32
    %c0_i32_0 = arith.constant 0 : i32
    %c0_i32_1 = arith.constant 0 : i32
    return %arg0, %c0_i32, %c0_i32_0 : i32, i32, i32
  }
  func.func @transform_9(%arg0: i32) -> (i32, i32, i32) {
    %c0_i32 = arith.constant 0 : i32
    %c0_i32_0 = arith.constant 0 : i32
    %c0_i32_1 = arith.constant 0 : i32
    return %arg0, %c0_i32, %c0_i32_0 : i32, i32, i32
  }
  func.func @transform_10(%arg0: i32) -> (i32, i32, i32) {
    %c0_i32 = arith.constant 0 : i32
    %c0_i32_0 = arith.constant 0 : i32
    %c0_i32_1 = arith.constant 0 : i32
    return %arg0, %c0_i32, %c0_i32_0 : i32, i32, i32
  }
  func.func @transform_11(%arg0: i32) -> (i32, i32, i32) {
    %c0_i32 = arith.constant 0 : i32
    %c0_i32_0 = arith.constant 0 : i32
    %c0_i32_1 = arith.constant 0 : i32
    return %arg0, %c0_i32, %c0_i32_0 : i32, i32, i32
  }
  func.func @transform_12(%arg0: i32) -> (i32, i32, i32) {
    %c0_i32 = arith.constant 0 : i32
    %c0_i32_0 = arith.constant 0 : i32
    %c0_i32_1 = arith.constant 0 : i32
    return %arg0, %c0_i32, %c0_i32_0 : i32, i32, i32
  }
  func.func @transform_13(%arg0: i32) -> (i32, i32) {
    %c0_i32 = arith.constant 0 : i32
    %c0_i32_0 = arith.constant 0 : i32
    %c0_i32_1 = arith.constant 0 : i32
    return %c0_i32, %c0_i32_0 : i32, i32
  }
  func.func @transform_14(%arg0: i32) -> (i32, i32) {
    %c0_i32 = arith.constant 0 : i32
    %c0_i32_0 = arith.constant 0 : i32
    %c0_i32_1 = arith.constant 0 : i32
    return %c0_i32, %c0_i32_0 : i32, i32
  }
  func.func @transform_15(%arg0: i32) -> (i32, i32) {
    %c0_i32 = arith.constant 0 : i32
    %c0_i32_0 = arith.constant 0 : i32
    %c0_i32_1 = arith.constant 0 : i32
    return %c0_i32, %c0_i32_0 : i32, i32
  }
  func.func @transform_16(%arg0: i32) -> (i32, i32) {
    %c0_i32 = arith.constant 0 : i32
    %c0_i32_0 = arith.constant 0 : i32
    %c0_i32_1 = arith.constant 0 : i32
    return %c0_i32, %c0_i32_0 : i32, i32
  }
  func.func @transform_17(%arg0: i32) -> (i32, i32) {
    %c0_i32 = arith.constant 0 : i32
    %c0_i32_0 = arith.constant 0 : i32
    %c0_i32_1 = arith.constant 0 : i32
    return %c0_i32, %c0_i32_0 : i32, i32
  }
}

</mosaic_0001>

<llo_original>
// kernel: tpu_custom_call.1
$region0: #{tpu_custom_call.1}
  #allocation0 [shape = 'u32[]', space=smem, size = 0x4, offset = 0x4, fixed_abs, tag = 'smem constant byte address 0x4 - core index']
  #allocation1 [shape = 'u32[144,128]{1,0:T(1,128)}', space=vmem, size = 0x12000, scoped, tag = 'internal scratch']
  #allocation2 [shape = 'f32[32,32]{1,0:T(8,128)}', space=vmem, size = 0x4000, scoped, tag = 'scratch operand']
  #allocation3 [shape = 'f32[1,1]{1,0:T(1,128)S(1)}', space=vmem, size = 0x200, scoped, tag = 'scoped memory for tpu_custom_call.1']
  %s0 = inlined_call_operand.vmem [shape: f32[32,32], index: 0, kind: input, shape index: {}]
  %s1 = inlined_call_operand.vmem [shape: bf16[2,3,8,32,4], index: 1, kind: input, shape index: {}]
  %s2 = inlined_call_operand.vmem [shape: f32[2,3,8,1,4], index: 2, kind: input, shape index: {}]
  %s3 = inlined_call_operand.vmem [shape: bf16[2,8,4,32], index: 3, kind: input, shape index: {}]
  %s4 = inlined_call_operand.vmem [shape: f32[2,1,32], index: 4, kind: input, shape index: {}]
  %s5 = inlined_call_operand.vmem [shape: f32[2,1,32], index: 5, kind: input, shape index: {}]
  %s6 = inlined_call_operand.vmem [shape: f32[2,1,32], index: 6, kind: input, shape index: {}]
  %s7 = inlined_call_operand.vmem [shape: bf16[2,32,2048], index: 7, kind: input, shape index: {}]
  %s8 = inlined_call_operand.vmem [shape: f32[2,1,2048], index: 8, kind: input, shape index: {}]
  %s9 = inlined_call_operand.vmem [shape: bf16[2,2048,32], index: 9, kind: input, shape index: {}]
  %s10 = inlined_call_operand.vmem [shape: f32[2,1,32], index: 10, kind: input, shape index: {}]
  %s11 = inlined_call_operand.vmem [shape: f32[2,1,32], index: 11, kind: input, shape index: {}]
  %s12 = inlined_call_operand.vmem [shape: f32[2,1,32], index: 12, kind: input, shape index: {}]
  %s13 = inlined_call_operand.vmem [shape: f32[32,32], index: 13, kind: input, shape index: {}]
  %s14 = inlined_call_operand.vmem [shape: f32[1,32], index: 14, kind: input, shape index: {}]
  %s15 = inlined_call_operand.vmem [shape: f32[32,1], index: 15, kind: input, shape index: {}]
  %s16 = inlined_call_operand.<no memory space> [shape: f32[1,1], index: 16, kind: input, shape index: {}]
  %s17 = inlined_call_operand.vmem [shape: f32[2,1], index: 17, kind: output, shape index: {}]
  %s18 = sld [smem:[#allocation0]]
  $region109: #{tpu_custom_call.1} parent=0
    _
  %s20 = ssub.s32 1, %s18
  %s21 = scalar_select 0, %s20, %s18
  %v22 = vstv %s16
  %23 = vst [vmem:[#allocation3] sm:$0x1] %v22
  loop: start=0, step=1, limit=4
  $region2: #{tpu_custom_call.1} parent=0 // loop_pre_header
    _
  $region3: #{tpu_custom_call.1} parent=0 // loop_header
    %s25 = sphi 0, %s29
    %p26 = scmp.ge.s32.totalorder %s25, 4
    %s33 = sphi 0, %s33
    %s35 = sphi 0, %s33
    %s36 = sphi 0, %s35
    %s50 = sphi 0, %s36
    %s56 = sphi 0, %s58
    %s59 = sphi 0, %s56
    %s60 = sphi 0, %s59
    %s76 = sphi 0, %s60
    %s82 = sphi 0, %s84
    %s85 = sphi 0, %s82
    %s86 = sphi 0, %s85
    %s102 = sphi 0, %s86
    %s108 = sphi 0, %s110
    %s111 = sphi 0, %s108
    %s112 = sphi 0, %s111
    %s128 = sphi 0, %s112
    %s134 = sphi 0, %s136
    %s137 = sphi 0, %s134
    %s138 = sphi 0, %s137
    %s154 = sphi 0, %s138
    %s160 = sphi 0, %s162
    %s163 = sphi 0, %s160
    %s164 = sphi 0, %s163
    %s180 = sphi 0, %s164
    %s186 = sphi 0, %s188
    %s189 = sphi 0, %s186
    %s190 = sphi 0, %s189
    %s206 = sphi 0, %s190
    %s212 = sphi 0, %s214
    %s215 = sphi 0, %s212
    %s216 = sphi 0, %s215
    %s232 = sphi 0, %s216
    %s238 = sphi 0, %s240
    %s241 = sphi 0, %s238
    %s242 = sphi 0, %s241
    %s258 = sphi 0, %s242
    %s264 = sphi 0, %s266
    %s267 = sphi 0, %s264
    %s268 = sphi 0, %s267
    %s284 = sphi 0, %s268
    %s290 = sphi 0, %s292
    %s293 = sphi 0, %s290
    %s294 = sphi 0, %s293
    %s310 = sphi 0, %s294
    %s316 = sphi 0, %s318
    %s319 = sphi 0, %s316
    %s320 = sphi 0, %s319
    %s336 = sphi 0, %s320
    %s342 = sphi 0, %s344
    %s345 = sphi 0, %s342
    %s346 = sphi 0, %s345
    %s362 = sphi 0, %s346
    %s366 = sphi 0, %s366
    %s368 = sphi 0, %s366
    %s369 = sphi 0, %s368
    %s383 = sphi 0, %s369
    %s387 = sphi 0, %s387
    %s389 = sphi 0, %s387
    %s390 = sphi 0, %s389
    %s404 = sphi 0, %s390
    %s408 = sphi 0, %s408
    %s410 = sphi 0, %s408
    %s411 = sphi 0, %s410
    %s425 = sphi 0, %s411
    %s429 = sphi 0, %s429
    %s431 = sphi 0, %s429
    %s432 = sphi 0, %s431
    %s446 = sphi 0, %s432
    %s450 = sphi 0, %s450
    %s452 = sphi 0, %s450
    %s453 = sphi 0, %s452
    %s467 = sphi 0, %s453
  $region4: #{tpu_custom_call.1} parent=0 // loop_header_branch
    %28 = sbr.rel (%p26) target = $region8
  $region5: #{tpu_custom_call.1} parent=0 // loop_body
    %s30 = ssub.s32 %s25, 1
    %s31 = ssub.s32 %s25, 2
    %s32 = sadd.s32 %s25, 1
    %s34 = sadd.s32 %s33, 1
    %p37 = scmp.eq.s32.totalorder %s25, 1
    %p38 = scmp.ne.s32.totalorder %s33, %s35
    %p39 = scmp.eq.s32.totalorder %s25, 0
    %p40 = por %p38, %p39
    %p41 = scmp.ne.s32.totalorder %s33, %s35
    %p42 = scmp.eq.s32.totalorder %s30, 1
    %p43 = por %p41, %p42
    %p44 = scmp.ne.s32.totalorder %s35, %s36
    %p45 = scmp.eq.s32.totalorder %s30, 0
    %p46 = por %p44, %p45
    %p47 = scmp.ne.s32.totalorder %s35, %s36
    %p48 = scmp.eq.s32.totalorder %s31, 1
    %p49 = por %p47, %p48
    %p51 = scmp.ne.s32.totalorder %s36, %s50
    %p52 = scmp.eq.s32.totalorder %s31, 0
    %p53 = por %p51, %p52
    %s54 = ssub.s32 %s25, %s32
    %p55 = scmp.eq.s32.totalorder %s54, 0
    %s57 = sadd.s32 %s56, 1
    %s58 = scalar_select %p55, %s56, %s57
    %p61 = pneg %p55
    %p62 = scmp.eq.s32.totalorder %s25, 1
    %p63 = por %p61, %p62
    %p64 = scmp.ne.s32.totalorder %s56, %s59
    %p65 = scmp.eq.s32.totalorder %s25, 0
    %p66 = por %p64, %p65
    %p67 = scmp.ne.s32.totalorder %s56, %s59
    %p68 = scmp.eq.s32.totalorder %s30, 1
    %p69 = por %p67, %p68
    %p70 = scmp.ne.s32.totalorder %s59, %s60
    %p71 = scmp.eq.s32.totalorder %s30, 0
    %p72 = por %p70, %p71
    %p73 = scmp.ne.s32.totalorder %s59, %s60
    %p74 = scmp.eq.s32.totalorder %s31, 1
    %p75 = por %p73, %p74
    %p77 = scmp.ne.s32.totalorder %s60, %s76
    %p78 = scmp.eq.s32.totalorder %s31, 0
    %p79 = por %p77, %p78
    %s80 = ssub.s32 %s25, %s32
    %p81 = scmp.eq.s32.totalorder %s80, 0
    %s83 = sadd.s32 %s82, 1
    %s84 = scalar_select %p81, %s82, %s83
    %p87 = pneg %p81
    %p88 = scmp.eq.s32.totalorder %s25, 1
    %p89 = por %p87, %p88
    %p90 = scmp.ne.s32.totalorder %s82, %s85
    %p91 = scmp.eq.s32.totalorder %s25, 0
    %p92 = por %p90, %p91
    %p93 = scmp.ne.s32.totalorder %s82, %s85
    %p94 = scmp.eq.s32.totalorder %s30, 1
    %p95 = por %p93, %p94
    %p96 = scmp.ne.s32.totalorder %s85, %s86
    %p97 = scmp.eq.s32.totalorder %s30, 0
    %p98 = por %p96, %p97
    %p99 = scmp.ne.s32.totalorder %s85, %s86
    %p100 = scmp.eq.s32.totalorder %s31, 1
    %p101 = por %p99, %p100
    %p103 = scmp.ne.s32.totalorder %s86, %s102
    %p104 = scmp.eq.s32.totalorder %s31, 0
    %p105 = por %p103, %p104
    %s106 = ssub.s32 %s25, %s32
    %p107 = scmp.eq.s32.totalorder %s106, 0
    %s109 = sadd.s32 %s108, 1
    %s110 = scalar_select %p107, %s108, %s109
    %p113 = pneg %p107
    %p114 = scmp.eq.s32.totalorder %s25, 1
    %p115 = por %p113, %p114
    %p116 = scmp.ne.s32.totalorder %s108, %s111
    %p117 = scmp.eq.s32.totalorder %s25, 0
    %p118 = por %p116, %p117
    %p119 = scmp.ne.s32.totalorder %s108, %s111
    %p120 = scmp.eq.s32.totalorder %s30, 1
    %p121 = por %p119, %p120
    %p122 = scmp.ne.s32.totalorder %s111, %s112
    %p123 = scmp.eq.s32.totalorder %s30, 0
    %p124 = por %p122, %p123
    %p125 = scmp.ne.s32.totalorder %s111, %s112
    %p126 = scmp.eq.s32.totalorder %s31, 1
    %p127 = por %p125, %p126
    %p129 = scmp.ne.s32.totalorder %s112, %s128
    %p130 = scmp.eq.s32.totalorder %s31, 0
    %p131 = por %p129, %p130
    %s132 = ssub.s32 %s25, %s32
    %p133 = scmp.eq.s32.totalorder %s132, 0
    %s135 = sadd.s32 %s134, 1
    %s136 = scalar_select %p133, %s134, %s135
    %p139 = pneg %p133
    %p140 = scmp.eq.s32.totalorder %s25, 1
    %p141 = por %p139, %p140
    %p142 = scmp.ne.s32.totalorder %s134, %s137
    %p143 = scmp.eq.s32.totalorder %s25, 0
    %p144 = por %p142, %p143
    %p145 = scmp.ne.s32.totalorder %s134, %s137
    %p146 = scmp.eq.s32.totalorder %s30, 1
    %p147 = por %p145, %p146
    %p148 = scmp.ne.s32.totalorder %s137, %s138
    %p149 = scmp.eq.s32.totalorder %s30, 0
    %p150 = por %p148, %p149
    %p151 = scmp.ne.s32.totalorder %s137, %s138
    %p152 = scmp.eq.s32.totalorder %s31, 1
    %p153 = por %p151, %p152
    %p155 = scmp.ne.s32.totalorder %s138, %s154
    %p156 = scmp.eq.s32.totalorder %s31, 0
    %p157 = por %p155, %p156
    %s158 = ssub.s32 %s25, %s32
    %p159 = scmp.eq.s32.totalorder %s158, 0
    %s161 = sadd.s32 %s160, 1
    %s162 = scalar_select %p159, %s160, %s161
    %p165 = pneg %p159
    %p166 = scmp.eq.s32.totalorder %s25, 1
    %p167 = por %p165, %p166
    %p168 = scmp.ne.s32.totalorder %s160, %s163
    %p169 = scmp.eq.s32.totalorder %s25, 0
    %p170 = por %p168, %p169
    %p171 = scmp.ne.s32.totalorder %s160, %s163
    %p172 = scmp.eq.s32.totalorder %s30, 1
    %p173 = por %p171, %p172
    %p174 = scmp.ne.s32.totalorder %s163, %s164
    %p175 = scmp.eq.s32.totalorder %s30, 0
    %p176 = por %p174, %p175
    %p177 = scmp.ne.s32.totalorder %s163, %s164
    %p178 = scmp.eq.s32.totalorder %s31, 1
    %p179 = por %p177, %p178
    %p181 = scmp.ne.s32.totalorder %s164, %s180
    %p182 = scmp.eq.s32.totalorder %s31, 0
    %p183 = por %p181, %p182
    %s184 = ssub.s32 %s25, %s32
    %p185 = scmp.eq.s32.totalorder %s184, 0
    %s187 = sadd.s32 %s186, 1
    %s188 = scalar_select %p185, %s186, %s187
    %p191 = pneg %p185
    %p192 = scmp.eq.s32.totalorder %s25, 1
    %p193 = por %p191, %p192
    %p194 = scmp.ne.s32.totalorder %s186, %s189
    %p195 = scmp.eq.s32.totalorder %s25, 0
    %p196 = por %p194, %p195
    %p197 = scmp.ne.s32.totalorder %s186, %s189
    %p198 = scmp.eq.s32.totalorder %s30, 1
    %p199 = por %p197, %p198
    %p200 = scmp.ne.s32.totalorder %s189, %s190
    %p201 = scmp.eq.s32.totalorder %s30, 0
    %p202 = por %p200, %p201
    %p203 = scmp.ne.s32.totalorder %s189, %s190
    %p204 = scmp.eq.s32.totalorder %s31, 1
    %p205 = por %p203, %p204
    %p207 = scmp.ne.s32.totalorder %s190, %s206
    %p208 = scmp.eq.s32.totalorder %s31, 0
    %p209 = por %p207, %p208
    %s210 = ssub.s32 %s25, %s32
    %p211 = scmp.eq.s32.totalorder %s210, 0
    %s213 = sadd.s32 %s212, 1
    %s214 = scalar_select %p211, %s212, %s213
    %p217 = pneg %p211
    %p218 = scmp.eq.s32.totalorder %s25, 1
    %p219 = por %p217, %p218
    %p220 = scmp.ne.s32.totalorder %s212, %s215
    %p221 = scmp.eq.s32.totalorder %s25, 0
    %p222 = por %p220, %p221
    %p223 = scmp.ne.s32.totalorder %s212, %s215
    %p224 = scmp.eq.s32.totalorder %s30, 1
    %p225 = por %p223, %p224
    %p226 = scmp.ne.s32.totalorder %s215, %s216
    %p227 = scmp.eq.s32.totalorder %s30, 0
    %p228 = por %p226, %p227
    %p229 = scmp.ne.s32.totalorder %s215, %s216
    %p230 = scmp.eq.s32.totalorder %s31, 1
    %p231 = por %p229, %p230
    %p233 = scmp.ne.s32.totalorder %s216, %s232
    %p234 = scmp.eq.s32.totalorder %s31, 0
    %p235 = por %p233, %p234
    %s236 = ssub.s32 %s25, %s32
    %p237 = scmp.eq.s32.totalorder %s236, 0
    %s239 = sadd.s32 %s238, 1
    %s240 = scalar_select %p237, %s238, %s239
    %p243 = pneg %p237
    %p244 = scmp.eq.s32.totalorder %s25, 1
    %p245 = por %p243, %p244
    %p246 = scmp.ne.s32.totalorder %s238, %s241
    %p247 = scmp.eq.s32.totalorder %s25, 0
    %p248 = por %p246, %p247
    %p249 = scmp.ne.s32.totalorder %s238, %s241
    %p250 = scmp.eq.s32.totalorder %s30, 1
    %p251 = por %p249, %p250
    %p252 = scmp.ne.s32.totalorder %s241, %s242
    %p253 = scmp.eq.s32.totalorder %s30, 0
    %p254 = por %p252, %p253
    %p255 = scmp.ne.s32.totalorder %s241, %s242
    %p256 = scmp.eq.s32.totalorder %s31, 1
    %p257 = por %p255, %p256
    %p259 = scmp.ne.s32.totalorder %s242, %s258
    %p260 = scmp.eq.s32.totalorder %s31, 0
    %p261 = por %p259, %p260
    %s262 = ssub.s32 %s25, %s32
    %p263 = scmp.eq.s32.totalorder %s262, 0
    %s265 = sadd.s32 %s264, 1
    %s266 = scalar_select %p263, %s264, %s265
    %p269 = pneg %p263
    %p270 = scmp.eq.s32.totalorder %s25, 1
    %p271 = por %p269, %p270
    %p272 = scmp.ne.s32.totalorder %s264, %s267
    %p273 = scmp.eq.s32.totalorder %s25, 0
    %p274 = por %p272, %p273
    %p275 = scmp.ne.s32.totalorder %s264, %s267
    %p276 = scmp.eq.s32.totalorder %s30, 1
    %p277 = por %p275, %p276
    %p278 = scmp.ne.s32.totalorder %s267, %s268
    %p279 = scmp.eq.s32.totalorder %s30, 0
    %p280 = por %p278, %p279
    %p281 = scmp.ne.s32.totalorder %s267, %s268
    %p282 = scmp.eq.s32.totalorder %s31, 1
    %p283 = por %p281, %p282
    %p285 = scmp.ne.s32.totalorder %s268, %s284
    %p286 = scmp.eq.s32.totalorder %s31, 0
    %p287 = por %p285, %p286
    %s288 = ssub.s32 %s25, %s32
    %p289 = scmp.eq.s32.totalorder %s288, 0
    %s291 = sadd.s32 %s290, 1
    %s292 = scalar_select %p289, %s290, %s291
    %p295 = pneg %p289
    %p296 = scmp.eq.s32.totalorder %s25, 1
    %p297 = por %p295, %p296
    %p298 = scmp.ne.s32.totalorder %s290, %s293
    %p299 = scmp.eq.s32.totalorder %s25, 0
    %p300 = por %p298, %p299
    %p301 = scmp.ne.s32.totalorder %s290, %s293
    %p302 = scmp.eq.s32.totalorder %s30, 1
    %p303 = por %p301, %p302
    %p304 = scmp.ne.s32.totalorder %s293, %s294
    %p305 = scmp.eq.s32.totalorder %s30, 0
    %p306 = por %p304, %p305
    %p307 = scmp.ne.s32.totalorder %s293, %s294
    %p308 = scmp.eq.s32.totalorder %s31, 1
    %p309 = por %p307, %p308
    %p311 = scmp.ne.s32.totalorder %s294, %s310
    %p312 = scmp.eq.s32.totalorder %s31, 0
    %p313 = por %p311, %p312
    %s314 = ssub.s32 %s25, %s32
    %p315 = scmp.eq.s32.totalorder %s314, 0
    %s317 = sadd.s32 %s316, 1
    %s318 = scalar_select %p315, %s316, %s317
    %p321 = pneg %p315
    %p322 = scmp.eq.s32.totalorder %s25, 1
    %p323 = por %p321, %p322
    %p324 = scmp.ne.s32.totalorder %s316, %s319
    %p325 = scmp.eq.s32.totalorder %s25, 0
    %p326 = por %p324, %p325
    %p327 = scmp.ne.s32.totalorder %s316, %s319
    %p328 = scmp.eq.s32.totalorder %s30, 1
    %p329 = por %p327, %p328
    %p330 = scmp.ne.s32.totalorder %s319, %s320
    %p331 = scmp.eq.s32.totalorder %s30, 0
    %p332 = por %p330, %p331
    %p333 = scmp.ne.s32.totalorder %s319, %s320
    %p334 = scmp.eq.s32.totalorder %s31, 1
    %p335 = por %p333, %p334
    %p337 = scmp.ne.s32.totalorder %s320, %s336
    %p338 = scmp.eq.s32.totalorder %s31, 0
    %p339 = por %p337, %p338
    %s340 = ssub.s32 %s25, %s32
    %p341 = scmp.eq.s32.totalorder %s340, 0
    %s343 = sadd.s32 %s342, 1
    %s344 = scalar_select %p341, %s342, %s343
    %p347 = pneg %p341
    %p348 = scmp.eq.s32.totalorder %s25, 1
    %p349 = por %p347, %p348
    %p350 = scmp.ne.s32.totalorder %s342, %s345
    %p351 = scmp.eq.s32.totalorder %s25, 0
    %p352 = por %p350, %p351
    %p353 = scmp.ne.s32.totalorder %s342, %s345
    %p354 = scmp.eq.s32.totalorder %s30, 1
    %p355 = por %p353, %p354
    %p356 = scmp.ne.s32.totalorder %s345, %s346
    %p357 = scmp.eq.s32.totalorder %s30, 0
    %p358 = por %p356, %p357
    %p359 = scmp.ne.s32.totalorder %s345, %s346
    %p360 = scmp.eq.s32.totalorder %s31, 1
    %p361 = por %p359, %p360
    %p363 = scmp.ne.s32.totalorder %s346, %s362
    %p364 = scmp.eq.s32.totalorder %s31, 0
    %p365 = por %p363, %p364
    %s367 = sadd.s32 %s366, 1
    %p370 = scmp.eq.s32.totalorder %s25, 1
    %p371 = scmp.ne.s32.totalorder %s366, %s368
    %p372 = scmp.eq.s32.totalorder %s25, 0
    %p373 = por %p371, %p372
    %p374 = scmp.ne.s32.totalorder %s366, %s368
    %p375 = scmp.eq.s32.totalorder %s30, 1
    %p376 = por %p374, %p375
    %p377 = scmp.ne.s32.totalorder %s368, %s369
    %p378 = scmp.eq.s32.totalorder %s30, 0
    %p379 = por %p377, %p378
    %p380 = scmp.ne.s32.totalorder %s368, %s369
    %p381 = scmp.eq.s32.totalorder %s31, 1
    %p382 = por %p380, %p381
    %p384 = scmp.ne.s32.totalorder %s369, %s383
    %p385 = scmp.eq.s32.totalorder %s31, 0
    %p386 = por %p384, %p385
    %s388 = sadd.s32 %s387, 1
    %p391 = scmp.eq.s32.totalorder %s25, 1
    %p392 = scmp.ne.s32.totalorder %s387, %s389
    %p393 = scmp.eq.s32.totalorder %s25, 0
    %p394 = por %p392, %p393
    %p395 = scmp.ne.s32.totalorder %s387, %s389
    %p396 = scmp.eq.s32.totalorder %s30, 1
    %p397 = por %p395, %p396
    %p398 = scmp.ne.s32.totalorder %s389, %s390
    %p399 = scmp.eq.s32.totalorder %s30, 0
    %p400 = por %p398, %p399
    %p401 = scmp.ne.s32.totalorder %s389, %s390
    %p402 = scmp.eq.s32.totalorder %s31, 1
    %p403 = por %p401, %p402
    %p405 = scmp.ne.s32.totalorder %s390, %s404
    %p406 = scmp.eq.s32.totalorder %s31, 0
    %p407 = por %p405, %p406
    %s409 = sadd.s32 %s408, 1
    %p412 = scmp.eq.s32.totalorder %s25, 1
    %p413 = scmp.ne.s32.totalorder %s408, %s410
    %p414 = scmp.eq.s32.totalorder %s25, 0
    %p415 = por %p413, %p414
    %p416 = scmp.ne.s32.totalorder %s408, %s410
    %p417 = scmp.eq.s32.totalorder %s30, 1
    %p418 = por %p416, %p417
    %p419 = scmp.ne.s32.totalorder %s410, %s411
    %p420 = scmp.eq.s32.totalorder %s30, 0
    %p421 = por %p419, %p420
    %p422 = scmp.ne.s32.totalorder %s410, %s411
    %p423 = scmp.eq.s32.totalorder %s31, 1
    %p424 = por %p422, %p423
    %p426 = scmp.ne.s32.totalorder %s411, %s425
    %p427 = scmp.eq.s32.totalorder %s31, 0
    %p428 = por %p426, %p427
    %s430 = sadd.s32 %s429, 1
    %p433 = scmp.eq.s32.totalorder %s25, 1
    %p434 = scmp.ne.s32.totalorder %s429, %s431
    %p435 = scmp.eq.s32.totalorder %s25, 0
    %p436 = por %p434, %p435
    %p437 = scmp.ne.s32.totalorder %s429, %s431
    %p438 = scmp.eq.s32.totalorder %s30, 1
    %p439 = por %p437, %p438
    %p440 = scmp.ne.s32.totalorder %s431, %s432
    %p441 = scmp.eq.s32.totalorder %s30, 0
    %p442 = por %p440, %p441
    %p443 = scmp.ne.s32.totalorder %s431, %s432
    %p444 = scmp.eq.s32.totalorder %s31, 1
    %p445 = por %p443, %p444
    %p447 = scmp.ne.s32.totalorder %s432, %s446
    %p448 = scmp.eq.s32.totalorder %s31, 0
    %p449 = por %p447, %p448
    %s451 = sadd.s32 %s450, 1
    %p454 = scmp.eq.s32.totalorder %s25, 1
    %p455 = scmp.ne.s32.totalorder %s450, %s452
    %p456 = scmp.eq.s32.totalorder %s25, 0
    %p457 = por %p455, %p456
    %p458 = scmp.ne.s32.totalorder %s450, %s452
    %p459 = scmp.eq.s32.totalorder %s30, 1
    %p460 = por %p458, %p459
    %p461 = scmp.ne.s32.totalorder %s452, %s453
    %p462 = scmp.eq.s32.totalorder %s30, 0
    %p463 = por %p461, %p462
    %p464 = scmp.ne.s32.totalorder %s452, %s453
    %p465 = scmp.eq.s32.totalorder %s31, 1
    %p466 = por %p464, %p465
    %p468 = scmp.ne.s32.totalorder %s453, %s467
    %p469 = scmp.eq.s32.totalorder %s31, 0
    %p470 = por %p468, %p469
    %p471 = scmp.le.s32.totalorder 1, %s25
    %p472 = scmp.lt.s32.totalorder %s25, 3
    %p473 = pnand %p471, %p472
    %p474 = pneg %p473
    // Predicated region
    $region9: #{tpu_custom_call.1} parent=5 // pred_check
      _
    $region10: #{tpu_custom_call.1} parent=5 // pred_check_branch
      %476 = sbr.rel (%p473) target = $region12
    $region11: #{tpu_custom_call.1} parent=5 // pred_region
      %s477 = ssub.s32 %s25, 1
      // Predicated region
      $region13: #{tpu_custom_call.1} parent=11 // pred_check
        %p478 = pneg %p46
      $region14: #{tpu_custom_call.1} parent=11 // pred_check_branch
        %480 = sbr.rel (%p478) target = $region16
      $region15: #{tpu_custom_call.1} parent=11 // pred_region
        _
      $region16: #{tpu_custom_call.1} parent=11 // pred_fallthru
        _
      // Predicated region
      $region17: #{tpu_custom_call.1} parent=11 // pred_check
        %p481 = pneg %p379
      $region18: #{tpu_custom_call.1} parent=11 // pred_check_branch
        %483 = sbr.rel (%p481) target = $region20
      $region19: #{tpu_custom_call.1} parent=11 // pred_region
        _
      $region20: #{tpu_custom_call.1} parent=11 // pred_fallthru
        _
      // Predicated region
      $region21: #{tpu_custom_call.1} parent=11 // pred_check
        %p484 = pneg %p400
      $region22: #{tpu_custom_call.1} parent=11 // pred_check_branch
        %486 = sbr.rel (%p484) target = $region24
      $region23: #{tpu_custom_call.1} parent=11 // pred_region
        _
      $region24: #{tpu_custom_call.1} parent=11 // pred_fallthru
        _
      // Predicated region
      $region25: #{tpu_custom_call.1} parent=11 // pred_check
        %p487 = pneg %p421
      $region26: #{tpu_custom_call.1} parent=11 // pred_check_branch
        %489 = sbr.rel (%p487) target = $region28
      $region27: #{tpu_custom_call.1} parent=11 // pred_region
        _
      $region28: #{tpu_custom_call.1} parent=11 // pred_fallthru
        _
      // Predicated region
      $region29: #{tpu_custom_call.1} parent=11 // pred_check
        %p490 = pneg %p442
      $region30: #{tpu_custom_call.1} parent=11 // pred_check_branch
        %492 = sbr.rel (%p490) target = $region32
      $region31: #{tpu_custom_call.1} parent=11 // pred_region
        _
      $region32: #{tpu_custom_call.1} parent=11 // pred_fallthru
        _
    $region12: #{tpu_custom_call.1} parent=5 // pred_fallthru
      _
    %p493 = scmp.lt.s32.totalorder %s25, 2
    // Predicated region
    $region33: #{tpu_custom_call.1} parent=5 // pred_check
      %p494 = pneg %p493
    $region34: #{tpu_custom_call.1} parent=5 // pred_check_branch
      %496 = sbr.rel (%p494) target = $region36
    $region35: #{tpu_custom_call.1} parent=5 // pred_region
      // Predicated region
      $region37: #{tpu_custom_call.1} parent=35 // pred_check
        %p497 = pneg %p66
      $region38: #{tpu_custom_call.1} parent=35 // pred_check_branch
        %499 = sbr.rel (%p497) target = $region40
      $region39: #{tpu_custom_call.1} parent=35 // pred_region
        %p500 = scmp.lt.s32.totalorder %s25, 1
        %s501 = scalar_select %p500, %s25, 1
        %s502 = smul.addr %s501, 96
        %s503 = smul.addr %s502, 4
        %s504 = scalar_lea.vmem %s1, %s503
      $region40: #{tpu_custom_call.1} parent=35 // pred_fallthru
        _
      // Predicated region
      $region41: #{tpu_custom_call.1} parent=35 // pred_check
        %p505 = pneg %p92
      $region42: #{tpu_custom_call.1} parent=35 // pred_check_branch
        %507 = sbr.rel (%p505) target = $region44
      $region43: #{tpu_custom_call.1} parent=35 // pred_region
        %p508 = scmp.lt.s32.totalorder %s25, 1
        %s509 = scalar_select %p508, %s25, 1
        %s510 = smul.addr %s509, 24
        %s511 = scalar_lea.vmem %s2, %s510
      $region44: #{tpu_custom_call.1} parent=35 // pred_fallthru
        _
      // Predicated region
      $region45: #{tpu_custom_call.1} parent=35 // pred_check
        %p512 = pneg %p118
      $region46: #{tpu_custom_call.1} parent=35 // pred_check_branch
        %514 = sbr.rel (%p512) target = $region48
      $region47: #{tpu_custom_call.1} parent=35 // pred_region
        %p515 = scmp.lt.s32.totalorder %s25, 1
        %s516 = scalar_select %p515, %s25, 1
        %s517 = smul.addr %s516, 8
        %s518 = smul.addr %s517, 2
        %s519 = scalar_lea.vmem %s3, %s518
      $region48: #{tpu_custom_call.1} parent=35 // pred_fallthru
        _
      // Predicated region
      $region49: #{tpu_custom_call.1} parent=35 // pred_check
        %p520 = pneg %p144
      $region50: #{tpu_custom_call.1} parent=35 // pred_check_branch
        %522 = sbr.rel (%p520) target = $region52
      $region51: #{tpu_custom_call.1} parent=35 // pred_region
        %p523 = scmp.lt.s32.totalorder %s25, 1
        %s524 = scalar_select %p523, %s25, 1
        %s525 = scalar_lea.vmem %s4, %s524
      $region52: #{tpu_custom_call.1} parent=35 // pred_fallthru
        _
      // Predicated region
      $region53: #{tpu_custom_call.1} parent=35 // pred_check
        %p526 = pneg %p170
      $region54: #{tpu_custom_call.1} parent=35 // pred_check_branch
        %528 = sbr.rel (%p526) target = $region56
      $region55: #{tpu_custom_call.1} parent=35 // pred_region
        %p529 = scmp.lt.s32.totalorder %s25, 1
        %s530 = scalar_select %p529, %s25, 1
        %s531 = scalar_lea.vmem %s5, %s530
      $region56: #{tpu_custom_call.1} parent=35 // pred_fallthru
        _
      // Predicated region
      $region57: #{tpu_custom_call.1} parent=35 // pred_check
        %p532 = pneg %p196
      $region58: #{tpu_custom_call.1} parent=35 // pred_check_branch
        %534 = sbr.rel (%p532) target = $region60
      $region59: #{tpu_custom_call.1} parent=35 // pred_region
        %p535 = scmp.lt.s32.totalorder %s25, 1
        %s536 = scalar_select %p535, %s25, 1
        %s537 = scalar_lea.vmem %s6, %s536
      $region60: #{tpu_custom_call.1} parent=35 // pred_fallthru
        _
      // Predicated region
      $region61: #{tpu_custom_call.1} parent=35 // pred_check
        %p538 = pneg %p222
      $region62: #{tpu_custom_call.1} parent=35 // pred_check_branch
        %540 = sbr.rel (%p538) target = $region64
      $region63: #{tpu_custom_call.1} parent=35 // pred_region
        %p541 = scmp.lt.s32.totalorder %s25, 1
        %s542 = scalar_select %p541, %s25, 1
        %s543 = smul.addr %s542, 64
        %s544 = smul.addr %s543, 4
        %s545 = scalar_lea.vmem %s7, %s544
      $region64: #{tpu_custom_call.1} parent=35 // pred_fallthru
        _
      // Predicated region
      $region65: #{tpu_custom_call.1} parent=35 // pred_check
        %p546 = pneg %p248
      $region66: #{tpu_custom_call.1} parent=35 // pred_check_branch
        %548 = sbr.rel (%p546) target = $region68
      $region67: #{tpu_custom_call.1} parent=35 // pred_region
        %p549 = scmp.lt.s32.totalorder %s25, 1
        %s550 = scalar_select %p549, %s25, 1
        %s551 = smul.addr %s550, 16
        %s552 = scalar_lea.vmem %s8, %s551
      $region68: #{tpu_custom_call.1} parent=35 // pred_fallthru
        _
      // Predicated region
      $region69: #{tpu_custom_call.1} parent=35 // pred_check
        %p553 = pneg %p274
      $region70: #{tpu_custom_call.1} parent=35 // pred_check_branch
        %555 = sbr.rel (%p553) target = $region72
      $region71: #{tpu_custom_call.1} parent=35 // pred_region
        %p556 = scmp.lt.s32.totalorder %s25, 1
        %s557 = scalar_select %p556, %s25, 1
        %s558 = smul.addr %s557, 256
        %s559 = smul.addr %s558, 4
        %s560 = scalar_lea.vmem %s9, %s559
      $region72: #{tpu_custom_call.1} parent=35 // pred_fallthru
        _
      // Predicated region
      $region73: #{tpu_custom_call.1} parent=35 // pred_check
        %p561 = pneg %p300
      $region74: #{tpu_custom_call.1} parent=35 // pred_check_branch
        %563 = sbr.rel (%p561) target = $region76
      $region75: #{tpu_custom_call.1} parent=35 // pred_region
        %p564 = scmp.lt.s32.totalorder %s25, 1
        %s565 = scalar_select %p564, %s25, 1
        %s566 = scalar_lea.vmem %s10, %s565
      $region76: #{tpu_custom_call.1} parent=35 // pred_fallthru
        _
      // Predicated region
      $region77: #{tpu_custom_call.1} parent=35 // pred_check
        %p567 = pneg %p326
      $region78: #{tpu_custom_call.1} parent=35 // pred_check_branch
        %569 = sbr.rel (%p567) target = $region80
      $region79: #{tpu_custom_call.1} parent=35 // pred_region
        %p570 = scmp.lt.s32.totalorder %s25, 1
        %s571 = scalar_select %p570, %s25, 1
        %s572 = scalar_lea.vmem %s11, %s571
      $region80: #{tpu_custom_call.1} parent=35 // pred_fallthru
        _
      // Predicated region
      $region81: #{tpu_custom_call.1} parent=35 // pred_check
        %p573 = pneg %p352
      $region82: #{tpu_custom_call.1} parent=35 // pred_check_branch
        %575 = sbr.rel (%p573) target = $region84
      $region83: #{tpu_custom_call.1} parent=35 // pred_region
        %p576 = scmp.lt.s32.totalorder %s25, 1
        %s577 = scalar_select %p576, %s25, 1
        %s578 = scalar_lea.vmem %s12, %s577
      $region84: #{tpu_custom_call.1} parent=35 // pred_fallthru
        _
    $region36: #{tpu_custom_call.1} parent=5 // pred_fallthru
      _
    %p579 = scmp.le.s32.totalorder 1, %s25
    %p580 = scmp.lt.s32.totalorder %s25, 3
    %p581 = pnand %p579, %p580
    %p582 = pneg %p581
    // Predicated region
    $region85: #{tpu_custom_call.1} parent=5 // pred_check
      _
    $region86: #{tpu_custom_call.1} parent=5 // pred_check_branch
      %584 = sbr.rel (%p581) target = $region88
    $region87: #{tpu_custom_call.1} parent=5 // pred_region
      %s585 = ssub.s32 %s25, 1
      %p586 = pneg %p46
      %p587 = pneg %p43
      %p588 = scmp.lt.s32.totalorder %s30, 1
      %s589 = scalar_select %p588, %s30, 1
      %s590 = smul.addr %s589, 96
      %s591 = smul.addr %s590, 4
      %s592 = scalar_lea.vmem %s1, %s591
      %p593 = pneg %p72
      %p594 = pneg %p69
      %p595 = scmp.lt.s32.totalorder %s30, 1
      %s596 = scalar_select %p595, %s30, 1
      %s597 = smul.addr %s596, 24
      %s598 = scalar_lea.vmem %s2, %s597
      %p599 = pneg %p98
      %p600 = pneg %p95
      %p601 = scmp.lt.s32.totalorder %s30, 1
      %s602 = scalar_select %p601, %s30, 1
      %s603 = smul.addr %s602, 8
      %s604 = smul.addr %s603, 2
      %s605 = scalar_lea.vmem %s3, %s604
      %p606 = pneg %p124
      %p607 = pneg %p121
      %p608 = scmp.lt.s32.totalorder %s30, 1
      %s609 = scalar_select %p608, %s30, 1
      %s610 = scalar_lea.vmem %s4, %s609
      %p611 = pneg %p150
      %p612 = pneg %p147
      %p613 = scmp.lt.s32.totalorder %s30, 1
      %s614 = scalar_select %p613, %s30, 1
      %s615 = scalar_lea.vmem %s5, %s614
      %p616 = pneg %p176
      %p617 = pneg %p173
      %p618 = scmp.lt.s32.totalorder %s30, 1
      %s619 = scalar_select %p618, %s30, 1
      %s620 = scalar_lea.vmem %s6, %s619
      %p621 = pneg %p202
      %p622 = pneg %p199
      %p623 = scmp.lt.s32.totalorder %s30, 1
      %s624 = scalar_select %p623, %s30, 1
      %s625 = smul.addr %s624, 64
      %s626 = smul.addr %s625, 4
      %s627 = scalar_lea.vmem %s7, %s626
      %p628 = pneg %p228
      %p629 = pneg %p225
      %p630 = scmp.lt.s32.totalorder %s30, 1
      %s631 = scalar_select %p630, %s30, 1
      %s632 = smul.addr %s631, 16
      %s633 = scalar_lea.vmem %s8, %s632
      %p634 = pneg %p254
      %p635 = pneg %p251
      %p636 = scmp.lt.s32.totalorder %s30, 1
      %s637 = scalar_select %p636, %s30, 1
      %s638 = smul.addr %s637, 256
      %s639 = smul.addr %s638, 4
      %s640 = scalar_lea.vmem %s9, %s639
      %p641 = pneg %p280
      %p642 = pneg %p277
      %p643 = scmp.lt.s32.totalorder %s30, 1
      %s644 = scalar_select %p643, %s30, 1
      %s645 = scalar_lea.vmem %s10, %s644
      %p646 = pneg %p306
      %p647 = pneg %p303
      %p648 = scmp.lt.s32.totalorder %s30, 1
      %s649 = scalar_select %p648, %s30, 1
      %s650 = scalar_lea.vmem %s11, %s649
      %p651 = pneg %p332
      %p652 = pneg %p329
      %p653 = scmp.lt.s32.totalorder %s30, 1
      %s654 = scalar_select %p653, %s30, 1
      %s655 = scalar_lea.vmem %s12, %s654
      %p656 = pneg %p358
      %p657 = pneg %p355
      %p658 = pneg %p379
      %p659 = pneg %p376
      %p660 = pneg %p400
      %p661 = pneg %p397
      %p662 = pneg %p421
      %p663 = pneg %p418
      %p664 = pneg %p442
      %p665 = pneg %p439
      %p666 = pneg %p463
      %p667 = pneg %p460
      %p668 = scmp.lt.s32.totalorder %s30, 1
      %s669 = scalar_select %p668, %s30, 1
      %s670 = smul.addr %s669, 96
      %s671 = smul.addr %s670, 4
      %s672 = scalar_lea.vmem %s1, %s671
      %p673 = scmp.lt.s32.totalorder %s30, 1
      %s674 = scalar_select %p673, %s30, 1
      %s675 = smul.addr %s674, 24
      %s676 = scalar_lea.vmem %s2, %s675
      %p677 = scmp.lt.s32.totalorder %s30, 1
      %s678 = scalar_select %p677, %s30, 1
      %s679 = smul.addr %s678, 8
      %s680 = smul.addr %s679, 2
      %s681 = scalar_lea.vmem %s3, %s680
      %p682 = scmp.lt.s32.totalorder %s30, 1
      %s683 = scalar_select %p682, %s30, 1
      %s684 = scalar_lea.vmem %s4, %s683
      %p685 = scmp.lt.s32.totalorder %s30, 1
      %s686 = scalar_select %p685, %s30, 1
      %s687 = scalar_lea.vmem %s5, %s686
      %p688 = scmp.lt.s32.totalorder %s30, 1
      %s689 = scalar_select %p688, %s30, 1
      %s690 = scalar_lea.vmem %s6, %s689
      %p691 = scmp.lt.s32.totalorder %s30, 1
      %s692 = scalar_select %p691, %s30, 1
      %s693 = smul.addr %s692, 64
      %s694 = smul.addr %s693, 4
      %s695 = scalar_lea.vmem %s7, %s694
      %p696 = scmp.lt.s32.totalorder %s30, 1
      %s697 = scalar_select %p696, %s30, 1
      %s698 = smul.addr %s697, 16
      %s699 = scalar_lea.vmem %s8, %s698
      %p700 = scmp.lt.s32.totalorder %s30, 1
      %s701 = scalar_select %p700, %s30, 1
      %s702 = smul.addr %s701, 256
      %s703 = smul.addr %s702, 4
      %s704 = scalar_lea.vmem %s9, %s703
      %p705 = scmp.lt.s32.totalorder %s30, 1
      %s706 = scalar_select %p705, %s30, 1
      %s707 = scalar_lea.vmem %s10, %s706
      %p708 = scmp.lt.s32.totalorder %s30, 1
      %s709 = scalar_select %p708, %s30, 1
      %s710 = scalar_lea.vmem %s11, %s709
      %p711 = scmp.lt.s32.totalorder %s30, 1
      %s712 = scalar_select %p711, %s30, 1
      %s713 = scalar_lea.vmem %s12, %s712
      %p715 = scmp.eq.s32.totalorder %s30, 0
      // Predicated region
      $region89: #{tpu_custom_call.1} parent=87 // pred_check
        %p716 = pneg %p715
      $region90: #{tpu_custom_call.1} parent=87 // pred_check_branch
        %718 = sbr.rel (%p716) target = $region92
      $region91: #{tpu_custom_call.1} parent=87 // pred_region
        %v719 = vld [vmem:[%s0] sm:$0xff]
        %v720 = vld [vmem:[%s0 + $0x8] sm:$0xff]
        %v721 = vld [vmem:[%s0 + $0x10] sm:$0xff]
        %v722 = vld [vmem:[%s0 + $0x18] sm:$0xff]
        %vm723 = vcmask 261120
        %724 = vst.msk [vmem:[#allocation2] sm:$0xff] %vm723, %v719
        %725 = vst.msk [vmem:[#allocation2 + $0x8] sm:$0xff] %vm723, %v720
        %726 = vst.msk [vmem:[#allocation2 + $0x10] sm:$0xff] %vm723, %v721
        %727 = vst.msk [vmem:[#allocation2 + $0x18] sm:$0xff] %vm723, %v722
      $region92: #{tpu_custom_call.1} parent=87 // pred_fallthru
        _
      %v728 = vld [vmem:[#allocation2] sm:$0xff]
      %v729 = vld [vmem:[#allocation2 + $0x8] sm:$0xff]
      %v730 = vld [vmem:[#allocation2 + $0x10] sm:$0xff]
      %v731 = vld [vmem:[#allocation2 + $0x18] sm:$0xff]
      %v732 = vpack.c.bf16 %v729, %v728
      %v733 = vpack.c.bf16 %v731, %v730
      %v734 = vld [vmem:[%s672] sm:$0xf]
      %v735 = vld [vmem:[%s672 + $0x4] sm:$0xf]
      %v736 = vld [vmem:[%s672 + $0x8] sm:$0xf]
      %v737 = vld [vmem:[%s672 + $0xc] sm:$0xf]
      %v738 = vld [vmem:[%s676] sm:$0x1]
      %v740 = vlaneseq
      %v741 = vshrl.u32 %v740, 7
      %v742 = vsub.s32 0, %v741
      %v743 = vrot.slane %v738, %v742
      %v749 = vunpack.c.l.b16 %v734
      %v750 = vunpack.c.l.b16 %v735
      %v751 = vunpack.c.l.b16 %v736
      %v752 = vunpack.c.l.b16 %v737
      %v753 = vpack.c.b16 %v750, %v749
      %v754 = vpack.c.b16 %v752, %v751
      %vm757 = vcmask 261120
      %v759 = vsel %vm757, %v732, 0
      %v762 = vsel %vm757, %v733, 0
      %764 = vmatprep.subr.bf16.mxu0 0
      %765 = vmatpush1.bf16.msra.mxu0 %v753
      %766 = vmatprep.subr.bf16.mxu0 0
      %767 = vmatpush1.bf16.msra.mxu0 %v754
      %768 = vmatprep.subr.bf16.mxu0 0
      %769 = vmatpush1.bf16.msra.mxu0 0
      %770 = vmatprep.subr.bf16.mxu0 0
      %771 = vmatpush1.bf16.msra.mxu0 0
      %772 = vmatprep.subr.bf16.mxu0 0
      %773 = vmatpush1.bf16.msra.mxu0 0
      %774 = vmatprep.subr.bf16.mxu0 0
      %775 = vmatpush1.bf16.msra.mxu0 0
      %776 = vmatprep.subr.bf16.mxu0 0
      %777 = vmatpush1.bf16.msra.mxu0 0
      %778 = vmatprep.subr.bf16.mxu0 0
      %779 = vmatpush1.bf16.msra.mxu0 0
      %780 = vmatprep.subr.bf16.mxu0 0
      %781 = vmatpush1.bf16.msra.mxu0 0
      %782 = vmatprep.subr.bf16.mxu0 0
      %783 = vmatpush1.bf16.msra.mxu0 0
      %784 = vmatprep.subr.bf16.mxu0 0
      %785 = vmatpush1.bf16.msra.mxu0 0
      %786 = vmatprep.subr.bf16.mxu0 0
      %787 = vmatpush1.bf16.msra.mxu0 0
      %788 = vmatprep.subr.bf16.mxu0 0
      %789 = vmatpush1.bf16.msra.mxu0 0
      %790 = vmatprep.subr.bf16.mxu0 0
      %791 = vmatpush1.bf16.msra.mxu0 0
      %792 = vmatprep.subr.bf16.mxu0 0
      %793 = vmatpush1.bf16.msra.mxu0 0
      %794 = vmatprep.subr.bf16.mxu0 0
      %795 = vmatpush1.bf16.msra.mxu0 0
      %796 = vmatprep.mubr.bf16.mxu0 0
      %797 = vmatmul.mubr.bf16.gmra.mrb[0].mxu0 %v759
      %v798 = vpop.f32.mrb[0].mxu0
      %v799 = vadd.f32 %v743, %v798
      %v800 = vpop.f32.mrb[0].mxu0
      %v801 = vpop.f32.mrb[0].mxu0
      %v802 = vadd.f32 %v743, %v801
      %v803 = vpop.f32.mrb[0].mxu0
      %804 = vmatprep.mubr.bf16.mxu0 0
      %805 = vmatmul.mubr.bf16.gmra.mrb[0].mxu0 %v762
      %v806 = vpop.f32.mrb[0].mxu0
      %v807 = vadd.f32 %v743, %v806
      %v808 = vpop.f32.mrb[0].mxu0
      %v809 = vpop.f32.mrb[0].mxu0
      %v810 = vadd.f32 %v743, %v809
      %v811 = vpop.f32.mrb[0].mxu0
      %812 = vdwg.mxu0
      %v813 = vpack.c.bf16 %v802, %v799
      %v814 = vpack.c.bf16 %v810, %v807
      %s815 = scalar_lea.vmem %s672, 128
      %v816 = vld [vmem:[%s815] sm:$0xf]
      %v817 = vld [vmem:[%s815 + $0x4] sm:$0xf]
      %v818 = vld [vmem:[%s815 + $0x8] sm:$0xf]
      %v819 = vld [vmem:[%s815 + $0xc] sm:$0xf]
      %s820 = scalar_lea.vmem %s676, 8
      %v821 = vld [vmem:[%s820] sm:$0x1]
      %v823 = vlaneseq
      %v824 = vshrl.u32 %v823, 7
      %v825 = vsub.s32 0, %v824
      %v826 = vrot.slane %v821, %v825
      %v832 = vunpack.c.l.b16 %v816
      %v833 = vunpack.c.l.b16 %v817
      %v834 = vunpack.c.l.b16 %v818
      %v835 = vunpack.c.l.b16 %v819
      %v836 = vpack.c.b16 %v833, %v832
      %v837 = vpack.c.b16 %v835, %v834
      %840 = vmatprep.subr.bf16.mxu0 0
      %841 = vmatpush1.bf16.msra.mxu0 %v836
      %842 = vmatprep.subr.bf16.mxu0 0
      %843 = vmatpush1.bf16.msra.mxu0 %v837
      %844 = vmatprep.subr.bf16.mxu0 0
      %845 = vmatpush1.bf16.msra.mxu0 0
      %846 = vmatprep.subr.bf16.mxu0 0
      %847 = vmatpush1.bf16.msra.mxu0 0
      %848 = vmatprep.subr.bf16.mxu0 0
      %849 = vmatpush1.bf16.msra.mxu0 0
      %850 = vmatprep.subr.bf16.mxu0 0
      %851 = vmatpush1.bf16.msra.mxu0 0
      %852 = vmatprep.subr.bf16.mxu0 0
      %853 = vmatpush1.bf16.msra.mxu0 0
      %854 = vmatprep.subr.bf16.mxu0 0
      %855 = vmatpush1.bf16.msra.mxu0 0
      %856 = vmatprep.subr.bf16.mxu0 0
      %857 = vmatpush1.bf16.msra.mxu0 0
      %858 = vmatprep.subr.bf16.mxu0 0
      %859 = vmatpush1.bf16.msra.mxu0 0
      %860 = vmatprep.subr.bf16.mxu0 0
      %861 = vmatpush1.bf16.msra.mxu0 0
      %862 = vmatprep.subr.bf16.mxu0 0
      %863 = vmatpush1.bf16.msra.mxu0 0
      %864 = vmatprep.subr.bf16.mxu0 0
      %865 = vmatpush1.bf16.msra.mxu0 0
      %866 = vmatprep.subr.bf16.mxu0 0
      %867 = vmatpush1.bf16.msra.mxu0 0
      %868 = vmatprep.subr.bf16.mxu0 0
      %869 = vmatpush1.bf16.msra.mxu0 0
      %870 = vmatprep.subr.bf16.mxu0 0
      %871 = vmatpush1.bf16.msra.mxu0 0
      %872 = vmatprep.mubr.bf16.mxu0 0
      %873 = vmatmul.mubr.bf16.gmra.mrb[0].mxu0 %v759
      %v874 = vpop.f32.mrb[0].mxu0
      %v875 = vadd.f32 %v826, %v874
      %v876 = vpop.f32.mrb[0].mxu0
      %v877 = vpop.f32.mrb[0].mxu0
      %v878 = vadd.f32 %v826, %v877
      %v879 = vpop.f32.mrb[0].mxu0
      %880 = vmatprep.mubr.bf16.mxu0 0
      %881 = vmatmul.mubr.bf16.gmra.mrb[0].mxu0 %v762
      %v882 = vpop.f32.mrb[0].mxu0
      %v883 = vadd.f32 %v826, %v882
      %v884 = vpop.f32.mrb[0].mxu0
      %v885 = vpop.f32.mrb[0].mxu0
      %v886 = vadd.f32 %v826, %v885
      %v887 = vpop.f32.mrb[0].mxu0
      %888 = vdwg.mxu0
      %v889 = vpack.c.bf16 %v878, %v875
      %v890 = vpack.c.bf16 %v886, %v883
      %s891 = scalar_lea.vmem %s672, 256
      %v892 = vld [vmem:[%s891] sm:$0xf]
      %v893 = vld [vmem:[%s891 + $0x4] sm:$0xf]
      %v894 = vld [vmem:[%s891 + $0x8] sm:$0xf]
      %v895 = vld [vmem:[%s891 + $0xc] sm:$0xf]
      %s896 = scalar_lea.vmem %s676, 16
      %v897 = vld [vmem:[%s896] sm:$0x1]
      %v899 = vlaneseq
      %v900 = vshrl.u32 %v899, 7
      %v901 = vsub.s32 0, %v900
      %v902 = vrot.slane %v897, %v901
      %v908 = vunpack.c.l.b16 %v892
      %v909 = vunpack.c.l.b16 %v893
      %v910 = vunpack.c.l.b16 %v894
      %v911 = vunpack.c.l.b16 %v895
      %v912 = vpack.c.b16 %v909, %v908
      %v913 = vpack.c.b16 %v911, %v910
      %916 = vmatprep.subr.bf16.mxu0 0
      %917 = vmatpush1.bf16.msra.mxu0 %v912
      %918 = vmatprep.subr.bf16.mxu0 0
      %919 = vmatpush1.bf16.msra.mxu0 %v913
      %920 = vmatprep.subr.bf16.mxu0 0
      %921 = vmatpush1.bf16.msra.mxu0 0
      %922 = vmatprep.subr.bf16.mxu0 0
      %923 = vmatpush1.bf16.msra.mxu0 0
      %924 = vmatprep.subr.bf16.mxu0 0
      %925 = vmatpush1.bf16.msra.mxu0 0
      %926 = vmatprep.subr.bf16.mxu0 0
      %927 = vmatpush1.bf16.msra.mxu0 0
      %928 = vmatprep.subr.bf16.mxu0 0
      %929 = vmatpush1.bf16.msra.mxu0 0
      %930 = vmatprep.subr.bf16.mxu0 0
      %931 = vmatpush1.bf16.msra.mxu0 0
      %932 = vmatprep.subr.bf16.mxu0 0
      %933 = vmatpush1.bf16.msra.mxu0 0
      %934 = vmatprep.subr.bf16.mxu0 0
      %935 = vmatpush1.bf16.msra.mxu0 0
      %936 = vmatprep.subr.bf16.mxu0 0
      %937 = vmatpush1.bf16.msra.mxu0 0
      %938 = vmatprep.subr.bf16.mxu0 0
      %939 = vmatpush1.bf16.msra.mxu0 0
      %940 = vmatprep.subr.bf16.mxu0 0
      %941 = vmatpush1.bf16.msra.mxu0 0
      %942 = vmatprep.subr.bf16.mxu0 0
      %943 = vmatpush1.bf16.msra.mxu0 0
      %944 = vmatprep.subr.bf16.mxu0 0
      %945 = vmatpush1.bf16.msra.mxu0 0
      %946 = vmatprep.subr.bf16.mxu0 0
      %947 = vmatpush1.bf16.msra.mxu0 0
      %948 = vmatprep.mubr.bf16.mxu0 0
      %949 = vmatmul.mubr.bf16.gmra.mrb[0].mxu0 %v759
      %v950 = vpop.f32.mrb[0].mxu0
      %v951 = vadd.f32 %v902, %v950
      %v952 = vpop.f32.mrb[0].mxu0
      %v953 = vpop.f32.mrb[0].mxu0
      %v954 = vadd.f32 %v902, %v953
      %v955 = vpop.f32.mrb[0].mxu0
      %956 = vmatprep.mubr.bf16.mxu0 0
      %957 = vmatmul.mubr.bf16.gmra.mrb[0].mxu0 %v762
      %v958 = vpop.f32.mrb[0].mxu0
      %v959 = vadd.f32 %v902, %v958
      %v960 = vpop.f32.mrb[0].mxu0
      %v961 = vpop.f32.mrb[0].mxu0
      %v962 = vadd.f32 %v902, %v961
      %v963 = vpop.f32.mrb[0].mxu0
      %964 = vdwg.mxu0
      %v965 = vpack.c.bf16 %v954, %v951
      %v966 = vpack.c.bf16 %v962, %v959
      %v967 = vld [vmem:[%s681] sm:$0x3]
      %vm968 = vcmask 31744
      %v970 = vsel %vm968, %v813, 0
      %v973 = vsel %vm968, %v889, 0
      %975 = vmatprep.subr.bf16.mxu0 0
      %976 = vmatpush1.bf16.xpose.msra.mxu0 %v973
      %977 = vmatprep.subr.bf16.mxu0 0
      %978 = vmatpush1.bf16.xpose.msra.mxu0 0
      %979 = vmatprep.subr.bf16.mxu0 0
      %980 = vmatpush1.bf16.xpose.msra.mxu0 0
      %981 = vmatprep.subr.bf16.mxu0 0
      %982 = vmatpush1.bf16.xpose.msra.mxu0 0
      %983 = vmatprep.subr.bf16.mxu0 0
      %984 = vmatpush1.bf16.xpose.msra.mxu0 0
      %985 = vmatprep.subr.bf16.mxu0 0
      %986 = vmatpush1.bf16.xpose.msra.mxu0 0
      %987 = vmatprep.subr.bf16.mxu0 0
      %988 = vmatpush1.bf16.xpose.msra.mxu0 0
      %989 = vmatprep.subr.bf16.mxu0 0
      %990 = vmatpush1.bf16.xpose.msra.mxu0 0
      %991 = vmatprep.subr.bf16.mxu0 0
      %992 = vmatpush1.bf16.xpose.msra.mxu0 0
      %993 = vmatprep.subr.bf16.mxu0 0
      %994 = vmatpush1.bf16.xpose.msra.mxu0 0
      %995 = vmatprep.subr.bf16.mxu0 0
      %996 = vmatpush1.bf16.xpose.msra.mxu0 0
      %997 = vmatprep.subr.bf16.mxu0 0
      %998 = vmatpush1.bf16.xpose.msra.mxu0 0
      %999 = vmatprep.subr.bf16.mxu0 0
      %1000 = vmatpush1.bf16.xpose.msra.mxu0 0
      %1001 = vmatprep.subr.bf16.mxu0 0
      %1002 = vmatpush1.bf16.xpose.msra.mxu0 0
      %1003 = vmatprep.subr.bf16.mxu0 0
      %1004 = vmatpush1.bf16.xpose.msra.mxu0 0
      %1005 = vmatprep.subr.bf16.mxu0 0
      %1006 = vmatpush1.bf16.xpose.msra.mxu0 0
      %1007 = vmatprep.mubr.bf16.mxu0 0
      %1008 = vmatmul.mubr.bf16.gmra.mrb[0].mxu0 %v970
      %v1009 = vpop.f32.mrb[0].mxu0
      %v1010 = vadd.f32 0.0, %v1009
      %v1011 = vpop.f32.mrb[0].mxu0
      %v1012 = vpop.f32.mrb[0].mxu0
      %v1013 = vadd.f32 0.0, %v1012
      %v1014 = vpop.f32.mrb[0].mxu0
      %1015 = vdwg.mxu0
      %v1016 = vmul.f32 %v1010, 0.5
      %v1017 = vmul.f32 %v1013, 0.5
      %vm1018 = vcmask 130048
      %v1019 = vsel %vm1018, %v1016, -inf
      %1020 = vmax.xlane.f32.xlu0 %v1019
      %v1021 = vpop.xlane.xlu0 %1020
      %v1022 = vsel %vm1018, %v1017, -inf
      %1023 = vmax.xlane.f32.xlu0 %v1022
      %v1024 = vpop.xlane.xlu0 %1023
      %v1025 = vsub.f32 %v1016, %v1021
      %v1026 = vsub.f32 %v1017, %v1024
      %v1027 = vmul.f32 %v1025, 1.442695
      %v1028 = vpow.pop %v1027
      %v1029 = vmul.f32 %v1026, 1.442695
      %v1030 = vpow.pop %v1029
      %v1031 = vsel %vm1018, %v1028, 0.0
      %1032 = vadd.xlane.f32.xlu0 %v1031
      %v1033 = vpop.xlane.xlu0 %1032
      %v1034 = vsel %vm1018, %v1030, 0.0
      %1035 = vadd.xlane.f32.xlu0 %v1034
      %v1036 = vpop.xlane.xlu0 %1035
      %v1037 = vrcp.pop %v1033
      %v1038 = vrcp.pop %v1036
      %v1039 = vmul.f32 %v1028, %v1037
      %v1040 = vmul.f32 %v1030, %v1038
      %v1041 = vpack.c.bf16 %v1040, %v1039
      %v1043 = vsel %vm1018, %v1041, 0
      %1045 = vmatprep.subr.bf16.mxu0 0
      %1046 = vmatpush1.bf16.msra.mxu0 %v965
      %1047 = vmatprep.subr.bf16.mxu0 0
      %1048 = vmatpush1.bf16.msra.mxu0 0
      %1049 = vmatprep.subr.bf16.mxu0 0
      %1050 = vmatpush1.bf16.msra.mxu0 0
      %1051 = vmatprep.subr.bf16.mxu0 0
      %1052 = vmatpush1.bf16.msra.mxu0 0
      %1053 = vmatprep.subr.bf16.mxu0 0
      %1054 = vmatpush1.bf16.msra.mxu0 0
      %1055 = vmatprep.subr.bf16.mxu0 0
      %1056 = vmatpush1.bf16.msra.mxu0 0
      %1057 = vmatprep.subr.bf16.mxu0 0
      %1058 = vmatpush1.bf16.msra.mxu0 0
      %1059 = vmatprep.subr.bf16.mxu0 0
      %1060 = vmatpush1.bf16.msra.mxu0 0
      %1061 = vmatprep.subr.bf16.mxu0 0
      %1062 = vmatpush1.bf16.msra.mxu0 0
      %1063 = vmatprep.subr.bf16.mxu0 0
      %1064 = vmatpush1.bf16.msra.mxu0 0
      %1065 = vmatprep.subr.bf16.mxu0 0
      %1066 = vmatpush1.bf16.msra.mxu0 0
      %1067 = vmatprep.subr.bf16.mxu0 0
      %1068 = vmatpush1.bf16.msra.mxu0 0
      %1069 = vmatprep.subr.bf16.mxu0 0
      %1070 = vmatpush1.bf16.msra.mxu0 0
      %1071 = vmatprep.subr.bf16.mxu0 0
      %1072 = vmatpush1.bf16.msra.mxu0 0
      %1073 = vmatprep.subr.bf16.mxu0 0
      %1074 = vmatpush1.bf16.msra.mxu0 0
      %1075 = vmatprep.subr.bf16.mxu0 0
      %1076 = vmatpush1.bf16.msra.mxu0 0
      %1077 = vmatprep.mubr.bf16.mxu0 0
      %1078 = vmatmul.mubr.bf16.gmra.mrb[0].mxu0 %v1043
      %v1079 = vpop.f32.mrb[0].mxu0
      %v1080 = vadd.f32 0.0, %v1079
      %v1081 = vpop.f32.mrb[0].mxu0
      %v1082 = vpop.f32.mrb[0].mxu0
      %v1083 = vadd.f32 0.0, %v1082
      %v1084 = vpop.f32.mrb[0].mxu0
      %1085 = vdwg.mxu0
      %v1086 = vpack.c.bf16 %v1083, %v1080
      %v1088 = vsel %vm968, %v814, 0
      %v1091 = vsel %vm968, %v890, 0
      %1093 = vmatprep.subr.bf16.mxu0 0
      %1094 = vmatpush1.bf16.xpose.msra.mxu0 %v1091
      %1095 = vmatprep.subr.bf16.mxu0 0
      %1096 = vmatpush1.bf16.xpose.msra.mxu0 0
      %1097 = vmatprep.subr.bf16.mxu0 0
      %1098 = vmatpush1.bf16.xpose.msra.mxu0 0
      %1099 = vmatprep.subr.bf16.mxu0 0
      %1100 = vmatpush1.bf16.xpose.msra.mxu0 0
      %1101 = vmatprep.subr.bf16.mxu0 0
      %1102 = vmatpush1.bf16.xpose.msra.mxu0 0
      %1103 = vmatprep.subr.bf16.mxu0 0
      %1104 = vmatpush1.bf16.xpose.msra.mxu0 0
      %1105 = vmatprep.subr.bf16.mxu0 0
      %1106 = vmatpush1.bf16.xpose.msra.mxu0 0
      %1107 = vmatprep.subr.bf16.mxu0 0
      %1108 = vmatpush1.bf16.xpose.msra.mxu0 0
      %1109 = vmatprep.subr.bf16.mxu0 0
      %1110 = vmatpush1.bf16.xpose.msra.mxu0 0
      %1111 = vmatprep.subr.bf16.mxu0 0
      %1112 = vmatpush1.bf16.xpose.msra.mxu0 0
      %1113 = vmatprep.subr.bf16.mxu0 0
      %1114 = vmatpush1.bf16.xpose.msra.mxu0 0
      %1115 = vmatprep.subr.bf16.mxu0 0
      %1116 = vmatpush1.bf16.xpose.msra.mxu0 0
      %1117 = vmatprep.subr.bf16.mxu0 0
      %1118 = vmatpush1.bf16.xpose.msra.mxu0 0
      %1119 = vmatprep.subr.bf16.mxu0 0
      %1120 = vmatpush1.bf16.xpose.msra.mxu0 0
      %1121 = vmatprep.subr.bf16.mxu0 0
      %1122 = vmatpush1.bf16.xpose.msra.mxu0 0
      %1123 = vmatprep.subr.bf16.mxu0 0
      %1124 = vmatpush1.bf16.xpose.msra.mxu0 0
      %1125 = vmatprep.mubr.bf16.mxu0 0
      %1126 = vmatmul.mubr.bf16.gmra.mrb[0].mxu0 %v1088
      %v1127 = vpop.f32.mrb[0].mxu0
      %v1128 = vadd.f32 0.0, %v1127
      %v1129 = vpop.f32.mrb[0].mxu0
      %v1130 = vpop.f32.mrb[0].mxu0
      %v1131 = vadd.f32 0.0, %v1130
      %v1132 = vpop.f32.mrb[0].mxu0
      %1133 = vdwg.mxu0
      %v1134 = vmul.f32 %v1128, 0.5
      %v1135 = vmul.f32 %v1131, 0.5
      %v1136 = vsel %vm1018, %v1134, -inf
      %1137 = vmax.xlane.f32.xlu0 %v1136
      %v1138 = vpop.xlane.xlu0 %1137
      %v1139 = vsel %vm1018, %v1135, -inf
      %1140 = vmax.xlane.f32.xlu0 %v1139
      %v1141 = vpop.xlane.xlu0 %1140
      %v1142 = vsub.f32 %v1134, %v1138
      %v1143 = vsub.f32 %v1135, %v1141
      %v1144 = vmul.f32 %v1142, 1.442695
      %v1145 = vpow.pop %v1144
      %v1146 = vmul.f32 %v1143, 1.442695
      %v1147 = vpow.pop %v1146
      %v1148 = vsel %vm1018, %v1145, 0.0
      %1149 = vadd.xlane.f32.xlu0 %v1148
      %v1150 = vpop.xlane.xlu0 %1149
      %v1151 = vsel %vm1018, %v1147, 0.0
      %1152 = vadd.xlane.f32.xlu0 %v1151
      %v1153 = vpop.xlane.xlu0 %1152
      %v1154 = vrcp.pop %v1150
      %v1155 = vrcp.pop %v1153
      %v1156 = vmul.f32 %v1145, %v1154
      %v1157 = vmul.f32 %v1147, %v1155
      %v1158 = vpack.c.bf16 %v1157, %v1156
      %v1160 = vsel %vm1018, %v1158, 0
      %1162 = vmatprep.subr.bf16.mxu0 0
      %1163 = vmatpush1.bf16.msra.mxu0 %v966
      %1164 = vmatprep.subr.bf16.mxu0 0
      %1165 = vmatpush1.bf16.msra.mxu0 0
      %1166 = vmatprep.subr.bf16.mxu0 0
      %1167 = vmatpush1.bf16.msra.mxu0 0
      %1168 = vmatprep.subr.bf16.mxu0 0
      %1169 = vmatpush1.bf16.msra.mxu0 0
      %1170 = vmatprep.subr.bf16.mxu0 0
      %1171 = vmatpush1.bf16.msra.mxu0 0
      %1172 = vmatprep.subr.bf16.mxu0 0
      %1173 = vmatpush1.bf16.msra.mxu0 0
      %1174 = vmatprep.subr.bf16.mxu0 0
      %1175 = vmatpush1.bf16.msra.mxu0 0
      %1176 = vmatprep.subr.bf16.mxu0 0
      %1177 = vmatpush1.bf16.msra.mxu0 0
      %1178 = vmatprep.subr.bf16.mxu0 0
      %1179 = vmatpush1.bf16.msra.mxu0 0
      %1180 = vmatprep.subr.bf16.mxu0 0
      %1181 = vmatpush1.bf16.msra.mxu0 0
      %1182 = vmatprep.subr.bf16.mxu0 0
      %1183 = vmatpush1.bf16.msra.mxu0 0
      %1184 = vmatprep.subr.bf16.mxu0 0
      %1185 = vmatpush1.bf16.msra.mxu0 0
      %1186 = vmatprep.subr.bf16.mxu0 0
      %1187 = vmatpush1.bf16.msra.mxu0 0
      %1188 = vmatprep.subr.bf16.mxu0 0
      %1189 = vmatpush1.bf16.msra.mxu0 0
      %1190 = vmatprep.subr.bf16.mxu0 0
      %1191 = vmatpush1.bf16.msra.mxu0 0
      %1192 = vmatprep.subr.bf16.mxu0 0
      %1193 = vmatpush1.bf16.msra.mxu0 0
      %1194 = vmatprep.mubr.bf16.mxu0 0
      %1195 = vmatmul.mubr.bf16.gmra.mrb[0].mxu0 %v1160
      %v1196 = vpop.f32.mrb[0].mxu0
      %v1197 = vadd.f32 0.0, %v1196
      %v1198 = vpop.f32.mrb[0].mxu0
      %v1199 = vpop.f32.mrb[0].mxu0
      %v1200 = vadd.f32 0.0, %v1199
      %v1201 = vpop.f32.mrb[0].mxu0
      %1202 = vdwg.mxu0
      %v1203 = vpack.c.bf16 %v1200, %v1197
      %s1204 = scalar_lea.vmem %s672, 16
      %v1205 = vld [vmem:[%s1204] sm:$0xf]
      %v1206 = vld [vmem:[%s1204 + $0x4] sm:$0xf]
      %v1207 = vld [vmem:[%s1204 + $0x8] sm:$0xf]
      %v1208 = vld [vmem:[%s1204 + $0xc] sm:$0xf]
      %s1209 = scalar_lea.vmem %s676, 1
      %v1210 = vld [vmem:[%s1209] sm:$0x1]
      %v1212 = vlaneseq
      %v1213 = vshrl.u32 %v1212, 7
      %v1214 = vsub.s32 0, %v1213
      %v1215 = vrot.slane %v1210, %v1214
      %v1221 = vunpack.c.l.b16 %v1205
      %v1222 = vunpack.c.l.b16 %v1206
      %v1223 = vunpack.c.l.b16 %v1207
      %v1224 = vunpack.c.l.b16 %v1208
      %v1225 = vpack.c.b16 %v1222, %v1221
      %v1226 = vpack.c.b16 %v1224, %v1223
      %1229 = vmatprep.subr.bf16.mxu0 0
      %1230 = vmatpush1.bf16.msra.mxu0 %v1225
      %1231 = vmatprep.subr.bf16.mxu0 0
      %1232 = vmatpush1.bf16.msra.mxu0 %v1226
      %1233 = vmatprep.subr.bf16.mxu0 0
      %1234 = vmatpush1.bf16.msra.mxu0 0
      %1235 = vmatprep.subr.bf16.mxu0 0
      %1236 = vmatpush1.bf16.msra.mxu0 0
      %1237 = vmatprep.subr.bf16.mxu0 0
      %1238 = vmatpush1.bf16.msra.mxu0 0
      %1239 = vmatprep.subr.bf16.mxu0 0
      %1240 = vmatpush1.bf16.msra.mxu0 0
      %1241 = vmatprep.subr.bf16.mxu0 0
      %1242 = vmatpush1.bf16.msra.mxu0 0
      %1243 = vmatprep.subr.bf16.mxu0 0
      %1244 = vmatpush1.bf16.msra.mxu0 0
      %1245 = vmatprep.subr.bf16.mxu0 0
      %1246 = vmatpush1.bf16.msra.mxu0 0
      %1247 = vmatprep.subr.bf16.mxu0 0
      %1248 = vmatpush1.bf16.msra.mxu0 0
      %1249 = vmatprep.subr.bf16.mxu0 0
      %1250 = vmatpush1.bf16.msra.mxu0 0
      %1251 = vmatprep.subr.bf16.mxu0 0
      %1252 = vmatpush1.bf16.msra.mxu0 0
      %1253 = vmatprep.subr.bf16.mxu0 0
      %1254 = vmatpush1.bf16.msra.mxu0 0
      %1255 = vmatprep.subr.bf16.mxu0 0
      %1256 = vmatpush1.bf16.msra.mxu0 0
      %1257 = vmatprep.subr.bf16.mxu0 0
      %1258 = vmatpush1.bf16.msra.mxu0 0
      %1259 = vmatprep.subr.bf16.mxu0 0
      %1260 = vmatpush1.bf16.msra.mxu0 0
      %1261 = vmatprep.mubr.bf16.mxu0 0
      %1262 = vmatmul.mubr.bf16.gmra.mrb[0].mxu0 %v759
      %v1263 = vpop.f32.mrb[0].mxu0
      %v1264 = vadd.f32 %v1215, %v1263
      %v1265 = vpop.f32.mrb[0].mxu0
      %v1266 = vpop.f32.mrb[0].mxu0
      %v1267 = vadd.f32 %v1215, %v1266
      %v1268 = vpop.f32.mrb[0].mxu0
      %1269 = vmatprep.mubr.bf16.mxu0 0
      %1270 = vmatmul.mubr.bf16.gmra.mrb[0].mxu0 %v762
      %v1271 = vpop.f32.mrb[0].mxu0
      %v1272 = vadd.f32 %v1215, %v1271
      %v1273 = vpop.f32.mrb[0].mxu0
      %v1274 = vpop.f32.mrb[0].mxu0
      %v1275 = vadd.f32 %v1215, %v1274
      %v1276 = vpop.f32.mrb[0].mxu0
      %1277 = vdwg.mxu0
      %v1278 = vpack.c.bf16 %v1267, %v1264
      %v1279 = vpack.c.bf16 %v1275, %v1272
      %s1280 = scalar_lea.vmem %s672, 144
      %v1281 = vld [vmem:[%s1280] sm:$0xf]
      %v1282 = vld [vmem:[%s1280 + $0x4] sm:$0xf]
      %v1283 = vld [vmem:[%s1280 + $0x8] sm:$0xf]
      %v1284 = vld [vmem:[%s1280 + $0xc] sm:$0xf]
      %s1285 = scalar_lea.vmem %s676, 9
      %v1286 = vld [vmem:[%s1285] sm:$0x1]
      %v1288 = vlaneseq
      %v1289 = vshrl.u32 %v1288, 7
      %v1290 = vsub.s32 0, %v1289
      %v1291 = vrot.slane %v1286, %v1290
      %v1297 = vunpack.c.l.b16 %v1281
      %v1298 = vunpack.c.l.b16 %v1282
      %v1299 = vunpack.c.l.b16 %v1283
      %v1300 = vunpack.c.l.b16 %v1284
      %v1301 = vpack.c.b16 %v1298, %v1297
      %v1302 = vpack.c.b16 %v1300, %v1299
      %1305 = vmatprep.subr.bf16.mxu0 0
      %1306 = vmatpush1.bf16.msra.mxu0 %v1301
      %1307 = vmatprep.subr.bf16.mxu0 0
      %1308 = vmatpush1.bf16.msra.mxu0 %v1302
      %1309 = vmatprep.subr.bf16.mxu0 0
      %1310 = vmatpush1.bf16.msra.mxu0 0
      %1311 = vmatprep.subr.bf16.mxu0 0
      %1312 = vmatpush1.bf16.msra.mxu0 0
      %1313 = vmatprep.subr.bf16.mxu0 0
      %1314 = vmatpush1.bf16.msra.mxu0 0
      %1315 = vmatprep.subr.bf16.mxu0 0
      %1316 = vmatpush1.bf16.msra.mxu0 0
      %1317 = vmatprep.subr.bf16.mxu0 0
      %1318 = vmatpush1.bf16.msra.mxu0 0
      %1319 = vmatprep.subr.bf16.mxu0 0
      %1320 = vmatpush1.bf16.msra.mxu0 0
      %1321 = vmatprep.subr.bf16.mxu0 0
      %1322 = vmatpush1.bf16.msra.mxu0 0
      %1323 = vmatprep.subr.bf16.mxu0 0
      %1324 = vmatpush1.bf16.msra.mxu0 0
      %1325 = vmatprep.subr.bf16.mxu0 0
      %1326 = vmatpush1.bf16.msra.mxu0 0
      %1327 = vmatprep.subr.bf16.mxu0 0
      %1328 = vmatpush1.bf16.msra.mxu0 0
      %1329 = vmatprep.subr.bf16.mxu0 0
      %1330 = vmatpush1.bf16.msra.mxu0 0
      %1331 = vmatprep.subr.bf16.mxu0 0
      %1332 = vmatpush1.bf16.msra.mxu0 0
      %1333 = vmatprep.subr.bf16.mxu0 0
      %1334 = vmatpush1.bf16.msra.mxu0 0
      %1335 = vmatprep.subr.bf16.mxu0 0
      %1336 = vmatpush1.bf16.msra.mxu0 0
      %1337 = vmatprep.mubr.bf16.mxu0 0
      %1338 = vmatmul.mubr.bf16.gmra.mrb[0].mxu0 %v759
      %v1339 = vpop.f32.mrb[0].mxu0
      %v1340 = vadd.f32 %v1291, %v1339
      %v1341 = vpop.f32.mrb[0].mxu0
      %v1342 = vpop.f32.mrb[0].mxu0
      %v1343 = vadd.f32 %v1291, %v1342
      %v1344 = vpop.f32.mrb[0].mxu0
      %1345 = vmatprep.mubr.bf16.mxu0 0
      %1346 = vmatmul.mubr.bf16.gmra.mrb[0].mxu0 %v762
      %v1347 = vpop.f32.mrb[0].mxu0
      %v1348 = vadd.f32 %v1291, %v1347
      %v1349 = vpop.f32.mrb[0].mxu0
      %v1350 = vpop.f32.mrb[0].mxu0
      %v1351 = vadd.f32 %v1291, %v1350
      %v1352 = vpop.f32.mrb[0].mxu0
      %1353 = vdwg.mxu0
      %v1354 = vpack.c.bf16 %v1343, %v1340
      %v1355 = vpack.c.bf16 %v1351, %v1348
      %s1356 = scalar_lea.vmem %s672, 272
      %v1357 = vld [vmem:[%s1356] sm:$0xf]
      %v1358 = vld [vmem:[%s1356 + $0x4] sm:$0xf]
      %v1359 = vld [vmem:[%s1356 + $0x8] sm:$0xf]
      %v1360 = vld [vmem:[%s1356 + $0xc] sm:$0xf]
      %s1361 = scalar_lea.vmem %s676, 17
      %v1362 = vld [vmem:[%s1361] sm:$0x1]
      %v1364 = vlaneseq
      %v1365 = vshrl.u32 %v1364, 7
      %v1366 = vsub.s32 0, %v1365
      %v1367 = vrot.slane %v1362, %v1366
      %v1373 = vunpack.c.l.b16 %v1357
      %v1374 = vunpack.c.l.b16 %v1358
      %v1375 = vunpack.c.l.b16 %v1359
      %v1376 = vunpack.c.l.b16 %v1360
      %v1377 = vpack.c.b16 %v1374, %v1373
      %v1378 = vpack.c.b16 %v1376, %v1375
      %1381 = vmatprep.subr.bf16.mxu0 0
      %1382 = vmatpush1.bf16.msra.mxu0 %v1377
      %1383 = vmatprep.subr.bf16.mxu0 0
      %1384 = vmatpush1.bf16.msra.mxu0 %v1378
      %1385 = vmatprep.subr.bf16.mxu0 0
      %1386 = vmatpush1.bf16.msra.mxu0 0
      %1387 = vmatprep.subr.bf16.mxu0 0
      %1388 = vmatpush1.bf16.msra.mxu0 0
      %1389 = vmatprep.subr.bf16.mxu0 0
      %1390 = vmatpush1.bf16.msra.mxu0 0
      %1391 = vmatprep.subr.bf16.mxu0 0
      %1392 = vmatpush1.bf16.msra.mxu0 0
      %1393 = vmatprep.subr.bf16.mxu0 0
      %1394 = vmatpush1.bf16.msra.mxu0 0
      %1395 = vmatprep.subr.bf16.mxu0 0
      %1396 = vmatpush1.bf16.msra.mxu0 0
      %1397 = vmatprep.subr.bf16.mxu0 0
      %1398 = vmatpush1.bf16.msra.mxu0 0
      %1399 = vmatprep.subr.bf16.mxu0 0
      %1400 = vmatpush1.bf16.msra.mxu0 0
      %1401 = vmatprep.subr.bf16.mxu0 0
      %1402 = vmatpush1.bf16.msra.mxu0 0
      %1403 = vmatprep.subr.bf16.mxu0 0
      %1404 = vmatpush1.bf16.msra.mxu0 0
      %1405 = vmatprep.subr.bf16.mxu0 0
      %1406 = vmatpush1.bf16.msra.mxu0 0
      %1407 = vmatprep.subr.bf16.mxu0 0
      %1408 = vmatpush1.bf16.msra.mxu0 0
      %1409 = vmatprep.subr.bf16.mxu0 0
      %1410 = vmatpush1.bf16.msra.mxu0 0
      %1411 = vmatprep.subr.bf16.mxu0 0
      %1412 = vmatpush1.bf16.msra.mxu0 0
      %1413 = vmatprep.mubr.bf16.mxu0 0
      %1414 = vmatmul.mubr.bf16.gmra.mrb[0].mxu0 %v759
      %v1415 = vpop.f32.mrb[0].mxu0
      %v1416 = vadd.f32 %v1367, %v1415
      %v1417 = vpop.f32.mrb[0].mxu0
      %v1418 = vpop.f32.mrb[0].mxu0
      %v1419 = vadd.f32 %v1367, %v1418
      %v1420 = vpop.f32.mrb[0].mxu0
      %1421 = vmatprep.mubr.bf16.mxu0 0
      %1422 = vmatmul.mubr.bf16.gmra.mrb[0].mxu0 %v762
      %v1423 = vpop.f32.mrb[0].mxu0
      %v1424 = vadd.f32 %v1367, %v1423
      %v1425 = vpop.f32.mrb[0].mxu0
      %v1426 = vpop.f32.mrb[0].mxu0
      %v1427 = vadd.f32 %v1367, %v1426
      %v1428 = vpop.f32.mrb[0].mxu0
      %1429 = vdwg.mxu0
      %v1430 = vpack.c.bf16 %v1419, %v1416
      %v1431 = vpack.c.bf16 %v1427, %v1424
      %s1432 = scalar_lea.vmem %s681, 2
      %v1433 = vld [vmem:[%s1432] sm:$0x3]
      %v1435 = vsel %vm968, %v1278, 0
      %v1438 = vsel %vm968, %v1354, 0
      %1440 = vmatprep.subr.bf16.mxu0 0
      %1441 = vmatpush1.bf16.xpose.msra.mxu0 %v1438
      %1442 = vmatprep.subr.bf16.mxu0 0
      %1443 = vmatpush1.bf16.xpose.msra.mxu0 0
      %1444 = vmatprep.subr.bf16.mxu0 0
      %1445 = vmatpush1.bf16.xpose.msra.mxu0 0
      %1446 = vmatprep.subr.bf16.mxu0 0
      %1447 = vmatpush1.bf16.xpose.msra.mxu0 0
      %1448 = vmatprep.subr.bf16.mxu0 0
      %1449 = vmatpush1.bf16.xpose.msra.mxu0 0
      %1450 = vmatprep.subr.bf16.mxu0 0
      %1451 = vmatpush1.bf16.xpose.msra.mxu0 0
      %1452 = vmatprep.subr.bf16.mxu0 0
      %1453 = vmatpush1.bf16.xpose.msra.mxu0 0
      %1454 = vmatprep.subr.bf16.mxu0 0
      %1455 = vmatpush1.bf16.xpose.msra.mxu0 0
      %1456 = vmatprep.subr.bf16.mxu0 0
      %1457 = vmatpush1.bf16.xpose.msra.mxu0 0
      %1458 = vmatprep.subr.bf16.mxu0 0
      %1459 = vmatpush1.bf16.xpose.msra.mxu0 0
      %1460 = vmatprep.subr.bf16.mxu0 0
      %1461 = vmatpush1.bf16.xpose.msra.mxu0 0
      %1462 = vmatprep.subr.bf16.mxu0 0
      %1463 = vmatpush1.bf16.xpose.msra.mxu0 0
      %1464 = vmatprep.subr.bf16.mxu0 0
      %1465 = vmatpush1.bf16.xpose.msra.mxu0 0
      %1466 = vmatprep.subr.bf16.mxu0 0
      %1467 = vmatpush1.bf16.xpose.msra.mxu0 0
      %1468 = vmatprep.subr.bf16.mxu0 0
      %1469 = vmatpush1.bf16.xpose.msra.mxu0 0
      %1470 = vmatprep.subr.bf16.mxu0 0
      %1471 = vmatpush1.bf16.xpose.msra.mxu0 0
      %1472 = vmatprep.mubr.bf16.mxu0 0
      %1473 = vmatmul.mubr.bf16.gmra.mrb[0].mxu0 %v1435
      %v1474 = vpop.f32.mrb[0].mxu0
      %v1475 = vadd.f32 0.0, %v1474
      %v1476 = vpop.f32.mrb[0].mxu0
      %v1477 = vpop.f32.mrb[0].mxu0
      %v1478 = vadd.f32 0.0, %v1477
      %v1479 = vpop.f32.mrb[0].mxu0
      %1480 = vdwg.mxu0
      %v1481 = vmul.f32 %v1475, 0.5
      %v1482 = vmul.f32 %v1478, 0.5
      %v1483 = vsel %vm1018, %v1481, -inf
      %1484 = vmax.xlane.f32.xlu0 %v1483
      %v1485 = vpop.xlane.xlu0 %1484
      %v1486 = vsel %vm1018, %v1482, -inf
      %1487 = vmax.xlane.f32.xlu0 %v1486
      %v1488 = vpop.xlane.xlu0 %1487
      %v1489 = vsub.f32 %v1481, %v1485
      %v1490 = vsub.f32 %v1482, %v1488
      %v1491 = vmul.f32 %v1489, 1.442695
      %v1492 = vpow.pop %v1491
      %v1493 = vmul.f32 %v1490, 1.442695
      %v1494 = vpow.pop %v1493
      %v1495 = vsel %vm1018, %v1492, 0.0
      %1496 = vadd.xlane.f32.xlu0 %v1495
      %v1497 = vpop.xlane.xlu0 %1496
      %v1498 = vsel %vm1018, %v1494, 0.0
      %1499 = vadd.xlane.f32.xlu0 %v1498
      %v1500 = vpop.xlane.xlu0 %1499
      %v1501 = vrcp.pop %v1497
      %v1502 = vrcp.pop %v1500
      %v1503 = vmul.f32 %v1492, %v1501
      %v1504 = vmul.f32 %v1494, %v1502
      %v1505 = vpack.c.bf16 %v1504, %v1503
      %v1507 = vsel %vm1018, %v1505, 0
      %1509 = vmatprep.subr.bf16.mxu0 0
      %1510 = vmatpush1.bf16.msra.mxu0 %v1430
      %1511 = vmatprep.subr.bf16.mxu0 0
      %1512 = vmatpush1.bf16.msra.mxu0 0
      %1513 = vmatprep.subr.bf16.mxu0 0
      %1514 = vmatpush1.bf16.msra.mxu0 0
      %1515 = vmatprep.subr.bf16.mxu0 0
      %1516 = vmatpush1.bf16.msra.mxu0 0
      %1517 = vmatprep.subr.bf16.mxu0 0
      %1518 = vmatpush1.bf16.msra.mxu0 0
      %1519 = vmatprep.subr.bf16.mxu0 0
      %1520 = vmatpush1.bf16.msra.mxu0 0
      %1521 = vmatprep.subr.bf16.mxu0 0
      %1522 = vmatpush1.bf16.msra.mxu0 0
      %1523 = vmatprep.subr.bf16.mxu0 0
      %1524 = vmatpush1.bf16.msra.mxu0 0
      %1525 = vmatprep.subr.bf16.mxu0 0
      %1526 = vmatpush1.bf16.msra.mxu0 0
      %1527 = vmatprep.subr.bf16.mxu0 0
      %1528 = vmatpush1.bf16.msra.mxu0 0
      %1529 = vmatprep.subr.bf16.mxu0 0
      %1530 = vmatpush1.bf16.msra.mxu0 0
      %1531 = vmatprep.subr.bf16.mxu0 0
      %1532 = vmatpush1.bf16.msra.mxu0 0
      %1533 = vmatprep.subr.bf16.mxu0 0
      %1534 = vmatpush1.bf16.msra.mxu0 0
      %1535 = vmatprep.subr.bf16.mxu0 0
      %1536 = vmatpush1.bf16.msra.mxu0 0
      %1537 = vmatprep.subr.bf16.mxu0 0
      %1538 = vmatpush1.bf16.msra.mxu0 0
      %1539 = vmatprep.subr.bf16.mxu0 0
      %1540 = vmatpush1.bf16.msra.mxu0 0
      %1541 = vmatprep.mubr.bf16.mxu0 0
      %1542 = vmatmul.mubr.bf16.gmra.mrb[0].mxu0 %v1507
      %v1543 = vpop.f32.mrb[0].mxu0
      %v1544 = vadd.f32 0.0, %v1543
      %v1545 = vpop.f32.mrb[0].mxu0
      %v1546 = vpop.f32.mrb[0].mxu0
      %v1547 = vadd.f32 0.0, %v1546
      %v1548 = vpop.f32.mrb[0].mxu0
      %1549 = vdwg.mxu0
      %v1550 = vpack.c.bf16 %v1547, %v1544
      %v1552 = vsel %vm968, %v1550, 0
      %vm1554 = vcmask 1041408
      %v1556 = vsel %vm1554, %v1433, 0
      %1558 = vmatprep.subr.bf16.mxu0 0
      %1559 = vmatpush1.bf16.msra.mxu0 %v1556
      %1560 = vmatprep.subr.bf16.mxu0 0
      %1561 = vmatpush1.bf16.msra.mxu0 0
      %1562 = vmatprep.subr.bf16.mxu0 0
      %1563 = vmatpush1.bf16.msra.mxu0 0
      %1564 = vmatprep.subr.bf16.mxu0 0
      %1565 = vmatpush1.bf16.msra.mxu0 0
      %1566 = vmatprep.subr.bf16.mxu0 0
      %1567 = vmatpush1.bf16.msra.mxu0 0
      %1568 = vmatprep.subr.bf16.mxu0 0
      %1569 = vmatpush1.bf16.msra.mxu0 0
      %1570 = vmatprep.subr.bf16.mxu0 0
      %1571 = vmatpush1.bf16.msra.mxu0 0
      %1572 = vmatprep.subr.bf16.mxu0 0
      %1573 = vmatpush1.bf16.msra.mxu0 0
      %1574 = vmatprep.subr.bf16.mxu0 0
      %1575 = vmatpush1.bf16.msra.mxu0 0
      %1576 = vmatprep.subr.bf16.mxu0 0
      %1577 = vmatpush1.bf16.msra.mxu0 0
      %1578 = vmatprep.subr.bf16.mxu0 0
      %1579 = vmatpush1.bf16.msra.mxu0 0
      %1580 = vmatprep.subr.bf16.mxu0 0
      %1581 = vmatpush1.bf16.msra.mxu0 0
      %1582 = vmatprep.subr.bf16.mxu0 0
      %1583 = vmatpush1.bf16.msra.mxu0 0
      %1584 = vmatprep.subr.bf16.mxu0 0
      %1585 = vmatpush1.bf16.msra.mxu0 0
      %1586 = vmatprep.subr.bf16.mxu0 0
      %1587 = vmatpush1.bf16.msra.mxu0 0
      %1588 = vmatprep.subr.bf16.mxu0 0
      %1589 = vmatpush1.bf16.msra.mxu0 0
      %1590 = vmatprep.mubr.bf16.mxu0 0
      %1591 = vmatmul.mubr.bf16.gmra.mrb[0].mxu0 %v1552
      %v1592 = vpop.f32.mrb[0].mxu0
      %v1593 = vadd.f32 0.0, %v1592
      %v1594 = vpop.f32.mrb[0].mxu0
      %v1595 = vpop.f32.mrb[0].mxu0
      %v1596 = vadd.f32 0.0, %v1595
      %v1597 = vpop.f32.mrb[0].mxu0
      %1598 = vdwg.mxu0
      %v1600 = vsel %vm968, %v1086, 0
      %v1603 = vsel %vm1554, %v967, 0
      %1605 = vmatprep.subr.bf16.mxu0 0
      %1606 = vmatpush1.bf16.msra.mxu0 %v1603
      %1607 = vmatprep.subr.bf16.mxu0 0
      %1608 = vmatpush1.bf16.msra.mxu0 0
      %1609 = vmatprep.subr.bf16.mxu0 0
      %1610 = vmatpush1.bf16.msra.mxu0 0
      %1611 = vmatprep.subr.bf16.mxu0 0
      %1612 = vmatpush1.bf16.msra.mxu0 0
      %1613 = vmatprep.subr.bf16.mxu0 0
      %1614 = vmatpush1.bf16.msra.mxu0 0
      %1615 = vmatprep.subr.bf16.mxu0 0
      %1616 = vmatpush1.bf16.msra.mxu0 0
      %1617 = vmatprep.subr.bf16.mxu0 0
      %1618 = vmatpush1.bf16.msra.mxu0 0
      %1619 = vmatprep.subr.bf16.mxu0 0
      %1620 = vmatpush1.bf16.msra.mxu0 0
      %1621 = vmatprep.subr.bf16.mxu0 0
      %1622 = vmatpush1.bf16.msra.mxu0 0
      %1623 = vmatprep.subr.bf16.mxu0 0
      %1624 = vmatpush1.bf16.msra.mxu0 0
      %1625 = vmatprep.subr.bf16.mxu0 0
      %1626 = vmatpush1.bf16.msra.mxu0 0
      %1627 = vmatprep.subr.bf16.mxu0 0
      %1628 = vmatpush1.bf16.msra.mxu0 0
      %1629 = vmatprep.subr.bf16.mxu0 0
      %1630 = vmatpush1.bf16.msra.mxu0 0
      %1631 = vmatprep.subr.bf16.mxu0 0
      %1632 = vmatpush1.bf16.msra.mxu0 0
      %1633 = vmatprep.subr.bf16.mxu0 0
      %1634 = vmatpush1.bf16.msra.mxu0 0
      %1635 = vmatprep.subr.bf16.mxu0 0
      %1636 = vmatpush1.bf16.msra.mxu0 0
      %1637 = vmatprep.mubr.bf16.mxu0 0
      %1638 = vmatmul.mubr.bf16.gmra.mrb[0].mxu0 %v1600
      %v1639 = vpop.f32.mrb[0].mxu0
      %v1640 = vadd.f32 %v1593, %v1639
      %v1641 = vpop.f32.mrb[0].mxu0
      %v1642 = vpop.f32.mrb[0].mxu0
      %v1643 = vadd.f32 %v1596, %v1642
      %v1644 = vpop.f32.mrb[0].mxu0
      %1645 = vdwg.mxu0
      %v1647 = vsel %vm968, %v1279, 0
      %v1650 = vsel %vm968, %v1355, 0
      %1652 = vmatprep.subr.bf16.mxu0 0
      %1653 = vmatpush1.bf16.xpose.msra.mxu0 %v1650
      %1654 = vmatprep.subr.bf16.mxu0 0
      %1655 = vmatpush1.bf16.xpose.msra.mxu0 0
      %1656 = vmatprep.subr.bf16.mxu0 0
      %1657 = vmatpush1.bf16.xpose.msra.mxu0 0
      %1658 = vmatprep.subr.bf16.mxu0 0
      %1659 = vmatpush1.bf16.xpose.msra.mxu0 0
      %1660 = vmatprep.subr.bf16.mxu0 0
      %1661 = vmatpush1.bf16.xpose.msra.mxu0 0
      %1662 = vmatprep.subr.bf16.mxu0 0
      %1663 = vmatpush1.bf16.xpose.msra.mxu0 0
      %1664 = vmatprep.subr.bf16.mxu0 0
      %1665 = vmatpush1.bf16.xpose.msra.mxu0 0
      %1666 = vmatprep.subr.bf16.mxu0 0
      %1667 = vmatpush1.bf16.xpose.msra.mxu0 0
      %1668 = vmatprep.subr.bf16.mxu0 0
      %1669 = vmatpush1.bf16.xpose.msra.mxu0 0
      %1670 = vmatprep.subr.bf16.mxu0 0
      %1671 = vmatpush1.bf16.xpose.msra.mxu0 0
      %1672 = vmatprep.subr.bf16.mxu0 0
      %1673 = vmatpush1.bf16.xpose.msra.mxu0 0
      %1674 = vmatprep.subr.bf16.mxu0 0
      %1675 = vmatpush1.bf16.xpose.msra.mxu0 0
      %1676 = vmatprep.subr.bf16.mxu0 0
      %1677 = vmatpush1.bf16.xpose.msra.mxu0 0
      %1678 = vmatprep.subr.bf16.mxu0 0
      %1679 = vmatpush1.bf16.xpose.msra.mxu0 0
      %1680 = vmatprep.subr.bf16.mxu0 0
      %1681 = vmatpush1.bf16.xpose.msra.mxu0 0
      %1682 = vmatprep.subr.bf16.mxu0 0
      %1683 = vmatpush1.bf16.xpose.msra.mxu0 0
      %1684 = vmatprep.mubr.bf16.mxu0 0
      %1685 = vmatmul.mubr.bf16.gmra.mrb[0].mxu0 %v1647
      %v1686 = vpop.f32.mrb[0].mxu0
      %v1687 = vadd.f32 0.0, %v1686
      %v1688 = vpop.f32.mrb[0].mxu0
      %v1689 = vpop.f32.mrb[0].mxu0
      %v1690 = vadd.f32 0.0, %v1689
      %v1691 = vpop.f32.mrb[0].mxu0
      %1692 = vdwg.mxu0
      %v1693 = vmul.f32 %v1687, 0.5
      %v1694 = vmul.f32 %v1690, 0.5
      %v1695 = vsel %vm1018, %v1693, -inf
      %1696 = vmax.xlane.f32.xlu0 %v1695
      %v1697 = vpop.xlane.xlu0 %1696
      %v1698 = vsel %vm1018, %v1694, -inf
      %1699 = vmax.xlane.f32.xlu0 %v1698
      %v1700 = vpop.xlane.xlu0 %1699
      %v1701 = vsub.f32 %v1693, %v1697
      %v1702 = vsub.f32 %v1694, %v1700
      %v1703 = vmul.f32 %v1701, 1.442695
      %v1704 = vpow.pop %v1703
      %v1705 = vmul.f32 %v1702, 1.442695
      %v1706 = vpow.pop %v1705
      %v1707 = vsel %vm1018, %v1704, 0.0
      %1708 = vadd.xlane.f32.xlu0 %v1707
      %v1709 = vpop.xlane.xlu0 %1708
      %v1710 = vsel %vm1018, %v1706, 0.0
      %1711 = vadd.xlane.f32.xlu0 %v1710
      %v1712 = vpop.xlane.xlu0 %1711
      %v1713 = vrcp.pop %v1709
      %v1714 = vrcp.pop %v1712
      %v1715 = vmul.f32 %v1704, %v1713
      %v1716 = vmul.f32 %v1706, %v1714
      %v1717 = vpack.c.bf16 %v1716, %v1715
      %v1719 = vsel %vm1018, %v1717, 0
      %1721 = vmatprep.subr.bf16.mxu0 0
      %1722 = vmatpush1.bf16.msra.mxu0 %v1431
      %1723 = vmatprep.subr.bf16.mxu0 0
      %1724 = vmatpush1.bf16.msra.mxu0 0
      %1725 = vmatprep.subr.bf16.mxu0 0
      %1726 = vmatpush1.bf16.msra.mxu0 0
      %1727 = vmatprep.subr.bf16.mxu0 0
      %1728 = vmatpush1.bf16.msra.mxu0 0
      %1729 = vmatprep.subr.bf16.mxu0 0
      %1730 = vmatpush1.bf16.msra.mxu0 0
      %1731 = vmatprep.subr.bf16.mxu0 0
      %1732 = vmatpush1.bf16.msra.mxu0 0
      %1733 = vmatprep.subr.bf16.mxu0 0
      %1734 = vmatpush1.bf16.msra.mxu0 0
      %1735 = vmatprep.subr.bf16.mxu0 0
      %1736 = vmatpush1.bf16.msra.mxu0 0
      %1737 = vmatprep.subr.bf16.mxu0 0
      %1738 = vmatpush1.bf16.msra.mxu0 0
      %1739 = vmatprep.subr.bf16.mxu0 0
      %1740 = vmatpush1.bf16.msra.mxu0 0
      %1741 = vmatprep.subr.bf16.mxu0 0
      %1742 = vmatpush1.bf16.msra.mxu0 0
      %1743 = vmatprep.subr.bf16.mxu0 0
      %1744 = vmatpush1.bf16.msra.mxu0 0
      %1745 = vmatprep.subr.bf16.mxu0 0
      %1746 = vmatpush1.bf16.msra.mxu0 0
      %1747 = vmatprep.subr.bf16.mxu0 0
      %1748 = vmatpush1.bf16.msra.mxu0 0
      %1749 = vmatprep.subr.bf16.mxu0 0
      %1750 = vmatpush1.bf16.msra.mxu0 0
      %1751 = vmatprep.subr.bf16.mxu0 0
      %1752 = vmatpush1.bf16.msra.mxu0 0
      %1753 = vmatprep.mubr.bf16.mxu0 0
      %1754 = vmatmul.mubr.bf16.gmra.mrb[0].mxu0 %v1719
      %v1755 = vpop.f32.mrb[0].mxu0
      %v1756 = vadd.f32 0.0, %v1755
      %v1757 = vpop.f32.mrb[0].mxu0
      %v1758 = vpop.f32.mrb[0].mxu0
      %v1759 = vadd.f32 0.0, %v1758
      %v1760 = vpop.f32.mrb[0].mxu0
      %1761 = vdwg.mxu0
      %v1762 = vpack.c.bf16 %v1759, %v1756
      %v1764 = vsel %vm968, %v1762, 0
      %1766 = vmatprep.subr.bf16.mxu0 0
      %1767 = vmatpush1.bf16.msra.mxu0 %v1556
      %1768 = vmatprep.subr.bf16.mxu0 0
      %1769 = vmatpush1.bf16.msra.mxu0 0
      %1770 = vmatprep.subr.bf16.mxu0 0
      %1771 = vmatpush1.bf16.msra.mxu0 0
      %1772 = vmatprep.subr.bf16.mxu0 0
      %1773 = vmatpush1.bf16.msra.mxu0 0
      %1774 = vmatprep.subr.bf16.mxu0 0
      %1775 = vmatpush1.bf16.msra.mxu0 0
      %1776 = vmatprep.subr.bf16.mxu0 0
      %1777 = vmatpush1.bf16.msra.mxu0 0
      %1778 = vmatprep.subr.bf16.mxu0 0
      %1779 = vmatpush1.bf16.msra.mxu0 0
      %1780 = vmatprep.subr.bf16.mxu0 0
      %1781 = vmatpush1.bf16.msra.mxu0 0
      %1782 = vmatprep.subr.bf16.mxu0 0
      %1783 = vmatpush1.bf16.msra.mxu0 0
      %1784 = vmatprep.subr.bf16.mxu0 0
      %1785 = vmatpush1.bf16.msra.mxu0 0
      %1786 = vmatprep.subr.bf16.mxu0 0
      %1787 = vmatpush1.bf16.msra.mxu0 0
      %1788 = vmatprep.subr.bf16.mxu0 0
      %1789 = vmatpush1.bf16.msra.mxu0 0
      %1790 = vmatprep.subr.bf16.mxu0 0
      %1791 = vmatpush1.bf16.msra.mxu0 0
      %1792 = vmatprep.subr.bf16.mxu0 0
      %1793 = vmatpush1.bf16.msra.mxu0 0
      %1794 = vmatprep.subr.bf16.mxu0 0
      %1795 = vmatpush1.bf16.msra.mxu0 0
      %1796 = vmatprep.subr.bf16.mxu0 0
      %1797 = vmatpush1.bf16.msra.mxu0 0
      %1798 = vmatprep.mubr.bf16.mxu0 0
      %1799 = vmatmul.mubr.bf16.gmra.mrb[0].mxu0 %v1764
      %v1800 = vpop.f32.mrb[0].mxu0
      %v1801 = vadd.f32 0.0, %v1800
      %v1802 = vpop.f32.mrb[0].mxu0
      %v1803 = vpop.f32.mrb[0].mxu0
      %v1804 = vadd.f32 0.0, %v1803
      %v1805 = vpop.f32.mrb[0].mxu0
      %1806 = vdwg.mxu0
      %v1808 = vsel %vm968, %v1203, 0
      %1810 = vmatprep.subr.bf16.mxu0 0
      %1811 = vmatpush1.bf16.msra.mxu0 %v1603
      %1812 = vmatprep.subr.bf16.mxu0 0
      %1813 = vmatpush1.bf16.msra.mxu0 0
      %1814 = vmatprep.subr.bf16.mxu0 0
      %1815 = vmatpush1.bf16.msra.mxu0 0
      %1816 = vmatprep.subr.bf16.mxu0 0
      %1817 = vmatpush1.bf16.msra.mxu0 0
      %1818 = vmatprep.subr.bf16.mxu0 0
      %1819 = vmatpush1.bf16.msra.mxu0 0
      %1820 = vmatprep.subr.bf16.mxu0 0
      %1821 = vmatpush1.bf16.msra.mxu0 0
      %1822 = vmatprep.subr.bf16.mxu0 0
      %1823 = vmatpush1.bf16.msra.mxu0 0
      %1824 = vmatprep.subr.bf16.mxu0 0
      %1825 = vmatpush1.bf16.msra.mxu0 0
      %1826 = vmatprep.subr.bf16.mxu0 0
      %1827 = vmatpush1.bf16.msra.mxu0 0
      %1828 = vmatprep.subr.bf16.mxu0 0
      %1829 = vmatpush1.bf16.msra.mxu0 0
      %1830 = vmatprep.subr.bf16.mxu0 0
      %1831 = vmatpush1.bf16.msra.mxu0 0
      %1832 = vmatprep.subr.bf16.mxu0 0
      %1833 = vmatpush1.bf16.msra.mxu0 0
      %1834 = vmatprep.subr.bf16.mxu0 0
      %1835 = vmatpush1.bf16.msra.mxu0 0
      %1836 = vmatprep.subr.bf16.mxu0 0
      %1837 = vmatpush1.bf16.msra.mxu0 0
      %1838 = vmatprep.subr.bf16.mxu0 0
      %1839 = vmatpush1.bf16.msra.mxu0 0
      %1840 = vmatprep.subr.bf16.mxu0 0
      %1841 = vmatpush1.bf16.msra.mxu0 0
      %1842 = vmatprep.mubr.bf16.mxu0 0
      %1843 = vmatmul.mubr.bf16.gmra.mrb[0].mxu0 %v1808
      %v1844 = vpop.f32.mrb[0].mxu0
      %v1845 = vadd.f32 %v1801, %v1844
      %v1846 = vpop.f32.mrb[0].mxu0
      %v1847 = vpop.f32.mrb[0].mxu0
      %v1848 = vadd.f32 %v1804, %v1847
      %v1849 = vpop.f32.mrb[0].mxu0
      %1850 = vdwg.mxu0
      %s1851 = scalar_lea.vmem %s672, 32
      %v1852 = vld [vmem:[%s1851] sm:$0xf]
      %v1853 = vld [vmem:[%s1851 + $0x4] sm:$0xf]
      %v1854 = vld [vmem:[%s1851 + $0x8] sm:$0xf]
      %v1855 = vld [vmem:[%s1851 + $0xc] sm:$0xf]
      %s1856 = scalar_lea.vmem %s676, 2
      %v1857 = vld [vmem:[%s1856] sm:$0x1]
      %v1859 = vlaneseq
      %v1860 = vshrl.u32 %v1859, 7
      %v1861 = vsub.s32 0, %v1860
      %v1862 = vrot.slane %v1857, %v1861
      %v1868 = vunpack.c.l.b16 %v1852
      %v1869 = vunpack.c.l.b16 %v1853
      %v1870 = vunpack.c.l.b16 %v1854
      %v1871 = vunpack.c.l.b16 %v1855
      %v1872 = vpack.c.b16 %v1869, %v1868
      %v1873 = vpack.c.b16 %v1871, %v1870
      %1876 = vmatprep.subr.bf16.mxu0 0
      %1877 = vmatpush1.bf16.msra.mxu0 %v1872
      %1878 = vmatprep.subr.bf16.mxu0 0
      %1879 = vmatpush1.bf16.msra.mxu0 %v1873
      %1880 = vmatprep.subr.bf16.mxu0 0
      %1881 = vmatpush1.bf16.msra.mxu0 0
      %1882 = vmatprep.subr.bf16.mxu0 0
      %1883 = vmatpush1.bf16.msra.mxu0 0
      %1884 = vmatprep.subr.bf16.mxu0 0
      %1885 = vmatpush1.bf16.msra.mxu0 0
      %1886 = vmatprep.subr.bf16.mxu0 0
      %1887 = vmatpush1.bf16.msra.mxu0 0
      %1888 = vmatprep.subr.bf16.mxu0 0
      %1889 = vmatpush1.bf16.msra.mxu0 0
      %1890 = vmatprep.subr.bf16.mxu0 0
      %1891 = vmatpush1.bf16.msra.mxu0 0
      %1892 = vmatprep.subr.bf16.mxu0 0
      %1893 = vmatpush1.bf16.msra.mxu0 0
      %1894 = vmatprep.subr.bf16.mxu0 0
      %1895 = vmatpush1.bf16.msra.mxu0 0
      %1896 = vmatprep.subr.bf16.mxu0 0
      %1897 = vmatpush1.bf16.msra.mxu0 0
      %1898 = vmatprep.subr.bf16.mxu0 0
      %1899 = vmatpush1.bf16.msra.mxu0 0
      %1900 = vmatprep.subr.bf16.mxu0 0
      %1901 = vmatpush1.bf16.msra.mxu0 0
      %1902 = vmatprep.subr.bf16.mxu0 0
      %1903 = vmatpush1.bf16.msra.mxu0 0
      %1904 = vmatprep.subr.bf16.mxu0 0
      %1905 = vmatpush1.bf16.msra.mxu0 0
      %1906 = vmatprep.subr.bf16.mxu0 0
      %1907 = vmatpush1.bf16.msra.mxu0 0
      %1908 = vmatprep.mubr.bf16.mxu0 0
      %1909 = vmatmul.mubr.bf16.gmra.mrb[0].mxu0 %v759
      %v1910 = vpop.f32.mrb[0].mxu0
      %v1911 = vadd.f32 %v1862, %v1910
      %v1912 = vpop.f32.mrb[0].mxu0
      %v1913 = vpop.f32.mrb[0].mxu0
      %v1914 = vadd.f32 %v1862, %v1913
      %v1915 = vpop.f32.mrb[0].mxu0
      %1916 = vmatprep.mubr.bf16.mxu0 0
      %1917 = vmatmul.mubr.bf16.gmra.mrb[0].mxu0 %v762
      %v1918 = vpop.f32.mrb[0].mxu0
      %v1919 = vadd.f32 %v1862, %v1918
      %v1920 = vpop.f32.mrb[0].mxu0
      %v1921 = vpop.f32.mrb[0].mxu0
      %v1922 = vadd.f32 %v1862, %v1921
      %v1923 = vpop.f32.mrb[0].mxu0
      %1924 = vdwg.mxu0
      %v1925 = vpack.c.bf16 %v1914, %v1911
      %v1926 = vpack.c.bf16 %v1922, %v1919
      %s1927 = scalar_lea.vmem %s672, 160
      %v1928 = vld [vmem:[%s1927] sm:$0xf]
      %v1929 = vld [vmem:[%s1927 + $0x4] sm:$0xf]
      %v1930 = vld [vmem:[%s1927 + $0x8] sm:$0xf]
      %v1931 = vld [vmem:[%s1927 + $0xc] sm:$0xf]
      %s1932 = scalar_lea.vmem %s676, 10
      %v1933 = vld [vmem:[%s1932] sm:$0x1]
      %v1935 = vlaneseq
      %v1936 = vshrl.u32 %v1935, 7
      %v1937 = vsub.s32 0, %v1936
      %v1938 = vrot.slane %v1933, %v1937
      %v1944 = vunpack.c.l.b16 %v1928
      %v1945 = vunpack.c.l.b16 %v1929
      %v1946 = vunpack.c.l.b16 %v1930
      %v1947 = vunpack.c.l.b16 %v1931
      %v1948 = vpack.c.b16 %v1945, %v1944
      %v1949 = vpack.c.b16 %v1947, %v1946
      %1952 = vmatprep.subr.bf16.mxu0 0
      %1953 = vmatpush1.bf16.msra.mxu0 %v1948
      %1954 = vmatprep.subr.bf16.mxu0 0
      %1955 = vmatpush1.bf16.msra.mxu0 %v1949
      %1956 = vmatprep.subr.bf16.mxu0 0
      %1957 = vmatpush1.bf16.msra.mxu0 0
      %1958 = vmatprep.subr.bf16.mxu0 0
      %1959 = vmatpush1.bf16.msra.mxu0 0
      %1960 = vmatprep.subr.bf16.mxu0 0
      %1961 = vmatpush1.bf16.msra.mxu0 0
      %1962 = vmatprep.subr.bf16.mxu0 0
      %1963 = vmatpush1.bf16.msra.mxu0 0
      %1964 = vmatprep.subr.bf16.mxu0 0
      %1965 = vmatpush1.bf16.msra.mxu0 0
      %1966 = vmatprep.subr.bf16.mxu0 0
      %1967 = vmatpush1.bf16.msra.mxu0 0
      %1968 = vmatprep.subr.bf16.mxu0 0
      %1969 = vmatpush1.bf16.msra.mxu0 0
      %1970 = vmatprep.subr.bf16.mxu0 0
      %1971 = vmatpush1.bf16.msra.mxu0 0
      %1972 = vmatprep.subr.bf16.mxu0 0
      %1973 = vmatpush1.bf16.msra.mxu0 0
      %1974 = vmatprep.subr.bf16.mxu0 0
      %1975 = vmatpush1.bf16.msra.mxu0 0
      %1976 = vmatprep.subr.bf16.mxu0 0
      %1977 = vmatpush1.bf16.msra.mxu0 0
      %1978 = vmatprep.subr.bf16.mxu0 0
      %1979 = vmatpush1.bf16.msra.mxu0 0
      %1980 = vmatprep.subr.bf16.mxu0 0
      %1981 = vmatpush1.bf16.msra.mxu0 0
      %1982 = vmatprep.subr.bf16.mxu0 0
      %1983 = vmatpush1.bf16.msra.mxu0 0
      %1984 = vmatprep.mubr.bf16.mxu0 0
      %1985 = vmatmul.mubr.bf16.gmra.mrb[0].mxu0 %v759
      %v1986 = vpop.f32.mrb[0].mxu0
      %v1987 = vadd.f32 %v1938, %v1986
      %v1988 = vpop.f32.mrb[0].mxu0
      %v1989 = vpop.f32.mrb[0].mxu0
      %v1990 = vadd.f32 %v1938, %v1989
      %v1991 = vpop.f32.mrb[0].mxu0
      %1992 = vmatprep.mubr.bf16.mxu0 0
      %1993 = vmatmul.mubr.bf16.gmra.mrb[0].mxu0 %v762
      %v1994 = vpop.f32.mrb[0].mxu0
      %v1995 = vadd.f32 %v1938, %v1994
      %v1996 = vpop.f32.mrb[0].mxu0
      %v1997 = vpop.f32.mrb[0].mxu0
      %v1998 = vadd.f32 %v1938, %v1997
      %v1999 = vpop.f32.mrb[0].mxu0
      %2000 = vdwg.mxu0
      %v2001 = vpack.c.bf16 %v1990, %v1987
      %v2002 = vpack.c.bf16 %v1998, %v1995
      %s2003 = scalar_lea.vmem %s672, 288
      %v2004 = vld [vmem:[%s2003] sm:$0xf]
      %v2005 = vld [vmem:[%s2003 + $0x4] sm:$0xf]
      %v2006 = vld [vmem:[%s2003 + $0x8] sm:$0xf]
      %v2007 = vld [vmem:[%s2003 + $0xc] sm:$0xf]
      %s2008 = scalar_lea.vmem %s676, 18
      %v2009 = vld [vmem:[%s2008] sm:$0x1]
      %v2011 = vlaneseq
      %v2012 = vshrl.u32 %v2011, 7
      %v2013 = vsub.s32 0, %v2012
      %v2014 = vrot.slane %v2009, %v2013
      %v2020 = vunpack.c.l.b16 %v2004
      %v2021 = vunpack.c.l.b16 %v2005
      %v2022 = vunpack.c.l.b16 %v2006
      %v2023 = vunpack.c.l.b16 %v2007
      %v2024 = vpack.c.b16 %v2021, %v2020
      %v2025 = vpack.c.b16 %v2023, %v2022
      %2028 = vmatprep.subr.bf16.mxu0 0
      %2029 = vmatpush1.bf16.msra.mxu0 %v2024
      %2030 = vmatprep.subr.bf16.mxu0 0
      %2031 = vmatpush1.bf16.msra.mxu0 %v2025
      %2032 = vmatprep.subr.bf16.mxu0 0
      %2033 = vmatpush1.bf16.msra.mxu0 0
      %2034 = vmatprep.subr.bf16.mxu0 0
      %2035 = vmatpush1.bf16.msra.mxu0 0
      %2036 = vmatprep.subr.bf16.mxu0 0
      %2037 = vmatpush1.bf16.msra.mxu0 0
      %2038 = vmatprep.subr.bf16.mxu0 0
      %2039 = vmatpush1.bf16.msra.mxu0 0
      %2040 = vmatprep.subr.bf16.mxu0 0
      %2041 = vmatpush1.bf16.msra.mxu0 0
      %2042 = vmatprep.subr.bf16.mxu0 0
      %2043 = vmatpush1.bf16.msra.mxu0 0
      %2044 = vmatprep.subr.bf16.mxu0 0
      %2045 = vmatpush1.bf16.msra.mxu0 0
      %2046 = vmatprep.subr.bf16.mxu0 0
      %2047 = vmatpush1.bf16.msra.mxu0 0
      %2048 = vmatprep.subr.bf16.mxu0 0
      %2049 = vmatpush1.bf16.msra.mxu0 0
      %2050 = vmatprep.subr.bf16.mxu0 0
      %2051 = vmatpush1.bf16.msra.mxu0 0
      %2052 = vmatprep.subr.bf16.mxu0 0
      %2053 = vmatpush1.bf16.msra.mxu0 0
      %2054 = vmatprep.subr.bf16.mxu0 0
      %2055 = vmatpush1.bf16.msra.mxu0 0
      %2056 = vmatprep.subr.bf16.mxu0 0
      %2057 = vmatpush1.bf16.msra.mxu0 0
      %2058 = vmatprep.subr.bf16.mxu0 0
      %2059 = vmatpush1.bf16.msra.mxu0 0
      %2060 = vmatprep.mubr.bf16.mxu0 0
      %2061 = vmatmul.mubr.bf16.gmra.mrb[0].mxu0 %v759
      %v2062 = vpop.f32.mrb[0].mxu0
      %v2063 = vadd.f32 %v2014, %v2062
      %v2064 = vpop.f32.mrb[0].mxu0
      %v2065 = vpop.f32.mrb[0].mxu0
      %v2066 = vadd.f32 %v2014, %v2065
      %v2067 = vpop.f32.mrb[0].mxu0
      %2068 = vmatprep.mubr.bf16.mxu0 0
      %2069 = vmatmul.mubr.bf16.gmra.mrb[0].mxu0 %v762
      %v2070 = vpop.f32.mrb[0].mxu0
      %v2071 = vadd.f32 %v2014, %v2070
      %v2072 = vpop.f32.mrb[0].mxu0
      %v2073 = vpop.f32.mrb[0].mxu0
      %v2074 = vadd.f32 %v2014, %v2073
      %v2075 = vpop.f32.mrb[0].mxu0
      %2076 = vdwg.mxu0
      %v2077 = vpack.c.bf16 %v2066, %v2063
      %v2078 = vpack.c.bf16 %v2074, %v2071
      %s2079 = scalar_lea.vmem %s681, 4
      %v2080 = vld [vmem:[%s2079] sm:$0x3]
      %v2082 = vsel %vm968, %v1925, 0
      %v2085 = vsel %vm968, %v2001, 0
      %2087 = vmatprep.subr.bf16.mxu0 0
      %2088 = vmatpush1.bf16.xpose.msra.mxu0 %v2085
      %2089 = vmatprep.subr.bf16.mxu0 0
      %2090 = vmatpush1.bf16.xpose.msra.mxu0 0
      %2091 = vmatprep.subr.bf16.mxu0 0
      %2092 = vmatpush1.bf16.xpose.msra.mxu0 0
      %2093 = vmatprep.subr.bf16.mxu0 0
      %2094 = vmatpush1.bf16.xpose.msra.mxu0 0
      %2095 = vmatprep.subr.bf16.mxu0 0
      %2096 = vmatpush1.bf16.xpose.msra.mxu0 0
      %2097 = vmatprep.subr.bf16.mxu0 0
      %2098 = vmatpush1.bf16.xpose.msra.mxu0 0
      %2099 = vmatprep.subr.bf16.mxu0 0
      %2100 = vmatpush1.bf16.xpose.msra.mxu0 0
      %2101 = vmatprep.subr.bf16.mxu0 0
      %2102 = vmatpush1.bf16.xpose.msra.mxu0 0
      %2103 = vmatprep.subr.bf16.mxu0 0
      %2104 = vmatpush1.bf16.xpose.msra.mxu0 0
      %2105 = vmatprep.subr.bf16.mxu0 0
      %2106 = vmatpush1.bf16.xpose.msra.mxu0 0
      %2107 = vmatprep.subr.bf16.mxu0 0
      %2108 = vmatpush1.bf16.xpose.msra.mxu0 0
      %2109 = vmatprep.subr.bf16.mxu0 0
      %2110 = vmatpush1.bf16.xpose.msra.mxu0 0
      %2111 = vmatprep.subr.bf16.mxu0 0
      %2112 = vmatpush1.bf16.xpose.msra.mxu0 0
      %2113 = vmatprep.subr.bf16.mxu0 0
      %2114 = vmatpush1.bf16.xpose.msra.mxu0 0
      %2115 = vmatprep.subr.bf16.mxu0 0
      %2116 = vmatpush1.bf16.xpose.msra.mxu0 0
      %2117 = vmatprep.subr.bf16.mxu0 0
      %2118 = vmatpush1.bf16.xpose.msra.mxu0 0
      %2119 = vmatprep.mubr.bf16.mxu0 0
      %2120 = vmatmul.mubr.bf16.gmra.mrb[0].mxu0 %v2082
      %v2121 = vpop.f32.mrb[0].mxu0
      %v2122 = vadd.f32 0.0, %v2121
      %v2123 = vpop.f32.mrb[0].mxu0
      %v2124 = vpop.f32.mrb[0].mxu0
      %v2125 = vadd.f32 0.0, %v2124
      %v2126 = vpop.f32.mrb[0].mxu0
      %2127 = vdwg.mxu0
      %v2128 = vmul.f32 %v2122, 0.5
      %v2129 = vmul.f32 %v2125, 0.5
      %v2130 = vsel %vm1018, %v2128, -inf
      %2131 = vmax.xlane.f32.xlu0 %v2130
      %v2132 = vpop.xlane.xlu0 %2131
      %v2133 = vsel %vm1018, %v2129, -inf
      %2134 = vmax.xlane.f32.xlu0 %v2133
      %v2135 = vpop.xlane.xlu0 %2134
      %v2136 = vsub.f32 %v2128, %v2132
      %v2137 = vsub.f32 %v2129, %v2135
      %v2138 = vmul.f32 %v2136, 1.442695
      %v2139 = vpow.pop %v2138
      %v2140 = vmul.f32 %v2137, 1.442695
      %v2141 = vpow.pop %v2140
      %v2142 = vsel %vm1018, %v2139, 0.0
      %2143 = vadd.xlane.f32.xlu0 %v2142
      %v2144 = vpop.xlane.xlu0 %2143
      %v2145 = vsel %vm1018, %v2141, 0.0
      %2146 = vadd.xlane.f32.xlu0 %v2145
      %v2147 = vpop.xlane.xlu0 %2146
      %v2148 = vrcp.pop %v2144
      %v2149 = vrcp.pop %v2147
      %v2150 = vmul.f32 %v2139, %v2148
      %v2151 = vmul.f32 %v2141, %v2149
      %v2152 = vpack.c.bf16 %v2151, %v2150
      %v2154 = vsel %vm1018, %v2152, 0
      %2156 = vmatprep.subr.bf16.mxu0 0
      %2157 = vmatpush1.bf16.msra.mxu0 %v2077
      %2158 = vmatprep.subr.bf16.mxu0 0
      %2159 = vmatpush1.bf16.msra.mxu0 0
      %2160 = vmatprep.subr.bf16.mxu0 0
      %2161 = vmatpush1.bf16.msra.mxu0 0
      %2162 = vmatprep.subr.bf16.mxu0 0
      %2163 = vmatpush1.bf16.msra.mxu0 0
      %2164 = vmatprep.subr.bf16.mxu0 0
      %2165 = vmatpush1.bf16.msra.mxu0 0
      %2166 = vmatprep.subr.bf16.mxu0 0
      %2167 = vmatpush1.bf16.msra.mxu0 0
      %2168 = vmatprep.subr.bf16.mxu0 0
      %2169 = vmatpush1.bf16.msra.mxu0 0
      %2170 = vmatprep.subr.bf16.mxu0 0
      %2171 = vmatpush1.bf16.msra.mxu0 0
      %2172 = vmatprep.subr.bf16.mxu0 0
      %2173 = vmatpush1.bf16.msra.mxu0 0
      %2174 = vmatprep.subr.bf16.mxu0 0
      %2175 = vmatpush1.bf16.msra.mxu0 0
      %2176 = vmatprep.subr.bf16.mxu0 0
      %2177 = vmatpush1.bf16.msra.mxu0 0
      %2178 = vmatprep.subr.bf16.mxu0 0
      %2179 = vmatpush1.bf16.msra.mxu0 0
      %2180 = vmatprep.subr.bf16.mxu0 0
      %2181 = vmatpush1.bf16.msra.mxu0 0
      %2182 = vmatprep.subr.bf16.mxu0 0
      %2183 = vmatpush1.bf16.msra.mxu0 0
      %2184 = vmatprep.subr.bf16.mxu0 0
      %2185 = vmatpush1.bf16.msra.mxu0 0
      %2186 = vmatprep.subr.bf16.mxu0 0
      %2187 = vmatpush1.bf16.msra.mxu0 0
      %2188 = vmatprep.mubr.bf16.mxu0 0
      %2189 = vmatmul.mubr.bf16.gmra.mrb[0].mxu0 %v2154
      %v2190 = vpop.f32.mrb[0].mxu0
      %v2191 = vadd.f32 0.0, %v2190
      %v2192 = vpop.f32.mrb[0].mxu0
      %v2193 = vpop.f32.mrb[0].mxu0
      %v2194 = vadd.f32 0.0, %v2193
      %v2195 = vpop.f32.mrb[0].mxu0
      %2196 = vdwg.mxu0
      %v2197 = vpack.c.bf16 %v2194, %v2191
      %v2199 = vsel %vm968, %v2197, 0
      %v2202 = vsel %vm1554, %v2080, 0
      %2204 = vmatprep.subr.bf16.mxu0 0
      %2205 = vmatpush1.bf16.msra.mxu0 %v2202
      %2206 = vmatprep.subr.bf16.mxu0 0
      %2207 = vmatpush1.bf16.msra.mxu0 0
      %2208 = vmatprep.subr.bf16.mxu0 0
      %2209 = vmatpush1.bf16.msra.mxu0 0
      %2210 = vmatprep.subr.bf16.mxu0 0
      %2211 = vmatpush1.bf16.msra.mxu0 0
      %2212 = vmatprep.subr.bf16.mxu0 0
      %2213 = vmatpush1.bf16.msra.mxu0 0
      %2214 = vmatprep.subr.bf16.mxu0 0
      %2215 = vmatpush1.bf16.msra.mxu0 0
      %2216 = vmatprep.subr.bf16.mxu0 0
      %2217 = vmatpush1.bf16.msra.mxu0 0
      %2218 = vmatprep.subr.bf16.mxu0 0
      %2219 = vmatpush1.bf16.msra.mxu0 0
      %2220 = vmatprep.subr.bf16.mxu0 0
      %2221 = vmatpush1.bf16.msra.mxu0 0
      %2222 = vmatprep.subr.bf16.mxu0 0
      %2223 = vmatpush1.bf16.msra.mxu0 0
      %2224 = vmatprep.subr.bf16.mxu0 0
      %2225 = vmatpush1.bf16.msra.mxu0 0
      %2226 = vmatprep.subr.bf16.mxu0 0
      %2227 = vmatpush1.bf16.msra.mxu0 0
      %2228 = vmatprep.subr.bf16.mxu0 0
      %2229 = vmatpush1.bf16.msra.mxu0 0
      %2230 = vmatprep.subr.bf16.mxu0 0
      %2231 = vmatpush1.bf16.msra.mxu0 0
      %2232 = vmatprep.subr.bf16.mxu0 0
      %2233 = vmatpush1.bf16.msra.mxu0 0
      %2234 = vmatprep.subr.bf16.mxu0 0
      %2235 = vmatpush1.bf16.msra.mxu0 0
      %2236 = vmatprep.mubr.bf16.mxu0 0
      %2237 = vmatmul.mubr.bf16.gmra.mrb[0].mxu0 %v2199
      %v2238 = vpop.f32.mrb[0].mxu0
      %v2239 = vadd.f32 0.0, %v2238
      %v2240 = vpop.f32.mrb[0].mxu0
      %v2241 = vpop.f32.mrb[0].mxu0
      %v2242 = vadd.f32 0.0, %v2241
      %v2243 = vpop.f32.mrb[0].mxu0
      %2244 = vdwg.mxu0
      %v2245 = vadd.f32 %v1640, %v2239
      %v2246 = vadd.f32 %v1643, %v2242
      %v2248 = vsel %vm968, %v1926, 0
      %v2251 = vsel %vm968, %v2002, 0
      %2253 = vmatprep.subr.bf16.mxu0 0
      %2254 = vmatpush1.bf16.xpose.msra.mxu0 %v2251
      %2255 = vmatprep.subr.bf16.mxu0 0
      %2256 = vmatpush1.bf16.xpose.msra.mxu0 0
      %2257 = vmatprep.subr.bf16.mxu0 0
      %2258 = vmatpush1.bf16.xpose.msra.mxu0 0
      %2259 = vmatprep.subr.bf16.mxu0 0
      %2260 = vmatpush1.bf16.xpose.msra.mxu0 0
      %2261 = vmatprep.subr.bf16.mxu0 0
      %2262 = vmatpush1.bf16.xpose.msra.mxu0 0
      %2263 = vmatprep.subr.bf16.mxu0 0
      %2264 = vmatpush1.bf16.xpose.msra.mxu0 0
      %2265 = vmatprep.subr.bf16.mxu0 0
      %2266 = vmatpush1.bf16.xpose.msra.mxu0 0
      %2267 = vmatprep.subr.bf16.mxu0 0
      %2268 = vmatpush1.bf16.xpose.msra.mxu0 0
      %2269 = vmatprep.subr.bf16.mxu0 0
      %2270 = vmatpush1.bf16.xpose.msra.mxu0 0
      %2271 = vmatprep.subr.bf16.mxu0 0
      %2272 = vmatpush1.bf16.xpose.msra.mxu0 0
      %2273 = vmatprep.subr.bf16.mxu0 0
      %2274 = vmatpush1.bf16.xpose.msra.mxu0 0
      %2275 = vmatprep.subr.bf16.mxu0 0
      %2276 = vmatpush1.bf16.xpose.msra.mxu0 0
      %2277 = vmatprep.subr.bf16.mxu0 0
      %2278 = vmatpush1.bf16.xpose.msra.mxu0 0
      %2279 = vmatprep.subr.bf16.mxu0 0
      %2280 = vmatpush1.bf16.xpose.msra.mxu0 0
      %2281 = vmatprep.subr.bf16.mxu0 0
      %2282 = vmatpush1.bf16.xpose.msra.mxu0 0
      %2283 = vmatprep.subr.bf16.mxu0 0
      %2284 = vmatpush1.bf16.xpose.msra.mxu0 0
      %2285 = vmatprep.mubr.bf16.mxu0 0
      %2286 = vmatmul.mubr.bf16.gmra.mrb[0].mxu0 %v2248
      %v2287 = vpop.f32.mrb[0].mxu0
      %v2288 = vadd.f32 0.0, %v2287
      %v2289 = vpop.f32.mrb[0].mxu0
      %v2290 = vpop.f32.mrb[0].mxu0
      %v2291 = vadd.f32 0.0, %v2290
      %v2292 = vpop.f32.mrb[0].mxu0
      %2293 = vdwg.mxu0
      %v2294 = vmul.f32 %v2288, 0.5
      %v2295 = vmul.f32 %v2291, 0.5
      %v2296 = vsel %vm1018, %v2294, -inf
      %2297 = vmax.xlane.f32.xlu0 %v2296
      %v2298 = vpop.xlane.xlu0 %2297
      %v2299 = vsel %vm1018, %v2295, -inf
      %2300 = vmax.xlane.f32.xlu0 %v2299
      %v2301 = vpop.xlane.xlu0 %2300
      %v2302 = vsub.f32 %v2294, %v2298
      %v2303 = vsub.f32 %v2295, %v2301
      %v2304 = vmul.f32 %v2302, 1.442695
      %v2305 = vpow.pop %v2304
      %v2306 = vmul.f32 %v2303, 1.442695
      %v2307 = vpow.pop %v2306
      %v2308 = vsel %vm1018, %v2305, 0.0
      %2309 = vadd.xlane.f32.xlu0 %v2308
      %v2310 = vpop.xlane.xlu0 %2309
      %v2311 = vsel %vm1018, %v2307, 0.0
      %2312 = vadd.xlane.f32.xlu0 %v2311
      %v2313 = vpop.xlane.xlu0 %2312
      %v2314 = vrcp.pop %v2310
      %v2315 = vrcp.pop %v2313
      %v2316 = vmul.f32 %v2305, %v2314
      %v2317 = vmul.f32 %v2307, %v2315
      %v2318 = vpack.c.bf16 %v2317, %v2316
      %v2320 = vsel %vm1018, %v2318, 0
      %2322 = vmatprep.subr.bf16.mxu0 0
      %2323 = vmatpush1.bf16.msra.mxu0 %v2078
      %2324 = vmatprep.subr.bf16.mxu0 0
      %2325 = vmatpush1.bf16.msra.mxu0 0
      %2326 = vmatprep.subr.bf16.mxu0 0
      %2327 = vmatpush1.bf16.msra.mxu0 0
      %2328 = vmatprep.subr.bf16.mxu0 0
      %2329 = vmatpush1.bf16.msra.mxu0 0
      %2330 = vmatprep.subr.bf16.mxu0 0
      %2331 = vmatpush1.bf16.msra.mxu0 0
      %2332 = vmatprep.subr.bf16.mxu0 0
      %2333 = vmatpush1.bf16.msra.mxu0 0
      %2334 = vmatprep.subr.bf16.mxu0 0
      %2335 = vmatpush1.bf16.msra.mxu0 0
      %2336 = vmatprep.subr.bf16.mxu0 0
      %2337 = vmatpush1.bf16.msra.mxu0 0
      %2338 = vmatprep.subr.bf16.mxu0 0
      %2339 = vmatpush1.bf16.msra.mxu0 0
      %2340 = vmatprep.subr.bf16.mxu0 0
      %2341 = vmatpush1.bf16.msra.mxu0 0
      %2342 = vmatprep.subr.bf16.mxu0 0
      %2343 = vmatpush1.bf16.msra.mxu0 0
      %2344 = vmatprep.subr.bf16.mxu0 0
      %2345 = vmatpush1.bf16.msra.mxu0 0
      %2346 = vmatprep.subr.bf16.mxu0 0
      %2347 = vmatpush1.bf16.msra.mxu0 0
      %2348 = vmatprep.subr.bf16.mxu0 0
      %2349 = vmatpush1.bf16.msra.mxu0 0
      %2350 = vmatprep.subr.bf16.mxu0 0
      %2351 = vmatpush1.bf16.msra.mxu0 0
      %2352 = vmatprep.subr.bf16.mxu0 0
      %2353 = vmatpush1.bf16.msra.mxu0 0
      %2354 = vmatprep.mubr.bf16.mxu0 0
      %2355 = vmatmul.mubr.bf16.gmra.mrb[0].mxu0 %v2320
      %v2356 = vpop.f32.mrb[0].mxu0
      %v2357 = vadd.f32 0.0, %v2356
      %v2358 = vpop.f32.mrb[0].mxu0
      %v2359 = vpop.f32.mrb[0].mxu0
      %v2360 = vadd.f32 0.0, %v2359
      %v2361 = vpop.f32.mrb[0].mxu0
      %2362 = vdwg.mxu0
      %v2363 = vpack.c.bf16 %v2360, %v2357
      %v2365 = vsel %vm968, %v2363, 0
      %2367 = vmatprep.subr.bf16.mxu0 0
      %2368 = vmatpush1.bf16.msra.mxu0 %v2202
      %2369 = vmatprep.subr.bf16.mxu0 0
      %2370 = vmatpush1.bf16.msra.mxu0 0
      %2371 = vmatprep.subr.bf16.mxu0 0
      %2372 = vmatpush1.bf16.msra.mxu0 0
      %2373 = vmatprep.subr.bf16.mxu0 0
      %2374 = vmatpush1.bf16.msra.mxu0 0
      %2375 = vmatprep.subr.bf16.mxu0 0
      %2376 = vmatpush1.bf16.msra.mxu0 0
      %2377 = vmatprep.subr.bf16.mxu0 0
      %2378 = vmatpush1.bf16.msra.mxu0 0
      %2379 = vmatprep.subr.bf16.mxu0 0
      %2380 = vmatpush1.bf16.msra.mxu0 0
      %2381 = vmatprep.subr.bf16.mxu0 0
      %2382 = vmatpush1.bf16.msra.mxu0 0
      %2383 = vmatprep.subr.bf16.mxu0 0
      %2384 = vmatpush1.bf16.msra.mxu0 0
      %2385 = vmatprep.subr.bf16.mxu0 0
      %2386 = vmatpush1.bf16.msra.mxu0 0
      %2387 = vmatprep.subr.bf16.mxu0 0
      %2388 = vmatpush1.bf16.msra.mxu0 0
      %2389 = vmatprep.subr.bf16.mxu0 0
      %2390 = vmatpush1.bf16.msra.mxu0 0
      %2391 = vmatprep.subr.bf16.mxu0 0
      %2392 = vmatpush1.bf16.msra.mxu0 0
      %2393 = vmatprep.subr.bf16.mxu0 0
      %2394 = vmatpush1.bf16.msra.mxu0 0
      %2395 = vmatprep.subr.bf16.mxu0 0
      %2396 = vmatpush1.bf16.msra.mxu0 0
      %2397 = vmatprep.subr.bf16.mxu0 0
      %2398 = vmatpush1.bf16.msra.mxu0 0
      %2399 = vmatprep.mubr.bf16.mxu0 0
      %2400 = vmatmul.mubr.bf16.gmra.mrb[0].mxu0 %v2365
      %v2401 = vpop.f32.mrb[0].mxu0
      %v2402 = vadd.f32 0.0, %v2401
      %v2403 = vpop.f32.mrb[0].mxu0
      %v2404 = vpop.f32.mrb[0].mxu0
      %v2405 = vadd.f32 0.0, %v2404
      %v2406 = vpop.f32.mrb[0].mxu0
      %2407 = vdwg.mxu0
      %v2408 = vadd.f32 %v1845, %v2402
      %v2409 = vadd.f32 %v1848, %v2405
      %s2410 = scalar_lea.vmem %s672, 48
      %v2411 = vld [vmem:[%s2410] sm:$0xf]
      %v2412 = vld [vmem:[%s2410 + $0x4] sm:$0xf]
      %v2413 = vld [vmem:[%s2410 + $0x8] sm:$0xf]
      %v2414 = vld [vmem:[%s2410 + $0xc] sm:$0xf]
      %s2415 = scalar_lea.vmem %s676, 3
      %v2416 = vld [vmem:[%s2415] sm:$0x1]
      %v2418 = vlaneseq
      %v2419 = vshrl.u32 %v2418, 7
      %v2420 = vsub.s32 0, %v2419
      %v2421 = vrot.slane %v2416, %v2420
      %v2427 = vunpack.c.l.b16 %v2411
      %v2428 = vunpack.c.l.b16 %v2412
      %v2429 = vunpack.c.l.b16 %v2413
      %v2430 = vunpack.c.l.b16 %v2414
      %v2431 = vpack.c.b16 %v2428, %v2427
      %v2432 = vpack.c.b16 %v2430, %v2429
      %2435 = vmatprep.subr.bf16.mxu0 0
      %2436 = vmatpush1.bf16.msra.mxu0 %v2431
      %2437 = vmatprep.subr.bf16.mxu0 0
      %2438 = vmatpush1.bf16.msra.mxu0 %v2432
      %2439 = vmatprep.subr.bf16.mxu0 0
      %2440 = vmatpush1.bf16.msra.mxu0 0
      %2441 = vmatprep.subr.bf16.mxu0 0
      %2442 = vmatpush1.bf16.msra.mxu0 0
      %2443 = vmatprep.subr.bf16.mxu0 0
      %2444 = vmatpush1.bf16.msra.mxu0 0
      %2445 = vmatprep.subr.bf16.mxu0 0
      %2446 = vmatpush1.bf16.msra.mxu0 0
      %2447 = vmatprep.subr.bf16.mxu0 0
      %2448 = vmatpush1.bf16.msra.mxu0 0
      %2449 = vmatprep.subr.bf16.mxu0 0
      %2450 = vmatpush1.bf16.msra.mxu0 0
      %2451 = vmatprep.subr.bf16.mxu0 0
      %2452 = vmatpush1.bf16.msra.mxu0 0
      %2453 = vmatprep.subr.bf16.mxu0 0
      %2454 = vmatpush1.bf16.msra.mxu0 0
      %2455 = vmatprep.subr.bf16.mxu0 0
      %2456 = vmatpush1.bf16.msra.mxu0 0
      %2457 = vmatprep.subr.bf16.mxu0 0
      %2458 = vmatpush1.bf16.msra.mxu0 0
      %2459 = vmatprep.subr.bf16.mxu0 0
      %2460 = vmatpush1.bf16.msra.mxu0 0
      %2461 = vmatprep.subr.bf16.mxu0 0
      %2462 = vmatpush1.bf16.msra.mxu0 0
      %2463 = vmatprep.subr.bf16.mxu0 0
      %2464 = vmatpush1.bf16.msra.mxu0 0
      %2465 = vmatprep.subr.bf16.mxu0 0
      %2466 = vmatpush1.bf16.msra.mxu0 0
      %2467 = vmatprep.mubr.bf16.mxu0 0
      %2468 = vmatmul.mubr.bf16.gmra.mrb[0].mxu0 %v759
      %v2469 = vpop.f32.mrb[0].mxu0
      %v2470 = vadd.f32 %v2421, %v2469
      %v2471 = vpop.f32.mrb[0].mxu0
      %v2472 = vpop.f32.mrb[0].mxu0
      %v2473 = vadd.f32 %v2421, %v2472
      %v2474 = vpop.f32.mrb[0].mxu0
      %2475 = vmatprep.mubr.bf16.mxu0 0
      %2476 = vmatmul.mubr.bf16.gmra.mrb[0].mxu0 %v762
      %v2477 = vpop.f32.mrb[0].mxu0
      %v2478 = vadd.f32 %v2421, %v2477
      %v2479 = vpop.f32.mrb[0].mxu0
      %v2480 = vpop.f32.mrb[0].mxu0
      %v2481 = vadd.f32 %v2421, %v2480
      %v2482 = vpop.f32.mrb[0].mxu0
      %2483 = vdwg.mxu0
      %v2484 = vpack.c.bf16 %v2473, %v2470
      %v2485 = vpack.c.bf16 %v2481, %v2478
      %s2486 = scalar_lea.vmem %s672, 176
      %v2487 = vld [vmem:[%s2486] sm:$0xf]
      %v2488 = vld [vmem:[%s2486 + $0x4] sm:$0xf]
      %v2489 = vld [vmem:[%s2486 + $0x8] sm:$0xf]
      %v2490 = vld [vmem:[%s2486 + $0xc] sm:$0xf]
      %s2491 = scalar_lea.vmem %s676, 11
      %v2492 = vld [vmem:[%s2491] sm:$0x1]
      %v2494 = vlaneseq
      %v2495 = vshrl.u32 %v2494, 7
      %v2496 = vsub.s32 0, %v2495
      %v2497 = vrot.slane %v2492, %v2496
      %v2503 = vunpack.c.l.b16 %v2487
      %v2504 = vunpack.c.l.b16 %v2488
      %v2505 = vunpack.c.l.b16 %v2489
      %v2506 = vunpack.c.l.b16 %v2490
      %v2507 = vpack.c.b16 %v2504, %v2503
      %v2508 = vpack.c.b16 %v2506, %v2505
      %2511 = vmatprep.subr.bf16.mxu0 0
      %2512 = vmatpush1.bf16.msra.mxu0 %v2507
      %2513 = vmatprep.subr.bf16.mxu0 0
      %2514 = vmatpush1.bf16.msra.mxu0 %v2508
      %2515 = vmatprep.subr.bf16.mxu0 0
      %2516 = vmatpush1.bf16.msra.mxu0 0
      %2517 = vmatprep.subr.bf16.mxu0 0
      %2518 = vmatpush1.bf16.msra.mxu0 0
      %2519 = vmatprep.subr.bf16.mxu0 0
      %2520 = vmatpush1.bf16.msra.mxu0 0
      %2521 = vmatprep.subr.bf16.mxu0 0
      %2522 = vmatpush1.bf16.msra.mxu0 0
      %2523 = vmatprep.subr.bf16.mxu0 0
      %2524 = vmatpush1.bf16.msra.mxu0 0
      %2525 = vmatprep.subr.bf16.mxu0 0
      %2526 = vmatpush1.bf16.msra.mxu0 0
      %2527 = vmatprep.subr.bf16.mxu0 0
      %2528 = vmatpush1.bf16.msra.mxu0 0
      %2529 = vmatprep.subr.bf16.mxu0 0
      %2530 = vmatpush1.bf16.msra.mxu0 0
      %2531 = vmatprep.subr.bf16.mxu0 0
      %2532 = vmatpush1.bf16.msra.mxu0 0
      %2533 = vmatprep.subr.bf16.mxu0 0
      %2534 = vmatpush1.bf16.msra.mxu0 0
      %2535 = vmatprep.subr.bf16.mxu0 0
      %2536 = vmatpush1.bf16.msra.mxu0 0
      %2537 = vmatprep.subr.bf16.mxu0 0
      %2538 = vmatpush1.bf16.msra.mxu0 0
      %2539 = vmatprep.subr.bf16.mxu0 0
      %2540 = vmatpush1.bf16.msra.mxu0 0
      %2541 = vmatprep.subr.bf16.mxu0 0
      %2542 = vmatpush1.bf16.msra.mxu0 0
      %2543 = vmatprep.mubr.bf16.mxu0 0
      %2544 = vmatmul.mubr.bf16.gmra.mrb[0].mxu0 %v759
      %v2545 = vpop.f32.mrb[0].mxu0
      %v2546 = vadd.f32 %v2497, %v2545
      %v2547 = vpop.f32.mrb[0].mxu0
      %v2548 = vpop.f32.mrb[0].mxu0
      %v2549 = vadd.f32 %v2497, %v2548
      %v2550 = vpop.f32.mrb[0].mxu0
      %2551 = vmatprep.mubr.bf16.mxu0 0
      %2552 = vmatmul.mubr.bf16.gmra.mrb[0].mxu0 %v762
      %v2553 = vpop.f32.mrb[0].mxu0
      %v2554 = vadd.f32 %v2497, %v2553
      %v2555 = vpop.f32.mrb[0].mxu0
      %v2556 = vpop.f32.mrb[0].mxu0
      %v2557 = vadd.f32 %v2497, %v2556
      %v2558 = vpop.f32.mrb[0].mxu0
      %2559 = vdwg.mxu0
      %v2560 = vpack.c.bf16 %v2549, %v2546
      %v2561 = vpack.c.bf16 %v2557, %v2554
      %s2562 = scalar_lea.vmem %s672, 304
      %v2563 = vld [vmem:[%s2562] sm:$0xf]
      %v2564 = vld [vmem:[%s2562 + $0x4] sm:$0xf]
      %v2565 = vld [vmem:[%s2562 + $0x8] sm:$0xf]
      %v2566 = vld [vmem:[%s2562 + $0xc] sm:$0xf]
      %s2567 = scalar_lea.vmem %s676, 19
      %v2568 = vld [vmem:[%s2567] sm:$0x1]
      %v2570 = vlaneseq
      %v2571 = vshrl.u32 %v2570, 7
      %v2572 = vsub.s32 0, %v2571
      %v2573 = vrot.slane %v2568, %v2572
      %v2579 = vunpack.c.l.b16 %v2563
      %v2580 = vunpack.c.l.b16 %v2564
      %v2581 = vunpack.c.l.b16 %v2565
      %v2582 = vunpack.c.l.b16 %v2566
      %v2583 = vpack.c.b16 %v2580, %v2579
      %v2584 = vpack.c.b16 %v2582, %v2581
      %2587 = vmatprep.subr.bf16.mxu0 0
      %2588 = vmatpush1.bf16.msra.mxu0 %v2583
      %2589 = vmatprep.subr.bf16.mxu0 0
      %2590 = vmatpush1.bf16.msra.mxu0 %v2584
      %2591 = vmatprep.subr.bf16.mxu0 0
      %2592 = vmatpush1.bf16.msra.mxu0 0
      %2593 = vmatprep.subr.bf16.mxu0 0
      %2594 = vmatpush1.bf16.msra.mxu0 0
      %2595 = vmatprep.subr.bf16.mxu0 0
      %2596 = vmatpush1.bf16.msra.mxu0 0
      %2597 = vmatprep.subr.bf16.mxu0 0
      %2598 = vmatpush1.bf16.msra.mxu0 0
      %2599 = vmatprep.subr.bf16.mxu0 0
      %2600 = vmatpush1.bf16.msra.mxu0 0
      %2601 = vmatprep.subr.bf16.mxu0 0
      %2602 = vmatpush1.bf16.msra.mxu0 0
      %2603 = vmatprep.subr.bf16.mxu0 0
      %2604 = vmatpush1.bf16.msra.mxu0 0
      %2605 = vmatprep.subr.bf16.mxu0 0
      %2606 = vmatpush1.bf16.msra.mxu0 0
      %2607 = vmatprep.subr.bf16.mxu0 0
      %2608 = vmatpush1.bf16.msra.mxu0 0
      %2609 = vmatprep.subr.bf16.mxu0 0
      %2610 = vmatpush1.bf16.msra.mxu0 0
      %2611 = vmatprep.subr.bf16.mxu0 0
      %2612 = vmatpush1.bf16.msra.mxu0 0
      %2613 = vmatprep.subr.bf16.mxu0 0
      %2614 = vmatpush1.bf16.msra.mxu0 0
      %2615 = vmatprep.subr.bf16.mxu0 0
      %2616 = vmatpush1.bf16.msra.mxu0 0
      %2617 = vmatprep.subr.bf16.mxu0 0
      %2618 = vmatpush1.bf16.msra.mxu0 0
      %2619 = vmatprep.mubr.bf16.mxu0 0
      %2620 = vmatmul.mubr.bf16.gmra.mrb[0].mxu0 %v759
      %v2621 = vpop.f32.mrb[0].mxu0
      %v2622 = vadd.f32 %v2573, %v2621
      %v2623 = vpop.f32.mrb[0].mxu0
      %v2624 = vpop.f32.mrb[0].mxu0
      %v2625 = vadd.f32 %v2573, %v2624
      %v2626 = vpop.f32.mrb[0].mxu0
      %2627 = vmatprep.mubr.bf16.mxu0 0
      %2628 = vmatmul.mubr.bf16.gmra.mrb[0].mxu0 %v762
      %v2629 = vpop.f32.mrb[0].mxu0
      %v2630 = vadd.f32 %v2573, %v2629
      %v2631 = vpop.f32.mrb[0].mxu0
      %v2632 = vpop.f32.mrb[0].mxu0
      %v2633 = vadd.f32 %v2573, %v2632
      %v2634 = vpop.f32.mrb[0].mxu0
      %2635 = vdwg.mxu0
      %v2636 = vpack.c.bf16 %v2625, %v2622
      %v2637 = vpack.c.bf16 %v2633, %v2630
      %s2638 = scalar_lea.vmem %s681, 6
      %v2639 = vld [vmem:[%s2638] sm:$0x3]
      %v2641 = vsel %vm968, %v2484, 0
      %v2644 = vsel %vm968, %v2560, 0
      %2646 = vmatprep.subr.bf16.mxu0 0
      %2647 = vmatpush1.bf16.xpose.msra.mxu0 %v2644
      %2648 = vmatprep.subr.bf16.mxu0 0
      %2649 = vmatpush1.bf16.xpose.msra.mxu0 0
      %2650 = vmatprep.subr.bf16.mxu0 0
      %2651 = vmatpush1.bf16.xpose.msra.mxu0 0
      %2652 = vmatprep.subr.bf16.mxu0 0
      %2653 = vmatpush1.bf16.xpose.msra.mxu0 0
      %2654 = vmatprep.subr.bf16.mxu0 0
      %2655 = vmatpush1.bf16.xpose.msra.mxu0 0
      %2656 = vmatprep.subr.bf16.mxu0 0
      %2657 = vmatpush1.bf16.xpose.msra.mxu0 0
      %2658 = vmatprep.subr.bf16.mxu0 0
      %2659 = vmatpush1.bf16.xpose.msra.mxu0 0
      %2660 = vmatprep.subr.bf16.mxu0 0
      %2661 = vmatpush1.bf16.xpose.msra.mxu0 0
      %2662 = vmatprep.subr.bf16.mxu0 0
      %2663 = vmatpush1.bf16.xpose.msra.mxu0 0
      %2664 = vmatprep.subr.bf16.mxu0 0
      %2665 = vmatpush1.bf16.xpose.msra.mxu0 0
      %2666 = vmatprep.subr.bf16.mxu0 0
      %2667 = vmatpush1.bf16.xpose.msra.mxu0 0
      %2668 = vmatprep.subr.bf16.mxu0 0
      %2669 = vmatpush1.bf16.xpose.msra.mxu0 0
      %2670 = vmatprep.subr.bf16.mxu0 0
      %2671 = vmatpush1.bf16.xpose.msra.mxu0 0
      %2672 = vmatprep.subr.bf16.mxu0 0
      %2673 = vmatpush1.bf16.xpose.msra.mxu0 0
      %2674 = vmatprep.subr.bf16.mxu0 0
      %2675 = vmatpush1.bf16.xpose.msra.mxu0 0
      %2676 = vmatprep.subr.bf16.mxu0 0
      %2677 = vmatpush1.bf16.xpose.msra.mxu0 0
      %2678 = vmatprep.mubr.bf16.mxu0 0
      %2679 = vmatmul.mubr.bf16.gmra.mrb[0].mxu0 %v2641
      %v2680 = vpop.f32.mrb[0].mxu0
      %v2681 = vadd.f32 0.0, %v2680
      %v2682 = vpop.f32.mrb[0].mxu0
      %v2683 = vpop.f32.mrb[0].mxu0
      %v2684 = vadd.f32 0.0, %v2683
      %v2685 = vpop.f32.mrb[0].mxu0
      %2686 = vdwg.mxu0
      %v2687 = vmul.f32 %v2681, 0.5
      %v2688 = vmul.f32 %v2684, 0.5
      %v2689 = vsel %vm1018, %v2687, -inf
      %2690 = vmax.xlane.f32.xlu0 %v2689
      %v2691 = vpop.xlane.xlu0 %2690
      %v2692 = vsel %vm1018, %v2688, -inf
      %2693 = vmax.xlane.f32.xlu0 %v2692
      %v2694 = vpop.xlane.xlu0 %2693
      %v2695 = vsub.f32 %v2687, %v2691
      %v2696 = vsub.f32 %v2688, %v2694
      %v2697 = vmul.f32 %v2695, 1.442695
      %v2698 = vpow.pop %v2697
      %v2699 = vmul.f32 %v2696, 1.442695
      %v2700 = vpow.pop %v2699
      %v2701 = vsel %vm1018, %v2698, 0.0
      %2702 = vadd.xlane.f32.xlu0 %v2701
      %v2703 = vpop.xlane.xlu0 %2702
      %v2704 = vsel %vm1018, %v2700, 0.0
      %2705 = vadd.xlane.f32.xlu0 %v2704
      %v2706 = vpop.xlane.xlu0 %2705
      %v2707 = vrcp.pop %v2703
      %v2708 = vrcp.pop %v2706
      %v2709 = vmul.f32 %v2698, %v2707
      %v2710 = vmul.f32 %v2700, %v2708
      %v2711 = vpack.c.bf16 %v2710, %v2709
      %v2713 = vsel %vm1018, %v2711, 0
      %2715 = vmatprep.subr.bf16.mxu0 0
      %2716 = vmatpush1.bf16.msra.mxu0 %v2636
      %2717 = vmatprep.subr.bf16.mxu0 0
      %2718 = vmatpush1.bf16.msra.mxu0 0
      %2719 = vmatprep.subr.bf16.mxu0 0
      %2720 = vmatpush1.bf16.msra.mxu0 0
      %2721 = vmatprep.subr.bf16.mxu0 0
      %2722 = vmatpush1.bf16.msra.mxu0 0
      %2723 = vmatprep.subr.bf16.mxu0 0
      %2724 = vmatpush1.bf16.msra.mxu0 0
      %2725 = vmatprep.subr.bf16.mxu0 0
      %2726 = vmatpush1.bf16.msra.mxu0 0
      %2727 = vmatprep.subr.bf16.mxu0 0
      %2728 = vmatpush1.bf16.msra.mxu0 0
      %2729 = vmatprep.subr.bf16.mxu0 0
      %2730 = vmatpush1.bf16.msra.mxu0 0
      %2731 = vmatprep.subr.bf16.mxu0 0
      %2732 = vmatpush1.bf16.msra.mxu0 0
      %2733 = vmatprep.subr.bf16.mxu0 0
      %2734 = vmatpush1.bf16.msra.mxu0 0
      %2735 = vmatprep.subr.bf16.mxu0 0
      %2736 = vmatpush1.bf16.msra.mxu0 0
      %2737 = vmatprep.subr.bf16.mxu0 0
      %2738 = vmatpush1.bf16.msra.mxu0 0
      %2739 = vmatprep.subr.bf16.mxu0 0
      %2740 = vmatpush1.bf16.msra.mxu0 0
      %2741 = vmatprep.subr.bf16.mxu0 0
      %2742 = vmatpush1.bf16.msra.mxu0 0
      %2743 = vmatprep.subr.bf16.mxu0 0
      %2744 = vmatpush1.bf16.msra.mxu0 0
      %2745 = vmatprep.subr.bf16.mxu0 0
      %2746 = vmatpush1.bf16.msra.mxu0 0
      %2747 = vmatprep.mubr.bf16.mxu0 0
      %2748 = vmatmul.mubr.bf16.gmra.mrb[0].mxu0 %v2713
      %v2749 = vpop.f32.mrb[0].mxu0
      %v2750 = vadd.f32 0.0, %v2749
      %v2751 = vpop.f32.mrb[0].mxu0
      %v2752 = vpop.f32.mrb[0].mxu0
      %v2753 = vadd.f32 0.0, %v2752
      %v2754 = vpop.f32.mrb[0].mxu0
      %2755 = vdwg.mxu0
      %v2756 = vpack.c.bf16 %v2753, %v2750
      %v2758 = vsel %vm968, %v2756, 0
      %v2761 = vsel %vm1554, %v2639, 0
      %2763 = vmatprep.subr.bf16.mxu0 0
      %2764 = vmatpush1.bf16.msra.mxu0 %v2761
      %2765 = vmatprep.subr.bf16.mxu0 0
      %2766 = vmatpush1.bf16.msra.mxu0 0
      %2767 = vmatprep.subr.bf16.mxu0 0
      %2768 = vmatpush1.bf16.msra.mxu0 0
      %2769 = vmatprep.subr.bf16.mxu0 0
      %2770 = vmatpush1.bf16.msra.mxu0 0
      %2771 = vmatprep.subr.bf16.mxu0 0
      %2772 = vmatpush1.bf16.msra.mxu0 0
      %2773 = vmatprep.subr.bf16.mxu0 0
      %2774 = vmatpush1.bf16.msra.mxu0 0
      %2775 = vmatprep.subr.bf16.mxu0 0
      %2776 = vmatpush1.bf16.msra.mxu0 0
      %2777 = vmatprep.subr.bf16.mxu0 0
      %2778 = vmatpush1.bf16.msra.mxu0 0
      %2779 = vmatprep.subr.bf16.mxu0 0
      %2780 = vmatpush1.bf16.msra.mxu0 0
      %2781 = vmatprep.subr.bf16.mxu0 0
      %2782 = vmatpush1.bf16.msra.mxu0 0
      %2783 = vmatprep.subr.bf16.mxu0 0
      %2784 = vmatpush1.bf16.msra.mxu0 0
      %2785 = vmatprep.subr.bf16.mxu0 0
      %2786 = vmatpush1.bf16.msra.mxu0 0
      %2787 = vmatprep.subr.bf16.mxu0 0
      %2788 = vmatpush1.bf16.msra.mxu0 0
      %2789 = vmatprep.subr.bf16.mxu0 0
      %2790 = vmatpush1.bf16.msra.mxu0 0
      %2791 = vmatprep.subr.bf16.mxu0 0
      %2792 = vmatpush1.bf16.msra.mxu0 0
      %2793 = vmatprep.subr.bf16.mxu0 0
      %2794 = vmatpush1.bf16.msra.mxu0 0
      %2795 = vmatprep.mubr.bf16.mxu0 0
      %2796 = vmatmul.mubr.bf16.gmra.mrb[0].mxu0 %v2758
      %v2797 = vpop.f32.mrb[0].mxu0
      %v2798 = vadd.f32 0.0, %v2797
      %v2799 = vpop.f32.mrb[0].mxu0
      %v2800 = vpop.f32.mrb[0].mxu0
      %v2801 = vadd.f32 0.0, %v2800
      %v2802 = vpop.f32.mrb[0].mxu0
      %2803 = vdwg.mxu0
      %v2804 = vadd.f32 %v2245, %v2798
      %v2805 = vadd.f32 %v2246, %v2801
      %v2807 = vsel %vm968, %v2485, 0
      %v2810 = vsel %vm968, %v2561, 0
      %2812 = vmatprep.subr.bf16.mxu0 0
      %2813 = vmatpush1.bf16.xpose.msra.mxu0 %v2810
      %2814 = vmatprep.subr.bf16.mxu0 0
      %2815 = vmatpush1.bf16.xpose.msra.mxu0 0
      %2816 = vmatprep.subr.bf16.mxu0 0
      %2817 = vmatpush1.bf16.xpose.msra.mxu0 0
      %2818 = vmatprep.subr.bf16.mxu0 0
      %2819 = vmatpush1.bf16.xpose.msra.mxu0 0
      %2820 = vmatprep.subr.bf16.mxu0 0
      %2821 = vmatpush1.bf16.xpose.msra.mxu0 0
      %2822 = vmatprep.subr.bf16.mxu0 0
      %2823 = vmatpush1.bf16.xpose.msra.mxu0 0
      %2824 = vmatprep.subr.bf16.mxu0 0
      %2825 = vmatpush1.bf16.xpose.msra.mxu0 0
      %2826 = vmatprep.subr.bf16.mxu0 0
      %2827 = vmatpush1.bf16.xpose.msra.mxu0 0
      %2828 = vmatprep.subr.bf16.mxu0 0
      %2829 = vmatpush1.bf16.xpose.msra.mxu0 0
      %2830 = vmatprep.subr.bf16.mxu0 0
      %2831 = vmatpush1.bf16.xpose.msra.mxu0 0
      %2832 = vmatprep.subr.bf16.mxu0 0
      %2833 = vmatpush1.bf16.xpose.msra.mxu0 0
      %2834 = vmatprep.subr.bf16.mxu0 0
      %2835 = vmatpush1.bf16.xpose.msra.mxu0 0
      %2836 = vmatprep.subr.bf16.mxu0 0
      %2837 = vmatpush1.bf16.xpose.msra.mxu0 0
      %2838 = vmatprep.subr.bf16.mxu0 0
      %2839 = vmatpush1.bf16.xpose.msra.mxu0 0
      %2840 = vmatprep.subr.bf16.mxu0 0
      %2841 = vmatpush1.bf16.xpose.msra.mxu0 0
      %2842 = vmatprep.subr.bf16.mxu0 0
      %2843 = vmatpush1.bf16.xpose.msra.mxu0 0
      %2844 = vmatprep.mubr.bf16.mxu0 0
      %2845 = vmatmul.mubr.bf16.gmra.mrb[0].mxu0 %v2807
      %v2846 = vpop.f32.mrb[0].mxu0
      %v2847 = vadd.f32 0.0, %v2846
      %v2848 = vpop.f32.mrb[0].mxu0
      %v2849 = vpop.f32.mrb[0].mxu0
      %v2850 = vadd.f32 0.0, %v2849
      %v2851 = vpop.f32.mrb[0].mxu0
      %2852 = vdwg.mxu0
      %v2853 = vmul.f32 %v2847, 0.5
      %v2854 = vmul.f32 %v2850, 0.5
      %v2855 = vsel %vm1018, %v2853, -inf
      %2856 = vmax.xlane.f32.xlu0 %v2855
      %v2857 = vpop.xlane.xlu0 %2856
      %v2858 = vsel %vm1018, %v2854, -inf
      %2859 = vmax.xlane.f32.xlu0 %v2858
      %v2860 = vpop.xlane.xlu0 %2859
      %v2861 = vsub.f32 %v2853, %v2857
      %v2862 = vsub.f32 %v2854, %v2860
      %v2863 = vmul.f32 %v2861, 1.442695
      %v2864 = vpow.pop %v2863
      %v2865 = vmul.f32 %v2862, 1.442695
      %v2866 = vpow.pop %v2865
      %v2867 = vsel %vm1018, %v2864, 0.0
      %2868 = vadd.xlane.f32.xlu0 %v2867
      %v2869 = vpop.xlane.xlu0 %2868
      %v2870 = vsel %vm1018, %v2866, 0.0
      %2871 = vadd.xlane.f32.xlu0 %v2870
      %v2872 = vpop.xlane.xlu0 %2871
      %v2873 = vrcp.pop %v2869
      %v2874 = vrcp.pop %v2872
      %v2875 = vmul.f32 %v2864, %v2873
      %v2876 = vmul.f32 %v2866, %v2874
      %v2877 = vpack.c.bf16 %v2876, %v2875
      %v2879 = vsel %vm1018, %v2877, 0
      %2881 = vmatprep.subr.bf16.mxu0 0
      %2882 = vmatpush1.bf16.msra.mxu0 %v2637
      %2883 = vmatprep.subr.bf16.mxu0 0
      %2884 = vmatpush1.bf16.msra.mxu0 0
      %2885 = vmatprep.subr.bf16.mxu0 0
      %2886 = vmatpush1.bf16.msra.mxu0 0
      %2887 = vmatprep.subr.bf16.mxu0 0
      %2888 = vmatpush1.bf16.msra.mxu0 0
      %2889 = vmatprep.subr.bf16.mxu0 0
      %2890 = vmatpush1.bf16.msra.mxu0 0
      %2891 = vmatprep.subr.bf16.mxu0 0
      %2892 = vmatpush1.bf16.msra.mxu0 0
      %2893 = vmatprep.subr.bf16.mxu0 0
      %2894 = vmatpush1.bf16.msra.mxu0 0
      %2895 = vmatprep.subr.bf16.mxu0 0
      %2896 = vmatpush1.bf16.msra.mxu0 0
      %2897 = vmatprep.subr.bf16.mxu0 0
      %2898 = vmatpush1.bf16.msra.mxu0 0
      %2899 = vmatprep.subr.bf16.mxu0 0
      %2900 = vmatpush1.bf16.msra.mxu0 0
      %2901 = vmatprep.subr.bf16.mxu0 0
      %2902 = vmatpush1.bf16.msra.mxu0 0
      %2903 = vmatprep.subr.bf16.mxu0 0
      %2904 = vmatpush1.bf16.msra.mxu0 0
      %2905 = vmatprep.subr.bf16.mxu0 0
      %2906 = vmatpush1.bf16.msra.mxu0 0
      %2907 = vmatprep.subr.bf16.mxu0 0
      %2908 = vmatpush1.bf16.msra.mxu0 0
      %2909 = vmatprep.subr.bf16.mxu0 0
      %2910 = vmatpush1.bf16.msra.mxu0 0
      %2911 = vmatprep.subr.bf16.mxu0 0
      %2912 = vmatpush1.bf16.msra.mxu0 0
      %2913 = vmatprep.mubr.bf16.mxu0 0
      %2914 = vmatmul.mubr.bf16.gmra.mrb[0].mxu0 %v2879
      %v2915 = vpop.f32.mrb[0].mxu0
      %v2916 = vadd.f32 0.0, %v2915
      %v2917 = vpop.f32.mrb[0].mxu0
      %v2918 = vpop.f32.mrb[0].mxu0
      %v2919 = vadd.f32 0.0, %v2918
      %v2920 = vpop.f32.mrb[0].mxu0
      %2921 = vdwg.mxu0
      %v2922 = vpack.c.bf16 %v2919, %v2916
      %v2924 = vsel %vm968, %v2922, 0
      %2926 = vmatprep.subr.bf16.mxu0 0
      %2927 = vmatpush1.bf16.msra.mxu0 %v2761
      %2928 = vmatprep.subr.bf16.mxu0 0
      %2929 = vmatpush1.bf16.msra.mxu0 0
      %2930 = vmatprep.subr.bf16.mxu0 0
      %2931 = vmatpush1.bf16.msra.mxu0 0
      %2932 = vmatprep.subr.bf16.mxu0 0
      %2933 = vmatpush1.bf16.msra.mxu0 0
      %2934 = vmatprep.subr.bf16.mxu0 0
      %2935 = vmatpush1.bf16.msra.mxu0 0
      %2936 = vmatprep.subr.bf16.mxu0 0
      %2937 = vmatpush1.bf16.msra.mxu0 0
      %2938 = vmatprep.subr.bf16.mxu0 0
      %2939 = vmatpush1.bf16.msra.mxu0 0
      %2940 = vmatprep.subr.bf16.mxu0 0
      %2941 = vmatpush1.bf16.msra.mxu0 0
      %2942 = vmatprep.subr.bf16.mxu0 0
      %2943 = vmatpush1.bf16.msra.mxu0 0
      %2944 = vmatprep.subr.bf16.mxu0 0
      %2945 = vmatpush1.bf16.msra.mxu0 0
      %2946 = vmatprep.subr.bf16.mxu0 0
      %2947 = vmatpush1.bf16.msra.mxu0 0
      %2948 = vmatprep.subr.bf16.mxu0 0
      %2949 = vmatpush1.bf16.msra.mxu0 0
      %2950 = vmatprep.subr.bf16.mxu0 0
      %2951 = vmatpush1.bf16.msra.mxu0 0
      %2952 = vmatprep.subr.bf16.mxu0 0
      %2953 = vmatpush1.bf16.msra.mxu0 0
      %2954 = vmatprep.subr.bf16.mxu0 0
      %2955 = vmatpush1.bf16.msra.mxu0 0
      %2956 = vmatprep.subr.bf16.mxu0 0
      %2957 = vmatpush1.bf16.msra.mxu0 0
      %2958 = vmatprep.mubr.bf16.mxu0 0
      %2959 = vmatmul.mubr.bf16.gmra.mrb[0].mxu0 %v2924
      %v2960 = vpop.f32.mrb[0].mxu0
      %v2961 = vadd.f32 0.0, %v2960
      %v2962 = vpop.f32.mrb[0].mxu0
      %v2963 = vpop.f32.mrb[0].mxu0
      %v2964 = vadd.f32 0.0, %v2963
      %v2965 = vpop.f32.mrb[0].mxu0
      %2966 = vdwg.mxu0
      %v2967 = vadd.f32 %v2408, %v2961
      %v2968 = vadd.f32 %v2409, %v2964
      %s2969 = scalar_lea.vmem %s672, 64
      %v2970 = vld [vmem:[%s2969] sm:$0xf]
      %v2971 = vld [vmem:[%s2969 + $0x4] sm:$0xf]
      %v2972 = vld [vmem:[%s2969 + $0x8] sm:$0xf]
      %v2973 = vld [vmem:[%s2969 + $0xc] sm:$0xf]
      %s2974 = scalar_lea.vmem %s676, 4
      %v2975 = vld [vmem:[%s2974] sm:$0x1]
      %v2977 = vlaneseq
      %v2978 = vshrl.u32 %v2977, 7
      %v2979 = vsub.s32 0, %v2978
      %v2980 = vrot.slane %v2975, %v2979
      %v2986 = vunpack.c.l.b16 %v2970
      %v2987 = vunpack.c.l.b16 %v2971
      %v2988 = vunpack.c.l.b16 %v2972
      %v2989 = vunpack.c.l.b16 %v2973
      %v2990 = vpack.c.b16 %v2987, %v2986
      %v2991 = vpack.c.b16 %v2989, %v2988
      %2994 = vmatprep.subr.bf16.mxu0 0
      %2995 = vmatpush1.bf16.msra.mxu0 %v2990
      %2996 = vmatprep.subr.bf16.mxu0 0
      %2997 = vmatpush1.bf16.msra.mxu0 %v2991
      %2998 = vmatprep.subr.bf16.mxu0 0
      %2999 = vmatpush1.bf16.msra.mxu0 0
      %3000 = vmatprep.subr.bf16.mxu0 0
      %3001 = vmatpush1.bf16.msra.mxu0 0
      %3002 = vmatprep.subr.bf16.mxu0 0
      %3003 = vmatpush1.bf16.msra.mxu0 0
      %3004 = vmatprep.subr.bf16.mxu0 0
      %3005 = vmatpush1.bf16.msra.mxu0 0
      %3006 = vmatprep.subr.bf16.mxu0 0
      %3007 = vmatpush1.bf16.msra.mxu0 0
      %3008 = vmatprep.subr.bf16.mxu0 0
      %3009 = vmatpush1.bf16.msra.mxu0 0
      %3010 = vmatprep.subr.bf16.mxu0 0
      %3011 = vmatpush1.bf16.msra.mxu0 0
      %3012 = vmatprep.subr.bf16.mxu0 0
      %3013 = vmatpush1.bf16.msra.mxu0 0
      %3014 = vmatprep.subr.bf16.mxu0 0
      %3015 = vmatpush1.bf16.msra.mxu0 0
      %3016 = vmatprep.subr.bf16.mxu0 0
      %3017 = vmatpush1.bf16.msra.mxu0 0
      %3018 = vmatprep.subr.bf16.mxu0 0
      %3019 = vmatpush1.bf16.msra.mxu0 0
      %3020 = vmatprep.subr.bf16.mxu0 0
      %3021 = vmatpush1.bf16.msra.mxu0 0
      %3022 = vmatprep.subr.bf16.mxu0 0
      %3023 = vmatpush1.bf16.msra.mxu0 0
      %3024 = vmatprep.subr.bf16.mxu0 0
      %3025 = vmatpush1.bf16.msra.mxu0 0
      %3026 = vmatprep.mubr.bf16.mxu0 0
      %3027 = vmatmul.mubr.bf16.gmra.mrb[0].mxu0 %v759
      %v3028 = vpop.f32.mrb[0].mxu0
      %v3029 = vadd.f32 %v2980, %v3028
      %v3030 = vpop.f32.mrb[0].mxu0
      %v3031 = vpop.f32.mrb[0].mxu0
      %v3032 = vadd.f32 %v2980, %v3031
      %v3033 = vpop.f32.mrb[0].mxu0
      %3034 = vmatprep.mubr.bf16.mxu0 0
      %3035 = vmatmul.mubr.bf16.gmra.mrb[0].mxu0 %v762
      %v3036 = vpop.f32.mrb[0].mxu0
      %v3037 = vadd.f32 %v2980, %v3036
      %v3038 = vpop.f32.mrb[0].mxu0
      %v3039 = vpop.f32.mrb[0].mxu0
      %v3040 = vadd.f32 %v2980, %v3039
      %v3041 = vpop.f32.mrb[0].mxu0
      %3042 = vdwg.mxu0
      %v3043 = vpack.c.bf16 %v3032, %v3029
      %v3044 = vpack.c.bf16 %v3040, %v3037
      %s3045 = scalar_lea.vmem %s672, 192
      %v3046 = vld [vmem:[%s3045] sm:$0xf]
      %v3047 = vld [vmem:[%s3045 + $0x4] sm:$0xf]
      %v3048 = vld [vmem:[%s3045 + $0x8] sm:$0xf]
      %v3049 = vld [vmem:[%s3045 + $0xc] sm:$0xf]
      %s3050 = scalar_lea.vmem %s676, 12
      %v3051 = vld [vmem:[%s3050] sm:$0x1]
      %v3053 = vlaneseq
      %v3054 = vshrl.u32 %v3053, 7
      %v3055 = vsub.s32 0, %v3054
      %v3056 = vrot.slane %v3051, %v3055
      %v3062 = vunpack.c.l.b16 %v3046
      %v3063 = vunpack.c.l.b16 %v3047
      %v3064 = vunpack.c.l.b16 %v3048
      %v3065 = vunpack.c.l.b16 %v3049
      %v3066 = vpack.c.b16 %v3063, %v3062
      %v3067 = vpack.c.b16 %v3065, %v3064
      %3070 = vmatprep.subr.bf16.mxu0 0
      %3071 = vmatpush1.bf16.msra.mxu0 %v3066
      %3072 = vmatprep.subr.bf16.mxu0 0
      %3073 = vmatpush1.bf16.msra.mxu0 %v3067
      %3074 = vmatprep.subr.bf16.mxu0 0
      %3075 = vmatpush1.bf16.msra.mxu0 0
      %3076 = vmatprep.subr.bf16.mxu0 0
      %3077 = vmatpush1.bf16.msra.mxu0 0
      %3078 = vmatprep.subr.bf16.mxu0 0
      %3079 = vmatpush1.bf16.msra.mxu0 0
      %3080 = vmatprep.subr.bf16.mxu0 0
      %3081 = vmatpush1.bf16.msra.mxu0 0
      %3082 = vmatprep.subr.bf16.mxu0 0
      %3083 = vmatpush1.bf16.msra.mxu0 0
      %3084 = vmatprep.subr.bf16.mxu0 0
      %3085 = vmatpush1.bf16.msra.mxu0 0
      %3086 = vmatprep.subr.bf16.mxu0 0
      %3087 = vmatpush1.bf16.msra.mxu0 0
      %3088 = vmatprep.subr.bf16.mxu0 0
      %3089 = vmatpush1.bf16.msra.mxu0 0
      %3090 = vmatprep.subr.bf16.mxu0 0
      %3091 = vmatpush1.bf16.msra.mxu0 0
      %3092 = vmatprep.subr.bf16.mxu0 0
      %3093 = vmatpush1.bf16.msra.mxu0 0
      %3094 = vmatprep.subr.bf16.mxu0 0
      %3095 = vmatpush1.bf16.msra.mxu0 0
      %3096 = vmatprep.subr.bf16.mxu0 0
      %3097 = vmatpush1.bf16.msra.mxu0 0
      %3098 = vmatprep.subr.bf16.mxu0 0
      %3099 = vmatpush1.bf16.msra.mxu0 0
      %3100 = vmatprep.subr.bf16.mxu0 0
      %3101 = vmatpush1.bf16.msra.mxu0 0
      %3102 = vmatprep.mubr.bf16.mxu0 0
      %3103 = vmatmul.mubr.bf16.gmra.mrb[0].mxu0 %v759
      %v3104 = vpop.f32.mrb[0].mxu0
      %v3105 = vadd.f32 %v3056, %v3104
      %v3106 = vpop.f32.mrb[0].mxu0
      %v3107 = vpop.f32.mrb[0].mxu0
      %v3108 = vadd.f32 %v3056, %v3107
      %v3109 = vpop.f32.mrb[0].mxu0
      %3110 = vmatprep.mubr.bf16.mxu0 0
      %3111 = vmatmul.mubr.bf16.gmra.mrb[0].mxu0 %v762
      %v3112 = vpop.f32.mrb[0].mxu0
      %v3113 = vadd.f32 %v3056, %v3112
      %v3114 = vpop.f32.mrb[0].mxu0
      %v3115 = vpop.f32.mrb[0].mxu0
      %v3116 = vadd.f32 %v3056, %v3115
      %v3117 = vpop.f32.mrb[0].mxu0
      %3118 = vdwg.mxu0
      %v3119 = vpack.c.bf16 %v3108, %v3105
      %v3120 = vpack.c.bf16 %v3116, %v3113
      %s3121 = scalar_lea.vmem %s672, 320
      %v3122 = vld [vmem:[%s3121] sm:$0xf]
      %v3123 = vld [vmem:[%s3121 + $0x4] sm:$0xf]
      %v3124 = vld [vmem:[%s3121 + $0x8] sm:$0xf]
      %v3125 = vld [vmem:[%s3121 + $0xc] sm:$0xf]
      %s3126 = scalar_lea.vmem %s676, 20
      %v3127 = vld [vmem:[%s3126] sm:$0x1]
      %v3129 = vlaneseq
      %v3130 = vshrl.u32 %v3129, 7
      %v3131 = vsub.s32 0, %v3130
      %v3132 = vrot.slane %v3127, %v3131
      %v3138 = vunpack.c.l.b16 %v3122
      %v3139 = vunpack.c.l.b16 %v3123
      %v3140 = vunpack.c.l.b16 %v3124
      %v3141 = vunpack.c.l.b16 %v3125
      %v3142 = vpack.c.b16 %v3139, %v3138
      %v3143 = vpack.c.b16 %v3141, %v3140
      %3146 = vmatprep.subr.bf16.mxu0 0
      %3147 = vmatpush1.bf16.msra.mxu0 %v3142
      %3148 = vmatprep.subr.bf16.mxu0 0
      %3149 = vmatpush1.bf16.msra.mxu0 %v3143
      %3150 = vmatprep.subr.bf16.mxu0 0
      %3151 = vmatpush1.bf16.msra.mxu0 0
      %3152 = vmatprep.subr.bf16.mxu0 0
      %3153 = vmatpush1.bf16.msra.mxu0 0
      %3154 = vmatprep.subr.bf16.mxu0 0
      %3155 = vmatpush1.bf16.msra.mxu0 0
      %3156 = vmatprep.subr.bf16.mxu0 0
      %3157 = vmatpush1.bf16.msra.mxu0 0
      %3158 = vmatprep.subr.bf16.mxu0 0
      %3159 = vmatpush1.bf16.msra.mxu0 0
      %3160 = vmatprep.subr.bf16.mxu0 0
      %3161 = vmatpush1.bf16.msra.mxu0 0
      %3162 = vmatprep.subr.bf16.mxu0 0
      %3163 = vmatpush1.bf16.msra.mxu0 0
      %3164 = vmatprep.subr.bf16.mxu0 0
      %3165 = vmatpush1.bf16.msra.mxu0 0
      %3166 = vmatprep.subr.bf16.mxu0 0
      %3167 = vmatpush1.bf16.msra.mxu0 0
      %3168 = vmatprep.subr.bf16.mxu0 0
      %3169 = vmatpush1.bf16.msra.mxu0 0
      %3170 = vmatprep.subr.bf16.mxu0 0
      %3171 = vmatpush1.bf16.msra.mxu0 0
      %3172 = vmatprep.subr.bf16.mxu0 0
      %3173 = vmatpush1.bf16.msra.mxu0 0
      %3174 = vmatprep.subr.bf16.mxu0 0
      %3175 = vmatpush1.bf16.msra.mxu0 0
      %3176 = vmatprep.subr.bf16.mxu0 0
      %3177 = vmatpush1.bf16.msra.mxu0 0
      %3178 = vmatprep.mubr.bf16.mxu0 0
      %3179 = vmatmul.mubr.bf16.gmra.mrb[0].mxu0 %v759
      %v3180 = vpop.f32.mrb[0].mxu0
      %v3181 = vadd.f32 %v3132, %v3180
      %v3182 = vpop.f32.mrb[0].mxu0
      %v3183 = vpop.f32.mrb[0].mxu0
      %v3184 = vadd.f32 %v3132, %v3183
      %v3185 = vpop.f32.mrb[0].mxu0
      %3186 = vmatprep.mubr.bf16.mxu0 0
      %3187 = vmatmul.mubr.bf16.gmra.mrb[0].mxu0 %v762
      %v3188 = vpop.f32.mrb[0].mxu0
      %v3189 = vadd.f32 %v3132, %v3188
      %v3190 = vpop.f32.mrb[0].mxu0
      %v3191 = vpop.f32.mrb[0].mxu0
      %v3192 = vadd.f32 %v3132, %v3191
      %v3193 = vpop.f32.mrb[0].mxu0
      %3194 = vdwg.mxu0
      %v3195 = vpack.c.bf16 %v3184, %v3181
      %v3196 = vpack.c.bf16 %v3192, %v3189
      %s3197 = scalar_lea.vmem %s681, 8
      %v3198 = vld [vmem:[%s3197] sm:$0x3]
      %v3200 = vsel %vm968, %v3043, 0
      %v3203 = vsel %vm968, %v3119, 0
      %3205 = vmatprep.subr.bf16.mxu0 0
      %3206 = vmatpush1.bf16.xpose.msra.mxu0 %v3203
      %3207 = vmatprep.subr.bf16.mxu0 0
      %3208 = vmatpush1.bf16.xpose.msra.mxu0 0
      %3209 = vmatprep.subr.bf16.mxu0 0
      %3210 = vmatpush1.bf16.xpose.msra.mxu0 0
      %3211 = vmatprep.subr.bf16.mxu0 0
      %3212 = vmatpush1.bf16.xpose.msra.mxu0 0
      %3213 = vmatprep.subr.bf16.mxu0 0
      %3214 = vmatpush1.bf16.xpose.msra.mxu0 0
      %3215 = vmatprep.subr.bf16.mxu0 0
      %3216 = vmatpush1.bf16.xpose.msra.mxu0 0
      %3217 = vmatprep.subr.bf16.mxu0 0
      %3218 = vmatpush1.bf16.xpose.msra.mxu0 0
      %3219 = vmatprep.subr.bf16.mxu0 0
      %3220 = vmatpush1.bf16.xpose.msra.mxu0 0
      %3221 = vmatprep.subr.bf16.mxu0 0
      %3222 = vmatpush1.bf16.xpose.msra.mxu0 0
      %3223 = vmatprep.subr.bf16.mxu0 0
      %3224 = vmatpush1.bf16.xpose.msra.mxu0 0
      %3225 = vmatprep.subr.bf16.mxu0 0
      %3226 = vmatpush1.bf16.xpose.msra.mxu0 0
      %3227 = vmatprep.subr.bf16.mxu0 0
      %3228 = vmatpush1.bf16.xpose.msra.mxu0 0
      %3229 = vmatprep.subr.bf16.mxu0 0
      %3230 = vmatpush1.bf16.xpose.msra.mxu0 0
      %3231 = vmatprep.subr.bf16.mxu0 0
      %3232 = vmatpush1.bf16.xpose.msra.mxu0 0
      %3233 = vmatprep.subr.bf16.mxu0 0
      %3234 = vmatpush1.bf16.xpose.msra.mxu0 0
      %3235 = vmatprep.subr.bf16.mxu0 0
      %3236 = vmatpush1.bf16.xpose.msra.mxu0 0
      %3237 = vmatprep.mubr.bf16.mxu0 0
      %3238 = vmatmul.mubr.bf16.gmra.mrb[0].mxu0 %v3200
      %v3239 = vpop.f32.mrb[0].mxu0
      %v3240 = vadd.f32 0.0, %v3239
      %v3241 = vpop.f32.mrb[0].mxu0
      %v3242 = vpop.f32.mrb[0].mxu0
      %v3243 = vadd.f32 0.0, %v3242
      %v3244 = vpop.f32.mrb[0].mxu0
      %3245 = vdwg.mxu0
      %v3246 = vmul.f32 %v3240, 0.5
      %v3247 = vmul.f32 %v3243, 0.5
      %v3248 = vsel %vm1018, %v3246, -inf
      %3249 = vmax.xlane.f32.xlu0 %v3248
      %v3250 = vpop.xlane.xlu0 %3249
      %v3251 = vsel %vm1018, %v3247, -inf
      %3252 = vmax.xlane.f32.xlu0 %v3251
      %v3253 = vpop.xlane.xlu0 %3252
      %v3254 = vsub.f32 %v3246, %v3250
      %v3255 = vsub.f32 %v3247, %v3253
      %v3256 = vmul.f32 %v3254, 1.442695
      %v3257 = vpow.pop %v3256
      %v3258 = vmul.f32 %v3255, 1.442695
      %v3259 = vpow.pop %v3258
      %v3260 = vsel %vm1018, %v3257, 0.0
      %3261 = vadd.xlane.f32.xlu0 %v3260
      %v3262 = vpop.xlane.xlu0 %3261
      %v3263 = vsel %vm1018, %v3259, 0.0
      %3264 = vadd.xlane.f32.xlu0 %v3263
      %v3265 = vpop.xlane.xlu0 %3264
      %v3266 = vrcp.pop %v3262
      %v3267 = vrcp.pop %v3265
      %v3268 = vmul.f32 %v3257, %v3266
      %v3269 = vmul.f32 %v3259, %v3267
      %v3270 = vpack.c.bf16 %v3269, %v3268
      %v3272 = vsel %vm1018, %v3270, 0
      %3274 = vmatprep.subr.bf16.mxu0 0
      %3275 = vmatpush1.bf16.msra.mxu0 %v3195
      %3276 = vmatprep.subr.bf16.mxu0 0
      %3277 = vmatpush1.bf16.msra.mxu0 0
      %3278 = vmatprep.subr.bf16.mxu0 0
      %3279 = vmatpush1.bf16.msra.mxu0 0
      %3280 = vmatprep.subr.bf16.mxu0 0
      %3281 = vmatpush1.bf16.msra.mxu0 0
      %3282 = vmatprep.subr.bf16.mxu0 0
      %3283 = vmatpush1.bf16.msra.mxu0 0
      %3284 = vmatprep.subr.bf16.mxu0 0
      %3285 = vmatpush1.bf16.msra.mxu0 0
      %3286 = vmatprep.subr.bf16.mxu0 0
      %3287 = vmatpush1.bf16.msra.mxu0 0
      %3288 = vmatprep.subr.bf16.mxu0 0
      %3289 = vmatpush1.bf16.msra.mxu0 0
      %3290 = vmatprep.subr.bf16.mxu0 0
      %3291 = vmatpush1.bf16.msra.mxu0 0
      %3292 = vmatprep.subr.bf16.mxu0 0
      %3293 = vmatpush1.bf16.msra.mxu0 0
      %3294 = vmatprep.subr.bf16.mxu0 0
      %3295 = vmatpush1.bf16.msra.mxu0 0
      %3296 = vmatprep.subr.bf16.mxu0 0
      %3297 = vmatpush1.bf16.msra.mxu0 0
      %3298 = vmatprep.subr.bf16.mxu0 0
      %3299 = vmatpush1.bf16.msra.mxu0 0
      %3300 = vmatprep.subr.bf16.mxu0 0
      %3301 = vmatpush1.bf16.msra.mxu0 0
      %3302 = vmatprep.subr.bf16.mxu0 0
      %3303 = vmatpush1.bf16.msra.mxu0 0
      %3304 = vmatprep.subr.bf16.mxu0 0
      %3305 = vmatpush1.bf16.msra.mxu0 0
      %3306 = vmatprep.mubr.bf16.mxu0 0
      %3307 = vmatmul.mubr.bf16.gmra.mrb[0].mxu0 %v3272
      %v3308 = vpop.f32.mrb[0].mxu0
      %v3309 = vadd.f32 0.0, %v3308
      %v3310 = vpop.f32.mrb[0].mxu0
      %v3311 = vpop.f32.mrb[0].mxu0
      %v3312 = vadd.f32 0.0, %v3311
      %v3313 = vpop.f32.mrb[0].mxu0
      %3314 = vdwg.mxu0
      %v3315 = vpack.c.bf16 %v3312, %v3309
      %v3317 = vsel %vm968, %v3315, 0
      %v3320 = vsel %vm1554, %v3198, 0
      %3322 = vmatprep.subr.bf16.mxu0 0
      %3323 = vmatpush1.bf16.msra.mxu0 %v3320
      %3324 = vmatprep.subr.bf16.mxu0 0
      %3325 = vmatpush1.bf16.msra.mxu0 0
      %3326 = vmatprep.subr.bf16.mxu0 0
      %3327 = vmatpush1.bf16.msra.mxu0 0
      %3328 = vmatprep.subr.bf16.mxu0 0
      %3329 = vmatpush1.bf16.msra.mxu0 0
      %3330 = vmatprep.subr.bf16.mxu0 0
      %3331 = vmatpush1.bf16.msra.mxu0 0
      %3332 = vmatprep.subr.bf16.mxu0 0
      %3333 = vmatpush1.bf16.msra.mxu0 0
      %3334 = vmatprep.subr.bf16.mxu0 0
      %3335 = vmatpush1.bf16.msra.mxu0 0
      %3336 = vmatprep.subr.bf16.mxu0 0
      %3337 = vmatpush1.bf16.msra.mxu0 0
      %3338 = vmatprep.subr.bf16.mxu0 0
      %3339 = vmatpush1.bf16.msra.mxu0 0
      %3340 = vmatprep.subr.bf16.mxu0 0
      %3341 = vmatpush1.bf16.msra.mxu0 0
      %3342 = vmatprep.subr.bf16.mxu0 0
      %3343 = vmatpush1.bf16.msra.mxu0 0
      %3344 = vmatprep.subr.bf16.mxu0 0
      %3345 = vmatpush1.bf16.msra.mxu0 0
      %3346 = vmatprep.subr.bf16.mxu0 0
      %3347 = vmatpush1.bf16.msra.mxu0 0
      %3348 = vmatprep.subr.bf16.mxu0 0
      %3349 = vmatpush1.bf16.msra.mxu0 0
      %3350 = vmatprep.subr.bf16.mxu0 0
      %3351 = vmatpush1.bf16.msra.mxu0 0
      %3352 = vmatprep.subr.bf16.mxu0 0
      %3353 = vmatpush1.bf16.msra.mxu0 0
      %3354 = vmatprep.mubr.bf16.mxu0 0
      %3355 = vmatmul.mubr.bf16.gmra.mrb[0].mxu0 %v3317
      %v3356 = vpop.f32.mrb[0].mxu0
      %v3357 = vadd.f32 0.0, %v3356
      %v3358 = vpop.f32.mrb[0].mxu0
      %v3359 = vpop.f32.mrb[0].mxu0
      %v3360 = vadd.f32 0.0, %v3359
      %v3361 = vpop.f32.mrb[0].mxu0
      %3362 = vdwg.mxu0
      %v3363 = vadd.f32 %v2804, %v3357
      %v3364 = vadd.f32 %v2805, %v3360
      %v3366 = vsel %vm968, %v3044, 0
      %v3369 = vsel %vm968, %v3120, 0
      %3371 = vmatprep.subr.bf16.mxu0 0
      %3372 = vmatpush1.bf16.xpose.msra.mxu0 %v3369
      %3373 = vmatprep.subr.bf16.mxu0 0
      %3374 = vmatpush1.bf16.xpose.msra.mxu0 0
      %3375 = vmatprep.subr.bf16.mxu0 0
      %3376 = vmatpush1.bf16.xpose.msra.mxu0 0
      %3377 = vmatprep.subr.bf16.mxu0 0
      %3378 = vmatpush1.bf16.xpose.msra.mxu0 0
      %3379 = vmatprep.subr.bf16.mxu0 0
      %3380 = vmatpush1.bf16.xpose.msra.mxu0 0
      %3381 = vmatprep.subr.bf16.mxu0 0
      %3382 = vmatpush1.bf16.xpose.msra.mxu0 0
      %3383 = vmatprep.subr.bf16.mxu0 0
      %3384 = vmatpush1.bf16.xpose.msra.mxu0 0
      %3385 = vmatprep.subr.bf16.mxu0 0
      %3386 = vmatpush1.bf16.xpose.msra.mxu0 0
      %3387 = vmatprep.subr.bf16.mxu0 0
      %3388 = vmatpush1.bf16.xpose.msra.mxu0 0
      %3389 = vmatprep.subr.bf16.mxu0 0
      %3390 = vmatpush1.bf16.xpose.msra.mxu0 0
      %3391 = vmatprep.subr.bf16.mxu0 0
      %3392 = vmatpush1.bf16.xpose.msra.mxu0 0
      %3393 = vmatprep.subr.bf16.mxu0 0
      %3394 = vmatpush1.bf16.xpose.msra.mxu0 0
      %3395 = vmatprep.subr.bf16.mxu0 0
      %3396 = vmatpush1.bf16.xpose.msra.mxu0 0
      %3397 = vmatprep.subr.bf16.mxu0 0
      %3398 = vmatpush1.bf16.xpose.msra.mxu0 0
      %3399 = vmatprep.subr.bf16.mxu0 0
      %3400 = vmatpush1.bf16.xpose.msra.mxu0 0
      %3401 = vmatprep.subr.bf16.mxu0 0
      %3402 = vmatpush1.bf16.xpose.msra.mxu0 0
      %3403 = vmatprep.mubr.bf16.mxu0 0
      %3404 = vmatmul.mubr.bf16.gmra.mrb[0].mxu0 %v3366
      %v3405 = vpop.f32.mrb[0].mxu0
      %v3406 = vadd.f32 0.0, %v3405
      %v3407 = vpop.f32.mrb[0].mxu0
      %v3408 = vpop.f32.mrb[0].mxu0
      %v3409 = vadd.f32 0.0, %v3408
      %v3410 = vpop.f32.mrb[0].mxu0
      %3411 = vdwg.mxu0
      %v3412 = vmul.f32 %v3406, 0.5
      %v3413 = vmul.f32 %v3409, 0.5
      %v3414 = vsel %vm1018, %v3412, -inf
      %3415 = vmax.xlane.f32.xlu0 %v3414
      %v3416 = vpop.xlane.xlu0 %3415
      %v3417 = vsel %vm1018, %v3413, -inf
      %3418 = vmax.xlane.f32.xlu0 %v3417
      %v3419 = vpop.xlane.xlu0 %3418
      %v3420 = vsub.f32 %v3412, %v3416
      %v3421 = vsub.f32 %v3413, %v3419
      %v3422 = vmul.f32 %v3420, 1.442695
      %v3423 = vpow.pop %v3422
      %v3424 = vmul.f32 %v3421, 1.442695
      %v3425 = vpow.pop %v3424
      %v3426 = vsel %vm1018, %v3423, 0.0
      %3427 = vadd.xlane.f32.xlu0 %v3426
      %v3428 = vpop.xlane.xlu0 %3427
      %v3429 = vsel %vm1018, %v3425, 0.0
      %3430 = vadd.xlane.f32.xlu0 %v3429
      %v3431 = vpop.xlane.xlu0 %3430
      %v3432 = vrcp.pop %v3428
      %v3433 = vrcp.pop %v3431
      %v3434 = vmul.f32 %v3423, %v3432
      %v3435 = vmul.f32 %v3425, %v3433
      %v3436 = vpack.c.bf16 %v3435, %v3434
      %v3438 = vsel %vm1018, %v3436, 0
      %3440 = vmatprep.subr.bf16.mxu0 0
      %3441 = vmatpush1.bf16.msra.mxu0 %v3196
      %3442 = vmatprep.subr.bf16.mxu0 0
      %3443 = vmatpush1.bf16.msra.mxu0 0
      %3444 = vmatprep.subr.bf16.mxu0 0
      %3445 = vmatpush1.bf16.msra.mxu0 0
      %3446 = vmatprep.subr.bf16.mxu0 0
      %3447 = vmatpush1.bf16.msra.mxu0 0
      %3448 = vmatprep.subr.bf16.mxu0 0
      %3449 = vmatpush1.bf16.msra.mxu0 0
      %3450 = vmatprep.subr.bf16.mxu0 0
      %3451 = vmatpush1.bf16.msra.mxu0 0
      %3452 = vmatprep.subr.bf16.mxu0 0
      %3453 = vmatpush1.bf16.msra.mxu0 0
      %3454 = vmatprep.subr.bf16.mxu0 0
      %3455 = vmatpush1.bf16.msra.mxu0 0
      %3456 = vmatprep.subr.bf16.mxu0 0
      %3457 = vmatpush1.bf16.msra.mxu0 0
      %3458 = vmatprep.subr.bf16.mxu0 0
      %3459 = vmatpush1.bf16.msra.mxu0 0
      %3460 = vmatprep.subr.bf16.mxu0 0
      %3461 = vmatpush1.bf16.msra.mxu0 0
      %3462 = vmatprep.subr.bf16.mxu0 0
      %3463 = vmatpush1.bf16.msra.mxu0 0
      %3464 = vmatprep.subr.bf16.mxu0 0
      %3465 = vmatpush1.bf16.msra.mxu0 0
      %3466 = vmatprep.subr.bf16.mxu0 0
      %3467 = vmatpush1.bf16.msra.mxu0 0
      %3468 = vmatprep.subr.bf16.mxu0 0
      %3469 = vmatpush1.bf16.msra.mxu0 0
      %3470 = vmatprep.subr.bf16.mxu0 0
      %3471 = vmatpush1.bf16.msra.mxu0 0
      %3472 = vmatprep.mubr.bf16.mxu0 0
      %3473 = vmatmul.mubr.bf16.gmra.mrb[0].mxu0 %v3438
      %v3474 = vpop.f32.mrb[0].mxu0
      %v3475 = vadd.f32 0.0, %v3474
      %v3476 = vpop.f32.mrb[0].mxu0
      %v3477 = vpop.f32.mrb[0].mxu0
      %v3478 = vadd.f32 0.0, %v3477
      %v3479 = vpop.f32.mrb[0].mxu0
      %3480 = vdwg.mxu0
      %v3481 = vpack.c.bf16 %v3478, %v3475
      %v3483 = vsel %vm968, %v3481, 0
      %3485 = vmatprep.subr.bf16.mxu0 0
      %3486 = vmatpush1.bf16.msra.mxu0 %v3320
      %3487 = vmatprep.subr.bf16.mxu0 0
      %3488 = vmatpush1.bf16.msra.mxu0 0
      %3489 = vmatprep.subr.bf16.mxu0 0
      %3490 = vmatpush1.bf16.msra.mxu0 0
      %3491 = vmatprep.subr.bf16.mxu0 0
      %3492 = vmatpush1.bf16.msra.mxu0 0
      %3493 = vmatprep.subr.bf16.mxu0 0
      %3494 = vmatpush1.bf16.msra.mxu0 0
      %3495 = vmatprep.subr.bf16.mxu0 0
      %3496 = vmatpush1.bf16.msra.mxu0 0
      %3497 = vmatprep.subr.bf16.mxu0 0
      %3498 = vmatpush1.bf16.msra.mxu0 0
      %3499 = vmatprep.subr.bf16.mxu0 0
      %3500 = vmatpush1.bf16.msra.mxu0 0
      %3501 = vmatprep.subr.bf16.mxu0 0
      %3502 = vmatpush1.bf16.msra.mxu0 0
      %3503 = vmatprep.subr.bf16.mxu0 0
      %3504 = vmatpush1.bf16.msra.mxu0 0
      %3505 = vmatprep.subr.bf16.mxu0 0
      %3506 = vmatpush1.bf16.msra.mxu0 0
      %3507 = vmatprep.subr.bf16.mxu0 0
      %3508 = vmatpush1.bf16.msra.mxu0 0
      %3509 = vmatprep.subr.bf16.mxu0 0
      %3510 = vmatpush1.bf16.msra.mxu0 0
      %3511 = vmatprep.subr.bf16.mxu0 0
      %3512 = vmatpush1.bf16.msra.mxu0 0
      %3513 = vmatprep.subr.bf16.mxu0 0
      %3514 = vmatpush1.bf16.msra.mxu0 0
      %3515 = vmatprep.subr.bf16.mxu0 0
      %3516 = vmatpush1.bf16.msra.mxu0 0
      %3517 = vmatprep.mubr.bf16.mxu0 0
      %3518 = vmatmul.mubr.bf16.gmra.mrb[0].mxu0 %v3483
      %v3519 = vpop.f32.mrb[0].mxu0
      %v3520 = vadd.f32 0.0, %v3519
      %v3521 = vpop.f32.mrb[0].mxu0
      %v3522 = vpop.f32.mrb[0].mxu0
      %v3523 = vadd.f32 0.0, %v3522
      %v3524 = vpop.f32.mrb[0].mxu0
      %3525 = vdwg.mxu0
      %v3526 = vadd.f32 %v2967, %v3520
      %v3527 = vadd.f32 %v2968, %v3523
      %s3528 = scalar_lea.vmem %s672, 80
      %v3529 = vld [vmem:[%s3528] sm:$0xf]
      %v3530 = vld [vmem:[%s3528 + $0x4] sm:$0xf]
      %v3531 = vld [vmem:[%s3528 + $0x8] sm:$0xf]
      %v3532 = vld [vmem:[%s3528 + $0xc] sm:$0xf]
      %s3533 = scalar_lea.vmem %s676, 5
      %v3534 = vld [vmem:[%s3533] sm:$0x1]
      %v3536 = vlaneseq
      %v3537 = vshrl.u32 %v3536, 7
      %v3538 = vsub.s32 0, %v3537
      %v3539 = vrot.slane %v3534, %v3538
      %v3545 = vunpack.c.l.b16 %v3529
      %v3546 = vunpack.c.l.b16 %v3530
      %v3547 = vunpack.c.l.b16 %v3531
      %v3548 = vunpack.c.l.b16 %v3532
      %v3549 = vpack.c.b16 %v3546, %v3545
      %v3550 = vpack.c.b16 %v3548, %v3547
      %3553 = vmatprep.subr.bf16.mxu0 0
      %3554 = vmatpush1.bf16.msra.mxu0 %v3549
      %3555 = vmatprep.subr.bf16.mxu0 0
      %3556 = vmatpush1.bf16.msra.mxu0 %v3550
      %3557 = vmatprep.subr.bf16.mxu0 0
      %3558 = vmatpush1.bf16.msra.mxu0 0
      %3559 = vmatprep.subr.bf16.mxu0 0
      %3560 = vmatpush1.bf16.msra.mxu0 0
      %3561 = vmatprep.subr.bf16.mxu0 0
      %3562 = vmatpush1.bf16.msra.mxu0 0
      %3563 = vmatprep.subr.bf16.mxu0 0
      %3564 = vmatpush1.bf16.msra.mxu0 0
      %3565 = vmatprep.subr.bf16.mxu0 0
      %3566 = vmatpush1.bf16.msra.mxu0 0
      %3567 = vmatprep.subr.bf16.mxu0 0
      %3568 = vmatpush1.bf16.msra.mxu0 0
      %3569 = vmatprep.subr.bf16.mxu0 0
      %3570 = vmatpush1.bf16.msra.mxu0 0
      %3571 = vmatprep.subr.bf16.mxu0 0
      %3572 = vmatpush1.bf16.msra.mxu0 0
      %3573 = vmatprep.subr.bf16.mxu0 0
      %3574 = vmatpush1.bf16.msra.mxu0 0
      %3575 = vmatprep.subr.bf16.mxu0 0
      %3576 = vmatpush1.bf16.msra.mxu0 0
      %3577 = vmatprep.subr.bf16.mxu0 0
      %3578 = vmatpush1.bf16.msra.mxu0 0
      %3579 = vmatprep.subr.bf16.mxu0 0
      %3580 = vmatpush1.bf16.msra.mxu0 0
      %3581 = vmatprep.subr.bf16.mxu0 0
      %3582 = vmatpush1.bf16.msra.mxu0 0
      %3583 = vmatprep.subr.bf16.mxu0 0
      %3584 = vmatpush1.bf16.msra.mxu0 0
      %3585 = vmatprep.mubr.bf16.mxu0 0
      %3586 = vmatmul.mubr.bf16.gmra.mrb[0].mxu0 %v759
      %v3587 = vpop.f32.mrb[0].mxu0
      %v3588 = vadd.f32 %v3539, %v3587
      %v3589 = vpop.f32.mrb[0].mxu0
      %v3590 = vpop.f32.mrb[0].mxu0
      %v3591 = vadd.f32 %v3539, %v3590
      %v3592 = vpop.f32.mrb[0].mxu0
      %3593 = vmatprep.mubr.bf16.mxu0 0
      %3594 = vmatmul.mubr.bf16.gmra.mrb[0].mxu0 %v762
      %v3595 = vpop.f32.mrb[0].mxu0
      %v3596 = vadd.f32 %v3539, %v3595
      %v3597 = vpop.f32.mrb[0].mxu0
      %v3598 = vpop.f32.mrb[0].mxu0
      %v3599 = vadd.f32 %v3539, %v3598
      %v3600 = vpop.f32.mrb[0].mxu0
      %3601 = vdwg.mxu0
      %v3602 = vpack.c.bf16 %v3591, %v3588
      %v3603 = vpack.c.bf16 %v3599, %v3596
      %s3604 = scalar_lea.vmem %s672, 208
      %v3605 = vld [vmem:[%s3604] sm:$0xf]
      %v3606 = vld [vmem:[%s3604 + $0x4] sm:$0xf]
      %v3607 = vld [vmem:[%s3604 + $0x8] sm:$0xf]
      %v3608 = vld [vmem:[%s3604 + $0xc] sm:$0xf]
      %s3609 = scalar_lea.vmem %s676, 13
      %v3610 = vld [vmem:[%s3609] sm:$0x1]
      %v3612 = vlaneseq
      %v3613 = vshrl.u32 %v3612, 7
      %v3614 = vsub.s32 0, %v3613
      %v3615 = vrot.slane %v3610, %v3614
      %v3621 = vunpack.c.l.b16 %v3605
      %v3622 = vunpack.c.l.b16 %v3606
      %v3623 = vunpack.c.l.b16 %v3607
      %v3624 = vunpack.c.l.b16 %v3608
      %v3625 = vpack.c.b16 %v3622, %v3621
      %v3626 = vpack.c.b16 %v3624, %v3623
      %3629 = vmatprep.subr.bf16.mxu0 0
      %3630 = vmatpush1.bf16.msra.mxu0 %v3625
      %3631 = vmatprep.subr.bf16.mxu0 0
      %3632 = vmatpush1.bf16.msra.mxu0 %v3626
      %3633 = vmatprep.subr.bf16.mxu0 0
      %3634 = vmatpush1.bf16.msra.mxu0 0
      %3635 = vmatprep.subr.bf16.mxu0 0
      %3636 = vmatpush1.bf16.msra.mxu0 0
      %3637 = vmatprep.subr.bf16.mxu0 0
      %3638 = vmatpush1.bf16.msra.mxu0 0
      %3639 = vmatprep.subr.bf16.mxu0 0
      %3640 = vmatpush1.bf16.msra.mxu0 0
      %3641 = vmatprep.subr.bf16.mxu0 0
      %3642 = vmatpush1.bf16.msra.mxu0 0
      %3643 = vmatprep.subr.bf16.mxu0 0
      %3644 = vmatpush1.bf16.msra.mxu0 0
      %3645 = vmatprep.subr.bf16.mxu0 0
      %3646 = vmatpush1.bf16.msra.mxu0 0
      %3647 = vmatprep.subr.bf16.mxu0 0
      %3648 = vmatpush1.bf16.msra.mxu0 0
      %3649 = vmatprep.subr.bf16.mxu0 0
      %3650 = vmatpush1.bf16.msra.mxu0 0
      %3651 = vmatprep.subr.bf16.mxu0 0
      %3652 = vmatpush1.bf16.msra.mxu0 0
      %3653 = vmatprep.subr.bf16.mxu0 0
      %3654 = vmatpush1.bf16.msra.mxu0 0
      %3655 = vmatprep.subr.bf16.mxu0 0
      %3656 = vmatpush1.bf16.msra.mxu0 0
      %3657 = vmatprep.subr.bf16.mxu0 0
      %3658 = vmatpush1.bf16.msra.mxu0 0
      %3659 = vmatprep.subr.bf16.mxu0 0
      %3660 = vmatpush1.bf16.msra.mxu0 0
      %3661 = vmatprep.mubr.bf16.mxu0 0
      %3662 = vmatmul.mubr.bf16.gmra.mrb[0].mxu0 %v759
      %v3663 = vpop.f32.mrb[0].mxu0
      %v3664 = vadd.f32 %v3615, %v3663
      %v3665 = vpop.f32.mrb[0].mxu0
      %v3666 = vpop.f32.mrb[0].mxu0
      %v3667 = vadd.f32 %v3615, %v3666
      %v3668 = vpop.f32.mrb[0].mxu0
      %3669 = vmatprep.mubr.bf16.mxu0 0
      %3670 = vmatmul.mubr.bf16.gmra.mrb[0].mxu0 %v762
      %v3671 = vpop.f32.mrb[0].mxu0
      %v3672 = vadd.f32 %v3615, %v3671
      %v3673 = vpop.f32.mrb[0].mxu0
      %v3674 = vpop.f32.mrb[0].mxu0
      %v3675 = vadd.f32 %v3615, %v3674
      %v3676 = vpop.f32.mrb[0].mxu0
      %3677 = vdwg.mxu0
      %v3678 = vpack.c.bf16 %v3667, %v3664
      %v3679 = vpack.c.bf16 %v3675, %v3672
      %s3680 = scalar_lea.vmem %s672, 336
      %v3681 = vld [vmem:[%s3680] sm:$0xf]
      %v3682 = vld [vmem:[%s3680 + $0x4] sm:$0xf]
      %v3683 = vld [vmem:[%s3680 + $0x8] sm:$0xf]
      %v3684 = vld [vmem:[%s3680 + $0xc] sm:$0xf]
      %s3685 = scalar_lea.vmem %s676, 21
      %v3686 = vld [vmem:[%s3685] sm:$0x1]
      %v3688 = vlaneseq
      %v3689 = vshrl.u32 %v3688, 7
      %v3690 = vsub.s32 0, %v3689
      %v3691 = vrot.slane %v3686, %v3690
      %v3697 = vunpack.c.l.b16 %v3681
      %v3698 = vunpack.c.l.b16 %v3682
      %v3699 = vunpack.c.l.b16 %v3683
      %v3700 = vunpack.c.l.b16 %v3684
      %v3701 = vpack.c.b16 %v3698, %v3697
      %v3702 = vpack.c.b16 %v3700, %v3699
      %3705 = vmatprep.subr.bf16.mxu0 0
      %3706 = vmatpush1.bf16.msra.mxu0 %v3701
      %3707 = vmatprep.subr.bf16.mxu0 0
      %3708 = vmatpush1.bf16.msra.mxu0 %v3702
      %3709 = vmatprep.subr.bf16.mxu0 0
      %3710 = vmatpush1.bf16.msra.mxu0 0
      %3711 = vmatprep.subr.bf16.mxu0 0
      %3712 = vmatpush1.bf16.msra.mxu0 0
      %3713 = vmatprep.subr.bf16.mxu0 0
      %3714 = vmatpush1.bf16.msra.mxu0 0
      %3715 = vmatprep.subr.bf16.mxu0 0
      %3716 = vmatpush1.bf16.msra.mxu0 0
      %3717 = vmatprep.subr.bf16.mxu0 0
      %3718 = vmatpush1.bf16.msra.mxu0 0
      %3719 = vmatprep.subr.bf16.mxu0 0
      %3720 = vmatpush1.bf16.msra.mxu0 0
      %3721 = vmatprep.subr.bf16.mxu0 0
      %3722 = vmatpush1.bf16.msra.mxu0 0
      %3723 = vmatprep.subr.bf16.mxu0 0
      %3724 = vmatpush1.bf16.msra.mxu0 0
      %3725 = vmatprep.subr.bf16.mxu0 0
      %3726 = vmatpush1.bf16.msra.mxu0 0
      %3727 = vmatprep.subr.bf16.mxu0 0
      %3728 = vmatpush1.bf16.msra.mxu0 0
      %3729 = vmatprep.subr.bf16.mxu0 0
      %3730 = vmatpush1.bf16.msra.mxu0 0
      %3731 = vmatprep.subr.bf16.mxu0 0
      %3732 = vmatpush1.bf16.msra.mxu0 0
      %3733 = vmatprep.subr.bf16.mxu0 0
      %3734 = vmatpush1.bf16.msra.mxu0 0
      %3735 = vmatprep.subr.bf16.mxu0 0
      %3736 = vmatpush1.bf16.msra.mxu0 0
      %3737 = vmatprep.mubr.bf16.mxu0 0
      %3738 = vmatmul.mubr.bf16.gmra.mrb[0].mxu0 %v759
      %v3739 = vpop.f32.mrb[0].mxu0
      %v3740 = vadd.f32 %v3691, %v3739
      %v3741 = vpop.f32.mrb[0].mxu0
      %v3742 = vpop.f32.mrb[0].mxu0
      %v3743 = vadd.f32 %v3691, %v3742
      %v3744 = vpop.f32.mrb[0].mxu0
      %3745 = vmatprep.mubr.bf16.mxu0 0
      %3746 = vmatmul.mubr.bf16.gmra.mrb[0].mxu0 %v762
      %v3747 = vpop.f32.mrb[0].mxu0
      %v3748 = vadd.f32 %v3691, %v3747
      %v3749 = vpop.f32.mrb[0].mxu0
      %v3750 = vpop.f32.mrb[0].mxu0
      %v3751 = vadd.f32 %v3691, %v3750
      %v3752 = vpop.f32.mrb[0].mxu0
      %3753 = vdwg.mxu0
      %v3754 = vpack.c.bf16 %v3743, %v3740
      %v3755 = vpack.c.bf16 %v3751, %v3748
      %s3756 = scalar_lea.vmem %s681, 10
      %v3757 = vld [vmem:[%s3756] sm:$0x3]
      %v3759 = vsel %vm968, %v3602, 0
      %v3762 = vsel %vm968, %v3678, 0
      %3764 = vmatprep.subr.bf16.mxu0 0
      %3765 = vmatpush1.bf16.xpose.msra.mxu0 %v3762
      %3766 = vmatprep.subr.bf16.mxu0 0
      %3767 = vmatpush1.bf16.xpose.msra.mxu0 0
      %3768 = vmatprep.subr.bf16.mxu0 0
      %3769 = vmatpush1.bf16.xpose.msra.mxu0 0
      %3770 = vmatprep.subr.bf16.mxu0 0
      %3771 = vmatpush1.bf16.xpose.msra.mxu0 0
      %3772 = vmatprep.subr.bf16.mxu0 0
      %3773 = vmatpush1.bf16.xpose.msra.mxu0 0
      %3774 = vmatprep.subr.bf16.mxu0 0
      %3775 = vmatpush1.bf16.xpose.msra.mxu0 0
      %3776 = vmatprep.subr.bf16.mxu0 0
      %3777 = vmatpush1.bf16.xpose.msra.mxu0 0
      %3778 = vmatprep.subr.bf16.mxu0 0
      %3779 = vmatpush1.bf16.xpose.msra.mxu0 0
      %3780 = vmatprep.subr.bf16.mxu0 0
      %3781 = vmatpush1.bf16.xpose.msra.mxu0 0
      %3782 = vmatprep.subr.bf16.mxu0 0
      %3783 = vmatpush1.bf16.xpose.msra.mxu0 0
      %3784 = vmatprep.subr.bf16.mxu0 0
      %3785 = vmatpush1.bf16.xpose.msra.mxu0 0
      %3786 = vmatprep.subr.bf16.mxu0 0
      %3787 = vmatpush1.bf16.xpose.msra.mxu0 0
      %3788 = vmatprep.subr.bf16.mxu0 0
      %3789 = vmatpush1.bf16.xpose.msra.mxu0 0
      %3790 = vmatprep.subr.bf16.mxu0 0
      %3791 = vmatpush1.bf16.xpose.msra.mxu0 0
      %3792 = vmatprep.subr.bf16.mxu0 0
      %3793 = vmatpush1.bf16.xpose.msra.mxu0 0
      %3794 = vmatprep.subr.bf16.mxu0 0
      %3795 = vmatpush1.bf16.xpose.msra.mxu0 0
      %3796 = vmatprep.mubr.bf16.mxu0 0
      %3797 = vmatmul.mubr.bf16.gmra.mrb[0].mxu0 %v3759
      %v3798 = vpop.f32.mrb[0].mxu0
      %v3799 = vadd.f32 0.0, %v3798
      %v3800 = vpop.f32.mrb[0].mxu0
      %v3801 = vpop.f32.mrb[0].mxu0
      %v3802 = vadd.f32 0.0, %v3801
      %v3803 = vpop.f32.mrb[0].mxu0
      %3804 = vdwg.mxu0
      %v3805 = vmul.f32 %v3799, 0.5
      %v3806 = vmul.f32 %v3802, 0.5
      %v3807 = vsel %vm1018, %v3805, -inf
      %3808 = vmax.xlane.f32.xlu0 %v3807
      %v3809 = vpop.xlane.xlu0 %3808
      %v3810 = vsel %vm1018, %v3806, -inf
      %3811 = vmax.xlane.f32.xlu0 %v3810
      %v3812 = vpop.xlane.xlu0 %3811
      %v3813 = vsub.f32 %v3805, %v3809
      %v3814 = vsub.f32 %v3806, %v3812
      %v3815 = vmul.f32 %v3813, 1.442695
      %v3816 = vpow.pop %v3815
      %v3817 = vmul.f32 %v3814, 1.442695
      %v3818 = vpow.pop %v3817
      %v3819 = vsel %vm1018, %v3816, 0.0
      %3820 = vadd.xlane.f32.xlu0 %v3819
      %v3821 = vpop.xlane.xlu0 %3820
      %v3822 = vsel %vm1018, %v3818, 0.0
      %3823 = vadd.xlane.f32.xlu0 %v3822
      %v3824 = vpop.xlane.xlu0 %3823
      %v3825 = vrcp.pop %v3821
      %v3826 = vrcp.pop %v3824
      %v3827 = vmul.f32 %v3816, %v3825
      %v3828 = vmul.f32 %v3818, %v3826
      %v3829 = vpack.c.bf16 %v3828, %v3827
      %v3831 = vsel %vm1018, %v3829, 0
      %3833 = vmatprep.subr.bf16.mxu0 0
      %3834 = vmatpush1.bf16.msra.mxu0 %v3754
      %3835 = vmatprep.subr.bf16.mxu0 0
      %3836 = vmatpush1.bf16.msra.mxu0 0
      %3837 = vmatprep.subr.bf16.mxu0 0
      %3838 = vmatpush1.bf16.msra.mxu0 0
      %3839 = vmatprep.subr.bf16.mxu0 0
      %3840 = vmatpush1.bf16.msra.mxu0 0
      %3841 = vmatprep.subr.bf16.mxu0 0
      %3842 = vmatpush1.bf16.msra.mxu0 0
      %3843 = vmatprep.subr.bf16.mxu0 0
      %3844 = vmatpush1.bf16.msra.mxu0 0
      %3845 = vmatprep.subr.bf16.mxu0 0
      %3846 = vmatpush1.bf16.msra.mxu0 0
      %3847 = vmatprep.subr.bf16.mxu0 0
      %3848 = vmatpush1.bf16.msra.mxu0 0
      %3849 = vmatprep.subr.bf16.mxu0 0
      %3850 = vmatpush1.bf16.msra.mxu0 0
      %3851 = vmatprep.subr.bf16.mxu0 0
      %3852 = vmatpush1.bf16.msra.mxu0 0
      %3853 = vmatprep.subr.bf16.mxu0 0
      %3854 = vmatpush1.bf16.msra.mxu0 0
      %3855 = vmatprep.subr.bf16.mxu0 0
      %3856 = vmatpush1.bf16.msra.mxu0 0
      %3857 = vmatprep.subr.bf16.mxu0 0
      %3858 = vmatpush1.bf16.msra.mxu0 0
      %3859 = vmatprep.subr.bf16.mxu0 0
      %3860 = vmatpush1.bf16.msra.mxu0 0
      %3861 = vmatprep.subr.bf16.mxu0 0
      %3862 = vmatpush1.bf16.msra.mxu0 0
      %3863 = vmatprep.subr.bf16.mxu0 0
      %3864 = vmatpush1.bf16.msra.mxu0 0
      %3865 = vmatprep.mubr.bf16.mxu0 0
      %3866 = vmatmul.mubr.bf16.gmra.mrb[0].mxu0 %v3831
      %v3867 = vpop.f32.mrb[0].mxu0
      %v3868 = vadd.f32 0.0, %v3867
      %v3869 = vpop.f32.mrb[0].mxu0
      %v3870 = vpop.f32.mrb[0].mxu0
      %v3871 = vadd.f32 0.0, %v3870
      %v3872 = vpop.f32.mrb[0].mxu0
      %3873 = vdwg.mxu0
      %v3874 = vpack.c.bf16 %v3871, %v3868
      %v3876 = vsel %vm968, %v3874, 0
      %v3879 = vsel %vm1554, %v3757, 0
      %3881 = vmatprep.subr.bf16.mxu0 0
      %3882 = vmatpush1.bf16.msra.mxu0 %v3879
      %3883 = vmatprep.subr.bf16.mxu0 0
      %3884 = vmatpush1.bf16.msra.mxu0 0
      %3885 = vmatprep.subr.bf16.mxu0 0
      %3886 = vmatpush1.bf16.msra.mxu0 0
      %3887 = vmatprep.subr.bf16.mxu0 0
      %3888 = vmatpush1.bf16.msra.mxu0 0
      %3889 = vmatprep.subr.bf16.mxu0 0
      %3890 = vmatpush1.bf16.msra.mxu0 0
      %3891 = vmatprep.subr.bf16.mxu0 0
      %3892 = vmatpush1.bf16.msra.mxu0 0
      %3893 = vmatprep.subr.bf16.mxu0 0
      %3894 = vmatpush1.bf16.msra.mxu0 0
      %3895 = vmatprep.subr.bf16.mxu0 0
      %3896 = vmatpush1.bf16.msra.mxu0 0
      %3897 = vmatprep.subr.bf16.mxu0 0
      %3898 = vmatpush1.bf16.msra.mxu0 0
      %3899 = vmatprep.subr.bf16.mxu0 0
      %3900 = vmatpush1.bf16.msra.mxu0 0
      %3901 = vmatprep.subr.bf16.mxu0 0
      %3902 = vmatpush1.bf16.msra.mxu0 0
      %3903 = vmatprep.subr.bf16.mxu0 0
      %3904 = vmatpush1.bf16.msra.mxu0 0
      %3905 = vmatprep.subr.bf16.mxu0 0
      %3906 = vmatpush1.bf16.msra.mxu0 0
      %3907 = vmatprep.subr.bf16.mxu0 0
      %3908 = vmatpush1.bf16.msra.mxu0 0
      %3909 = vmatprep.subr.bf16.mxu0 0
      %3910 = vmatpush1.bf16.msra.mxu0 0
      %3911 = vmatprep.subr.bf16.mxu0 0
      %3912 = vmatpush1.bf16.msra.mxu0 0
      %3913 = vmatprep.mubr.bf16.mxu0 0
      %3914 = vmatmul.mubr.bf16.gmra.mrb[0].mxu0 %v3876
      %v3915 = vpop.f32.mrb[0].mxu0
      %v3916 = vadd.f32 0.0, %v3915
      %v3917 = vpop.f32.mrb[0].mxu0
      %v3918 = vpop.f32.mrb[0].mxu0
      %v3919 = vadd.f32 0.0, %v3918
      %v3920 = vpop.f32.mrb[0].mxu0
      %3921 = vdwg.mxu0
      %v3922 = vadd.f32 %v3363, %v3916
      %v3923 = vadd.f32 %v3364, %v3919
      %v3925 = vsel %vm968, %v3603, 0
      %v3928 = vsel %vm968, %v3679, 0
      %3930 = vmatprep.subr.bf16.mxu0 0
      %3931 = vmatpush1.bf16.xpose.msra.mxu0 %v3928
      %3932 = vmatprep.subr.bf16.mxu0 0
      %3933 = vmatpush1.bf16.xpose.msra.mxu0 0
      %3934 = vmatprep.subr.bf16.mxu0 0
      %3935 = vmatpush1.bf16.xpose.msra.mxu0 0
      %3936 = vmatprep.subr.bf16.mxu0 0
      %3937 = vmatpush1.bf16.xpose.msra.mxu0 0
      %3938 = vmatprep.subr.bf16.mxu0 0
      %3939 = vmatpush1.bf16.xpose.msra.mxu0 0
      %3940 = vmatprep.subr.bf16.mxu0 0
      %3941 = vmatpush1.bf16.xpose.msra.mxu0 0
      %3942 = vmatprep.subr.bf16.mxu0 0
      %3943 = vmatpush1.bf16.xpose.msra.mxu0 0
      %3944 = vmatprep.subr.bf16.mxu0 0
      %3945 = vmatpush1.bf16.xpose.msra.mxu0 0
      %3946 = vmatprep.subr.bf16.mxu0 0
      %3947 = vmatpush1.bf16.xpose.msra.mxu0 0
      %3948 = vmatprep.subr.bf16.mxu0 0
      %3949 = vmatpush1.bf16.xpose.msra.mxu0 0
      %3950 = vmatprep.subr.bf16.mxu0 0
      %3951 = vmatpush1.bf16.xpose.msra.mxu0 0
      %3952 = vmatprep.subr.bf16.mxu0 0
      %3953 = vmatpush1.bf16.xpose.msra.mxu0 0
      %3954 = vmatprep.subr.bf16.mxu0 0
      %3955 = vmatpush1.bf16.xpose.msra.mxu0 0
      %3956 = vmatprep.subr.bf16.mxu0 0
      %3957 = vmatpush1.bf16.xpose.msra.mxu0 0
      %3958 = vmatprep.subr.bf16.mxu0 0
      %3959 = vmatpush1.bf16.xpose.msra.mxu0 0
      %3960 = vmatprep.subr.bf16.mxu0 0
      %3961 = vmatpush1.bf16.xpose.msra.mxu0 0
      %3962 = vmatprep.mubr.bf16.mxu0 0
      %3963 = vmatmul.mubr.bf16.gmra.mrb[0].mxu0 %v3925
      %v3964 = vpop.f32.mrb[0].mxu0
      %v3965 = vadd.f32 0.0, %v3964
      %v3966 = vpop.f32.mrb[0].mxu0
      %v3967 = vpop.f32.mrb[0].mxu0
      %v3968 = vadd.f32 0.0, %v3967
      %v3969 = vpop.f32.mrb[0].mxu0
      %3970 = vdwg.mxu0
      %v3971 = vmul.f32 %v3965, 0.5
      %v3972 = vmul.f32 %v3968, 0.5
      %v3973 = vsel %vm1018, %v3971, -inf
      %3974 = vmax.xlane.f32.xlu0 %v3973
      %v3975 = vpop.xlane.xlu0 %3974
      %v3976 = vsel %vm1018, %v3972, -inf
      %3977 = vmax.xlane.f32.xlu0 %v3976
      %v3978 = vpop.xlane.xlu0 %3977
      %v3979 = vsub.f32 %v3971, %v3975
      %v3980 = vsub.f32 %v3972, %v3978
      %v3981 = vmul.f32 %v3979, 1.442695
      %v3982 = vpow.pop %v3981
      %v3983 = vmul.f32 %v3980, 1.442695
      %v3984 = vpow.pop %v3983
      %v3985 = vsel %vm1018, %v3982, 0.0
      %3986 = vadd.xlane.f32.xlu0 %v3985
      %v3987 = vpop.xlane.xlu0 %3986
      %v3988 = vsel %vm1018, %v3984, 0.0
      %3989 = vadd.xlane.f32.xlu0 %v3988
      %v3990 = vpop.xlane.xlu0 %3989
      %v3991 = vrcp.pop %v3987
      %v3992 = vrcp.pop %v3990
      %v3993 = vmul.f32 %v3982, %v3991
      %v3994 = vmul.f32 %v3984, %v3992
      %v3995 = vpack.c.bf16 %v3994, %v3993
      %v3997 = vsel %vm1018, %v3995, 0
      %3999 = vmatprep.subr.bf16.mxu0 0
      %4000 = vmatpush1.bf16.msra.mxu0 %v3755
      %4001 = vmatprep.subr.bf16.mxu0 0
      %4002 = vmatpush1.bf16.msra.mxu0 0
      %4003 = vmatprep.subr.bf16.mxu0 0
      %4004 = vmatpush1.bf16.msra.mxu0 0
      %4005 = vmatprep.subr.bf16.mxu0 0
      %4006 = vmatpush1.bf16.msra.mxu0 0
      %4007 = vmatprep.subr.bf16.mxu0 0
      %4008 = vmatpush1.bf16.msra.mxu0 0
      %4009 = vmatprep.subr.bf16.mxu0 0
      %4010 = vmatpush1.bf16.msra.mxu0 0
      %4011 = vmatprep.subr.bf16.mxu0 0
      %4012 = vmatpush1.bf16.msra.mxu0 0
      %4013 = vmatprep.subr.bf16.mxu0 0
      %4014 = vmatpush1.bf16.msra.mxu0 0
      %4015 = vmatprep.subr.bf16.mxu0 0
      %4016 = vmatpush1.bf16.msra.mxu0 0
      %4017 = vmatprep.subr.bf16.mxu0 0
      %4018 = vmatpush1.bf16.msra.mxu0 0
      %4019 = vmatprep.subr.bf16.mxu0 0
      %4020 = vmatpush1.bf16.msra.mxu0 0
      %4021 = vmatprep.subr.bf16.mxu0 0
      %4022 = vmatpush1.bf16.msra.mxu0 0
      %4023 = vmatprep.subr.bf16.mxu0 0
      %4024 = vmatpush1.bf16.msra.mxu0 0
      %4025 = vmatprep.subr.bf16.mxu0 0
      %4026 = vmatpush1.bf16.msra.mxu0 0
      %4027 = vmatprep.subr.bf16.mxu0 0
      %4028 = vmatpush1.bf16.msra.mxu0 0
      %4029 = vmatprep.subr.bf16.mxu0 0
      %4030 = vmatpush1.bf16.msra.mxu0 0
      %4031 = vmatprep.mubr.bf16.mxu0 0
      %4032 = vmatmul.mubr.bf16.gmra.mrb[0].mxu0 %v3997
      %v4033 = vpop.f32.mrb[0].mxu0
      %v4034 = vadd.f32 0.0, %v4033
      %v4035 = vpop.f32.mrb[0].mxu0
      %v4036 = vpop.f32.mrb[0].mxu0
      %v4037 = vadd.f32 0.0, %v4036
      %v4038 = vpop.f32.mrb[0].mxu0
      %4039 = vdwg.mxu0
      %v4040 = vpack.c.bf16 %v4037, %v4034
      %v4042 = vsel %vm968, %v4040, 0
      %4044 = vmatprep.subr.bf16.mxu0 0
      %4045 = vmatpush1.bf16.msra.mxu0 %v3879
      %4046 = vmatprep.subr.bf16.mxu0 0
      %4047 = vmatpush1.bf16.msra.mxu0 0
      %4048 = vmatprep.subr.bf16.mxu0 0
      %4049 = vmatpush1.bf16.msra.mxu0 0
      %4050 = vmatprep.subr.bf16.mxu0 0
      %4051 = vmatpush1.bf16.msra.mxu0 0
      %4052 = vmatprep.subr.bf16.mxu0 0
      %4053 = vmatpush1.bf16.msra.mxu0 0
      %4054 = vmatprep.subr.bf16.mxu0 0
      %4055 = vmatpush1.bf16.msra.mxu0 0
      %4056 = vmatprep.subr.bf16.mxu0 0
      %4057 = vmatpush1.bf16.msra.mxu0 0
      %4058 = vmatprep.subr.bf16.mxu0 0
      %4059 = vmatpush1.bf16.msra.mxu0 0
      %4060 = vmatprep.subr.bf16.mxu0 0
      %4061 = vmatpush1.bf16.msra.mxu0 0
      %4062 = vmatprep.subr.bf16.mxu0 0
      %4063 = vmatpush1.bf16.msra.mxu0 0
      %4064 = vmatprep.subr.bf16.mxu0 0
      %4065 = vmatpush1.bf16.msra.mxu0 0
      %4066 = vmatprep.subr.bf16.mxu0 0
      %4067 = vmatpush1.bf16.msra.mxu0 0
      %4068 = vmatprep.subr.bf16.mxu0 0
      %4069 = vmatpush1.bf16.msra.mxu0 0
      %4070 = vmatprep.subr.bf16.mxu0 0
      %4071 = vmatpush1.bf16.msra.mxu0 0
      %4072 = vmatprep.subr.bf16.mxu0 0
      %4073 = vmatpush1.bf16.msra.mxu0 0
      %4074 = vmatprep.subr.bf16.mxu0 0
      %4075 = vmatpush1.bf16.msra.mxu0 0
      %4076 = vmatprep.mubr.bf16.mxu0 0
      %4077 = vmatmul.mubr.bf16.gmra.mrb[0].mxu0 %v4042
      %v4078 = vpop.f32.mrb[0].mxu0
      %v4079 = vadd.f32 0.0, %v4078
      %v4080 = vpop.f32.mrb[0].mxu0
      %v4081 = vpop.f32.mrb[0].mxu0
      %v4082 = vadd.f32 0.0, %v4081
      %v4083 = vpop.f32.mrb[0].mxu0
      %4084 = vdwg.mxu0
      %v4085 = vadd.f32 %v3526, %v4079
      %v4086 = vadd.f32 %v3527, %v4082
      %s4087 = scalar_lea.vmem %s672, 96
      %v4088 = vld [vmem:[%s4087] sm:$0xf]
      %v4089 = vld [vmem:[%s4087 + $0x4] sm:$0xf]
      %v4090 = vld [vmem:[%s4087 + $0x8] sm:$0xf]
      %v4091 = vld [vmem:[%s4087 + $0xc] sm:$0xf]
      %s4092 = scalar_lea.vmem %s676, 6
      %v4093 = vld [vmem:[%s4092] sm:$0x1]
      %v4095 = vlaneseq
      %v4096 = vshrl.u32 %v4095, 7
      %v4097 = vsub.s32 0, %v4096
      %v4098 = vrot.slane %v4093, %v4097
      %v4104 = vunpack.c.l.b16 %v4088
      %v4105 = vunpack.c.l.b16 %v4089
      %v4106 = vunpack.c.l.b16 %v4090
      %v4107 = vunpack.c.l.b16 %v4091
      %v4108 = vpack.c.b16 %v4105, %v4104
      %v4109 = vpack.c.b16 %v4107, %v4106
      %4112 = vmatprep.subr.bf16.mxu0 0
      %4113 = vmatpush1.bf16.msra.mxu0 %v4108
      %4114 = vmatprep.subr.bf16.mxu0 0
      %4115 = vmatpush1.bf16.msra.mxu0 %v4109
      %4116 = vmatprep.subr.bf16.mxu0 0
      %4117 = vmatpush1.bf16.msra.mxu0 0
      %4118 = vmatprep.subr.bf16.mxu0 0
      %4119 = vmatpush1.bf16.msra.mxu0 0
      %4120 = vmatprep.subr.bf16.mxu0 0
      %4121 = vmatpush1.bf16.msra.mxu0 0
      %4122 = vmatprep.subr.bf16.mxu0 0
      %4123 = vmatpush1.bf16.msra.mxu0 0
      %4124 = vmatprep.subr.bf16.mxu0 0
      %4125 = vmatpush1.bf16.msra.mxu0 0
      %4126 = vmatprep.subr.bf16.mxu0 0
      %4127 = vmatpush1.bf16.msra.mxu0 0
      %4128 = vmatprep.subr.bf16.mxu0 0
      %4129 = vmatpush1.bf16.msra.mxu0 0
      %4130 = vmatprep.subr.bf16.mxu0 0
      %4131 = vmatpush1.bf16.msra.mxu0 0
      %4132 = vmatprep.subr.bf16.mxu0 0
      %4133 = vmatpush1.bf16.msra.mxu0 0
      %4134 = vmatprep.subr.bf16.mxu0 0
      %4135 = vmatpush1.bf16.msra.mxu0 0
      %4136 = vmatprep.subr.bf16.mxu0 0
      %4137 = vmatpush1.bf16.msra.mxu0 0
      %4138 = vmatprep.subr.bf16.mxu0 0
      %4139 = vmatpush1.bf16.msra.mxu0 0
      %4140 = vmatprep.subr.bf16.mxu0 0
      %4141 = vmatpush1.bf16.msra.mxu0 0
      %4142 = vmatprep.subr.bf16.mxu0 0
      %4143 = vmatpush1.bf16.msra.mxu0 0
      %4144 = vmatprep.mubr.bf16.mxu0 0
      %4145 = vmatmul.mubr.bf16.gmra.mrb[0].mxu0 %v759
      %v4146 = vpop.f32.mrb[0].mxu0
      %v4147 = vadd.f32 %v4098, %v4146
      %v4148 = vpop.f32.mrb[0].mxu0
      %v4149 = vpop.f32.mrb[0].mxu0
      %v4150 = vadd.f32 %v4098, %v4149
      %v4151 = vpop.f32.mrb[0].mxu0
      %4152 = vmatprep.mubr.bf16.mxu0 0
      %4153 = vmatmul.mubr.bf16.gmra.mrb[0].mxu0 %v762
      %v4154 = vpop.f32.mrb[0].mxu0
      %v4155 = vadd.f32 %v4098, %v4154
      %v4156 = vpop.f32.mrb[0].mxu0
      %v4157 = vpop.f32.mrb[0].mxu0
      %v4158 = vadd.f32 %v4098, %v4157
      %v4159 = vpop.f32.mrb[0].mxu0
      %4160 = vdwg.mxu0
      %v4161 = vpack.c.bf16 %v4150, %v4147
      %v4162 = vpack.c.bf16 %v4158, %v4155
      %s4163 = scalar_lea.vmem %s672, 224
      %v4164 = vld [vmem:[%s4163] sm:$0xf]
      %v4165 = vld [vmem:[%s4163 + $0x4] sm:$0xf]
      %v4166 = vld [vmem:[%s4163 + $0x8] sm:$0xf]
      %v4167 = vld [vmem:[%s4163 + $0xc] sm:$0xf]
      %s4168 = scalar_lea.vmem %s676, 14
      %v4169 = vld [vmem:[%s4168] sm:$0x1]
      %v4171 = vlaneseq
      %v4172 = vshrl.u32 %v4171, 7
      %v4173 = vsub.s32 0, %v4172
      %v4174 = vrot.slane %v4169, %v4173
      %v4180 = vunpack.c.l.b16 %v4164
      %v4181 = vunpack.c.l.b16 %v4165
      %v4182 = vunpack.c.l.b16 %v4166
      %v4183 = vunpack.c.l.b16 %v4167
      %v4184 = vpack.c.b16 %v4181, %v4180
      %v4185 = vpack.c.b16 %v4183, %v4182
      %4188 = vmatprep.subr.bf16.mxu0 0
      %4189 = vmatpush1.bf16.msra.mxu0 %v4184
      %4190 = vmatprep.subr.bf16.mxu0 0
      %4191 = vmatpush1.bf16.msra.mxu0 %v4185
      %4192 = vmatprep.subr.bf16.mxu0 0
      %4193 = vmatpush1.bf16.msra.mxu0 0
      %4194 = vmatprep.subr.bf16.mxu0 0
      %4195 = vmatpush1.bf16.msra.mxu0 0
      %4196 = vmatprep.subr.bf16.mxu0 0
      %4197 = vmatpush1.bf16.msra.mxu0 0
      %4198 = vmatprep.subr.bf16.mxu0 0
      %4199 = vmatpush1.bf16.msra.mxu0 0
      %4200 = vmatprep.subr.bf16.mxu0 0
      %4201 = vmatpush1.bf16.msra.mxu0 0
      %4202 = vmatprep.subr.bf16.mxu0 0
      %4203 = vmatpush1.bf16.msra.mxu0 0
      %4204 = vmatprep.subr.bf16.mxu0 0
      %4205 = vmatpush1.bf16.msra.mxu0 0
      %4206 = vmatprep.subr.bf16.mxu0 0
      %4207 = vmatpush1.bf16.msra.mxu0 0
      %4208 = vmatprep.subr.bf16.mxu0 0
      %4209 = vmatpush1.bf16.msra.mxu0 0
      %4210 = vmatprep.subr.bf16.mxu0 0
      %4211 = vmatpush1.bf16.msra.mxu0 0
      %4212 = vmatprep.subr.bf16.mxu0 0
      %4213 = vmatpush1.bf16.msra.mxu0 0
      %4214 = vmatprep.subr.bf16.mxu0 0
      %4215 = vmatpush1.bf16.msra.mxu0 0
      %4216 = vmatprep.subr.bf16.mxu0 0
      %4217 = vmatpush1.bf16.msra.mxu0 0
      %4218 = vmatprep.subr.bf16.mxu0 0
      %4219 = vmatpush1.bf16.msra.mxu0 0
      %4220 = vmatprep.mubr.bf16.mxu0 0
      %4221 = vmatmul.mubr.bf16.gmra.mrb[0].mxu0 %v759
      %v4222 = vpop.f32.mrb[0].mxu0
      %v4223 = vadd.f32 %v4174, %v4222
      %v4224 = vpop.f32.mrb[0].mxu0
      %v4225 = vpop.f32.mrb[0].mxu0
      %v4226 = vadd.f32 %v4174, %v4225
      %v4227 = vpop.f32.mrb[0].mxu0
      %4228 = vmatprep.mubr.bf16.mxu0 0
      %4229 = vmatmul.mubr.bf16.gmra.mrb[0].mxu0 %v762
      %v4230 = vpop.f32.mrb[0].mxu0
      %v4231 = vadd.f32 %v4174, %v4230
      %v4232 = vpop.f32.mrb[0].mxu0
      %v4233 = vpop.f32.mrb[0].mxu0
      %v4234 = vadd.f32 %v4174, %v4233
      %v4235 = vpop.f32.mrb[0].mxu0
      %4236 = vdwg.mxu0
      %v4237 = vpack.c.bf16 %v4226, %v4223
      %v4238 = vpack.c.bf16 %v4234, %v4231
      %s4239 = scalar_lea.vmem %s672, 352
      %v4240 = vld [vmem:[%s4239] sm:$0xf]
      %v4241 = vld [vmem:[%s4239 + $0x4] sm:$0xf]
      %v4242 = vld [vmem:[%s4239 + $0x8] sm:$0xf]
      %v4243 = vld [vmem:[%s4239 + $0xc] sm:$0xf]
      %s4244 = scalar_lea.vmem %s676, 22
      %v4245 = vld [vmem:[%s4244] sm:$0x1]
      %v4247 = vlaneseq
      %v4248 = vshrl.u32 %v4247, 7
      %v4249 = vsub.s32 0, %v4248
      %v4250 = vrot.slane %v4245, %v4249
      %v4256 = vunpack.c.l.b16 %v4240
      %v4257 = vunpack.c.l.b16 %v4241
      %v4258 = vunpack.c.l.b16 %v4242
      %v4259 = vunpack.c.l.b16 %v4243
      %v4260 = vpack.c.b16 %v4257, %v4256
      %v4261 = vpack.c.b16 %v4259, %v4258
      %4264 = vmatprep.subr.bf16.mxu0 0
      %4265 = vmatpush1.bf16.msra.mxu0 %v4260
      %4266 = vmatprep.subr.bf16.mxu0 0
      %4267 = vmatpush1.bf16.msra.mxu0 %v4261
      %4268 = vmatprep.subr.bf16.mxu0 0
      %4269 = vmatpush1.bf16.msra.mxu0 0
      %4270 = vmatprep.subr.bf16.mxu0 0
      %4271 = vmatpush1.bf16.msra.mxu0 0
      %4272 = vmatprep.subr.bf16.mxu0 0
      %4273 = vmatpush1.bf16.msra.mxu0 0
      %4274 = vmatprep.subr.bf16.mxu0 0
      %4275 = vmatpush1.bf16.msra.mxu0 0
      %4276 = vmatprep.subr.bf16.mxu0 0
      %4277 = vmatpush1.bf16.msra.mxu0 0
      %4278 = vmatprep.subr.bf16.mxu0 0
      %4279 = vmatpush1.bf16.msra.mxu0 0
      %4280 = vmatprep.subr.bf16.mxu0 0
      %4281 = vmatpush1.bf16.msra.mxu0 0
      %4282 = vmatprep.subr.bf16.mxu0 0
      %4283 = vmatpush1.bf16.msra.mxu0 0
      %4284 = vmatprep.subr.bf16.mxu0 0
      %4285 = vmatpush1.bf16.msra.mxu0 0
      %4286 = vmatprep.subr.bf16.mxu0 0
      %4287 = vmatpush1.bf16.msra.mxu0 0
      %4288 = vmatprep.subr.bf16.mxu0 0
      %4289 = vmatpush1.bf16.msra.mxu0 0
      %4290 = vmatprep.subr.bf16.mxu0 0
      %4291 = vmatpush1.bf16.msra.mxu0 0
      %4292 = vmatprep.subr.bf16.mxu0 0
      %4293 = vmatpush1.bf16.msra.mxu0 0
      %4294 = vmatprep.subr.bf16.mxu0 0
      %4295 = vmatpush1.bf16.msra.mxu0 0
      %4296 = vmatprep.mubr.bf16.mxu0 0
      %4297 = vmatmul.mubr.bf16.gmra.mrb[0].mxu0 %v759
      %v4298 = vpop.f32.mrb[0].mxu0
      %v4299 = vadd.f32 %v4250, %v4298
      %v4300 = vpop.f32.mrb[0].mxu0
      %v4301 = vpop.f32.mrb[0].mxu0
      %v4302 = vadd.f32 %v4250, %v4301
      %v4303 = vpop.f32.mrb[0].mxu0
      %4304 = vmatprep.mubr.bf16.mxu0 0
      %4305 = vmatmul.mubr.bf16.gmra.mrb[0].mxu0 %v762
      %v4306 = vpop.f32.mrb[0].mxu0
      %v4307 = vadd.f32 %v4250, %v4306
      %v4308 = vpop.f32.mrb[0].mxu0
      %v4309 = vpop.f32.mrb[0].mxu0
      %v4310 = vadd.f32 %v4250, %v4309
      %v4311 = vpop.f32.mrb[0].mxu0
      %4312 = vdwg.mxu0
      %v4313 = vpack.c.bf16 %v4302, %v4299
      %v4314 = vpack.c.bf16 %v4310, %v4307
      %s4315 = scalar_lea.vmem %s681, 12
      %v4316 = vld [vmem:[%s4315] sm:$0x3]
      %v4318 = vsel %vm968, %v4161, 0
      %v4321 = vsel %vm968, %v4237, 0
      %4323 = vmatprep.subr.bf16.mxu0 0
      %4324 = vmatpush1.bf16.xpose.msra.mxu0 %v4321
      %4325 = vmatprep.subr.bf16.mxu0 0
      %4326 = vmatpush1.bf16.xpose.msra.mxu0 0
      %4327 = vmatprep.subr.bf16.mxu0 0
      %4328 = vmatpush1.bf16.xpose.msra.mxu0 0
      %4329 = vmatprep.subr.bf16.mxu0 0
      %4330 = vmatpush1.bf16.xpose.msra.mxu0 0
      %4331 = vmatprep.subr.bf16.mxu0 0
      %4332 = vmatpush1.bf16.xpose.msra.mxu0 0
      %4333 = vmatprep.subr.bf16.mxu0 0
      %4334 = vmatpush1.bf16.xpose.msra.mxu0 0
      %4335 = vmatprep.subr.bf16.mxu0 0
      %4336 = vmatpush1.bf16.xpose.msra.mxu0 0
      %4337 = vmatprep.subr.bf16.mxu0 0
      %4338 = vmatpush1.bf16.xpose.msra.mxu0 0
      %4339 = vmatprep.subr.bf16.mxu0 0
      %4340 = vmatpush1.bf16.xpose.msra.mxu0 0
      %4341 = vmatprep.subr.bf16.mxu0 0
      %4342 = vmatpush1.bf16.xpose.msra.mxu0 0
      %4343 = vmatprep.subr.bf16.mxu0 0
      %4344 = vmatpush1.bf16.xpose.msra.mxu0 0
      %4345 = vmatprep.subr.bf16.mxu0 0
      %4346 = vmatpush1.bf16.xpose.msra.mxu0 0
      %4347 = vmatprep.subr.bf16.mxu0 0
      %4348 = vmatpush1.bf16.xpose.msra.mxu0 0
      %4349 = vmatprep.subr.bf16.mxu0 0
      %4350 = vmatpush1.bf16.xpose.msra.mxu0 0
      %4351 = vmatprep.subr.bf16.mxu0 0
      %4352 = vmatpush1.bf16.xpose.msra.mxu0 0
      %4353 = vmatprep.subr.bf16.mxu0 0
      %4354 = vmatpush1.bf16.xpose.msra.mxu0 0
      %4355 = vmatprep.mubr.bf16.mxu0 0
      %4356 = vmatmul.mubr.bf16.gmra.mrb[0].mxu0 %v4318
      %v4357 = vpop.f32.mrb[0].mxu0
      %v4358 = vadd.f32 0.0, %v4357
      %v4359 = vpop.f32.mrb[0].mxu0
      %v4360 = vpop.f32.mrb[0].mxu0
      %v4361 = vadd.f32 0.0, %v4360
      %v4362 = vpop.f32.mrb[0].mxu0
      %4363 = vdwg.mxu0
      %v4364 = vmul.f32 %v4358, 0.5
      %v4365 = vmul.f32 %v4361, 0.5
      %v4366 = vsel %vm1018, %v4364, -inf
      %4367 = vmax.xlane.f32.xlu0 %v4366
      %v4368 = vpop.xlane.xlu0 %4367
      %v4369 = vsel %vm1018, %v4365, -inf
      %4370 = vmax.xlane.f32.xlu0 %v4369
      %v4371 = vpop.xlane.xlu0 %4370
      %v4372 = vsub.f32 %v4364, %v4368
      %v4373 = vsub.f32 %v4365, %v4371
      %v4374 = vmul.f32 %v4372, 1.442695
      %v4375 = vpow.pop %v4374
      %v4376 = vmul.f32 %v4373, 1.442695
      %v4377 = vpow.pop %v4376
      %v4378 = vsel %vm1018, %v4375, 0.0
      %4379 = vadd.xlane.f32.xlu0 %v4378
      %v4380 = vpop.xlane.xlu0 %4379
      %v4381 = vsel %vm1018, %v4377, 0.0
      %4382 = vadd.xlane.f32.xlu0 %v4381
      %v4383 = vpop.xlane.xlu0 %4382
      %v4384 = vrcp.pop %v4380
      %v4385 = vrcp.pop %v4383
      %v4386 = vmul.f32 %v4375, %v4384
      %v4387 = vmul.f32 %v4377, %v4385
      %v4388 = vpack.c.bf16 %v4387, %v4386
      %v4390 = vsel %vm1018, %v4388, 0
      %4392 = vmatprep.subr.bf16.mxu0 0
      %4393 = vmatpush1.bf16.msra.mxu0 %v4313
      %4394 = vmatprep.subr.bf16.mxu0 0
      %4395 = vmatpush1.bf16.msra.mxu0 0
      %4396 = vmatprep.subr.bf16.mxu0 0
      %4397 = vmatpush1.bf16.msra.mxu0 0
      %4398 = vmatprep.subr.bf16.mxu0 0
      %4399 = vmatpush1.bf16.msra.mxu0 0
      %4400 = vmatprep.subr.bf16.mxu0 0
      %4401 = vmatpush1.bf16.msra.mxu0 0
      %4402 = vmatprep.subr.bf16.mxu0 0
      %4403 = vmatpush1.bf16.msra.mxu0 0
      %4404 = vmatprep.subr.bf16.mxu0 0
      %4405 = vmatpush1.bf16.msra.mxu0 0
      %4406 = vmatprep.subr.bf16.mxu0 0
      %4407 = vmatpush1.bf16.msra.mxu0 0
      %4408 = vmatprep.subr.bf16.mxu0 0
      %4409 = vmatpush1.bf16.msra.mxu0 0
      %4410 = vmatprep.subr.bf16.mxu0 0
      %4411 = vmatpush1.bf16.msra.mxu0 0
      %4412 = vmatprep.subr.bf16.mxu0 0
      %4413 = vmatpush1.bf16.msra.mxu0 0
      %4414 = vmatprep.subr.bf16.mxu0 0
      %4415 = vmatpush1.bf16.msra.mxu0 0
      %4416 = vmatprep.subr.bf16.mxu0 0
      %4417 = vmatpush1.bf16.msra.mxu0 0
      %4418 = vmatprep.subr.bf16.mxu0 0
      %4419 = vmatpush1.bf16.msra.mxu0 0
      %4420 = vmatprep.subr.bf16.mxu0 0
      %4421 = vmatpush1.bf16.msra.mxu0 0
      %4422 = vmatprep.subr.bf16.mxu0 0
      %4423 = vmatpush1.bf16.msra.mxu0 0
      %4424 = vmatprep.mubr.bf16.mxu0 0
      %4425 = vmatmul.mubr.bf16.gmra.mrb[0].mxu0 %v4390
      %v4426 = vpop.f32.mrb[0].mxu0
      %v4427 = vadd.f32 0.0, %v4426
      %v4428 = vpop.f32.mrb[0].mxu0
      %v4429 = vpop.f32.mrb[0].mxu0
      %v4430 = vadd.f32 0.0, %v4429
      %v4431 = vpop.f32.mrb[0].mxu0
      %4432 = vdwg.mxu0
      %v4433 = vpack.c.bf16 %v4430, %v4427
      %v4435 = vsel %vm968, %v4433, 0
      %v4438 = vsel %vm1554, %v4316, 0
      %4440 = vmatprep.subr.bf16.mxu0 0
      %4441 = vmatpush1.bf16.msra.mxu0 %v4438
      %4442 = vmatprep.subr.bf16.mxu0 0
      %4443 = vmatpush1.bf16.msra.mxu0 0
      %4444 = vmatprep.subr.bf16.mxu0 0
      %4445 = vmatpush1.bf16.msra.mxu0 0
      %4446 = vmatprep.subr.bf16.mxu0 0
      %4447 = vmatpush1.bf16.msra.mxu0 0
      %4448 = vmatprep.subr.bf16.mxu0 0
      %4449 = vmatpush1.bf16.msra.mxu0 0
      %4450 = vmatprep.subr.bf16.mxu0 0
      %4451 = vmatpush1.bf16.msra.mxu0 0
      %4452 = vmatprep.subr.bf16.mxu0 0
      %4453 = vmatpush1.bf16.msra.mxu0 0
      %4454 = vmatprep.subr.bf16.mxu0 0
      %4455 = vmatpush1.bf16.msra.mxu0 0
      %4456 = vmatprep.subr.bf16.mxu0 0
      %4457 = vmatpush1.bf16.msra.mxu0 0
      %4458 = vmatprep.subr.bf16.mxu0 0
      %4459 = vmatpush1.bf16.msra.mxu0 0
      %4460 = vmatprep.subr.bf16.mxu0 0
      %4461 = vmatpush1.bf16.msra.mxu0 0
      %4462 = vmatprep.subr.bf16.mxu0 0
      %4463 = vmatpush1.bf16.msra.mxu0 0
      %4464 = vmatprep.subr.bf16.mxu0 0
      %4465 = vmatpush1.bf16.msra.mxu0 0
      %4466 = vmatprep.subr.bf16.mxu0 0
      %4467 = vmatpush1.bf16.msra.mxu0 0
      %4468 = vmatprep.subr.bf16.mxu0 0
      %4469 = vmatpush1.bf16.msra.mxu0 0
      %4470 = vmatprep.subr.bf16.mxu0 0
      %4471 = vmatpush1.bf16.msra.mxu0 0
      %4472 = vmatprep.mubr.bf16.mxu0 0
      %4473 = vmatmul.mubr.bf16.gmra.mrb[0].mxu0 %v4435
      %v4474 = vpop.f32.mrb[0].mxu0
      %v4475 = vadd.f32 0.0, %v4474
      %v4476 = vpop.f32.mrb[0].mxu0
      %v4477 = vpop.f32.mrb[0].mxu0
      %v4478 = vadd.f32 0.0, %v4477
      %v4479 = vpop.f32.mrb[0].mxu0
      %4480 = vdwg.mxu0
      %v4481 = vadd.f32 %v3922, %v4475
      %v4482 = vadd.f32 %v3923, %v4478
      %v4484 = vsel %vm968, %v4162, 0
      %v4487 = vsel %vm968, %v4238, 0
      %4489 = vmatprep.subr.bf16.mxu0 0
      %4490 = vmatpush1.bf16.xpose.msra.mxu0 %v4487
      %4491 = vmatprep.subr.bf16.mxu0 0
      %4492 = vmatpush1.bf16.xpose.msra.mxu0 0
      %4493 = vmatprep.subr.bf16.mxu0 0
      %4494 = vmatpush1.bf16.xpose.msra.mxu0 0
      %4495 = vmatprep.subr.bf16.mxu0 0
      %4496 = vmatpush1.bf16.xpose.msra.mxu0 0
      %4497 = vmatprep.subr.bf16.mxu0 0
      %4498 = vmatpush1.bf16.xpose.msra.mxu0 0
      %4499 = vmatprep.subr.bf16.mxu0 0
      %4500 = vmatpush1.bf16.xpose.msra.mxu0 0
      %4501 = vmatprep.subr.bf16.mxu0 0
      %4502 = vmatpush1.bf16.xpose.msra.mxu0 0
      %4503 = vmatprep.subr.bf16.mxu0 0
      %4504 = vmatpush1.bf16.xpose.msra.mxu0 0
      %4505 = vmatprep.subr.bf16.mxu0 0
      %4506 = vmatpush1.bf16.xpose.msra.mxu0 0
      %4507 = vmatprep.subr.bf16.mxu0 0
      %4508 = vmatpush1.bf16.xpose.msra.mxu0 0
      %4509 = vmatprep.subr.bf16.mxu0 0
      %4510 = vmatpush1.bf16.xpose.msra.mxu0 0
      %4511 = vmatprep.subr.bf16.mxu0 0
      %4512 = vmatpush1.bf16.xpose.msra.mxu0 0
      %4513 = vmatprep.subr.bf16.mxu0 0
      %4514 = vmatpush1.bf16.xpose.msra.mxu0 0
      %4515 = vmatprep.subr.bf16.mxu0 0
      %4516 = vmatpush1.bf16.xpose.msra.mxu0 0
      %4517 = vmatprep.subr.bf16.mxu0 0
      %4518 = vmatpush1.bf16.xpose.msra.mxu0 0
      %4519 = vmatprep.subr.bf16.mxu0 0
      %4520 = vmatpush1.bf16.xpose.msra.mxu0 0
      %4521 = vmatprep.mubr.bf16.mxu0 0
      %4522 = vmatmul.mubr.bf16.gmra.mrb[0].mxu0 %v4484
      %v4523 = vpop.f32.mrb[0].mxu0
      %v4524 = vadd.f32 0.0, %v4523
      %v4525 = vpop.f32.mrb[0].mxu0
      %v4526 = vpop.f32.mrb[0].mxu0
      %v4527 = vadd.f32 0.0, %v4526
      %v4528 = vpop.f32.mrb[0].mxu0
      %4529 = vdwg.mxu0
      %v4530 = vmul.f32 %v4524, 0.5
      %v4531 = vmul.f32 %v4527, 0.5
      %v4532 = vsel %vm1018, %v4530, -inf
      %4533 = vmax.xlane.f32.xlu0 %v4532
      %v4534 = vpop.xlane.xlu0 %4533
      %v4535 = vsel %vm1018, %v4531, -inf
      %4536 = vmax.xlane.f32.xlu0 %v4535
      %v4537 = vpop.xlane.xlu0 %4536
      %v4538 = vsub.f32 %v4530, %v4534
      %v4539 = vsub.f32 %v4531, %v4537
      %v4540 = vmul.f32 %v4538, 1.442695
      %v4541 = vpow.pop %v4540
      %v4542 = vmul.f32 %v4539, 1.442695
      %v4543 = vpow.pop %v4542
      %v4544 = vsel %vm1018, %v4541, 0.0
      %4545 = vadd.xlane.f32.xlu0 %v4544
      %v4546 = vpop.xlane.xlu0 %4545
      %v4547 = vsel %vm1018, %v4543, 0.0
      %4548 = vadd.xlane.f32.xlu0 %v4547
      %v4549 = vpop.xlane.xlu0 %4548
      %v4550 = vrcp.pop %v4546
      %v4551 = vrcp.pop %v4549
      %v4552 = vmul.f32 %v4541, %v4550
      %v4553 = vmul.f32 %v4543, %v4551
      %v4554 = vpack.c.bf16 %v4553, %v4552
      %v4556 = vsel %vm1018, %v4554, 0
      %4558 = vmatprep.subr.bf16.mxu0 0
      %4559 = vmatpush1.bf16.msra.mxu0 %v4314
      %4560 = vmatprep.subr.bf16.mxu0 0
      %4561 = vmatpush1.bf16.msra.mxu0 0
      %4562 = vmatprep.subr.bf16.mxu0 0
      %4563 = vmatpush1.bf16.msra.mxu0 0
      %4564 = vmatprep.subr.bf16.mxu0 0
      %4565 = vmatpush1.bf16.msra.mxu0 0
      %4566 = vmatprep.subr.bf16.mxu0 0
      %4567 = vmatpush1.bf16.msra.mxu0 0
      %4568 = vmatprep.subr.bf16.mxu0 0
      %4569 = vmatpush1.bf16.msra.mxu0 0
      %4570 = vmatprep.subr.bf16.mxu0 0
      %4571 = vmatpush1.bf16.msra.mxu0 0
      %4572 = vmatprep.subr.bf16.mxu0 0
      %4573 = vmatpush1.bf16.msra.mxu0 0
      %4574 = vmatprep.subr.bf16.mxu0 0
      %4575 = vmatpush1.bf16.msra.mxu0 0
      %4576 = vmatprep.subr.bf16.mxu0 0
      %4577 = vmatpush1.bf16.msra.mxu0 0
      %4578 = vmatprep.subr.bf16.mxu0 0
      %4579 = vmatpush1.bf16.msra.mxu0 0
      %4580 = vmatprep.subr.bf16.mxu0 0
      %4581 = vmatpush1.bf16.msra.mxu0 0
      %4582 = vmatprep.subr.bf16.mxu0 0
      %4583 = vmatpush1.bf16.msra.mxu0 0
      %4584 = vmatprep.subr.bf16.mxu0 0
      %4585 = vmatpush1.bf16.msra.mxu0 0
      %4586 = vmatprep.subr.bf16.mxu0 0
      %4587 = vmatpush1.bf16.msra.mxu0 0
      %4588 = vmatprep.subr.bf16.mxu0 0
      %4589 = vmatpush1.bf16.msra.mxu0 0
      %4590 = vmatprep.mubr.bf16.mxu0 0
      %4591 = vmatmul.mubr.bf16.gmra.mrb[0].mxu0 %v4556
      %v4592 = vpop.f32.mrb[0].mxu0
      %v4593 = vadd.f32 0.0, %v4592
      %v4594 = vpop.f32.mrb[0].mxu0
      %v4595 = vpop.f32.mrb[0].mxu0
      %v4596 = vadd.f32 0.0, %v4595
      %v4597 = vpop.f32.mrb[0].mxu0
      %4598 = vdwg.mxu0
      %v4599 = vpack.c.bf16 %v4596, %v4593
      %v4601 = vsel %vm968, %v4599, 0
      %4603 = vmatprep.subr.bf16.mxu0 0
      %4604 = vmatpush1.bf16.msra.mxu0 %v4438
      %4605 = vmatprep.subr.bf16.mxu0 0
      %4606 = vmatpush1.bf16.msra.mxu0 0
      %4607 = vmatprep.subr.bf16.mxu0 0
      %4608 = vmatpush1.bf16.msra.mxu0 0
      %4609 = vmatprep.subr.bf16.mxu0 0
      %4610 = vmatpush1.bf16.msra.mxu0 0
      %4611 = vmatprep.subr.bf16.mxu0 0
      %4612 = vmatpush1.bf16.msra.mxu0 0
      %4613 = vmatprep.subr.bf16.mxu0 0
      %4614 = vmatpush1.bf16.msra.mxu0 0
      %4615 = vmatprep.subr.bf16.mxu0 0
      %4616 = vmatpush1.bf16.msra.mxu0 0
      %4617 = vmatprep.subr.bf16.mxu0 0
      %4618 = vmatpush1.bf16.msra.mxu0 0
      %4619 = vmatprep.subr.bf16.mxu0 0
      %4620 = vmatpush1.bf16.msra.mxu0 0
      %4621 = vmatprep.subr.bf16.mxu0 0
      %4622 = vmatpush1.bf16.msra.mxu0 0
      %4623 = vmatprep.subr.bf16.mxu0 0
      %4624 = vmatpush1.bf16.msra.mxu0 0
      %4625 = vmatprep.subr.bf16.mxu0 0
      %4626 = vmatpush1.bf16.msra.mxu0 0
      %4627 = vmatprep.subr.bf16.mxu0 0
      %4628 = vmatpush1.bf16.msra.mxu0 0
      %4629 = vmatprep.subr.bf16.mxu0 0
      %4630 = vmatpush1.bf16.msra.mxu0 0
      %4631 = vmatprep.subr.bf16.mxu0 0
      %4632 = vmatpush1.bf16.msra.mxu0 0
      %4633 = vmatprep.subr.bf16.mxu0 0
      %4634 = vmatpush1.bf16.msra.mxu0 0
      %4635 = vmatprep.mubr.bf16.mxu0 0
      %4636 = vmatmul.mubr.bf16.gmra.mrb[0].mxu0 %v4601
      %v4637 = vpop.f32.mrb[0].mxu0
      %v4638 = vadd.f32 0.0, %v4637
      %v4639 = vpop.f32.mrb[0].mxu0
      %v4640 = vpop.f32.mrb[0].mxu0
      %v4641 = vadd.f32 0.0, %v4640
      %v4642 = vpop.f32.mrb[0].mxu0
      %4643 = vdwg.mxu0
      %v4644 = vadd.f32 %v4085, %v4638
      %v4645 = vadd.f32 %v4086, %v4641
      %s4646 = scalar_lea.vmem %s672, 112
      %v4647 = vld [vmem:[%s4646] sm:$0xf]
      %v4648 = vld [vmem:[%s4646 + $0x4] sm:$0xf]
      %v4649 = vld [vmem:[%s4646 + $0x8] sm:$0xf]
      %v4650 = vld [vmem:[%s4646 + $0xc] sm:$0xf]
      %s4651 = scalar_lea.vmem %s676, 7
      %v4652 = vld [vmem:[%s4651] sm:$0x1]
      %v4654 = vlaneseq
      %v4655 = vshrl.u32 %v4654, 7
      %v4656 = vsub.s32 0, %v4655
      %v4657 = vrot.slane %v4652, %v4656
      %v4663 = vunpack.c.l.b16 %v4647
      %v4664 = vunpack.c.l.b16 %v4648
      %v4665 = vunpack.c.l.b16 %v4649
      %v4666 = vunpack.c.l.b16 %v4650
      %v4667 = vpack.c.b16 %v4664, %v4663
      %v4668 = vpack.c.b16 %v4666, %v4665
      %4671 = vmatprep.subr.bf16.mxu0 0
      %4672 = vmatpush1.bf16.msra.mxu0 %v4667
      %4673 = vmatprep.subr.bf16.mxu0 0
      %4674 = vmatpush1.bf16.msra.mxu0 %v4668
      %4675 = vmatprep.subr.bf16.mxu0 0
      %4676 = vmatpush1.bf16.msra.mxu0 0
      %4677 = vmatprep.subr.bf16.mxu0 0
      %4678 = vmatpush1.bf16.msra.mxu0 0
      %4679 = vmatprep.subr.bf16.mxu0 0
      %4680 = vmatpush1.bf16.msra.mxu0 0
      %4681 = vmatprep.subr.bf16.mxu0 0
      %4682 = vmatpush1.bf16.msra.mxu0 0
      %4683 = vmatprep.subr.bf16.mxu0 0
      %4684 = vmatpush1.bf16.msra.mxu0 0
      %4685 = vmatprep.subr.bf16.mxu0 0
      %4686 = vmatpush1.bf16.msra.mxu0 0
      %4687 = vmatprep.subr.bf16.mxu0 0
      %4688 = vmatpush1.bf16.msra.mxu0 0
      %4689 = vmatprep.subr.bf16.mxu0 0
      %4690 = vmatpush1.bf16.msra.mxu0 0
      %4691 = vmatprep.subr.bf16.mxu0 0
      %4692 = vmatpush1.bf16.msra.mxu0 0
      %4693 = vmatprep.subr.bf16.mxu0 0
      %4694 = vmatpush1.bf16.msra.mxu0 0
      %4695 = vmatprep.subr.bf16.mxu0 0
      %4696 = vmatpush1.bf16.msra.mxu0 0
      %4697 = vmatprep.subr.bf16.mxu0 0
      %4698 = vmatpush1.bf16.msra.mxu0 0
      %4699 = vmatprep.subr.bf16.mxu0 0
      %4700 = vmatpush1.bf16.msra.mxu0 0
      %4701 = vmatprep.subr.bf16.mxu0 0
      %4702 = vmatpush1.bf16.msra.mxu0 0
      %4703 = vmatprep.mubr.bf16.mxu0 0
      %4704 = vmatmul.mubr.bf16.gmra.mrb[0].mxu0 %v759
      %v4705 = vpop.f32.mrb[0].mxu0
      %v4706 = vadd.f32 %v4657, %v4705
      %v4707 = vpop.f32.mrb[0].mxu0
      %v4708 = vpop.f32.mrb[0].mxu0
      %v4709 = vadd.f32 %v4657, %v4708
      %v4710 = vpop.f32.mrb[0].mxu0
      %4711 = vmatprep.mubr.bf16.mxu0 0
      %4712 = vmatmul.mubr.bf16.gmra.mrb[0].mxu0 %v762
      %v4713 = vpop.f32.mrb[0].mxu0
      %v4714 = vadd.f32 %v4657, %v4713
      %v4715 = vpop.f32.mrb[0].mxu0
      %v4716 = vpop.f32.mrb[0].mxu0
      %v4717 = vadd.f32 %v4657, %v4716
      %v4718 = vpop.f32.mrb[0].mxu0
      %4719 = vdwg.mxu0
      %v4720 = vpack.c.bf16 %v4709, %v4706
      %v4721 = vpack.c.bf16 %v4717, %v4714
      %s4722 = scalar_lea.vmem %s672, 240
      %v4723 = vld [vmem:[%s4722] sm:$0xf]
      %v4724 = vld [vmem:[%s4722 + $0x4] sm:$0xf]
      %v4725 = vld [vmem:[%s4722 + $0x8] sm:$0xf]
      %v4726 = vld [vmem:[%s4722 + $0xc] sm:$0xf]
      %s4727 = scalar_lea.vmem %s676, 15
      %v4728 = vld [vmem:[%s4727] sm:$0x1]
      %v4730 = vlaneseq
      %v4731 = vshrl.u32 %v4730, 7
      %v4732 = vsub.s32 0, %v4731
      %v4733 = vrot.slane %v4728, %v4732
      %v4739 = vunpack.c.l.b16 %v4723
      %v4740 = vunpack.c.l.b16 %v4724
      %v4741 = vunpack.c.l.b16 %v4725
      %v4742 = vunpack.c.l.b16 %v4726
      %v4743 = vpack.c.b16 %v4740, %v4739
      %v4744 = vpack.c.b16 %v4742, %v4741
      %4747 = vmatprep.subr.bf16.mxu0 0
      %4748 = vmatpush1.bf16.msra.mxu0 %v4743
      %4749 = vmatprep.subr.bf16.mxu0 0
      %4750 = vmatpush1.bf16.msra.mxu0 %v4744
      %4751 = vmatprep.subr.bf16.mxu0 0
      %4752 = vmatpush1.bf16.msra.mxu0 0
      %4753 = vmatprep.subr.bf16.mxu0 0
      %4754 = vmatpush1.bf16.msra.mxu0 0
      %4755 = vmatprep.subr.bf16.mxu0 0
      %4756 = vmatpush1.bf16.msra.mxu0 0
      %4757 = vmatprep.subr.bf16.mxu0 0
      %4758 = vmatpush1.bf16.msra.mxu0 0
      %4759 = vmatprep.subr.bf16.mxu0 0
      %4760 = vmatpush1.bf16.msra.mxu0 0
      %4761 = vmatprep.subr.bf16.mxu0 0
      %4762 = vmatpush1.bf16.msra.mxu0 0
      %4763 = vmatprep.subr.bf16.mxu0 0
      %4764 = vmatpush1.bf16.msra.mxu0 0
      %4765 = vmatprep.subr.bf16.mxu0 0
      %4766 = vmatpush1.bf16.msra.mxu0 0
      %4767 = vmatprep.subr.bf16.mxu0 0
      %4768 = vmatpush1.bf16.msra.mxu0 0
      %4769 = vmatprep.subr.bf16.mxu0 0
      %4770 = vmatpush1.bf16.msra.mxu0 0
      %4771 = vmatprep.subr.bf16.mxu0 0
      %4772 = vmatpush1.bf16.msra.mxu0 0
      %4773 = vmatprep.subr.bf16.mxu0 0
      %4774 = vmatpush1.bf16.msra.mxu0 0
      %4775 = vmatprep.subr.bf16.mxu0 0
      %4776 = vmatpush1.bf16.msra.mxu0 0
      %4777 = vmatprep.subr.bf16.mxu0 0
      %4778 = vmatpush1.bf16.msra.mxu0 0
      %4779 = vmatprep.mubr.bf16.mxu0 0
      %4780 = vmatmul.mubr.bf16.gmra.mrb[0].mxu0 %v759
      %v4781 = vpop.f32.mrb[0].mxu0
      %v4782 = vadd.f32 %v4733, %v4781
      %v4783 = vpop.f32.mrb[0].mxu0
      %v4784 = vpop.f32.mrb[0].mxu0
      %v4785 = vadd.f32 %v4733, %v4784
      %v4786 = vpop.f32.mrb[0].mxu0
      %4787 = vmatprep.mubr.bf16.mxu0 0
      %4788 = vmatmul.mubr.bf16.gmra.mrb[0].mxu0 %v762
      %v4789 = vpop.f32.mrb[0].mxu0
      %v4790 = vadd.f32 %v4733, %v4789
      %v4791 = vpop.f32.mrb[0].mxu0
      %v4792 = vpop.f32.mrb[0].mxu0
      %v4793 = vadd.f32 %v4733, %v4792
      %v4794 = vpop.f32.mrb[0].mxu0
      %4795 = vdwg.mxu0
      %v4796 = vpack.c.bf16 %v4785, %v4782
      %v4797 = vpack.c.bf16 %v4793, %v4790
      %s4798 = scalar_lea.vmem %s672, 368
      %v4799 = vld [vmem:[%s4798] sm:$0xf]
      %v4800 = vld [vmem:[%s4798 + $0x4] sm:$0xf]
      %v4801 = vld [vmem:[%s4798 + $0x8] sm:$0xf]
      %v4802 = vld [vmem:[%s4798 + $0xc] sm:$0xf]
      %s4803 = scalar_lea.vmem %s676, 23
      %v4804 = vld [vmem:[%s4803] sm:$0x1]
      %v4806 = vlaneseq
      %v4807 = vshrl.u32 %v4806, 7
      %v4808 = vsub.s32 0, %v4807
      %v4809 = vrot.slane %v4804, %v4808
      %v4815 = vunpack.c.l.b16 %v4799
      %v4816 = vunpack.c.l.b16 %v4800
      %v4817 = vunpack.c.l.b16 %v4801
      %v4818 = vunpack.c.l.b16 %v4802
      %v4819 = vpack.c.b16 %v4816, %v4815
      %v4820 = vpack.c.b16 %v4818, %v4817
      %4823 = vmatprep.subr.bf16.mxu0 0
      %4824 = vmatpush1.bf16.msra.mxu0 %v4819
      %4825 = vmatprep.subr.bf16.mxu0 0
      %4826 = vmatpush1.bf16.msra.mxu0 %v4820
      %4827 = vmatprep.subr.bf16.mxu0 0
      %4828 = vmatpush1.bf16.msra.mxu0 0
      %4829 = vmatprep.subr.bf16.mxu0 0
      %4830 = vmatpush1.bf16.msra.mxu0 0
      %4831 = vmatprep.subr.bf16.mxu0 0
      %4832 = vmatpush1.bf16.msra.mxu0 0
      %4833 = vmatprep.subr.bf16.mxu0 0
      %4834 = vmatpush1.bf16.msra.mxu0 0
      %4835 = vmatprep.subr.bf16.mxu0 0
      %4836 = vmatpush1.bf16.msra.mxu0 0
      %4837 = vmatprep.subr.bf16.mxu0 0
      %4838 = vmatpush1.bf16.msra.mxu0 0
      %4839 = vmatprep.subr.bf16.mxu0 0
      %4840 = vmatpush1.bf16.msra.mxu0 0
      %4841 = vmatprep.subr.bf16.mxu0 0
      %4842 = vmatpush1.bf16.msra.mxu0 0
      %4843 = vmatprep.subr.bf16.mxu0 0
      %4844 = vmatpush1.bf16.msra.mxu0 0
      %4845 = vmatprep.subr.bf16.mxu0 0
      %4846 = vmatpush1.bf16.msra.mxu0 0
      %4847 = vmatprep.subr.bf16.mxu0 0
      %4848 = vmatpush1.bf16.msra.mxu0 0
      %4849 = vmatprep.subr.bf16.mxu0 0
      %4850 = vmatpush1.bf16.msra.mxu0 0
      %4851 = vmatprep.subr.bf16.mxu0 0
      %4852 = vmatpush1.bf16.msra.mxu0 0
      %4853 = vmatprep.subr.bf16.mxu0 0
      %4854 = vmatpush1.bf16.msra.mxu0 0
      %4855 = vmatprep.mubr.bf16.mxu0 0
      %4856 = vmatmul.mubr.bf16.gmra.mrb[0].mxu0 %v759
      %v4857 = vpop.f32.mrb[0].mxu0
      %v4858 = vadd.f32 %v4809, %v4857
      %v4859 = vpop.f32.mrb[0].mxu0
      %v4860 = vpop.f32.mrb[0].mxu0
      %v4861 = vadd.f32 %v4809, %v4860
      %v4862 = vpop.f32.mrb[0].mxu0
      %4863 = vmatprep.mubr.bf16.mxu0 0
      %4864 = vmatmul.mubr.bf16.gmra.mrb[0].mxu0 %v762
      %v4865 = vpop.f32.mrb[0].mxu0
      %v4866 = vadd.f32 %v4809, %v4865
      %v4867 = vpop.f32.mrb[0].mxu0
      %v4868 = vpop.f32.mrb[0].mxu0
      %v4869 = vadd.f32 %v4809, %v4868
      %v4870 = vpop.f32.mrb[0].mxu0
      %4871 = vdwg.mxu0
      %v4872 = vpack.c.bf16 %v4861, %v4858
      %v4873 = vpack.c.bf16 %v4869, %v4866
      %s4874 = scalar_lea.vmem %s681, 14
      %v4875 = vld [vmem:[%s4874] sm:$0x3]
      %v4877 = vsel %vm968, %v4720, 0
      %v4880 = vsel %vm968, %v4796, 0
      %4882 = vmatprep.subr.bf16.mxu0 0
      %4883 = vmatpush1.bf16.xpose.msra.mxu0 %v4880
      %4884 = vmatprep.subr.bf16.mxu0 0
      %4885 = vmatpush1.bf16.xpose.msra.mxu0 0
      %4886 = vmatprep.subr.bf16.mxu0 0
      %4887 = vmatpush1.bf16.xpose.msra.mxu0 0
      %4888 = vmatprep.subr.bf16.mxu0 0
      %4889 = vmatpush1.bf16.xpose.msra.mxu0 0
      %4890 = vmatprep.subr.bf16.mxu0 0
      %4891 = vmatpush1.bf16.xpose.msra.mxu0 0
      %4892 = vmatprep.subr.bf16.mxu0 0
      %4893 = vmatpush1.bf16.xpose.msra.mxu0 0
      %4894 = vmatprep.subr.bf16.mxu0 0
      %4895 = vmatpush1.bf16.xpose.msra.mxu0 0
      %4896 = vmatprep.subr.bf16.mxu0 0
      %4897 = vmatpush1.bf16.xpose.msra.mxu0 0
      %4898 = vmatprep.subr.bf16.mxu0 0
      %4899 = vmatpush1.bf16.xpose.msra.mxu0 0
      %4900 = vmatprep.subr.bf16.mxu0 0
      %4901 = vmatpush1.bf16.xpose.msra.mxu0 0
      %4902 = vmatprep.subr.bf16.mxu0 0
      %4903 = vmatpush1.bf16.xpose.msra.mxu0 0
      %4904 = vmatprep.subr.bf16.mxu0 0
      %4905 = vmatpush1.bf16.xpose.msra.mxu0 0
      %4906 = vmatprep.subr.bf16.mxu0 0
      %4907 = vmatpush1.bf16.xpose.msra.mxu0 0
      %4908 = vmatprep.subr.bf16.mxu0 0
      %4909 = vmatpush1.bf16.xpose.msra.mxu0 0
      %4910 = vmatprep.subr.bf16.mxu0 0
      %4911 = vmatpush1.bf16.xpose.msra.mxu0 0
      %4912 = vmatprep.subr.bf16.mxu0 0
      %4913 = vmatpush1.bf16.xpose.msra.mxu0 0
      %4914 = vmatprep.mubr.bf16.mxu0 0
      %4915 = vmatmul.mubr.bf16.gmra.mrb[0].mxu0 %v4877
      %v4916 = vpop.f32.mrb[0].mxu0
      %v4917 = vadd.f32 0.0, %v4916
      %v4918 = vpop.f32.mrb[0].mxu0
      %v4919 = vpop.f32.mrb[0].mxu0
      %v4920 = vadd.f32 0.0, %v4919
      %v4921 = vpop.f32.mrb[0].mxu0
      %4922 = vdwg.mxu0
      %v4923 = vmul.f32 %v4917, 0.5
      %v4924 = vmul.f32 %v4920, 0.5
      %v4925 = vsel %vm1018, %v4923, -inf
      %4926 = vmax.xlane.f32.xlu0 %v4925
      %v4927 = vpop.xlane.xlu0 %4926
      %v4928 = vsel %vm1018, %v4924, -inf
      %4929 = vmax.xlane.f32.xlu0 %v4928
      %v4930 = vpop.xlane.xlu0 %4929
      %v4931 = vsub.f32 %v4923, %v4927
      %v4932 = vsub.f32 %v4924, %v4930
      %v4933 = vmul.f32 %v4931, 1.442695
      %v4934 = vpow.pop %v4933
      %v4935 = vmul.f32 %v4932, 1.442695
      %v4936 = vpow.pop %v4935
      %v4937 = vsel %vm1018, %v4934, 0.0
      %4938 = vadd.xlane.f32.xlu0 %v4937
      %v4939 = vpop.xlane.xlu0 %4938
      %v4940 = vsel %vm1018, %v4936, 0.0
      %4941 = vadd.xlane.f32.xlu0 %v4940
      %v4942 = vpop.xlane.xlu0 %4941
      %v4943 = vrcp.pop %v4939
      %v4944 = vrcp.pop %v4942
      %v4945 = vmul.f32 %v4934, %v4943
      %v4946 = vmul.f32 %v4936, %v4944
      %v4947 = vpack.c.bf16 %v4946, %v4945
      %v4949 = vsel %vm1018, %v4947, 0
      %4951 = vmatprep.subr.bf16.mxu0 0
      %4952 = vmatpush1.bf16.msra.mxu0 %v4872
      %4953 = vmatprep.subr.bf16.mxu0 0
      %4954 = vmatpush1.bf16.msra.mxu0 0
      %4955 = vmatprep.subr.bf16.mxu0 0
      %4956 = vmatpush1.bf16.msra.mxu0 0
      %4957 = vmatprep.subr.bf16.mxu0 0
      %4958 = vmatpush1.bf16.msra.mxu0 0
      %4959 = vmatprep.subr.bf16.mxu0 0
      %4960 = vmatpush1.bf16.msra.mxu0 0
      %4961 = vmatprep.subr.bf16.mxu0 0
      %4962 = vmatpush1.bf16.msra.mxu0 0
      %4963 = vmatprep.subr.bf16.mxu0 0
      %4964 = vmatpush1.bf16.msra.mxu0 0
      %4965 = vmatprep.subr.bf16.mxu0 0
      %4966 = vmatpush1.bf16.msra.mxu0 0
      %4967 = vmatprep.subr.bf16.mxu0 0
      %4968 = vmatpush1.bf16.msra.mxu0 0
      %4969 = vmatprep.subr.bf16.mxu0 0
      %4970 = vmatpush1.bf16.msra.mxu0 0
      %4971 = vmatprep.subr.bf16.mxu0 0
      %4972 = vmatpush1.bf16.msra.mxu0 0
      %4973 = vmatprep.subr.bf16.mxu0 0
      %4974 = vmatpush1.bf16.msra.mxu0 0
      %4975 = vmatprep.subr.bf16.mxu0 0
      %4976 = vmatpush1.bf16.msra.mxu0 0
      %4977 = vmatprep.subr.bf16.mxu0 0
      %4978 = vmatpush1.bf16.msra.mxu0 0
      %4979 = vmatprep.subr.bf16.mxu0 0
      %4980 = vmatpush1.bf16.msra.mxu0 0
      %4981 = vmatprep.subr.bf16.mxu0 0
      %4982 = vmatpush1.bf16.msra.mxu0 0
      %4983 = vmatprep.mubr.bf16.mxu0 0
      %4984 = vmatmul.mubr.bf16.gmra.mrb[0].mxu0 %v4949
      %v4985 = vpop.f32.mrb[0].mxu0
      %v4986 = vadd.f32 0.0, %v4985
      %v4987 = vpop.f32.mrb[0].mxu0
      %v4988 = vpop.f32.mrb[0].mxu0
      %v4989 = vadd.f32 0.0, %v4988
      %v4990 = vpop.f32.mrb[0].mxu0
      %4991 = vdwg.mxu0
      %v4992 = vpack.c.bf16 %v4989, %v4986
      %v4994 = vsel %vm968, %v4992, 0
      %v4997 = vsel %vm1554, %v4875, 0
      %4999 = vmatprep.subr.bf16.mxu0 0
      %5000 = vmatpush1.bf16.msra.mxu0 %v4997
      %5001 = vmatprep.subr.bf16.mxu0 0
      %5002 = vmatpush1.bf16.msra.mxu0 0
      %5003 = vmatprep.subr.bf16.mxu0 0
      %5004 = vmatpush1.bf16.msra.mxu0 0
      %5005 = vmatprep.subr.bf16.mxu0 0
      %5006 = vmatpush1.bf16.msra.mxu0 0
      %5007 = vmatprep.subr.bf16.mxu0 0
      %5008 = vmatpush1.bf16.msra.mxu0 0
      %5009 = vmatprep.subr.bf16.mxu0 0
      %5010 = vmatpush1.bf16.msra.mxu0 0
      %5011 = vmatprep.subr.bf16.mxu0 0
      %5012 = vmatpush1.bf16.msra.mxu0 0
      %5013 = vmatprep.subr.bf16.mxu0 0
      %5014 = vmatpush1.bf16.msra.mxu0 0
      %5015 = vmatprep.subr.bf16.mxu0 0
      %5016 = vmatpush1.bf16.msra.mxu0 0
      %5017 = vmatprep.subr.bf16.mxu0 0
      %5018 = vmatpush1.bf16.msra.mxu0 0
      %5019 = vmatprep.subr.bf16.mxu0 0
      %5020 = vmatpush1.bf16.msra.mxu0 0
      %5021 = vmatprep.subr.bf16.mxu0 0
      %5022 = vmatpush1.bf16.msra.mxu0 0
      %5023 = vmatprep.subr.bf16.mxu0 0
      %5024 = vmatpush1.bf16.msra.mxu0 0
      %5025 = vmatprep.subr.bf16.mxu0 0
      %5026 = vmatpush1.bf16.msra.mxu0 0
      %5027 = vmatprep.subr.bf16.mxu0 0
      %5028 = vmatpush1.bf16.msra.mxu0 0
      %5029 = vmatprep.subr.bf16.mxu0 0
      %5030 = vmatpush1.bf16.msra.mxu0 0
      %5031 = vmatprep.mubr.bf16.mxu0 0
      %5032 = vmatmul.mubr.bf16.gmra.mrb[0].mxu0 %v4994
      %v5033 = vpop.f32.mrb[0].mxu0
      %v5034 = vadd.f32 0.0, %v5033
      %v5035 = vpop.f32.mrb[0].mxu0
      %v5036 = vpop.f32.mrb[0].mxu0
      %v5037 = vadd.f32 0.0, %v5036
      %v5038 = vpop.f32.mrb[0].mxu0
      %5039 = vdwg.mxu0
      %v5040 = vadd.f32 %v4481, %v5034
      %v5041 = vadd.f32 %v4482, %v5037
      %v5043 = vsel %vm968, %v4721, 0
      %v5046 = vsel %vm968, %v4797, 0
      %5048 = vmatprep.subr.bf16.mxu0 0
      %5049 = vmatpush1.bf16.xpose.msra.mxu0 %v5046
      %5050 = vmatprep.subr.bf16.mxu0 0
      %5051 = vmatpush1.bf16.xpose.msra.mxu0 0
      %5052 = vmatprep.subr.bf16.mxu0 0
      %5053 = vmatpush1.bf16.xpose.msra.mxu0 0
      %5054 = vmatprep.subr.bf16.mxu0 0
      %5055 = vmatpush1.bf16.xpose.msra.mxu0 0
      %5056 = vmatprep.subr.bf16.mxu0 0
      %5057 = vmatpush1.bf16.xpose.msra.mxu0 0
      %5058 = vmatprep.subr.bf16.mxu0 0
      %5059 = vmatpush1.bf16.xpose.msra.mxu0 0
      %5060 = vmatprep.subr.bf16.mxu0 0
      %5061 = vmatpush1.bf16.xpose.msra.mxu0 0
      %5062 = vmatprep.subr.bf16.mxu0 0
      %5063 = vmatpush1.bf16.xpose.msra.mxu0 0
      %5064 = vmatprep.subr.bf16.mxu0 0
      %5065 = vmatpush1.bf16.xpose.msra.mxu0 0
      %5066 = vmatprep.subr.bf16.mxu0 0
      %5067 = vmatpush1.bf16.xpose.msra.mxu0 0
      %5068 = vmatprep.subr.bf16.mxu0 0
      %5069 = vmatpush1.bf16.xpose.msra.mxu0 0
      %5070 = vmatprep.subr.bf16.mxu0 0
      %5071 = vmatpush1.bf16.xpose.msra.mxu0 0
      %5072 = vmatprep.subr.bf16.mxu0 0
      %5073 = vmatpush1.bf16.xpose.msra.mxu0 0
      %5074 = vmatprep.subr.bf16.mxu0 0
      %5075 = vmatpush1.bf16.xpose.msra.mxu0 0
      %5076 = vmatprep.subr.bf16.mxu0 0
      %5077 = vmatpush1.bf16.xpose.msra.mxu0 0
      %5078 = vmatprep.subr.bf16.mxu0 0
      %5079 = vmatpush1.bf16.xpose.msra.mxu0 0
      %5080 = vmatprep.mubr.bf16.mxu0 0
      %5081 = vmatmul.mubr.bf16.gmra.mrb[0].mxu0 %v5043
      %v5082 = vpop.f32.mrb[0].mxu0
      %v5083 = vadd.f32 0.0, %v5082
      %v5084 = vpop.f32.mrb[0].mxu0
      %v5085 = vpop.f32.mrb[0].mxu0
      %v5086 = vadd.f32 0.0, %v5085
      %v5087 = vpop.f32.mrb[0].mxu0
      %5088 = vdwg.mxu0
      %v5089 = vmul.f32 %v5083, 0.5
      %v5090 = vmul.f32 %v5086, 0.5
      %v5091 = vsel %vm1018, %v5089, -inf
      %5092 = vmax.xlane.f32.xlu0 %v5091
      %v5093 = vpop.xlane.xlu0 %5092
      %v5094 = vsel %vm1018, %v5090, -inf
      %5095 = vmax.xlane.f32.xlu0 %v5094
      %v5096 = vpop.xlane.xlu0 %5095
      %v5097 = vsub.f32 %v5089, %v5093
      %v5098 = vsub.f32 %v5090, %v5096
      %v5099 = vmul.f32 %v5097, 1.442695
      %v5100 = vpow.pop %v5099
      %v5101 = vmul.f32 %v5098, 1.442695
      %v5102 = vpow.pop %v5101
      %v5103 = vsel %vm1018, %v5100, 0.0
      %5104 = vadd.xlane.f32.xlu0 %v5103
      %v5105 = vpop.xlane.xlu0 %5104
      %v5106 = vsel %vm1018, %v5102, 0.0
      %5107 = vadd.xlane.f32.xlu0 %v5106
      %v5108 = vpop.xlane.xlu0 %5107
      %v5109 = vrcp.pop %v5105
      %v5110 = vrcp.pop %v5108
      %v5111 = vmul.f32 %v5100, %v5109
      %v5112 = vmul.f32 %v5102, %v5110
      %v5113 = vpack.c.bf16 %v5112, %v5111
      %v5115 = vsel %vm1018, %v5113, 0
      %5117 = vmatprep.subr.bf16.mxu0 0
      %5118 = vmatpush1.bf16.msra.mxu0 %v4873
      %5119 = vmatprep.subr.bf16.mxu0 0
      %5120 = vmatpush1.bf16.msra.mxu0 0
      %5121 = vmatprep.subr.bf16.mxu0 0
      %5122 = vmatpush1.bf16.msra.mxu0 0
      %5123 = vmatprep.subr.bf16.mxu0 0
      %5124 = vmatpush1.bf16.msra.mxu0 0
      %5125 = vmatprep.subr.bf16.mxu0 0
      %5126 = vmatpush1.bf16.msra.mxu0 0
      %5127 = vmatprep.subr.bf16.mxu0 0
      %5128 = vmatpush1.bf16.msra.mxu0 0
      %5129 = vmatprep.subr.bf16.mxu0 0
      %5130 = vmatpush1.bf16.msra.mxu0 0
      %5131 = vmatprep.subr.bf16.mxu0 0
      %5132 = vmatpush1.bf16.msra.mxu0 0
      %5133 = vmatprep.subr.bf16.mxu0 0
      %5134 = vmatpush1.bf16.msra.mxu0 0
      %5135 = vmatprep.subr.bf16.mxu0 0
      %5136 = vmatpush1.bf16.msra.mxu0 0
      %5137 = vmatprep.subr.bf16.mxu0 0
      %5138 = vmatpush1.bf16.msra.mxu0 0
      %5139 = vmatprep.subr.bf16.mxu0 0
      %5140 = vmatpush1.bf16.msra.mxu0 0
      %5141 = vmatprep.subr.bf16.mxu0 0
      %5142 = vmatpush1.bf16.msra.mxu0 0
      %5143 = vmatprep.subr.bf16.mxu0 0
      %5144 = vmatpush1.bf16.msra.mxu0 0
      %5145 = vmatprep.subr.bf16.mxu0 0
      %5146 = vmatpush1.bf16.msra.mxu0 0
      %5147 = vmatprep.subr.bf16.mxu0 0
      %5148 = vmatpush1.bf16.msra.mxu0 0
      %5149 = vmatprep.mubr.bf16.mxu0 0
      %5150 = vmatmul.mubr.bf16.gmra.mrb[0].mxu0 %v5115
      %v5151 = vpop.f32.mrb[0].mxu0
      %v5152 = vadd.f32 0.0, %v5151
      %v5153 = vpop.f32.mrb[0].mxu0
      %v5154 = vpop.f32.mrb[0].mxu0
      %v5155 = vadd.f32 0.0, %v5154
      %v5156 = vpop.f32.mrb[0].mxu0
      %5157 = vdwg.mxu0
      %v5158 = vpack.c.bf16 %v5155, %v5152
      %v5160 = vsel %vm968, %v5158, 0
      %5162 = vmatprep.subr.bf16.mxu0 0
      %5163 = vmatpush1.bf16.msra.mxu0 %v4997
      %5164 = vmatprep.subr.bf16.mxu0 0
      %5165 = vmatpush1.bf16.msra.mxu0 0
      %5166 = vmatprep.subr.bf16.mxu0 0
      %5167 = vmatpush1.bf16.msra.mxu0 0
      %5168 = vmatprep.subr.bf16.mxu0 0
      %5169 = vmatpush1.bf16.msra.mxu0 0
      %5170 = vmatprep.subr.bf16.mxu0 0
      %5171 = vmatpush1.bf16.msra.mxu0 0
      %5172 = vmatprep.subr.bf16.mxu0 0
      %5173 = vmatpush1.bf16.msra.mxu0 0
      %5174 = vmatprep.subr.bf16.mxu0 0
      %5175 = vmatpush1.bf16.msra.mxu0 0
      %5176 = vmatprep.subr.bf16.mxu0 0
      %5177 = vmatpush1.bf16.msra.mxu0 0
      %5178 = vmatprep.subr.bf16.mxu0 0
      %5179 = vmatpush1.bf16.msra.mxu0 0
      %5180 = vmatprep.subr.bf16.mxu0 0
      %5181 = vmatpush1.bf16.msra.mxu0 0
      %5182 = vmatprep.subr.bf16.mxu0 0
      %5183 = vmatpush1.bf16.msra.mxu0 0
      %5184 = vmatprep.subr.bf16.mxu0 0
      %5185 = vmatpush1.bf16.msra.mxu0 0
      %5186 = vmatprep.subr.bf16.mxu0 0
      %5187 = vmatpush1.bf16.msra.mxu0 0
      %5188 = vmatprep.subr.bf16.mxu0 0
      %5189 = vmatpush1.bf16.msra.mxu0 0
      %5190 = vmatprep.subr.bf16.mxu0 0
      %5191 = vmatpush1.bf16.msra.mxu0 0
      %5192 = vmatprep.subr.bf16.mxu0 0
      %5193 = vmatpush1.bf16.msra.mxu0 0
      %5194 = vmatprep.mubr.bf16.mxu0 0
      %5195 = vmatmul.mubr.bf16.gmra.mrb[0].mxu0 %v5160
      %v5196 = vpop.f32.mrb[0].mxu0
      %v5197 = vadd.f32 0.0, %v5196
      %v5198 = vpop.f32.mrb[0].mxu0
      %v5199 = vpop.f32.mrb[0].mxu0
      %v5200 = vadd.f32 0.0, %v5199
      %v5201 = vpop.f32.mrb[0].mxu0
      %5202 = vdwg.mxu0
      %v5203 = vadd.f32 %v4644, %v5197
      %v5204 = vadd.f32 %v4645, %v5200
      %v5205 = vld [vmem:[%s684] sm:$0x1]
      %v5207 = vlaneseq
      %v5208 = vshrl.u32 %v5207, 7
      %v5209 = vsub.s32 0, %v5208
      %v5210 = vrot.slane %v5205, %v5209
      %v5212 = vadd.f32 %v5040, %v5210
      %v5213 = vadd.f32 %v5041, %v5210
      %v5214 = vadd.f32 %v5203, %v5210
      %v5215 = vadd.f32 %v5204, %v5210
      %v5216 = vadd.f32 %v728, %v5212
      %v5217 = vadd.f32 %v729, %v5213
      %v5218 = vadd.f32 %v730, %v5214
      %v5219 = vadd.f32 %v731, %v5215
      %v5220 = vld [vmem:[%s687] sm:$0x1]
      %v5221 = vld [vmem:[%s690] sm:$0x1]
      %v5222 = vsel %vm757, %v5216, 0.0
      %5223 = vadd.xlane.f32.xlu0 %v5222
      %v5224 = vpop.xlane.xlu0 %5223
      %v5225 = vsel %vm757, %v5217, 0.0
      %5226 = vadd.xlane.f32.xlu0 %v5225
      %v5227 = vpop.xlane.xlu0 %5226
      %v5228 = vsel %vm757, %v5218, 0.0
      %5229 = vadd.xlane.f32.xlu0 %v5228
      %v5230 = vpop.xlane.xlu0 %5229
      %v5231 = vsel %vm757, %v5219, 0.0
      %5232 = vadd.xlane.f32.xlu0 %v5231
      %v5233 = vpop.xlane.xlu0 %5232
      %v5234 = vrcp.pop 32.0
      %v5235 = vmul.f32 %v5224, %v5234
      %v5236 = vmul.f32 %v5227, %v5234
      %v5237 = vmul.f32 %v5230, %v5234
      %v5238 = vmul.f32 %v5233, %v5234
      %v5239 = vsub.f32 %v5216, %v5235
      %v5240 = vsub.f32 %v5217, %v5236
      %v5241 = vsub.f32 %v5218, %v5237
      %v5242 = vsub.f32 %v5219, %v5238
      %v5243 = vmul.f32 %v5239, %v5239
      %v5244 = vmul.f32 %v5240, %v5240
      %v5245 = vmul.f32 %v5241, %v5241
      %v5246 = vmul.f32 %v5242, %v5242
      %v5247 = vsel %vm757, %v5243, 0.0
      %5248 = vadd.xlane.f32.xlu0 %v5247
      %v5249 = vpop.xlane.xlu0 %5248
      %v5250 = vsel %vm757, %v5244, 0.0
      %5251 = vadd.xlane.f32.xlu0 %v5250
      %v5252 = vpop.xlane.xlu0 %5251
      %v5253 = vsel %vm757, %v5245, 0.0
      %5254 = vadd.xlane.f32.xlu0 %v5253
      %v5255 = vpop.xlane.xlu0 %5254
      %v5256 = vsel %vm757, %v5246, 0.0
      %5257 = vadd.xlane.f32.xlu0 %v5256
      %v5258 = vpop.xlane.xlu0 %5257
      %v5259 = vmul.f32 %v5249, %v5234
      %v5260 = vmul.f32 %v5252, %v5234
      %v5261 = vmul.f32 %v5255, %v5234
      %v5262 = vmul.f32 %v5258, %v5234
      %v5263 = vadd.f32 %v5259, 1e-05
      %v5264 = vadd.f32 %v5260, 1e-05
      %v5265 = vadd.f32 %v5261, 1e-05
      %v5266 = vadd.f32 %v5262, 1e-05
      %v5267 = vrsqrt.pop %v5263
      %v5268 = vrsqrt.pop %v5264
      %v5269 = vrsqrt.pop %v5265
      %v5270 = vrsqrt.pop %v5266
      %v5271 = vmul.f32 %v5239, %v5267
      %v5272 = vmul.f32 %v5240, %v5268
      %v5273 = vmul.f32 %v5241, %v5269
      %v5274 = vmul.f32 %v5242, %v5270
      %v5276 = vlaneseq
      %v5277 = vshrl.u32 %v5276, 7
      %v5278 = vsub.s32 0, %v5277
      %v5279 = vrot.slane %v5220, %v5278
      %v5281 = vmul.f32 %v5271, %v5279
      %v5282 = vmul.f32 %v5272, %v5279
      %v5283 = vmul.f32 %v5273, %v5279
      %v5284 = vmul.f32 %v5274, %v5279
      %v5286 = vlaneseq
      %v5287 = vshrl.u32 %v5286, 7
      %v5288 = vsub.s32 0, %v5287
      %v5289 = vrot.slane %v5221, %v5288
      %v5291 = vadd.f32 %v5281, %v5289
      %v5292 = vadd.f32 %v5282, %v5289
      %v5293 = vadd.f32 %v5283, %v5289
      %v5294 = vadd.f32 %v5284, %v5289
      %v5295 = vpack.c.bf16 %v5292, %v5291
      %v5296 = vpack.c.bf16 %v5294, %v5293
      %v5297 = vld [vmem:[%s695] sm:$0xff]
      %v5298 = vld [vmem:[%s695 + $0x8] sm:$0xff]
      %v5299 = vld [vmem:[%s695 + $0x10] sm:$0xff]
      %v5300 = vld [vmem:[%s695 + $0x18] sm:$0xff]
      %v5301 = vld [vmem:[%s695 + $0x20] sm:$0xff]
      %v5302 = vld [vmem:[%s695 + $0x28] sm:$0xff]
      %v5303 = vld [vmem:[%s695 + $0x30] sm:$0xff]
      %v5304 = vld [vmem:[%s695 + $0x38] sm:$0xff]
      %v5305 = vld [vmem:[%s695 + $0x40] sm:$0xff]
      %v5306 = vld [vmem:[%s695 + $0x48] sm:$0xff]
      %v5307 = vld [vmem:[%s695 + $0x50] sm:$0xff]
      %v5308 = vld [vmem:[%s695 + $0x58] sm:$0xff]
      %v5309 = vld [vmem:[%s695 + $0x60] sm:$0xff]
      %v5310 = vld [vmem:[%s695 + $0x68] sm:$0xff]
      %v5311 = vld [vmem:[%s695 + $0x70] sm:$0xff]
      %v5312 = vld [vmem:[%s695 + $0x78] sm:$0xff]
      %v5313 = vld [vmem:[%s695 + $0x80] sm:$0xff]
      %v5314 = vld [vmem:[%s695 + $0x88] sm:$0xff]
      %v5315 = vld [vmem:[%s695 + $0x90] sm:$0xff]
      %v5316 = vld [vmem:[%s695 + $0x98] sm:$0xff]
      %v5317 = vld [vmem:[%s695 + $0xa0] sm:$0xff]
      %v5318 = vld [vmem:[%s695 + $0xa8] sm:$0xff]
      %v5319 = vld [vmem:[%s695 + $0xb0] sm:$0xff]
      %v5320 = vld [vmem:[%s695 + $0xb8] sm:$0xff]
      %v5321 = vld [vmem:[%s695 + $0xc0] sm:$0xff]
      %v5322 = vld [vmem:[%s695 + $0xc8] sm:$0xff]
      %v5323 = vld [vmem:[%s695 + $0xd0] sm:$0xff]
      %v5324 = vld [vmem:[%s695 + $0xd8] sm:$0xff]
      %v5325 = vld [vmem:[%s695 + $0xe0] sm:$0xff]
      %v5326 = vld [vmem:[%s695 + $0xe8] sm:$0xff]
      %v5327 = vld [vmem:[%s695 + $0xf0] sm:$0xff]
      %v5328 = vld [vmem:[%s695 + $0xf8] sm:$0xff]
      %v5329 = vld [vmem:[%s699] sm:$0xff]
      %v5330 = vld [vmem:[%s699 + $0x8] sm:$0xff]
      %v5333 = vlaneseq
      %v5334 = vshrl.u32 %v5333, 7
      %v5335 = vsub.s32 0, %v5334
      %v5336 = vrot.slane %v5329, %v5335
      %v5337 = vlaneseq
      %v5338 = vshrl.u32 %v5337, 7
      %v5339 = vsub.s32 1, %v5338
      %v5340 = vrot.slane %v5329, %v5339
      %v5341 = vlaneseq
      %v5342 = vshrl.u32 %v5341, 7
      %v5343 = vsub.s32 2, %v5342
      %v5344 = vrot.slane %v5329, %v5343
      %v5345 = vlaneseq
      %v5346 = vshrl.u32 %v5345, 7
      %v5347 = vsub.s32 3, %v5346
      %v5348 = vrot.slane %v5329, %v5347
      %v5349 = vlaneseq
      %v5350 = vshrl.u32 %v5349, 7
      %v5351 = vsub.s32 4, %v5350
      %v5352 = vrot.slane %v5329, %v5351
      %v5353 = vlaneseq
      %v5354 = vshrl.u32 %v5353, 7
      %v5355 = vsub.s32 5, %v5354
      %v5356 = vrot.slane %v5329, %v5355
      %v5357 = vlaneseq
      %v5358 = vshrl.u32 %v5357, 7
      %v5359 = vsub.s32 6, %v5358
      %v5360 = vrot.slane %v5329, %v5359
      %v5361 = vlaneseq
      %v5362 = vshrl.u32 %v5361, 7
      %v5363 = vsub.s32 7, %v5362
      %v5364 = vrot.slane %v5329, %v5363
      %v5365 = vlaneseq
      %v5366 = vshrl.u32 %v5365, 7
      %v5367 = vsub.s32 0, %v5366
      %v5368 = vrot.slane %v5330, %v5367
      %v5369 = vlaneseq
      %v5370 = vshrl.u32 %v5369, 7
      %v5371 = vsub.s32 1, %v5370
      %v5372 = vrot.slane %v5330, %v5371
      %v5373 = vlaneseq
      %v5374 = vshrl.u32 %v5373, 7
      %v5375 = vsub.s32 2, %v5374
      %v5376 = vrot.slane %v5330, %v5375
      %v5377 = vlaneseq
      %v5378 = vshrl.u32 %v5377, 7
      %v5379 = vsub.s32 3, %v5378
      %v5380 = vrot.slane %v5330, %v5379
      %v5381 = vlaneseq
      %v5382 = vshrl.u32 %v5381, 7
      %v5383 = vsub.s32 4, %v5382
      %v5384 = vrot.slane %v5330, %v5383
      %v5385 = vlaneseq
      %v5386 = vshrl.u32 %v5385, 7
      %v5387 = vsub.s32 5, %v5386
      %v5388 = vrot.slane %v5330, %v5387
      %v5389 = vlaneseq
      %v5390 = vshrl.u32 %v5389, 7
      %v5391 = vsub.s32 6, %v5390
      %v5392 = vrot.slane %v5330, %v5391
      %v5393 = vlaneseq
      %v5394 = vshrl.u32 %v5393, 7
      %v5395 = vsub.s32 7, %v5394
      %v5396 = vrot.slane %v5330, %v5395
      %v5445 = vunpack.c.l.b16 %v5297
      %v5446 = vunpack.c.h.b16 %v5297
      %v5447 = vunpack.c.l.b16 %v5298
      %v5448 = vunpack.c.h.b16 %v5298
      %v5449 = vunpack.c.l.b16 %v5299
      %v5450 = vunpack.c.h.b16 %v5299
      %v5451 = vunpack.c.l.b16 %v5300
      %v5452 = vunpack.c.h.b16 %v5300
      %v5453 = vunpack.c.l.b16 %v5301
      %v5454 = vunpack.c.h.b16 %v5301
      %v5455 = vunpack.c.l.b16 %v5302
      %v5456 = vunpack.c.h.b16 %v5302
      %v5457 = vunpack.c.l.b16 %v5303
      %v5458 = vunpack.c.h.b16 %v5303
      %v5459 = vunpack.c.l.b16 %v5304
      %v5460 = vunpack.c.h.b16 %v5304
      %v5461 = vunpack.c.l.b16 %v5305
      %v5462 = vunpack.c.h.b16 %v5305
      %v5463 = vunpack.c.l.b16 %v5306
      %v5464 = vunpack.c.h.b16 %v5306
      %v5465 = vunpack.c.l.b16 %v5307
      %v5466 = vunpack.c.h.b16 %v5307
      %v5467 = vunpack.c.l.b16 %v5308
      %v5468 = vunpack.c.h.b16 %v5308
      %v5469 = vunpack.c.l.b16 %v5309
      %v5470 = vunpack.c.h.b16 %v5309
      %v5471 = vunpack.c.l.b16 %v5310
      %v5472 = vunpack.c.h.b16 %v5310
      %v5473 = vunpack.c.l.b16 %v5311
      %v5474 = vunpack.c.h.b16 %v5311
      %v5475 = vunpack.c.l.b16 %v5312
      %v5476 = vunpack.c.h.b16 %v5312
      %v5477 = vunpack.c.l.b16 %v5313
      %v5478 = vunpack.c.h.b16 %v5313
      %v5479 = vunpack.c.l.b16 %v5314
      %v5480 = vunpack.c.h.b16 %v5314
      %v5481 = vunpack.c.l.b16 %v5315
      %v5482 = vunpack.c.h.b16 %v5315
      %v5483 = vunpack.c.l.b16 %v5316
      %v5484 = vunpack.c.h.b16 %v5316
      %v5485 = vunpack.c.l.b16 %v5317
      %v5486 = vunpack.c.h.b16 %v5317
      %v5487 = vunpack.c.l.b16 %v5318
      %v5488 = vunpack.c.h.b16 %v5318
      %v5489 = vunpack.c.l.b16 %v5319
      %v5490 = vunpack.c.h.b16 %v5319
      %v5491 = vunpack.c.l.b16 %v5320
      %v5492 = vunpack.c.h.b16 %v5320
      %v5493 = vunpack.c.l.b16 %v5321
      %v5494 = vunpack.c.h.b16 %v5321
      %v5495 = vunpack.c.l.b16 %v5322
      %v5496 = vunpack.c.h.b16 %v5322
      %v5497 = vunpack.c.l.b16 %v5323
      %v5498 = vunpack.c.h.b16 %v5323
      %v5499 = vunpack.c.l.b16 %v5324
      %v5500 = vunpack.c.h.b16 %v5324
      %v5501 = vunpack.c.l.b16 %v5325
      %v5502 = vunpack.c.h.b16 %v5325
      %v5503 = vunpack.c.l.b16 %v5326
      %v5504 = vunpack.c.h.b16 %v5326
      %v5505 = vunpack.c.l.b16 %v5327
      %v5506 = vunpack.c.h.b16 %v5327
      %v5507 = vunpack.c.l.b16 %v5328
      %v5508 = vunpack.c.h.b16 %v5328
      %v5509 = vpack.c.b16 %v5461, %v5445
      %v5510 = vpack.c.b16 %v5462, %v5446
      %v5511 = vpack.c.b16 %v5463, %v5447
      %v5512 = vpack.c.b16 %v5464, %v5448
      %v5513 = vpack.c.b16 %v5465, %v5449
      %v5514 = vpack.c.b16 %v5466, %v5450
      %v5515 = vpack.c.b16 %v5467, %v5451
      %v5516 = vpack.c.b16 %v5468, %v5452
      %v5517 = vpack.c.b16 %v5469, %v5453
      %v5518 = vpack.c.b16 %v5470, %v5454
      %v5519 = vpack.c.b16 %v5471, %v5455
      %v5520 = vpack.c.b16 %v5472, %v5456
      %v5521 = vpack.c.b16 %v5473, %v5457
      %v5522 = vpack.c.b16 %v5474, %v5458
      %v5523 = vpack.c.b16 %v5475, %v5459
      %v5524 = vpack.c.b16 %v5476, %v5460
      %v5525 = vpack.c.b16 %v5493, %v5477
      %v5526 = vpack.c.b16 %v5494, %v5478
      %v5527 = vpack.c.b16 %v5495, %v5479
      %v5528 = vpack.c.b16 %v5496, %v5480
      %v5529 = vpack.c.b16 %v5497, %v5481
      %v5530 = vpack.c.b16 %v5498, %v5482
      %v5531 = vpack.c.b16 %v5499, %v5483
      %v5532 = vpack.c.b16 %v5500, %v5484
      %v5533 = vpack.c.b16 %v5501, %v5485
      %v5534 = vpack.c.b16 %v5502, %v5486
      %v5535 = vpack.c.b16 %v5503, %v5487
      %v5536 = vpack.c.b16 %v5504, %v5488
      %v5537 = vpack.c.b16 %v5505, %v5489
      %v5538 = vpack.c.b16 %v5506, %v5490
      %v5539 = vpack.c.b16 %v5507, %v5491
      %v5540 = vpack.c.b16 %v5508, %v5492
      %v5574 = vsel %vm757, %v5295, 0
      %v5577 = vsel %vm757, %v5296, 0
      %5579 = vmatprep.subr.bf16.mxu0 %v5510
      %5580 = vmatpush1.bf16.msra.mxu0 %v5509
      %5581 = vmatprep.subr.bf16.mxu0 %v5526
      %5582 = vmatpush1.bf16.msra.mxu0 %v5525
      %5583 = vmatprep.subr.bf16.mxu0 0
      %5584 = vmatpush1.bf16.msra.mxu0 0
      %5585 = vmatprep.subr.bf16.mxu0 0
      %5586 = vmatpush1.bf16.msra.mxu0 0
      %5587 = vmatprep.subr.bf16.mxu0 0
      %5588 = vmatpush1.bf16.msra.mxu0 0
      %5589 = vmatprep.subr.bf16.mxu0 0
      %5590 = vmatpush1.bf16.msra.mxu0 0
      %5591 = vmatprep.subr.bf16.mxu0 0
      %5592 = vmatpush1.bf16.msra.mxu0 0
      %5593 = vmatprep.subr.bf16.mxu0 0
      %5594 = vmatpush1.bf16.msra.mxu0 0
      %5595 = vmatprep.subr.bf16.mxu0 0
      %5596 = vmatpush1.bf16.msra.mxu0 0
      %5597 = vmatprep.subr.bf16.mxu0 0
      %5598 = vmatpush1.bf16.msra.mxu0 0
      %5599 = vmatprep.subr.bf16.mxu0 0
      %5600 = vmatpush1.bf16.msra.mxu0 0
      %5601 = vmatprep.subr.bf16.mxu0 0
      %5602 = vmatpush1.bf16.msra.mxu0 0
      %5603 = vmatprep.subr.bf16.mxu0 0
      %5604 = vmatpush1.bf16.msra.mxu0 0
      %5605 = vmatprep.subr.bf16.mxu0 0
      %5606 = vmatpush1.bf16.msra.mxu0 0
      %5607 = vmatprep.subr.bf16.mxu0 0
      %5608 = vmatpush1.bf16.msra.mxu0 0
      %5609 = vmatprep.subr.bf16.mxu0 0
      %5610 = vmatpush1.bf16.msra.mxu0 0
      %5611 = vmatprep.mubr.bf16.mxu0 0
      %5612 = vmatmul.mubr.bf16.gmra.mrb[0].mxu0 %v5574
      %v5613 = vpop.f32.mrb[0].mxu0
      %v5614 = vadd.f32 %v5336, %v5613
      %v5615 = vpop.f32.mrb[0].mxu0
      %v5616 = vadd.f32 %v5340, %v5615
      %v5617 = vpop.f32.mrb[0].mxu0
      %v5618 = vadd.f32 %v5336, %v5617
      %v5619 = vpop.f32.mrb[0].mxu0
      %v5620 = vadd.f32 %v5340, %v5619
      %5621 = vmatprep.mubr.bf16.mxu0 0
      %5622 = vmatmul.mubr.bf16.gmra.mrb[0].mxu0 %v5577
      %v5623 = vpop.f32.mrb[0].mxu0
      %v5624 = vadd.f32 %v5336, %v5623
      %v5625 = vpop.f32.mrb[0].mxu0
      %v5626 = vadd.f32 %v5340, %v5625
      %v5627 = vpop.f32.mrb[0].mxu0
      %v5628 = vadd.f32 %v5336, %v5627
      %v5629 = vpop.f32.mrb[0].mxu0
      %v5630 = vadd.f32 %v5340, %v5629
      %5631 = vdwg.mxu0
      %5632 = vmatprep.subr.bf16.mxu0 %v5512
      %5633 = vmatpush1.bf16.msra.mxu0 %v5511
      %5634 = vmatprep.subr.bf16.mxu0 %v5528
      %5635 = vmatpush1.bf16.msra.mxu0 %v5527
      %5636 = vmatprep.subr.bf16.mxu0 0
      %5637 = vmatpush1.bf16.msra.mxu0 0
      %5638 = vmatprep.subr.bf16.mxu0 0
      %5639 = vmatpush1.bf16.msra.mxu0 0
      %5640 = vmatprep.subr.bf16.mxu0 0
      %5641 = vmatpush1.bf16.msra.mxu0 0
      %5642 = vmatprep.subr.bf16.mxu0 0
      %5643 = vmatpush1.bf16.msra.mxu0 0
      %5644 = vmatprep.subr.bf16.mxu0 0
      %5645 = vmatpush1.bf16.msra.mxu0 0
      %5646 = vmatprep.subr.bf16.mxu0 0
      %5647 = vmatpush1.bf16.msra.mxu0 0
      %5648 = vmatprep.subr.bf16.mxu0 0
      %5649 = vmatpush1.bf16.msra.mxu0 0
      %5650 = vmatprep.subr.bf16.mxu0 0
      %5651 = vmatpush1.bf16.msra.mxu0 0
      %5652 = vmatprep.subr.bf16.mxu0 0
      %5653 = vmatpush1.bf16.msra.mxu0 0
      %5654 = vmatprep.subr.bf16.mxu0 0
      %5655 = vmatpush1.bf16.msra.mxu0 0
      %5656 = vmatprep.subr.bf16.mxu0 0
      %5657 = vmatpush1.bf16.msra.mxu0 0
      %5658 = vmatprep.subr.bf16.mxu0 0
      %5659 = vmatpush1.bf16.msra.mxu0 0
      %5660 = vmatprep.subr.bf16.mxu0 0
      %5661 = vmatpush1.bf16.msra.mxu0 0
      %5662 = vmatprep.subr.bf16.mxu0 0
      %5663 = vmatpush1.bf16.msra.mxu0 0
      %5664 = vmatprep.mubr.bf16.mxu0 0
      %5665 = vmatmul.mubr.bf16.gmra.mrb[0].mxu0 %v5574
      %v5666 = vpop.f32.mrb[0].mxu0
      %v5667 = vadd.f32 %v5344, %v5666
      %v5668 = vpop.f32.mrb[0].mxu0
      %v5669 = vadd.f32 %v5348, %v5668
      %v5670 = vpop.f32.mrb[0].mxu0
      %v5671 = vadd.f32 %v5344, %v5670
      %v5672 = vpop.f32.mrb[0].mxu0
      %v5673 = vadd.f32 %v5348, %v5672
      %5674 = vmatprep.mubr.bf16.mxu0 0
      %5675 = vmatmul.mubr.bf16.gmra.mrb[0].mxu0 %v5577
      %v5676 = vpop.f32.mrb[0].mxu0
      %v5677 = vadd.f32 %v5344, %v5676
      %v5678 = vpop.f32.mrb[0].mxu0
      %v5679 = vadd.f32 %v5348, %v5678
      %v5680 = vpop.f32.mrb[0].mxu0
      %v5681 = vadd.f32 %v5344, %v5680
      %v5682 = vpop.f32.mrb[0].mxu0
      %v5683 = vadd.f32 %v5348, %v5682
      %5684 = vdwg.mxu0
      %5685 = vmatprep.subr.bf16.mxu0 %v5514
      %5686 = vmatpush1.bf16.msra.mxu0 %v5513
      %5687 = vmatprep.subr.bf16.mxu0 %v5530
      %5688 = vmatpush1.bf16.msra.mxu0 %v5529
      %5689 = vmatprep.subr.bf16.mxu0 0
      %5690 = vmatpush1.bf16.msra.mxu0 0
      %5691 = vmatprep.subr.bf16.mxu0 0
      %5692 = vmatpush1.bf16.msra.mxu0 0
      %5693 = vmatprep.subr.bf16.mxu0 0
      %5694 = vmatpush1.bf16.msra.mxu0 0
      %5695 = vmatprep.subr.bf16.mxu0 0
      %5696 = vmatpush1.bf16.msra.mxu0 0
      %5697 = vmatprep.subr.bf16.mxu0 0
      %5698 = vmatpush1.bf16.msra.mxu0 0
      %5699 = vmatprep.subr.bf16.mxu0 0
      %5700 = vmatpush1.bf16.msra.mxu0 0
      %5701 = vmatprep.subr.bf16.mxu0 0
      %5702 = vmatpush1.bf16.msra.mxu0 0
      %5703 = vmatprep.subr.bf16.mxu0 0
      %5704 = vmatpush1.bf16.msra.mxu0 0
      %5705 = vmatprep.subr.bf16.mxu0 0
      %5706 = vmatpush1.bf16.msra.mxu0 0
      %5707 = vmatprep.subr.bf16.mxu0 0
      %5708 = vmatpush1.bf16.msra.mxu0 0
      %5709 = vmatprep.subr.bf16.mxu0 0
      %5710 = vmatpush1.bf16.msra.mxu0 0
      %5711 = vmatprep.subr.bf16.mxu0 0
      %5712 = vmatpush1.bf16.msra.mxu0 0
      %5713 = vmatprep.subr.bf16.mxu0 0
      %5714 = vmatpush1.bf16.msra.mxu0 0
      %5715 = vmatprep.subr.bf16.mxu0 0
      %5716 = vmatpush1.bf16.msra.mxu0 0
      %5717 = vmatprep.mubr.bf16.mxu0 0
      %5718 = vmatmul.mubr.bf16.gmra.mrb[0].mxu0 %v5574
      %v5719 = vpop.f32.mrb[0].mxu0
      %v5720 = vadd.f32 %v5352, %v5719
      %v5721 = vpop.f32.mrb[0].mxu0
      %v5722 = vadd.f32 %v5356, %v5721
      %v5723 = vpop.f32.mrb[0].mxu0
      %v5724 = vadd.f32 %v5352, %v5723
      %v5725 = vpop.f32.mrb[0].mxu0
      %v5726 = vadd.f32 %v5356, %v5725
      %5727 = vmatprep.mubr.bf16.mxu0 0
      %5728 = vmatmul.mubr.bf16.gmra.mrb[0].mxu0 %v5577
      %v5729 = vpop.f32.mrb[0].mxu0
      %v5730 = vadd.f32 %v5352, %v5729
      %v5731 = vpop.f32.mrb[0].mxu0
      %v5732 = vadd.f32 %v5356, %v5731
      %v5733 = vpop.f32.mrb[0].mxu0
      %v5734 = vadd.f32 %v5352, %v5733
      %v5735 = vpop.f32.mrb[0].mxu0
      %v5736 = vadd.f32 %v5356, %v5735
      %5737 = vdwg.mxu0
      %5738 = vmatprep.subr.bf16.mxu0 %v5516
      %5739 = vmatpush1.bf16.msra.mxu0 %v5515
      %5740 = vmatprep.subr.bf16.mxu0 %v5532
      %5741 = vmatpush1.bf16.msra.mxu0 %v5531
      %5742 = vmatprep.subr.bf16.mxu0 0
      %5743 = vmatpush1.bf16.msra.mxu0 0
      %5744 = vmatprep.subr.bf16.mxu0 0
      %5745 = vmatpush1.bf16.msra.mxu0 0
      %5746 = vmatprep.subr.bf16.mxu0 0
      %5747 = vmatpush1.bf16.msra.mxu0 0
      %5748 = vmatprep.subr.bf16.mxu0 0
      %5749 = vmatpush1.bf16.msra.mxu0 0
      %5750 = vmatprep.subr.bf16.mxu0 0
      %5751 = vmatpush1.bf16.msra.mxu0 0
      %5752 = vmatprep.subr.bf16.mxu0 0
      %5753 = vmatpush1.bf16.msra.mxu0 0
      %5754 = vmatprep.subr.bf16.mxu0 0
      %5755 = vmatpush1.bf16.msra.mxu0 0
      %5756 = vmatprep.subr.bf16.mxu0 0
      %5757 = vmatpush1.bf16.msra.mxu0 0
      %5758 = vmatprep.subr.bf16.mxu0 0
      %5759 = vmatpush1.bf16.msra.mxu0 0
      %5760 = vmatprep.subr.bf16.mxu0 0
      %5761 = vmatpush1.bf16.msra.mxu0 0
      %5762 = vmatprep.subr.bf16.mxu0 0
      %5763 = vmatpush1.bf16.msra.mxu0 0
      %5764 = vmatprep.subr.bf16.mxu0 0
      %5765 = vmatpush1.bf16.msra.mxu0 0
      %5766 = vmatprep.subr.bf16.mxu0 0
      %5767 = vmatpush1.bf16.msra.mxu0 0
      %5768 = vmatprep.subr.bf16.mxu0 0
      %5769 = vmatpush1.bf16.msra.mxu0 0
      %5770 = vmatprep.mubr.bf16.mxu0 0
      %5771 = vmatmul.mubr.bf16.gmra.mrb[0].mxu0 %v5574
      %v5772 = vpop.f32.mrb[0].mxu0
      %v5773 = vadd.f32 %v5360, %v5772
      %v5774 = vpop.f32.mrb[0].mxu0
      %v5775 = vadd.f32 %v5364, %v5774
      %v5776 = vpop.f32.mrb[0].mxu0
      %v5777 = vadd.f32 %v5360, %v5776
      %v5778 = vpop.f32.mrb[0].mxu0
      %v5779 = vadd.f32 %v5364, %v5778
      %5780 = vmatprep.mubr.bf16.mxu0 0
      %5781 = vmatmul.mubr.bf16.gmra.mrb[0].mxu0 %v5577
      %v5782 = vpop.f32.mrb[0].mxu0
      %v5783 = vadd.f32 %v5360, %v5782
      %v5784 = vpop.f32.mrb[0].mxu0
      %v5785 = vadd.f32 %v5364, %v5784
      %v5786 = vpop.f32.mrb[0].mxu0
      %v5787 = vadd.f32 %v5360, %v5786
      %v5788 = vpop.f32.mrb[0].mxu0
      %v5789 = vadd.f32 %v5364, %v5788
      %5790 = vdwg.mxu0
      %5791 = vmatprep.subr.bf16.mxu0 %v5518
      %5792 = vmatpush1.bf16.msra.mxu0 %v5517
      %5793 = vmatprep.subr.bf16.mxu0 %v5534
      %5794 = vmatpush1.bf16.msra.mxu0 %v5533
      %5795 = vmatprep.subr.bf16.mxu0 0
      %5796 = vmatpush1.bf16.msra.mxu0 0
      %5797 = vmatprep.subr.bf16.mxu0 0
      %5798 = vmatpush1.bf16.msra.mxu0 0
      %5799 = vmatprep.subr.bf16.mxu0 0
      %5800 = vmatpush1.bf16.msra.mxu0 0
      %5801 = vmatprep.subr.bf16.mxu0 0
      %5802 = vmatpush1.bf16.msra.mxu0 0
      %5803 = vmatprep.subr.bf16.mxu0 0
      %5804 = vmatpush1.bf16.msra.mxu0 0
      %5805 = vmatprep.subr.bf16.mxu0 0
      %5806 = vmatpush1.bf16.msra.mxu0 0
      %5807 = vmatprep.subr.bf16.mxu0 0
      %5808 = vmatpush1.bf16.msra.mxu0 0
      %5809 = vmatprep.subr.bf16.mxu0 0
      %5810 = vmatpush1.bf16.msra.mxu0 0
      %5811 = vmatprep.subr.bf16.mxu0 0
      %5812 = vmatpush1.bf16.msra.mxu0 0
      %5813 = vmatprep.subr.bf16.mxu0 0
      %5814 = vmatpush1.bf16.msra.mxu0 0
      %5815 = vmatprep.subr.bf16.mxu0 0
      %5816 = vmatpush1.bf16.msra.mxu0 0
      %5817 = vmatprep.subr.bf16.mxu0 0
      %5818 = vmatpush1.bf16.msra.mxu0 0
      %5819 = vmatprep.subr.bf16.mxu0 0
      %5820 = vmatpush1.bf16.msra.mxu0 0
      %5821 = vmatprep.subr.bf16.mxu0 0
      %5822 = vmatpush1.bf16.msra.mxu0 0
      %5823 = vmatprep.mubr.bf16.mxu0 0
      %5824 = vmatmul.mubr.bf16.gmra.mrb[0].mxu0 %v5574
      %v5825 = vpop.f32.mrb[0].mxu0
      %v5826 = vadd.f32 %v5368, %v5825
      %v5827 = vpop.f32.mrb[0].mxu0
      %v5828 = vadd.f32 %v5372, %v5827
      %v5829 = vpop.f32.mrb[0].mxu0
      %v5830 = vadd.f32 %v5368, %v5829
      %v5831 = vpop.f32.mrb[0].mxu0
      %v5832 = vadd.f32 %v5372, %v5831
      %5833 = vmatprep.mubr.bf16.mxu0 0
      %5834 = vmatmul.mubr.bf16.gmra.mrb[0].mxu0 %v5577
      %v5835 = vpop.f32.mrb[0].mxu0
      %v5836 = vadd.f32 %v5368, %v5835
      %v5837 = vpop.f32.mrb[0].mxu0
      %v5838 = vadd.f32 %v5372, %v5837
      %v5839 = vpop.f32.mrb[0].mxu0
      %v5840 = vadd.f32 %v5368, %v5839
      %v5841 = vpop.f32.mrb[0].mxu0
      %v5842 = vadd.f32 %v5372, %v5841
      %5843 = vdwg.mxu0
      %5844 = vmatprep.subr.bf16.mxu0 %v5520
      %5845 = vmatpush1.bf16.msra.mxu0 %v5519
      %5846 = vmatprep.subr.bf16.mxu0 %v5536
      %5847 = vmatpush1.bf16.msra.mxu0 %v5535
      %5848 = vmatprep.subr.bf16.mxu0 0
      %5849 = vmatpush1.bf16.msra.mxu0 0
      %5850 = vmatprep.subr.bf16.mxu0 0
      %5851 = vmatpush1.bf16.msra.mxu0 0
      %5852 = vmatprep.subr.bf16.mxu0 0
      %5853 = vmatpush1.bf16.msra.mxu0 0
      %5854 = vmatprep.subr.bf16.mxu0 0
      %5855 = vmatpush1.bf16.msra.mxu0 0
      %5856 = vmatprep.subr.bf16.mxu0 0
      %5857 = vmatpush1.bf16.msra.mxu0 0
      %5858 = vmatprep.subr.bf16.mxu0 0
      %5859 = vmatpush1.bf16.msra.mxu0 0
      %5860 = vmatprep.subr.bf16.mxu0 0
      %5861 = vmatpush1.bf16.msra.mxu0 0
      %5862 = vmatprep.subr.bf16.mxu0 0
      %5863 = vmatpush1.bf16.msra.mxu0 0
      %5864 = vmatprep.subr.bf16.mxu0 0
      %5865 = vmatpush1.bf16.msra.mxu0 0
      %5866 = vmatprep.subr.bf16.mxu0 0
      %5867 = vmatpush1.bf16.msra.mxu0 0
      %5868 = vmatprep.subr.bf16.mxu0 0
      %5869 = vmatpush1.bf16.msra.mxu0 0
      %5870 = vmatprep.subr.bf16.mxu0 0
      %5871 = vmatpush1.bf16.msra.mxu0 0
      %5872 = vmatprep.subr.bf16.mxu0 0
      %5873 = vmatpush1.bf16.msra.mxu0 0
      %5874 = vmatprep.subr.bf16.mxu0 0
      %5875 = vmatpush1.bf16.msra.mxu0 0
      %5876 = vmatprep.mubr.bf16.mxu0 0
      %5877 = vmatmul.mubr.bf16.gmra.mrb[0].mxu0 %v5574
      %v5878 = vpop.f32.mrb[0].mxu0
      %v5879 = vadd.f32 %v5376, %v5878
      %v5880 = vpop.f32.mrb[0].mxu0
      %v5881 = vadd.f32 %v5380, %v5880
      %v5882 = vpop.f32.mrb[0].mxu0
      %v5883 = vadd.f32 %v5376, %v5882
      %v5884 = vpop.f32.mrb[0].mxu0
      %v5885 = vadd.f32 %v5380, %v5884
      %5886 = vmatprep.mubr.bf16.mxu0 0
      %5887 = vmatmul.mubr.bf16.gmra.mrb[0].mxu0 %v5577
      %v5888 = vpop.f32.mrb[0].mxu0
      %v5889 = vadd.f32 %v5376, %v5888
      %v5890 = vpop.f32.mrb[0].mxu0
      %v5891 = vadd.f32 %v5380, %v5890
      %v5892 = vpop.f32.mrb[0].mxu0
      %v5893 = vadd.f32 %v5376, %v5892
      %v5894 = vpop.f32.mrb[0].mxu0
      %v5895 = vadd.f32 %v5380, %v5894
      %5896 = vdwg.mxu0
      %5897 = vmatprep.subr.bf16.mxu0 %v5522
      %5898 = vmatpush1.bf16.msra.mxu0 %v5521
      %5899 = vmatprep.subr.bf16.mxu0 %v5538
      %5900 = vmatpush1.bf16.msra.mxu0 %v5537
      %5901 = vmatprep.subr.bf16.mxu0 0
      %5902 = vmatpush1.bf16.msra.mxu0 0
      %5903 = vmatprep.subr.bf16.mxu0 0
      %5904 = vmatpush1.bf16.msra.mxu0 0
      %5905 = vmatprep.subr.bf16.mxu0 0
      %5906 = vmatpush1.bf16.msra.mxu0 0
      %5907 = vmatprep.subr.bf16.mxu0 0
      %5908 = vmatpush1.bf16.msra.mxu0 0
      %5909 = vmatprep.subr.bf16.mxu0 0
      %5910 = vmatpush1.bf16.msra.mxu0 0
      %5911 = vmatprep.subr.bf16.mxu0 0
      %5912 = vmatpush1.bf16.msra.mxu0 0
      %5913 = vmatprep.subr.bf16.mxu0 0
      %5914 = vmatpush1.bf16.msra.mxu0 0
      %5915 = vmatprep.subr.bf16.mxu0 0
      %5916 = vmatpush1.bf16.msra.mxu0 0
      %5917 = vmatprep.subr.bf16.mxu0 0
      %5918 = vmatpush1.bf16.msra.mxu0 0
      %5919 = vmatprep.subr.bf16.mxu0 0
      %5920 = vmatpush1.bf16.msra.mxu0 0
      %5921 = vmatprep.subr.bf16.mxu0 0
      %5922 = vmatpush1.bf16.msra.mxu0 0
      %5923 = vmatprep.subr.bf16.mxu0 0
      %5924 = vmatpush1.bf16.msra.mxu0 0
      %5925 = vmatprep.subr.bf16.mxu0 0
      %5926 = vmatpush1.bf16.msra.mxu0 0
      %5927 = vmatprep.subr.bf16.mxu0 0
      %5928 = vmatpush1.bf16.msra.mxu0 0
      %5929 = vmatprep.mubr.bf16.mxu0 0
      %5930 = vmatmul.mubr.bf16.gmra.mrb[0].mxu0 %v5574
      %v5931 = vpop.f32.mrb[0].mxu0
      %v5932 = vadd.f32 %v5384, %v5931
      %v5933 = vpop.f32.mrb[0].mxu0
      %v5934 = vadd.f32 %v5388, %v5933
      %v5935 = vpop.f32.mrb[0].mxu0
      %v5936 = vadd.f32 %v5384, %v5935
      %v5937 = vpop.f32.mrb[0].mxu0
      %v5938 = vadd.f32 %v5388, %v5937
      %5939 = vmatprep.mubr.bf16.mxu0 0
      %5940 = vmatmul.mubr.bf16.gmra.mrb[0].mxu0 %v5577
      %v5941 = vpop.f32.mrb[0].mxu0
      %v5942 = vadd.f32 %v5384, %v5941
      %v5943 = vpop.f32.mrb[0].mxu0
      %v5944 = vadd.f32 %v5388, %v5943
      %v5945 = vpop.f32.mrb[0].mxu0
      %v5946 = vadd.f32 %v5384, %v5945
      %v5947 = vpop.f32.mrb[0].mxu0
      %v5948 = vadd.f32 %v5388, %v5947
      %5949 = vdwg.mxu0
      %5950 = vmatprep.subr.bf16.mxu0 %v5524
      %5951 = vmatpush1.bf16.msra.mxu0 %v5523
      %5952 = vmatprep.subr.bf16.mxu0 %v5540
      %5953 = vmatpush1.bf16.msra.mxu0 %v5539
      %5954 = vmatprep.subr.bf16.mxu0 0
      %5955 = vmatpush1.bf16.msra.mxu0 0
      %5956 = vmatprep.subr.bf16.mxu0 0
      %5957 = vmatpush1.bf16.msra.mxu0 0
      %5958 = vmatprep.subr.bf16.mxu0 0
      %5959 = vmatpush1.bf16.msra.mxu0 0
      %5960 = vmatprep.subr.bf16.mxu0 0
      %5961 = vmatpush1.bf16.msra.mxu0 0
      %5962 = vmatprep.subr.bf16.mxu0 0
      %5963 = vmatpush1.bf16.msra.mxu0 0
      %5964 = vmatprep.subr.bf16.mxu0 0
      %5965 = vmatpush1.bf16.msra.mxu0 0
      %5966 = vmatprep.subr.bf16.mxu0 0
      %5967 = vmatpush1.bf16.msra.mxu0 0
      %5968 = vmatprep.subr.bf16.mxu0 0
      %5969 = vmatpush1.bf16.msra.mxu0 0
      %5970 = vmatprep.subr.bf16.mxu0 0
      %5971 = vmatpush1.bf16.msra.mxu0 0
      %5972 = vmatprep.subr.bf16.mxu0 0
      %5973 = vmatpush1.bf16.msra.mxu0 0
      %5974 = vmatprep.subr.bf16.mxu0 0
      %5975 = vmatpush1.bf16.msra.mxu0 0
      %5976 = vmatprep.subr.bf16.mxu0 0
      %5977 = vmatpush1.bf16.msra.mxu0 0
      %5978 = vmatprep.subr.bf16.mxu0 0
      %5979 = vmatpush1.bf16.msra.mxu0 0
      %5980 = vmatprep.subr.bf16.mxu0 0
      %5981 = vmatpush1.bf16.msra.mxu0 0
      %5982 = vmatprep.mubr.bf16.mxu0 0
      %5983 = vmatmul.mubr.bf16.gmra.mrb[0].mxu0 %v5574
      %v5984 = vpop.f32.mrb[0].mxu0
      %v5985 = vadd.f32 %v5392, %v5984
      %v5986 = vpop.f32.mrb[0].mxu0
      %v5987 = vadd.f32 %v5396, %v5986
      %v5988 = vpop.f32.mrb[0].mxu0
      %v5989 = vadd.f32 %v5392, %v5988
      %v5990 = vpop.f32.mrb[0].mxu0
      %v5991 = vadd.f32 %v5396, %v5990
      %5992 = vmatprep.mubr.bf16.mxu0 0
      %5993 = vmatmul.mubr.bf16.gmra.mrb[0].mxu0 %v5577
      %v5994 = vpop.f32.mrb[0].mxu0
      %v5995 = vadd.f32 %v5392, %v5994
      %v5996 = vpop.f32.mrb[0].mxu0
      %v5997 = vadd.f32 %v5396, %v5996
      %v5998 = vpop.f32.mrb[0].mxu0
      %v5999 = vadd.f32 %v5392, %v5998
      %v6000 = vpop.f32.mrb[0].mxu0
      %v6001 = vadd.f32 %v5396, %v6000
      %6002 = vdwg.mxu0
      %v6003 = vmax.f32 %v5614, 0.0
      %v6004 = vmax.f32 %v5616, 0.0
      %v6005 = vmax.f32 %v5667, 0.0
      %v6006 = vmax.f32 %v5669, 0.0
      %v6007 = vmax.f32 %v5720, 0.0
      %v6008 = vmax.f32 %v5722, 0.0
      %v6009 = vmax.f32 %v5773, 0.0
      %v6010 = vmax.f32 %v5775, 0.0
      %v6011 = vmax.f32 %v5826, 0.0
      %v6012 = vmax.f32 %v5828, 0.0
      %v6013 = vmax.f32 %v5879, 0.0
      %v6014 = vmax.f32 %v5881, 0.0
      %v6015 = vmax.f32 %v5932, 0.0
      %v6016 = vmax.f32 %v5934, 0.0
      %v6017 = vmax.f32 %v5985, 0.0
      %v6018 = vmax.f32 %v5987, 0.0
      %v6019 = vmax.f32 %v5618, 0.0
      %v6020 = vmax.f32 %v5620, 0.0
      %v6021 = vmax.f32 %v5671, 0.0
      %v6022 = vmax.f32 %v5673, 0.0
      %v6023 = vmax.f32 %v5724, 0.0
      %v6024 = vmax.f32 %v5726, 0.0
      %v6025 = vmax.f32 %v5777, 0.0
      %v6026 = vmax.f32 %v5779, 0.0
      %v6027 = vmax.f32 %v5830, 0.0
      %v6028 = vmax.f32 %v5832, 0.0
      %v6029 = vmax.f32 %v5883, 0.0
      %v6030 = vmax.f32 %v5885, 0.0
      %v6031 = vmax.f32 %v5936, 0.0
      %v6032 = vmax.f32 %v5938, 0.0
      %v6033 = vmax.f32 %v5989, 0.0
      %v6034 = vmax.f32 %v5991, 0.0
      %v6035 = vmax.f32 %v5624, 0.0
      %v6036 = vmax.f32 %v5626, 0.0
      %v6037 = vmax.f32 %v5677, 0.0
      %v6038 = vmax.f32 %v5679, 0.0
      %v6039 = vmax.f32 %v5730, 0.0
      %v6040 = vmax.f32 %v5732, 0.0
      %v6041 = vmax.f32 %v5783, 0.0
      %v6042 = vmax.f32 %v5785, 0.0
      %v6043 = vmax.f32 %v5836, 0.0
      %v6044 = vmax.f32 %v5838, 0.0
      %v6045 = vmax.f32 %v5889, 0.0
      %v6046 = vmax.f32 %v5891, 0.0
      %v6047 = vmax.f32 %v5942, 0.0
      %v6048 = vmax.f32 %v5944, 0.0
      %v6049 = vmax.f32 %v5995, 0.0
      %v6050 = vmax.f32 %v5997, 0.0
      %v6051 = vmax.f32 %v5628, 0.0
      %v6052 = vmax.f32 %v5630, 0.0
      %v6053 = vmax.f32 %v5681, 0.0
      %v6054 = vmax.f32 %v5683, 0.0
      %v6055 = vmax.f32 %v5734, 0.0
      %v6056 = vmax.f32 %v5736, 0.0
      %v6057 = vmax.f32 %v5787, 0.0
      %v6058 = vmax.f32 %v5789, 0.0
      %v6059 = vmax.f32 %v5840, 0.0
      %v6060 = vmax.f32 %v5842, 0.0
      %v6061 = vmax.f32 %v5893, 0.0
      %v6062 = vmax.f32 %v5895, 0.0
      %v6063 = vmax.f32 %v5946, 0.0
      %v6064 = vmax.f32 %v5948, 0.0
      %v6065 = vmax.f32 %v5999, 0.0
      %v6066 = vmax.f32 %v6001, 0.0
      %v6067 = vpack.c.bf16 %v6019, %v6003
      %v6068 = vpack.c.bf16 %v6020, %v6004
      %v6069 = vpack.c.bf16 %v6021, %v6005
      %v6070 = vpack.c.bf16 %v6022, %v6006
      %v6071 = vpack.c.bf16 %v6023, %v6007
      %v6072 = vpack.c.bf16 %v6024, %v6008
      %v6073 = vpack.c.bf16 %v6025, %v6009
      %v6074 = vpack.c.bf16 %v6026, %v6010
      %v6075 = vpack.c.bf16 %v6027, %v6011
      %v6076 = vpack.c.bf16 %v6028, %v6012
      %v6077 = vpack.c.bf16 %v6029, %v6013
      %v6078 = vpack.c.bf16 %v6030, %v6014
      %v6079 = vpack.c.bf16 %v6031, %v6015
      %v6080 = vpack.c.bf16 %v6032, %v6016
      %v6081 = vpack.c.bf16 %v6033, %v6017
      %v6082 = vpack.c.bf16 %v6034, %v6018
      %v6083 = vpack.c.bf16 %v6051, %v6035
      %v6084 = vpack.c.bf16 %v6052, %v6036
      %v6085 = vpack.c.bf16 %v6053, %v6037
      %v6086 = vpack.c.bf16 %v6054, %v6038
      %v6087 = vpack.c.bf16 %v6055, %v6039
      %v6088 = vpack.c.bf16 %v6056, %v6040
      %v6089 = vpack.c.bf16 %v6057, %v6041
      %v6090 = vpack.c.bf16 %v6058, %v6042
      %v6091 = vpack.c.bf16 %v6059, %v6043
      %v6092 = vpack.c.bf16 %v6060, %v6044
      %v6093 = vpack.c.bf16 %v6061, %v6045
      %v6094 = vpack.c.bf16 %v6062, %v6046
      %v6095 = vpack.c.bf16 %v6063, %v6047
      %v6096 = vpack.c.bf16 %v6064, %v6048
      %v6097 = vpack.c.bf16 %v6065, %v6049
      %v6098 = vpack.c.bf16 %v6066, %v6050
      %v6099 = vld [vmem:[%s704] sm:$0xf]
      %v6100 = vld [vmem:[%s704 + $0x4] sm:$0xf]
      %v6101 = vld [vmem:[%s704 + $0x8] sm:$0xf]
      %v6102 = vld [vmem:[%s704 + $0xc] sm:$0xf]
      %v6103 = vld [vmem:[%s704 + $0x10] sm:$0xf]
      %v6104 = vld [vmem:[%s704 + $0x14] sm:$0xf]
      %v6105 = vld [vmem:[%s704 + $0x18] sm:$0xf]
      %v6106 = vld [vmem:[%s704 + $0x1c] sm:$0xf]
      %v6107 = vld [vmem:[%s704 + $0x20] sm:$0xf]
      %v6108 = vld [vmem:[%s704 + $0x24] sm:$0xf]
      %v6109 = vld [vmem:[%s704 + $0x28] sm:$0xf]
      %v6110 = vld [vmem:[%s704 + $0x2c] sm:$0xf]
      %v6111 = vld [vmem:[%s704 + $0x30] sm:$0xf]
      %v6112 = vld [vmem:[%s704 + $0x34] sm:$0xf]
      %v6113 = vld [vmem:[%s704 + $0x38] sm:$0xf]
      %v6114 = vld [vmem:[%s704 + $0x3c] sm:$0xf]
      %v6115 = vld [vmem:[%s704 + $0x40] sm:$0xf]
      %v6116 = vld [vmem:[%s704 + $0x44] sm:$0xf]
      %v6117 = vld [vmem:[%s704 + $0x48] sm:$0xf]
      %v6118 = vld [vmem:[%s704 + $0x4c] sm:$0xf]
      %v6119 = vld [vmem:[%s704 + $0x50] sm:$0xf]
      %v6120 = vld [vmem:[%s704 + $0x54] sm:$0xf]
      %v6121 = vld [vmem:[%s704 + $0x58] sm:$0xf]
      %v6122 = vld [vmem:[%s704 + $0x5c] sm:$0xf]
      %v6123 = vld [vmem:[%s704 + $0x60] sm:$0xf]
      %v6124 = vld [vmem:[%s704 + $0x64] sm:$0xf]
      %v6125 = vld [vmem:[%s704 + $0x68] sm:$0xf]
      %v6126 = vld [vmem:[%s704 + $0x6c] sm:$0xf]
      %v6127 = vld [vmem:[%s704 + $0x70] sm:$0xf]
      %v6128 = vld [vmem:[%s704 + $0x74] sm:$0xf]
      %v6129 = vld [vmem:[%s704 + $0x78] sm:$0xf]
      %v6130 = vld [vmem:[%s704 + $0x7c] sm:$0xf]
      %v6131 = vld [vmem:[%s704 + $0x80] sm:$0xf]
      %v6132 = vld [vmem:[%s704 + $0x84] sm:$0xf]
      %v6133 = vld [vmem:[%s704 + $0x88] sm:$0xf]
      %v6134 = vld [vmem:[%s704 + $0x8c] sm:$0xf]
      %v6135 = vld [vmem:[%s704 + $0x90] sm:$0xf]
      %v6136 = vld [vmem:[%s704 + $0x94] sm:$0xf]
      %v6137 = vld [vmem:[%s704 + $0x98] sm:$0xf]
      %v6138 = vld [vmem:[%s704 + $0x9c] sm:$0xf]
      %v6139 = vld [vmem:[%s704 + $0xa0] sm:$0xf]
      %v6140 = vld [vmem:[%s704 + $0xa4] sm:$0xf]
      %v6141 = vld [vmem:[%s704 + $0xa8] sm:$0xf]
      %v6142 = vld [vmem:[%s704 + $0xac] sm:$0xf]
      %v6143 = vld [vmem:[%s704 + $0xb0] sm:$0xf]
      %v6144 = vld [vmem:[%s704 + $0xb4] sm:$0xf]
      %v6145 = vld [vmem:[%s704 + $0xb8] sm:$0xf]
      %v6146 = vld [vmem:[%s704 + $0xbc] sm:$0xf]
      %v6147 = vld [vmem:[%s704 + $0xc0] sm:$0xf]
      %v6148 = vld [vmem:[%s704 + $0xc4] sm:$0xf]
      %v6149 = vld [vmem:[%s704 + $0xc8] sm:$0xf]
      %v6150 = vld [vmem:[%s704 + $0xcc] sm:$0xf]
      %v6151 = vld [vmem:[%s704 + $0xd0] sm:$0xf]
      %v6152 = vld [vmem:[%s704 + $0xd4] sm:$0xf]
      %v6153 = vld [vmem:[%s704 + $0xd8] sm:$0xf]
      %v6154 = vld [vmem:[%s704 + $0xdc] sm:$0xf]
      %v6155 = vld [vmem:[%s704 + $0xe0] sm:$0xf]
      %v6156 = vld [vmem:[%s704 + $0xe4] sm:$0xf]
      %v6157 = vld [vmem:[%s704 + $0xe8] sm:$0xf]
      %v6158 = vld [vmem:[%s704 + $0xec] sm:$0xf]
      %v6159 = vld [vmem:[%s704 + $0xf0] sm:$0xf]
      %v6160 = vld [vmem:[%s704 + $0xf4] sm:$0xf]
      %v6161 = vld [vmem:[%s704 + $0xf8] sm:$0xf]
      %v6162 = vld [vmem:[%s704 + $0xfc] sm:$0xf]
      %v6163 = vld [vmem:[%s704 + $0x100] sm:$0xf]
      %v6164 = vld [vmem:[%s704 + $0x104] sm:$0xf]
      %v6165 = vld [vmem:[%s704 + $0x108] sm:$0xf]
      %v6166 = vld [vmem:[%s704 + $0x10c] sm:$0xf]
      %v6167 = vld [vmem:[%s704 + $0x110] sm:$0xf]
      %v6168 = vld [vmem:[%s704 + $0x114] sm:$0xf]
      %v6169 = vld [vmem:[%s704 + $0x118] sm:$0xf]
      %v6170 = vld [vmem:[%s704 + $0x11c] sm:$0xf]
      %v6171 = vld [vmem:[%s704 + $0x120] sm:$0xf]
      %v6172 = vld [vmem:[%s704 + $0x124] sm:$0xf]
      %v6173 = vld [vmem:[%s704 + $0x128] sm:$0xf]
      %v6174 = vld [vmem:[%s704 + $0x12c] sm:$0xf]
      %v6175 = vld [vmem:[%s704 + $0x130] sm:$0xf]
      %v6176 = vld [vmem:[%s704 + $0x134] sm:$0xf]
      %v6177 = vld [vmem:[%s704 + $0x138] sm:$0xf]
      %v6178 = vld [vmem:[%s704 + $0x13c] sm:$0xf]
      %v6179 = vld [vmem:[%s704 + $0x140] sm:$0xf]
      %v6180 = vld [vmem:[%s704 + $0x144] sm:$0xf]
      %v6181 = vld [vmem:[%s704 + $0x148] sm:$0xf]
      %v6182 = vld [vmem:[%s704 + $0x14c] sm:$0xf]
      %v6183 = vld [vmem:[%s704 + $0x150] sm:$0xf]
      %v6184 = vld [vmem:[%s704 + $0x154] sm:$0xf]
      %v6185 = vld [vmem:[%s704 + $0x158] sm:$0xf]
      %v6186 = vld [vmem:[%s704 + $0x15c] sm:$0xf]
      %v6187 = vld [vmem:[%s704 + $0x160] sm:$0xf]
      %v6188 = vld [vmem:[%s704 + $0x164] sm:$0xf]
      %v6189 = vld [vmem:[%s704 + $0x168] sm:$0xf]
      %v6190 = vld [vmem:[%s704 + $0x16c] sm:$0xf]
      %v6191 = vld [vmem:[%s704 + $0x170] sm:$0xf]
      %v6192 = vld [vmem:[%s704 + $0x174] sm:$0xf]
      %v6193 = vld [vmem:[%s704 + $0x178] sm:$0xf]
      %v6194 = vld [vmem:[%s704 + $0x17c] sm:$0xf]
      %v6195 = vld [vmem:[%s704 + $0x180] sm:$0xf]
      %v6196 = vld [vmem:[%s704 + $0x184] sm:$0xf]
      %v6197 = vld [vmem:[%s704 + $0x188] sm:$0xf]
      %v6198 = vld [vmem:[%s704 + $0x18c] sm:$0xf]
      %v6199 = vld [vmem:[%s704 + $0x190] sm:$0xf]
      %v6200 = vld [vmem:[%s704 + $0x194] sm:$0xf]
      %v6201 = vld [vmem:[%s704 + $0x198] sm:$0xf]
      %v6202 = vld [vmem:[%s704 + $0x19c] sm:$0xf]
      %v6203 = vld [vmem:[%s704 + $0x1a0] sm:$0xf]
      %v6204 = vld [vmem:[%s704 + $0x1a4] sm:$0xf]
      %v6205 = vld [vmem:[%s704 + $0x1a8] sm:$0xf]
      %v6206 = vld [vmem:[%s704 + $0x1ac] sm:$0xf]
      %v6207 = vld [vmem:[%s704 + $0x1b0] sm:$0xf]
      %v6208 = vld [vmem:[%s704 + $0x1b4] sm:$0xf]
      %v6209 = vld [vmem:[%s704 + $0x1b8] sm:$0xf]
      %v6210 = vld [vmem:[%s704 + $0x1bc] sm:$0xf]
      %v6211 = vld [vmem:[%s704 + $0x1c0] sm:$0xf]
      %v6212 = vld [vmem:[%s704 + $0x1c4] sm:$0xf]
      %v6213 = vld [vmem:[%s704 + $0x1c8] sm:$0xf]
      %v6214 = vld [vmem:[%s704 + $0x1cc] sm:$0xf]
      %v6215 = vld [vmem:[%s704 + $0x1d0] sm:$0xf]
      %v6216 = vld [vmem:[%s704 + $0x1d4] sm:$0xf]
      %v6217 = vld [vmem:[%s704 + $0x1d8] sm:$0xf]
      %v6218 = vld [vmem:[%s704 + $0x1dc] sm:$0xf]
      %v6219 = vld [vmem:[%s704 + $0x1e0] sm:$0xf]
      %v6220 = vld [vmem:[%s704 + $0x1e4] sm:$0xf]
      %v6221 = vld [vmem:[%s704 + $0x1e8] sm:$0xf]
      %v6222 = vld [vmem:[%s704 + $0x1ec] sm:$0xf]
      %v6223 = vld [vmem:[%s704 + $0x1f0] sm:$0xf]
      %v6224 = vld [vmem:[%s704 + $0x1f4] sm:$0xf]
      %v6225 = vld [vmem:[%s704 + $0x1f8] sm:$0xf]
      %v6226 = vld [vmem:[%s704 + $0x1fc] sm:$0xf]
      %v6227 = vld [vmem:[%s704 + $0x200] sm:$0xf]
      %v6228 = vld [vmem:[%s704 + $0x204] sm:$0xf]
      %v6229 = vld [vmem:[%s704 + $0x208] sm:$0xf]
      %v6230 = vld [vmem:[%s704 + $0x20c] sm:$0xf]
      %v6231 = vld [vmem:[%s704 + $0x210] sm:$0xf]
      %v6232 = vld [vmem:[%s704 + $0x214] sm:$0xf]
      %v6233 = vld [vmem:[%s704 + $0x218] sm:$0xf]
      %v6234 = vld [vmem:[%s704 + $0x21c] sm:$0xf]
      %v6235 = vld [vmem:[%s704 + $0x220] sm:$0xf]
      %v6236 = vld [vmem:[%s704 + $0x224] sm:$0xf]
      %v6237 = vld [vmem:[%s704 + $0x228] sm:$0xf]
      %v6238 = vld [vmem:[%s704 + $0x22c] sm:$0xf]
      %v6239 = vld [vmem:[%s704 + $0x230] sm:$0xf]
      %v6240 = vld [vmem:[%s704 + $0x234] sm:$0xf]
      %v6241 = vld [vmem:[%s704 + $0x238] sm:$0xf]
      %v6242 = vld [vmem:[%s704 + $0x23c] sm:$0xf]
      %v6243 = vld [vmem:[%s704 + $0x240] sm:$0xf]
      %v6244 = vld [vmem:[%s704 + $0x244] sm:$0xf]
      %v6245 = vld [vmem:[%s704 + $0x248] sm:$0xf]
      %v6246 = vld [vmem:[%s704 + $0x24c] sm:$0xf]
      %v6247 = vld [vmem:[%s704 + $0x250] sm:$0xf]
      %v6248 = vld [vmem:[%s704 + $0x254] sm:$0xf]
      %v6249 = vld [vmem:[%s704 + $0x258] sm:$0xf]
      %v6250 = vld [vmem:[%s704 + $0x25c] sm:$0xf]
      %v6251 = vld [vmem:[%s704 + $0x260] sm:$0xf]
      %v6252 = vld [vmem:[%s704 + $0x264] sm:$0xf]
      %v6253 = vld [vmem:[%s704 + $0x268] sm:$0xf]
      %v6254 = vld [vmem:[%s704 + $0x26c] sm:$0xf]
      %v6255 = vld [vmem:[%s704 + $0x270] sm:$0xf]
      %v6256 = vld [vmem:[%s704 + $0x274] sm:$0xf]
      %v6257 = vld [vmem:[%s704 + $0x278] sm:$0xf]
      %v6258 = vld [vmem:[%s704 + $0x27c] sm:$0xf]
      %v6259 = vld [vmem:[%s704 + $0x280] sm:$0xf]
      %v6260 = vld [vmem:[%s704 + $0x284] sm:$0xf]
      %v6261 = vld [vmem:[%s704 + $0x288] sm:$0xf]
      %v6262 = vld [vmem:[%s704 + $0x28c] sm:$0xf]
      %v6263 = vld [vmem:[%s704 + $0x290] sm:$0xf]
      %v6264 = vld [vmem:[%s704 + $0x294] sm:$0xf]
      %v6265 = vld [vmem:[%s704 + $0x298] sm:$0xf]
      %v6266 = vld [vmem:[%s704 + $0x29c] sm:$0xf]
      %v6267 = vld [vmem:[%s704 + $0x2a0] sm:$0xf]
      %v6268 = vld [vmem:[%s704 + $0x2a4] sm:$0xf]
      %v6269 = vld [vmem:[%s704 + $0x2a8] sm:$0xf]
      %v6270 = vld [vmem:[%s704 + $0x2ac] sm:$0xf]
      %v6271 = vld [vmem:[%s704 + $0x2b0] sm:$0xf]
      %v6272 = vld [vmem:[%s704 + $0x2b4] sm:$0xf]
      %v6273 = vld [vmem:[%s704 + $0x2b8] sm:$0xf]
      %v6274 = vld [vmem:[%s704 + $0x2bc] sm:$0xf]
      %v6275 = vld [vmem:[%s704 + $0x2c0] sm:$0xf]
      %v6276 = vld [vmem:[%s704 + $0x2c4] sm:$0xf]
      %v6277 = vld [vmem:[%s704 + $0x2c8] sm:$0xf]
      %v6278 = vld [vmem:[%s704 + $0x2cc] sm:$0xf]
      %v6279 = vld [vmem:[%s704 + $0x2d0] sm:$0xf]
      %v6280 = vld [vmem:[%s704 + $0x2d4] sm:$0xf]
      %v6281 = vld [vmem:[%s704 + $0x2d8] sm:$0xf]
      %v6282 = vld [vmem:[%s704 + $0x2dc] sm:$0xf]
      %v6283 = vld [vmem:[%s704 + $0x2e0] sm:$0xf]
      %v6284 = vld [vmem:[%s704 + $0x2e4] sm:$0xf]
      %v6285 = vld [vmem:[%s704 + $0x2e8] sm:$0xf]
      %v6286 = vld [vmem:[%s704 + $0x2ec] sm:$0xf]
      %v6287 = vld [vmem:[%s704 + $0x2f0] sm:$0xf]
      %v6288 = vld [vmem:[%s704 + $0x2f4] sm:$0xf]
      %v6289 = vld [vmem:[%s704 + $0x2f8] sm:$0xf]
      %v6290 = vld [vmem:[%s704 + $0x2fc] sm:$0xf]
      %v6291 = vld [vmem:[%s704 + $0x300] sm:$0xf]
      %v6292 = vld [vmem:[%s704 + $0x304] sm:$0xf]
      %v6293 = vld [vmem:[%s704 + $0x308] sm:$0xf]
      %v6294 = vld [vmem:[%s704 + $0x30c] sm:$0xf]
      %v6295 = vld [vmem:[%s704 + $0x310] sm:$0xf]
      %v6296 = vld [vmem:[%s704 + $0x314] sm:$0xf]
      %v6297 = vld [vmem:[%s704 + $0x318] sm:$0xf]
      %v6298 = vld [vmem:[%s704 + $0x31c] sm:$0xf]
      %v6299 = vld [vmem:[%s704 + $0x320] sm:$0xf]
      %v6300 = vld [vmem:[%s704 + $0x324] sm:$0xf]
      %v6301 = vld [vmem:[%s704 + $0x328] sm:$0xf]
      %v6302 = vld [vmem:[%s704 + $0x32c] sm:$0xf]
      %v6303 = vld [vmem:[%s704 + $0x330] sm:$0xf]
      %v6304 = vld [vmem:[%s704 + $0x334] sm:$0xf]
      %v6305 = vld [vmem:[%s704 + $0x338] sm:$0xf]
      %v6306 = vld [vmem:[%s704 + $0x33c] sm:$0xf]
      %v6307 = vld [vmem:[%s704 + $0x340] sm:$0xf]
      %v6308 = vld [vmem:[%s704 + $0x344] sm:$0xf]
      %v6309 = vld [vmem:[%s704 + $0x348] sm:$0xf]
      %v6310 = vld [vmem:[%s704 + $0x34c] sm:$0xf]
      %v6311 = vld [vmem:[%s704 + $0x350] sm:$0xf]
      %v6312 = vld [vmem:[%s704 + $0x354] sm:$0xf]
      %v6313 = vld [vmem:[%s704 + $0x358] sm:$0xf]
      %v6314 = vld [vmem:[%s704 + $0x35c] sm:$0xf]
      %v6315 = vld [vmem:[%s704 + $0x360] sm:$0xf]
      %v6316 = vld [vmem:[%s704 + $0x364] sm:$0xf]
      %v6317 = vld [vmem:[%s704 + $0x368] sm:$0xf]
      %v6318 = vld [vmem:[%s704 + $0x36c] sm:$0xf]
      %v6319 = vld [vmem:[%s704 + $0x370] sm:$0xf]
      %v6320 = vld [vmem:[%s704 + $0x374] sm:$0xf]
      %v6321 = vld [vmem:[%s704 + $0x378] sm:$0xf]
      %v6322 = vld [vmem:[%s704 + $0x37c] sm:$0xf]
      %v6323 = vld [vmem:[%s704 + $0x380] sm:$0xf]
      %v6324 = vld [vmem:[%s704 + $0x384] sm:$0xf]
      %v6325 = vld [vmem:[%s704 + $0x388] sm:$0xf]
      %v6326 = vld [vmem:[%s704 + $0x38c] sm:$0xf]
      %v6327 = vld [vmem:[%s704 + $0x390] sm:$0xf]
      %v6328 = vld [vmem:[%s704 + $0x394] sm:$0xf]
      %v6329 = vld [vmem:[%s704 + $0x398] sm:$0xf]
      %v6330 = vld [vmem:[%s704 + $0x39c] sm:$0xf]
      %v6331 = vld [vmem:[%s704 + $0x3a0] sm:$0xf]
      %v6332 = vld [vmem:[%s704 + $0x3a4] sm:$0xf]
      %v6333 = vld [vmem:[%s704 + $0x3a8] sm:$0xf]
      %v6334 = vld [vmem:[%s704 + $0x3ac] sm:$0xf]
      %v6335 = vld [vmem:[%s704 + $0x3b0] sm:$0xf]
      %v6336 = vld [vmem:[%s704 + $0x3b4] sm:$0xf]
      %v6337 = vld [vmem:[%s704 + $0x3b8] sm:$0xf]
      %v6338 = vld [vmem:[%s704 + $0x3bc] sm:$0xf]
      %v6339 = vld [vmem:[%s704 + $0x3c0] sm:$0xf]
      %v6340 = vld [vmem:[%s704 + $0x3c4] sm:$0xf]
      %v6341 = vld [vmem:[%s704 + $0x3c8] sm:$0xf]
      %v6342 = vld [vmem:[%s704 + $0x3cc] sm:$0xf]
      %v6343 = vld [vmem:[%s704 + $0x3d0] sm:$0xf]
      %v6344 = vld [vmem:[%s704 + $0x3d4] sm:$0xf]
      %v6345 = vld [vmem:[%s704 + $0x3d8] sm:$0xf]
      %v6346 = vld [vmem:[%s704 + $0x3dc] sm:$0xf]
      %v6347 = vld [vmem:[%s704 + $0x3e0] sm:$0xf]
      %v6348 = vld [vmem:[%s704 + $0x3e4] sm:$0xf]
      %v6349 = vld [vmem:[%s704 + $0x3e8] sm:$0xf]
      %v6350 = vld [vmem:[%s704 + $0x3ec] sm:$0xf]
      %v6351 = vld [vmem:[%s704 + $0x3f0] sm:$0xf]
      %v6352 = vld [vmem:[%s704 + $0x3f4] sm:$0xf]
      %v6353 = vld [vmem:[%s704 + $0x3f8] sm:$0xf]
      %v6354 = vld [vmem:[%s704 + $0x3fc] sm:$0xf]
      %v6355 = vld [vmem:[%s707] sm:$0x1]
      %v6357 = vlaneseq
      %v6358 = vshrl.u32 %v6357, 7
      %v6359 = vsub.s32 0, %v6358
      %v6360 = vrot.slane %v6355, %v6359
      %v6618 = vunpack.c.l.b16 %v6099
      %v6619 = vunpack.c.l.b16 %v6100
      %v6620 = vunpack.c.l.b16 %v6101
      %v6621 = vunpack.c.l.b16 %v6102
      %v6622 = vunpack.c.l.b16 %v6103
      %v6623 = vunpack.c.l.b16 %v6104
      %v6624 = vunpack.c.l.b16 %v6105
      %v6625 = vunpack.c.l.b16 %v6106
      %v6626 = vunpack.c.l.b16 %v6107
      %v6627 = vunpack.c.l.b16 %v6108
      %v6628 = vunpack.c.l.b16 %v6109
      %v6629 = vunpack.c.l.b16 %v6110
      %v6630 = vunpack.c.l.b16 %v6111
      %v6631 = vunpack.c.l.b16 %v6112
      %v6632 = vunpack.c.l.b16 %v6113
      %v6633 = vunpack.c.l.b16 %v6114
      %v6634 = vunpack.c.l.b16 %v6115
      %v6635 = vunpack.c.l.b16 %v6116
      %v6636 = vunpack.c.l.b16 %v6117
      %v6637 = vunpack.c.l.b16 %v6118
      %v6638 = vunpack.c.l.b16 %v6119
      %v6639 = vunpack.c.l.b16 %v6120
      %v6640 = vunpack.c.l.b16 %v6121
      %v6641 = vunpack.c.l.b16 %v6122
      %v6642 = vunpack.c.l.b16 %v6123
      %v6643 = vunpack.c.l.b16 %v6124
      %v6644 = vunpack.c.l.b16 %v6125
      %v6645 = vunpack.c.l.b16 %v6126
      %v6646 = vunpack.c.l.b16 %v6127
      %v6647 = vunpack.c.l.b16 %v6128
      %v6648 = vunpack.c.l.b16 %v6129
      %v6649 = vunpack.c.l.b16 %v6130
      %v6650 = vunpack.c.l.b16 %v6131
      %v6651 = vunpack.c.l.b16 %v6132
      %v6652 = vunpack.c.l.b16 %v6133
      %v6653 = vunpack.c.l.b16 %v6134
      %v6654 = vunpack.c.l.b16 %v6135
      %v6655 = vunpack.c.l.b16 %v6136
      %v6656 = vunpack.c.l.b16 %v6137
      %v6657 = vunpack.c.l.b16 %v6138
      %v6658 = vunpack.c.l.b16 %v6139
      %v6659 = vunpack.c.l.b16 %v6140
      %v6660 = vunpack.c.l.b16 %v6141
      %v6661 = vunpack.c.l.b16 %v6142
      %v6662 = vunpack.c.l.b16 %v6143
      %v6663 = vunpack.c.l.b16 %v6144
      %v6664 = vunpack.c.l.b16 %v6145
      %v6665 = vunpack.c.l.b16 %v6146
      %v6666 = vunpack.c.l.b16 %v6147
      %v6667 = vunpack.c.l.b16 %v6148
      %v6668 = vunpack.c.l.b16 %v6149
      %v6669 = vunpack.c.l.b16 %v6150
      %v6670 = vunpack.c.l.b16 %v6151
      %v6671 = vunpack.c.l.b16 %v6152
      %v6672 = vunpack.c.l.b16 %v6153
      %v6673 = vunpack.c.l.b16 %v6154
      %v6674 = vunpack.c.l.b16 %v6155
      %v6675 = vunpack.c.l.b16 %v6156
      %v6676 = vunpack.c.l.b16 %v6157
      %v6677 = vunpack.c.l.b16 %v6158
      %v6678 = vunpack.c.l.b16 %v6159
      %v6679 = vunpack.c.l.b16 %v6160
      %v6680 = vunpack.c.l.b16 %v6161
      %v6681 = vunpack.c.l.b16 %v6162
      %v6682 = vunpack.c.l.b16 %v6163
      %v6683 = vunpack.c.l.b16 %v6164
      %v6684 = vunpack.c.l.b16 %v6165
      %v6685 = vunpack.c.l.b16 %v6166
      %v6686 = vunpack.c.l.b16 %v6167
      %v6687 = vunpack.c.l.b16 %v6168
      %v6688 = vunpack.c.l.b16 %v6169
      %v6689 = vunpack.c.l.b16 %v6170
      %v6690 = vunpack.c.l.b16 %v6171
      %v6691 = vunpack.c.l.b16 %v6172
      %v6692 = vunpack.c.l.b16 %v6173
      %v6693 = vunpack.c.l.b16 %v6174
      %v6694 = vunpack.c.l.b16 %v6175
      %v6695 = vunpack.c.l.b16 %v6176
      %v6696 = vunpack.c.l.b16 %v6177
      %v6697 = vunpack.c.l.b16 %v6178
      %v6698 = vunpack.c.l.b16 %v6179
      %v6699 = vunpack.c.l.b16 %v6180
      %v6700 = vunpack.c.l.b16 %v6181
      %v6701 = vunpack.c.l.b16 %v6182
      %v6702 = vunpack.c.l.b16 %v6183
      %v6703 = vunpack.c.l.b16 %v6184
      %v6704 = vunpack.c.l.b16 %v6185
      %v6705 = vunpack.c.l.b16 %v6186
      %v6706 = vunpack.c.l.b16 %v6187
      %v6707 = vunpack.c.l.b16 %v6188
      %v6708 = vunpack.c.l.b16 %v6189
      %v6709 = vunpack.c.l.b16 %v6190
      %v6710 = vunpack.c.l.b16 %v6191
      %v6711 = vunpack.c.l.b16 %v6192
      %v6712 = vunpack.c.l.b16 %v6193
      %v6713 = vunpack.c.l.b16 %v6194
      %v6714 = vunpack.c.l.b16 %v6195
      %v6715 = vunpack.c.l.b16 %v6196
      %v6716 = vunpack.c.l.b16 %v6197
      %v6717 = vunpack.c.l.b16 %v6198
      %v6718 = vunpack.c.l.b16 %v6199
      %v6719 = vunpack.c.l.b16 %v6200
      %v6720 = vunpack.c.l.b16 %v6201
      %v6721 = vunpack.c.l.b16 %v6202
      %v6722 = vunpack.c.l.b16 %v6203
      %v6723 = vunpack.c.l.b16 %v6204
      %v6724 = vunpack.c.l.b16 %v6205
      %v6725 = vunpack.c.l.b16 %v6206
      %v6726 = vunpack.c.l.b16 %v6207
      %v6727 = vunpack.c.l.b16 %v6208
      %v6728 = vunpack.c.l.b16 %v6209
      %v6729 = vunpack.c.l.b16 %v6210
      %v6730 = vunpack.c.l.b16 %v6211
      %v6731 = vunpack.c.l.b16 %v6212
      %v6732 = vunpack.c.l.b16 %v6213
      %v6733 = vunpack.c.l.b16 %v6214
      %v6734 = vunpack.c.l.b16 %v6215
      %v6735 = vunpack.c.l.b16 %v6216
      %v6736 = vunpack.c.l.b16 %v6217
      %v6737 = vunpack.c.l.b16 %v6218
      %v6738 = vunpack.c.l.b16 %v6219
      %v6739 = vunpack.c.l.b16 %v6220
      %v6740 = vunpack.c.l.b16 %v6221
      %v6741 = vunpack.c.l.b16 %v6222
      %v6742 = vunpack.c.l.b16 %v6223
      %v6743 = vunpack.c.l.b16 %v6224
      %v6744 = vunpack.c.l.b16 %v6225
      %v6745 = vunpack.c.l.b16 %v6226
      %v6746 = vunpack.c.l.b16 %v6227
      %v6747 = vunpack.c.l.b16 %v6228
      %v6748 = vunpack.c.l.b16 %v6229
      %v6749 = vunpack.c.l.b16 %v6230
      %v6750 = vunpack.c.l.b16 %v6231
      %v6751 = vunpack.c.l.b16 %v6232
      %v6752 = vunpack.c.l.b16 %v6233
      %v6753 = vunpack.c.l.b16 %v6234
      %v6754 = vunpack.c.l.b16 %v6235
      %v6755 = vunpack.c.l.b16 %v6236
      %v6756 = vunpack.c.l.b16 %v6237
      %v6757 = vunpack.c.l.b16 %v6238
      %v6758 = vunpack.c.l.b16 %v6239
      %v6759 = vunpack.c.l.b16 %v6240
      %v6760 = vunpack.c.l.b16 %v6241
      %v6761 = vunpack.c.l.b16 %v6242
      %v6762 = vunpack.c.l.b16 %v6243
      %v6763 = vunpack.c.l.b16 %v6244
      %v6764 = vunpack.c.l.b16 %v6245
      %v6765 = vunpack.c.l.b16 %v6246
      %v6766 = vunpack.c.l.b16 %v6247
      %v6767 = vunpack.c.l.b16 %v6248
      %v6768 = vunpack.c.l.b16 %v6249
      %v6769 = vunpack.c.l.b16 %v6250
      %v6770 = vunpack.c.l.b16 %v6251
      %v6771 = vunpack.c.l.b16 %v6252
      %v6772 = vunpack.c.l.b16 %v6253
      %v6773 = vunpack.c.l.b16 %v6254
      %v6774 = vunpack.c.l.b16 %v6255
      %v6775 = vunpack.c.l.b16 %v6256
      %v6776 = vunpack.c.l.b16 %v6257
      %v6777 = vunpack.c.l.b16 %v6258
      %v6778 = vunpack.c.l.b16 %v6259
      %v6779 = vunpack.c.l.b16 %v6260
      %v6780 = vunpack.c.l.b16 %v6261
      %v6781 = vunpack.c.l.b16 %v6262
      %v6782 = vunpack.c.l.b16 %v6263
      %v6783 = vunpack.c.l.b16 %v6264
      %v6784 = vunpack.c.l.b16 %v6265
      %v6785 = vunpack.c.l.b16 %v6266
      %v6786 = vunpack.c.l.b16 %v6267
      %v6787 = vunpack.c.l.b16 %v6268
      %v6788 = vunpack.c.l.b16 %v6269
      %v6789 = vunpack.c.l.b16 %v6270
      %v6790 = vunpack.c.l.b16 %v6271
      %v6791 = vunpack.c.l.b16 %v6272
      %v6792 = vunpack.c.l.b16 %v6273
      %v6793 = vunpack.c.l.b16 %v6274
      %v6794 = vunpack.c.l.b16 %v6275
      %v6795 = vunpack.c.l.b16 %v6276
      %v6796 = vunpack.c.l.b16 %v6277
      %v6797 = vunpack.c.l.b16 %v6278
      %v6798 = vunpack.c.l.b16 %v6279
      %v6799 = vunpack.c.l.b16 %v6280
      %v6800 = vunpack.c.l.b16 %v6281
      %v6801 = vunpack.c.l.b16 %v6282
      %v6802 = vunpack.c.l.b16 %v6283
      %v6803 = vunpack.c.l.b16 %v6284
      %v6804 = vunpack.c.l.b16 %v6285
      %v6805 = vunpack.c.l.b16 %v6286
      %v6806 = vunpack.c.l.b16 %v6287
      %v6807 = vunpack.c.l.b16 %v6288
      %v6808 = vunpack.c.l.b16 %v6289
      %v6809 = vunpack.c.l.b16 %v6290
      %v6810 = vunpack.c.l.b16 %v6291
      %v6811 = vunpack.c.l.b16 %v6292
      %v6812 = vunpack.c.l.b16 %v6293
      %v6813 = vunpack.c.l.b16 %v6294
      %v6814 = vunpack.c.l.b16 %v6295
      %v6815 = vunpack.c.l.b16 %v6296
      %v6816 = vunpack.c.l.b16 %v6297
      %v6817 = vunpack.c.l.b16 %v6298
      %v6818 = vunpack.c.l.b16 %v6299
      %v6819 = vunpack.c.l.b16 %v6300
      %v6820 = vunpack.c.l.b16 %v6301
      %v6821 = vunpack.c.l.b16 %v6302
      %v6822 = vunpack.c.l.b16 %v6303
      %v6823 = vunpack.c.l.b16 %v6304
      %v6824 = vunpack.c.l.b16 %v6305
      %v6825 = vunpack.c.l.b16 %v6306
      %v6826 = vunpack.c.l.b16 %v6307
      %v6827 = vunpack.c.l.b16 %v6308
      %v6828 = vunpack.c.l.b16 %v6309
      %v6829 = vunpack.c.l.b16 %v6310
      %v6830 = vunpack.c.l.b16 %v6311
      %v6831 = vunpack.c.l.b16 %v6312
      %v6832 = vunpack.c.l.b16 %v6313
      %v6833 = vunpack.c.l.b16 %v6314
      %v6834 = vunpack.c.l.b16 %v6315
      %v6835 = vunpack.c.l.b16 %v6316
      %v6836 = vunpack.c.l.b16 %v6317
      %v6837 = vunpack.c.l.b16 %v6318
      %v6838 = vunpack.c.l.b16 %v6319
      %v6839 = vunpack.c.l.b16 %v6320
      %v6840 = vunpack.c.l.b16 %v6321
      %v6841 = vunpack.c.l.b16 %v6322
      %v6842 = vunpack.c.l.b16 %v6323
      %v6843 = vunpack.c.l.b16 %v6324
      %v6844 = vunpack.c.l.b16 %v6325
      %v6845 = vunpack.c.l.b16 %v6326
      %v6846 = vunpack.c.l.b16 %v6327
      %v6847 = vunpack.c.l.b16 %v6328
      %v6848 = vunpack.c.l.b16 %v6329
      %v6849 = vunpack.c.l.b16 %v6330
      %v6850 = vunpack.c.l.b16 %v6331
      %v6851 = vunpack.c.l.b16 %v6332
      %v6852 = vunpack.c.l.b16 %v6333
      %v6853 = vunpack.c.l.b16 %v6334
      %v6854 = vunpack.c.l.b16 %v6335
      %v6855 = vunpack.c.l.b16 %v6336
      %v6856 = vunpack.c.l.b16 %v6337
      %v6857 = vunpack.c.l.b16 %v6338
      %v6858 = vunpack.c.l.b16 %v6339
      %v6859 = vunpack.c.l.b16 %v6340
      %v6860 = vunpack.c.l.b16 %v6341
      %v6861 = vunpack.c.l.b16 %v6342
      %v6862 = vunpack.c.l.b16 %v6343
      %v6863 = vunpack.c.l.b16 %v6344
      %v6864 = vunpack.c.l.b16 %v6345
      %v6865 = vunpack.c.l.b16 %v6346
      %v6866 = vunpack.c.l.b16 %v6347
      %v6867 = vunpack.c.l.b16 %v6348
      %v6868 = vunpack.c.l.b16 %v6349
      %v6869 = vunpack.c.l.b16 %v6350
      %v6870 = vunpack.c.l.b16 %v6351
      %v6871 = vunpack.c.l.b16 %v6352
      %v6872 = vunpack.c.l.b16 %v6353
      %v6873 = vunpack.c.l.b16 %v6354
      %v6874 = vpack.c.b16 %v6619, %v6618
      %v6875 = vpack.c.b16 %v6621, %v6620
      %v6876 = vpack.c.b16 %v6623, %v6622
      %v6877 = vpack.c.b16 %v6625, %v6624
      %v6878 = vpack.c.b16 %v6627, %v6626
      %v6879 = vpack.c.b16 %v6629, %v6628
      %v6880 = vpack.c.b16 %v6631, %v6630
      %v6881 = vpack.c.b16 %v6633, %v6632
      %v6882 = vpack.c.b16 %v6635, %v6634
      %v6883 = vpack.c.b16 %v6637, %v6636
      %v6884 = vpack.c.b16 %v6639, %v6638
      %v6885 = vpack.c.b16 %v6641, %v6640
      %v6886 = vpack.c.b16 %v6643, %v6642
      %v6887 = vpack.c.b16 %v6645, %v6644
      %v6888 = vpack.c.b16 %v6647, %v6646
      %v6889 = vpack.c.b16 %v6649, %v6648
      %v6890 = vpack.c.b16 %v6651, %v6650
      %v6891 = vpack.c.b16 %v6653, %v6652
      %v6892 = vpack.c.b16 %v6655, %v6654
      %v6893 = vpack.c.b16 %v6657, %v6656
      %v6894 = vpack.c.b16 %v6659, %v6658
      %v6895 = vpack.c.b16 %v6661, %v6660
      %v6896 = vpack.c.b16 %v6663, %v6662
      %v6897 = vpack.c.b16 %v6665, %v6664
      %v6898 = vpack.c.b16 %v6667, %v6666
      %v6899 = vpack.c.b16 %v6669, %v6668
      %v6900 = vpack.c.b16 %v6671, %v6670
      %v6901 = vpack.c.b16 %v6673, %v6672
      %v6902 = vpack.c.b16 %v6675, %v6674
      %v6903 = vpack.c.b16 %v6677, %v6676
      %v6904 = vpack.c.b16 %v6679, %v6678
      %v6905 = vpack.c.b16 %v6681, %v6680
      %v6906 = vpack.c.b16 %v6683, %v6682
      %v6907 = vpack.c.b16 %v6685, %v6684
      %v6908 = vpack.c.b16 %v6687, %v6686
      %v6909 = vpack.c.b16 %v6689, %v6688
      %v6910 = vpack.c.b16 %v6691, %v6690
      %v6911 = vpack.c.b16 %v6693, %v6692
      %v6912 = vpack.c.b16 %v6695, %v6694
      %v6913 = vpack.c.b16 %v6697, %v6696
      %v6914 = vpack.c.b16 %v6699, %v6698
      %v6915 = vpack.c.b16 %v6701, %v6700
      %v6916 = vpack.c.b16 %v6703, %v6702
      %v6917 = vpack.c.b16 %v6705, %v6704
      %v6918 = vpack.c.b16 %v6707, %v6706
      %v6919 = vpack.c.b16 %v6709, %v6708
      %v6920 = vpack.c.b16 %v6711, %v6710
      %v6921 = vpack.c.b16 %v6713, %v6712
      %v6922 = vpack.c.b16 %v6715, %v6714
      %v6923 = vpack.c.b16 %v6717, %v6716
      %v6924 = vpack.c.b16 %v6719, %v6718
      %v6925 = vpack.c.b16 %v6721, %v6720
      %v6926 = vpack.c.b16 %v6723, %v6722
      %v6927 = vpack.c.b16 %v6725, %v6724
      %v6928 = vpack.c.b16 %v6727, %v6726
      %v6929 = vpack.c.b16 %v6729, %v6728
      %v6930 = vpack.c.b16 %v6731, %v6730
      %v6931 = vpack.c.b16 %v6733, %v6732
      %v6932 = vpack.c.b16 %v6735, %v6734
      %v6933 = vpack.c.b16 %v6737, %v6736
      %v6934 = vpack.c.b16 %v6739, %v6738
      %v6935 = vpack.c.b16 %v6741, %v6740
      %v6936 = vpack.c.b16 %v6743, %v6742
      %v6937 = vpack.c.b16 %v6745, %v6744
      %v6938 = vpack.c.b16 %v6747, %v6746
      %v6939 = vpack.c.b16 %v6749, %v6748
      %v6940 = vpack.c.b16 %v6751, %v6750
      %v6941 = vpack.c.b16 %v6753, %v6752
      %v6942 = vpack.c.b16 %v6755, %v6754
      %v6943 = vpack.c.b16 %v6757, %v6756
      %v6944 = vpack.c.b16 %v6759, %v6758
      %v6945 = vpack.c.b16 %v6761, %v6760
      %v6946 = vpack.c.b16 %v6763, %v6762
      %v6947 = vpack.c.b16 %v6765, %v6764
      %v6948 = vpack.c.b16 %v6767, %v6766
      %v6949 = vpack.c.b16 %v6769, %v6768
      %v6950 = vpack.c.b16 %v6771, %v6770
      %v6951 = vpack.c.b16 %v6773, %v6772
      %v6952 = vpack.c.b16 %v6775, %v6774
      %v6953 = vpack.c.b16 %v6777, %v6776
      %v6954 = vpack.c.b16 %v6779, %v6778
      %v6955 = vpack.c.b16 %v6781, %v6780
      %v6956 = vpack.c.b16 %v6783, %v6782
      %v6957 = vpack.c.b16 %v6785, %v6784
      %v6958 = vpack.c.b16 %v6787, %v6786
      %v6959 = vpack.c.b16 %v6789, %v6788
      %v6960 = vpack.c.b16 %v6791, %v6790
      %v6961 = vpack.c.b16 %v6793, %v6792
      %v6962 = vpack.c.b16 %v6795, %v6794
      %v6963 = vpack.c.b16 %v6797, %v6796
      %v6964 = vpack.c.b16 %v6799, %v6798
      %v6965 = vpack.c.b16 %v6801, %v6800
      %v6966 = vpack.c.b16 %v6803, %v6802
      %v6967 = vpack.c.b16 %v6805, %v6804
      %v6968 = vpack.c.b16 %v6807, %v6806
      %v6969 = vpack.c.b16 %v6809, %v6808
      %v6970 = vpack.c.b16 %v6811, %v6810
      %v6971 = vpack.c.b16 %v6813, %v6812
      %v6972 = vpack.c.b16 %v6815, %v6814
      %v6973 = vpack.c.b16 %v6817, %v6816
      %v6974 = vpack.c.b16 %v6819, %v6818
      %v6975 = vpack.c.b16 %v6821, %v6820
      %v6976 = vpack.c.b16 %v6823, %v6822
      %v6977 = vpack.c.b16 %v6825, %v6824
      %v6978 = vpack.c.b16 %v6827, %v6826
      %v6979 = vpack.c.b16 %v6829, %v6828
      %v6980 = vpack.c.b16 %v6831, %v6830
      %v6981 = vpack.c.b16 %v6833, %v6832
      %v6982 = vpack.c.b16 %v6835, %v6834
      %v6983 = vpack.c.b16 %v6837, %v6836
      %v6984 = vpack.c.b16 %v6839, %v6838
      %v6985 = vpack.c.b16 %v6841, %v6840
      %v6986 = vpack.c.b16 %v6843, %v6842
      %v6987 = vpack.c.b16 %v6845, %v6844
      %v6988 = vpack.c.b16 %v6847, %v6846
      %v6989 = vpack.c.b16 %v6849, %v6848
      %v6990 = vpack.c.b16 %v6851, %v6850
      %v6991 = vpack.c.b16 %v6853, %v6852
      %v6992 = vpack.c.b16 %v6855, %v6854
      %v6993 = vpack.c.b16 %v6857, %v6856
      %v6994 = vpack.c.b16 %v6859, %v6858
      %v6995 = vpack.c.b16 %v6861, %v6860
      %v6996 = vpack.c.b16 %v6863, %v6862
      %v6997 = vpack.c.b16 %v6865, %v6864
      %v6998 = vpack.c.b16 %v6867, %v6866
      %v6999 = vpack.c.b16 %v6869, %v6868
      %v7000 = vpack.c.b16 %v6871, %v6870
      %v7001 = vpack.c.b16 %v6873, %v6872
      %7130 = vmatprep.subr.bf16.mxu0 0
      %7131 = vmatpush1.bf16.msra.mxu0 %v6874
      %7132 = vmatprep.subr.bf16.mxu0 0
      %7133 = vmatpush1.bf16.msra.mxu0 %v6875
      %7134 = vmatprep.subr.bf16.mxu0 0
      %7135 = vmatpush1.bf16.msra.mxu0 %v6876
      %7136 = vmatprep.subr.bf16.mxu0 0
      %7137 = vmatpush1.bf16.msra.mxu0 %v6877
      %7138 = vmatprep.subr.bf16.mxu0 0
      %7139 = vmatpush1.bf16.msra.mxu0 %v6878
      %7140 = vmatprep.subr.bf16.mxu0 0
      %7141 = vmatpush1.bf16.msra.mxu0 %v6879
      %7142 = vmatprep.subr.bf16.mxu0 0
      %7143 = vmatpush1.bf16.msra.mxu0 %v6880
      %7144 = vmatprep.subr.bf16.mxu0 0
      %7145 = vmatpush1.bf16.msra.mxu0 %v6881
      %7146 = vmatprep.subr.bf16.mxu0 0
      %7147 = vmatpush1.bf16.msra.mxu0 %v6882
      %7148 = vmatprep.subr.bf16.mxu0 0
      %7149 = vmatpush1.bf16.msra.mxu0 %v6883
      %7150 = vmatprep.subr.bf16.mxu0 0
      %7151 = vmatpush1.bf16.msra.mxu0 %v6884
      %7152 = vmatprep.subr.bf16.mxu0 0
      %7153 = vmatpush1.bf16.msra.mxu0 %v6885
      %7154 = vmatprep.subr.bf16.mxu0 0
      %7155 = vmatpush1.bf16.msra.mxu0 %v6886
      %7156 = vmatprep.subr.bf16.mxu0 0
      %7157 = vmatpush1.bf16.msra.mxu0 %v6887
      %7158 = vmatprep.subr.bf16.mxu0 0
      %7159 = vmatpush1.bf16.msra.mxu0 %v6888
      %7160 = vmatprep.subr.bf16.mxu0 0
      %7161 = vmatpush1.bf16.msra.mxu0 %v6889
      %7162 = vmatprep.mubr.bf16.mxu0 %v6068
      %7163 = vmatmul.mubr.bf16.gmra.mrb[0].mxu0 %v6067
      %v7164 = vpop.f32.mrb[0].mxu0
      %v7165 = vadd.f32 %v6360, %v7164
      %v7166 = vpop.f32.mrb[0].mxu0
      %v7167 = vpop.f32.mrb[0].mxu0
      %v7168 = vadd.f32 %v6360, %v7167
      %v7169 = vpop.f32.mrb[0].mxu0
      %7170 = vmatprep.mubr.bf16.mxu0 %v6084
      %7171 = vmatmul.mubr.bf16.gmra.mrb[0].mxu0 %v6083
      %v7172 = vpop.f32.mrb[0].mxu0
      %v7173 = vadd.f32 %v6360, %v7172
      %v7174 = vpop.f32.mrb[0].mxu0
      %v7175 = vpop.f32.mrb[0].mxu0
      %v7176 = vadd.f32 %v6360, %v7175
      %v7177 = vpop.f32.mrb[0].mxu0
      %7178 = vdwg.mxu0
      %7179 = vmatprep.subr.bf16.mxu0 0
      %7180 = vmatpush1.bf16.msra.mxu0 %v6890
      %7181 = vmatprep.subr.bf16.mxu0 0
      %7182 = vmatpush1.bf16.msra.mxu0 %v6891
      %7183 = vmatprep.subr.bf16.mxu0 0
      %7184 = vmatpush1.bf16.msra.mxu0 %v6892
      %7185 = vmatprep.subr.bf16.mxu0 0
      %7186 = vmatpush1.bf16.msra.mxu0 %v6893
      %7187 = vmatprep.subr.bf16.mxu0 0
      %7188 = vmatpush1.bf16.msra.mxu0 %v6894
      %7189 = vmatprep.subr.bf16.mxu0 0
      %7190 = vmatpush1.bf16.msra.mxu0 %v6895
      %7191 = vmatprep.subr.bf16.mxu0 0
      %7192 = vmatpush1.bf16.msra.mxu0 %v6896
      %7193 = vmatprep.subr.bf16.mxu0 0
      %7194 = vmatpush1.bf16.msra.mxu0 %v6897
      %7195 = vmatprep.subr.bf16.mxu0 0
      %7196 = vmatpush1.bf16.msra.mxu0 %v6898
      %7197 = vmatprep.subr.bf16.mxu0 0
      %7198 = vmatpush1.bf16.msra.mxu0 %v6899
      %7199 = vmatprep.subr.bf16.mxu0 0
      %7200 = vmatpush1.bf16.msra.mxu0 %v6900
      %7201 = vmatprep.subr.bf16.mxu0 0
      %7202 = vmatpush1.bf16.msra.mxu0 %v6901
      %7203 = vmatprep.subr.bf16.mxu0 0
      %7204 = vmatpush1.bf16.msra.mxu0 %v6902
      %7205 = vmatprep.subr.bf16.mxu0 0
      %7206 = vmatpush1.bf16.msra.mxu0 %v6903
      %7207 = vmatprep.subr.bf16.mxu0 0
      %7208 = vmatpush1.bf16.msra.mxu0 %v6904
      %7209 = vmatprep.subr.bf16.mxu0 0
      %7210 = vmatpush1.bf16.msra.mxu0 %v6905
      %7211 = vmatprep.mubr.bf16.mxu0 %v6070
      %7212 = vmatmul.mubr.bf16.gmra.mrb[0].mxu0 %v6069
      %v7213 = vpop.f32.mrb[0].mxu0
      %v7214 = vadd.f32 %v7165, %v7213
      %v7215 = vpop.f32.mrb[0].mxu0
      %v7216 = vpop.f32.mrb[0].mxu0
      %v7217 = vadd.f32 %v7168, %v7216
      %v7218 = vpop.f32.mrb[0].mxu0
      %7219 = vmatprep.mubr.bf16.mxu0 %v6086
      %7220 = vmatmul.mubr.bf16.gmra.mrb[0].mxu0 %v6085
      %v7221 = vpop.f32.mrb[0].mxu0
      %v7222 = vadd.f32 %v7173, %v7221
      %v7223 = vpop.f32.mrb[0].mxu0
      %v7224 = vpop.f32.mrb[0].mxu0
      %v7225 = vadd.f32 %v7176, %v7224
      %v7226 = vpop.f32.mrb[0].mxu0
      %7227 = vdwg.mxu0
      %7228 = vmatprep.subr.bf16.mxu0 0
      %7229 = vmatpush1.bf16.msra.mxu0 %v6906
      %7230 = vmatprep.subr.bf16.mxu0 0
      %7231 = vmatpush1.bf16.msra.mxu0 %v6907
      %7232 = vmatprep.subr.bf16.mxu0 0
      %7233 = vmatpush1.bf16.msra.mxu0 %v6908
      %7234 = vmatprep.subr.bf16.mxu0 0
      %7235 = vmatpush1.bf16.msra.mxu0 %v6909
      %7236 = vmatprep.subr.bf16.mxu0 0
      %7237 = vmatpush1.bf16.msra.mxu0 %v6910
      %7238 = vmatprep.subr.bf16.mxu0 0
      %7239 = vmatpush1.bf16.msra.mxu0 %v6911
      %7240 = vmatprep.subr.bf16.mxu0 0
      %7241 = vmatpush1.bf16.msra.mxu0 %v6912
      %7242 = vmatprep.subr.bf16.mxu0 0
      %7243 = vmatpush1.bf16.msra.mxu0 %v6913
      %7244 = vmatprep.subr.bf16.mxu0 0
      %7245 = vmatpush1.bf16.msra.mxu0 %v6914
      %7246 = vmatprep.subr.bf16.mxu0 0
      %7247 = vmatpush1.bf16.msra.mxu0 %v6915
      %7248 = vmatprep.subr.bf16.mxu0 0
      %7249 = vmatpush1.bf16.msra.mxu0 %v6916
      %7250 = vmatprep.subr.bf16.mxu0 0
      %7251 = vmatpush1.bf16.msra.mxu0 %v6917
      %7252 = vmatprep.subr.bf16.mxu0 0
      %7253 = vmatpush1.bf16.msra.mxu0 %v6918
      %7254 = vmatprep.subr.bf16.mxu0 0
      %7255 = vmatpush1.bf16.msra.mxu0 %v6919
      %7256 = vmatprep.subr.bf16.mxu0 0
      %7257 = vmatpush1.bf16.msra.mxu0 %v6920
      %7258 = vmatprep.subr.bf16.mxu0 0
      %7259 = vmatpush1.bf16.msra.mxu0 %v6921
      %7260 = vmatprep.mubr.bf16.mxu0 %v6072
      %7261 = vmatmul.mubr.bf16.gmra.mrb[0].mxu0 %v6071
      %v7262 = vpop.f32.mrb[0].mxu0
      %v7263 = vadd.f32 %v7214, %v7262
      %v7264 = vpop.f32.mrb[0].mxu0
      %v7265 = vpop.f32.mrb[0].mxu0
      %v7266 = vadd.f32 %v7217, %v7265
      %v7267 = vpop.f32.mrb[0].mxu0
      %7268 = vmatprep.mubr.bf16.mxu0 %v6088
      %7269 = vmatmul.mubr.bf16.gmra.mrb[0].mxu0 %v6087
      %v7270 = vpop.f32.mrb[0].mxu0
      %v7271 = vadd.f32 %v7222, %v7270
      %v7272 = vpop.f32.mrb[0].mxu0
      %v7273 = vpop.f32.mrb[0].mxu0
      %v7274 = vadd.f32 %v7225, %v7273
      %v7275 = vpop.f32.mrb[0].mxu0
      %7276 = vdwg.mxu0
      %7277 = vmatprep.subr.bf16.mxu0 0
      %7278 = vmatpush1.bf16.msra.mxu0 %v6922
      %7279 = vmatprep.subr.bf16.mxu0 0
      %7280 = vmatpush1.bf16.msra.mxu0 %v6923
      %7281 = vmatprep.subr.bf16.mxu0 0
      %7282 = vmatpush1.bf16.msra.mxu0 %v6924
      %7283 = vmatprep.subr.bf16.mxu0 0
      %7284 = vmatpush1.bf16.msra.mxu0 %v6925
      %7285 = vmatprep.subr.bf16.mxu0 0
      %7286 = vmatpush1.bf16.msra.mxu0 %v6926
      %7287 = vmatprep.subr.bf16.mxu0 0
      %7288 = vmatpush1.bf16.msra.mxu0 %v6927
      %7289 = vmatprep.subr.bf16.mxu0 0
      %7290 = vmatpush1.bf16.msra.mxu0 %v6928
      %7291 = vmatprep.subr.bf16.mxu0 0
      %7292 = vmatpush1.bf16.msra.mxu0 %v6929
      %7293 = vmatprep.subr.bf16.mxu0 0
      %7294 = vmatpush1.bf16.msra.mxu0 %v6930
      %7295 = vmatprep.subr.bf16.mxu0 0
      %7296 = vmatpush1.bf16.msra.mxu0 %v6931
      %7297 = vmatprep.subr.bf16.mxu0 0
      %7298 = vmatpush1.bf16.msra.mxu0 %v6932
      %7299 = vmatprep.subr.bf16.mxu0 0
      %7300 = vmatpush1.bf16.msra.mxu0 %v6933
      %7301 = vmatprep.subr.bf16.mxu0 0
      %7302 = vmatpush1.bf16.msra.mxu0 %v6934
      %7303 = vmatprep.subr.bf16.mxu0 0
      %7304 = vmatpush1.bf16.msra.mxu0 %v6935
      %7305 = vmatprep.subr.bf16.mxu0 0
      %7306 = vmatpush1.bf16.msra.mxu0 %v6936
      %7307 = vmatprep.subr.bf16.mxu0 0
      %7308 = vmatpush1.bf16.msra.mxu0 %v6937
      %7309 = vmatprep.mubr.bf16.mxu0 %v6074
      %7310 = vmatmul.mubr.bf16.gmra.mrb[0].mxu0 %v6073
      %v7311 = vpop.f32.mrb[0].mxu0
      %v7312 = vadd.f32 %v7263, %v7311
      %v7313 = vpop.f32.mrb[0].mxu0
      %v7314 = vpop.f32.mrb[0].mxu0
      %v7315 = vadd.f32 %v7266, %v7314
      %v7316 = vpop.f32.mrb[0].mxu0
      %7317 = vmatprep.mubr.bf16.mxu0 %v6090
      %7318 = vmatmul.mubr.bf16.gmra.mrb[0].mxu0 %v6089
      %v7319 = vpop.f32.mrb[0].mxu0
      %v7320 = vadd.f32 %v7271, %v7319
      %v7321 = vpop.f32.mrb[0].mxu0
      %v7322 = vpop.f32.mrb[0].mxu0
      %v7323 = vadd.f32 %v7274, %v7322
      %v7324 = vpop.f32.mrb[0].mxu0
      %7325 = vdwg.mxu0
      %7326 = vmatprep.subr.bf16.mxu0 0
      %7327 = vmatpush1.bf16.msra.mxu0 %v6938
      %7328 = vmatprep.subr.bf16.mxu0 0
      %7329 = vmatpush1.bf16.msra.mxu0 %v6939
      %7330 = vmatprep.subr.bf16.mxu0 0
      %7331 = vmatpush1.bf16.msra.mxu0 %v6940
      %7332 = vmatprep.subr.bf16.mxu0 0
      %7333 = vmatpush1.bf16.msra.mxu0 %v6941
      %7334 = vmatprep.subr.bf16.mxu0 0
      %7335 = vmatpush1.bf16.msra.mxu0 %v6942
      %7336 = vmatprep.subr.bf16.mxu0 0
      %7337 = vmatpush1.bf16.msra.mxu0 %v6943
      %7338 = vmatprep.subr.bf16.mxu0 0
      %7339 = vmatpush1.bf16.msra.mxu0 %v6944
      %7340 = vmatprep.subr.bf16.mxu0 0
      %7341 = vmatpush1.bf16.msra.mxu0 %v6945
      %7342 = vmatprep.subr.bf16.mxu0 0
      %7343 = vmatpush1.bf16.msra.mxu0 %v6946
      %7344 = vmatprep.subr.bf16.mxu0 0
      %7345 = vmatpush1.bf16.msra.mxu0 %v6947
      %7346 = vmatprep.subr.bf16.mxu0 0
      %7347 = vmatpush1.bf16.msra.mxu0 %v6948
      %7348 = vmatprep.subr.bf16.mxu0 0
      %7349 = vmatpush1.bf16.msra.mxu0 %v6949
      %7350 = vmatprep.subr.bf16.mxu0 0
      %7351 = vmatpush1.bf16.msra.mxu0 %v6950
      %7352 = vmatprep.subr.bf16.mxu0 0
      %7353 = vmatpush1.bf16.msra.mxu0 %v6951
      %7354 = vmatprep.subr.bf16.mxu0 0
      %7355 = vmatpush1.bf16.msra.mxu0 %v6952
      %7356 = vmatprep.subr.bf16.mxu0 0
      %7357 = vmatpush1.bf16.msra.mxu0 %v6953
      %7358 = vmatprep.mubr.bf16.mxu0 %v6076
      %7359 = vmatmul.mubr.bf16.gmra.mrb[0].mxu0 %v6075
      %v7360 = vpop.f32.mrb[0].mxu0
      %v7361 = vadd.f32 %v7312, %v7360
      %v7362 = vpop.f32.mrb[0].mxu0
      %v7363 = vpop.f32.mrb[0].mxu0
      %v7364 = vadd.f32 %v7315, %v7363
      %v7365 = vpop.f32.mrb[0].mxu0
      %7366 = vmatprep.mubr.bf16.mxu0 %v6092
      %7367 = vmatmul.mubr.bf16.gmra.mrb[0].mxu0 %v6091
      %v7368 = vpop.f32.mrb[0].mxu0
      %v7369 = vadd.f32 %v7320, %v7368
      %v7370 = vpop.f32.mrb[0].mxu0
      %v7371 = vpop.f32.mrb[0].mxu0
      %v7372 = vadd.f32 %v7323, %v7371
      %v7373 = vpop.f32.mrb[0].mxu0
      %7374 = vdwg.mxu0
      %7375 = vmatprep.subr.bf16.mxu0 0
      %7376 = vmatpush1.bf16.msra.mxu0 %v6954
      %7377 = vmatprep.subr.bf16.mxu0 0
      %7378 = vmatpush1.bf16.msra.mxu0 %v6955
      %7379 = vmatprep.subr.bf16.mxu0 0
      %7380 = vmatpush1.bf16.msra.mxu0 %v6956
      %7381 = vmatprep.subr.bf16.mxu0 0
      %7382 = vmatpush1.bf16.msra.mxu0 %v6957
      %7383 = vmatprep.subr.bf16.mxu0 0
      %7384 = vmatpush1.bf16.msra.mxu0 %v6958
      %7385 = vmatprep.subr.bf16.mxu0 0
      %7386 = vmatpush1.bf16.msra.mxu0 %v6959
      %7387 = vmatprep.subr.bf16.mxu0 0
      %7388 = vmatpush1.bf16.msra.mxu0 %v6960
      %7389 = vmatprep.subr.bf16.mxu0 0
      %7390 = vmatpush1.bf16.msra.mxu0 %v6961
      %7391 = vmatprep.subr.bf16.mxu0 0
      %7392 = vmatpush1.bf16.msra.mxu0 %v6962
      %7393 = vmatprep.subr.bf16.mxu0 0
      %7394 = vmatpush1.bf16.msra.mxu0 %v6963
      %7395 = vmatprep.subr.bf16.mxu0 0
      %7396 = vmatpush1.bf16.msra.mxu0 %v6964
      %7397 = vmatprep.subr.bf16.mxu0 0
      %7398 = vmatpush1.bf16.msra.mxu0 %v6965
      %7399 = vmatprep.subr.bf16.mxu0 0
      %7400 = vmatpush1.bf16.msra.mxu0 %v6966
      %7401 = vmatprep.subr.bf16.mxu0 0
      %7402 = vmatpush1.bf16.msra.mxu0 %v6967
      %7403 = vmatprep.subr.bf16.mxu0 0
      %7404 = vmatpush1.bf16.msra.mxu0 %v6968
      %7405 = vmatprep.subr.bf16.mxu0 0
      %7406 = vmatpush1.bf16.msra.mxu0 %v6969
      %7407 = vmatprep.mubr.bf16.mxu0 %v6078
      %7408 = vmatmul.mubr.bf16.gmra.mrb[0].mxu0 %v6077
      %v7409 = vpop.f32.mrb[0].mxu0
      %v7410 = vadd.f32 %v7361, %v7409
      %v7411 = vpop.f32.mrb[0].mxu0
      %v7412 = vpop.f32.mrb[0].mxu0
      %v7413 = vadd.f32 %v7364, %v7412
      %v7414 = vpop.f32.mrb[0].mxu0
      %7415 = vmatprep.mubr.bf16.mxu0 %v6094
      %7416 = vmatmul.mubr.bf16.gmra.mrb[0].mxu0 %v6093
      %v7417 = vpop.f32.mrb[0].mxu0
      %v7418 = vadd.f32 %v7369, %v7417
      %v7419 = vpop.f32.mrb[0].mxu0
      %v7420 = vpop.f32.mrb[0].mxu0
      %v7421 = vadd.f32 %v7372, %v7420
      %v7422 = vpop.f32.mrb[0].mxu0
      %7423 = vdwg.mxu0
      %7424 = vmatprep.subr.bf16.mxu0 0
      %7425 = vmatpush1.bf16.msra.mxu0 %v6970
      %7426 = vmatprep.subr.bf16.mxu0 0
      %7427 = vmatpush1.bf16.msra.mxu0 %v6971
      %7428 = vmatprep.subr.bf16.mxu0 0
      %7429 = vmatpush1.bf16.msra.mxu0 %v6972
      %7430 = vmatprep.subr.bf16.mxu0 0
      %7431 = vmatpush1.bf16.msra.mxu0 %v6973
      %7432 = vmatprep.subr.bf16.mxu0 0
      %7433 = vmatpush1.bf16.msra.mxu0 %v6974
      %7434 = vmatprep.subr.bf16.mxu0 0
      %7435 = vmatpush1.bf16.msra.mxu0 %v6975
      %7436 = vmatprep.subr.bf16.mxu0 0
      %7437 = vmatpush1.bf16.msra.mxu0 %v6976
      %7438 = vmatprep.subr.bf16.mxu0 0
      %7439 = vmatpush1.bf16.msra.mxu0 %v6977
      %7440 = vmatprep.subr.bf16.mxu0 0
      %7441 = vmatpush1.bf16.msra.mxu0 %v6978
      %7442 = vmatprep.subr.bf16.mxu0 0
      %7443 = vmatpush1.bf16.msra.mxu0 %v6979
      %7444 = vmatprep.subr.bf16.mxu0 0
      %7445 = vmatpush1.bf16.msra.mxu0 %v6980
      %7446 = vmatprep.subr.bf16.mxu0 0
      %7447 = vmatpush1.bf16.msra.mxu0 %v6981
      %7448 = vmatprep.subr.bf16.mxu0 0
      %7449 = vmatpush1.bf16.msra.mxu0 %v6982
      %7450 = vmatprep.subr.bf16.mxu0 0
      %7451 = vmatpush1.bf16.msra.mxu0 %v6983
      %7452 = vmatprep.subr.bf16.mxu0 0
      %7453 = vmatpush1.bf16.msra.mxu0 %v6984
      %7454 = vmatprep.subr.bf16.mxu0 0
      %7455 = vmatpush1.bf16.msra.mxu0 %v6985
      %7456 = vmatprep.mubr.bf16.mxu0 %v6080
      %7457 = vmatmul.mubr.bf16.gmra.mrb[0].mxu0 %v6079
      %v7458 = vpop.f32.mrb[0].mxu0
      %v7459 = vadd.f32 %v7410, %v7458
      %v7460 = vpop.f32.mrb[0].mxu0
      %v7461 = vpop.f32.mrb[0].mxu0
      %v7462 = vadd.f32 %v7413, %v7461
      %v7463 = vpop.f32.mrb[0].mxu0
      %7464 = vmatprep.mubr.bf16.mxu0 %v6096
      %7465 = vmatmul.mubr.bf16.gmra.mrb[0].mxu0 %v6095
      %v7466 = vpop.f32.mrb[0].mxu0
      %v7467 = vadd.f32 %v7418, %v7466
      %v7468 = vpop.f32.mrb[0].mxu0
      %v7469 = vpop.f32.mrb[0].mxu0
      %v7470 = vadd.f32 %v7421, %v7469
      %v7471 = vpop.f32.mrb[0].mxu0
      %7472 = vdwg.mxu0
      %7473 = vmatprep.subr.bf16.mxu0 0
      %7474 = vmatpush1.bf16.msra.mxu0 %v6986
      %7475 = vmatprep.subr.bf16.mxu0 0
      %7476 = vmatpush1.bf16.msra.mxu0 %v6987
      %7477 = vmatprep.subr.bf16.mxu0 0
      %7478 = vmatpush1.bf16.msra.mxu0 %v6988
      %7479 = vmatprep.subr.bf16.mxu0 0
      %7480 = vmatpush1.bf16.msra.mxu0 %v6989
      %7481 = vmatprep.subr.bf16.mxu0 0
      %7482 = vmatpush1.bf16.msra.mxu0 %v6990
      %7483 = vmatprep.subr.bf16.mxu0 0
      %7484 = vmatpush1.bf16.msra.mxu0 %v6991
      %7485 = vmatprep.subr.bf16.mxu0 0
      %7486 = vmatpush1.bf16.msra.mxu0 %v6992
      %7487 = vmatprep.subr.bf16.mxu0 0
      %7488 = vmatpush1.bf16.msra.mxu0 %v6993
      %7489 = vmatprep.subr.bf16.mxu0 0
      %7490 = vmatpush1.bf16.msra.mxu0 %v6994
      %7491 = vmatprep.subr.bf16.mxu0 0
      %7492 = vmatpush1.bf16.msra.mxu0 %v6995
      %7493 = vmatprep.subr.bf16.mxu0 0
      %7494 = vmatpush1.bf16.msra.mxu0 %v6996
      %7495 = vmatprep.subr.bf16.mxu0 0
      %7496 = vmatpush1.bf16.msra.mxu0 %v6997
      %7497 = vmatprep.subr.bf16.mxu0 0
      %7498 = vmatpush1.bf16.msra.mxu0 %v6998
      %7499 = vmatprep.subr.bf16.mxu0 0
      %7500 = vmatpush1.bf16.msra.mxu0 %v6999
      %7501 = vmatprep.subr.bf16.mxu0 0
      %7502 = vmatpush1.bf16.msra.mxu0 %v7000
      %7503 = vmatprep.subr.bf16.mxu0 0
      %7504 = vmatpush1.bf16.msra.mxu0 %v7001
      %7505 = vmatprep.mubr.bf16.mxu0 %v6082
      %7506 = vmatmul.mubr.bf16.gmra.mrb[0].mxu0 %v6081
      %v7507 = vpop.f32.mrb[0].mxu0
      %v7508 = vadd.f32 %v7459, %v7507
      %v7509 = vpop.f32.mrb[0].mxu0
      %v7510 = vpop.f32.mrb[0].mxu0
      %v7511 = vadd.f32 %v7462, %v7510
      %v7512 = vpop.f32.mrb[0].mxu0
      %7513 = vmatprep.mubr.bf16.mxu0 %v6098
      %7514 = vmatmul.mubr.bf16.gmra.mrb[0].mxu0 %v6097
      %v7515 = vpop.f32.mrb[0].mxu0
      %v7516 = vadd.f32 %v7467, %v7515
      %v7517 = vpop.f32.mrb[0].mxu0
      %v7518 = vpop.f32.mrb[0].mxu0
      %v7519 = vadd.f32 %v7470, %v7518
      %v7520 = vpop.f32.mrb[0].mxu0
      %7521 = vdwg.mxu0
      %v7522 = vadd.f32 %v5291, %v7508
      %v7523 = vadd.f32 %v5292, %v7511
      %v7524 = vadd.f32 %v5293, %v7516
      %v7525 = vadd.f32 %v5294, %v7519
      %v7526 = vld [vmem:[%s710] sm:$0x1]
      %v7527 = vld [vmem:[%s713] sm:$0x1]
      %v7528 = vsel %vm757, %v7522, 0.0
      %7529 = vadd.xlane.f32.xlu0 %v7528
      %v7530 = vpop.xlane.xlu0 %7529
      %v7531 = vsel %vm757, %v7523, 0.0
      %7532 = vadd.xlane.f32.xlu0 %v7531
      %v7533 = vpop.xlane.xlu0 %7532
      %v7534 = vsel %vm757, %v7524, 0.0
      %7535 = vadd.xlane.f32.xlu0 %v7534
      %v7536 = vpop.xlane.xlu0 %7535
      %v7537 = vsel %vm757, %v7525, 0.0
      %7538 = vadd.xlane.f32.xlu0 %v7537
      %v7539 = vpop.xlane.xlu0 %7538
      %v7540 = vmul.f32 %v7530, %v5234
      %v7541 = vmul.f32 %v7533, %v5234
      %v7542 = vmul.f32 %v7536, %v5234
      %v7543 = vmul.f32 %v7539, %v5234
      %v7544 = vsub.f32 %v7522, %v7540
      %v7545 = vsub.f32 %v7523, %v7541
      %v7546 = vsub.f32 %v7524, %v7542
      %v7547 = vsub.f32 %v7525, %v7543
      %v7548 = vmul.f32 %v7544, %v7544
      %v7549 = vmul.f32 %v7545, %v7545
      %v7550 = vmul.f32 %v7546, %v7546
      %v7551 = vmul.f32 %v7547, %v7547
      %v7552 = vsel %vm757, %v7548, 0.0
      %7553 = vadd.xlane.f32.xlu0 %v7552
      %v7554 = vpop.xlane.xlu0 %7553
      %v7555 = vsel %vm757, %v7549, 0.0
      %7556 = vadd.xlane.f32.xlu0 %v7555
      %v7557 = vpop.xlane.xlu0 %7556
      %v7558 = vsel %vm757, %v7550, 0.0
      %7559 = vadd.xlane.f32.xlu0 %v7558
      %v7560 = vpop.xlane.xlu0 %7559
      %v7561 = vsel %vm757, %v7551, 0.0
      %7562 = vadd.xlane.f32.xlu0 %v7561
      %v7563 = vpop.xlane.xlu0 %7562
      %v7564 = vmul.f32 %v7554, %v5234
      %v7565 = vmul.f32 %v7557, %v5234
      %v7566 = vmul.f32 %v7560, %v5234
      %v7567 = vmul.f32 %v7563, %v5234
      %v7568 = vadd.f32 %v7564, 1e-05
      %v7569 = vadd.f32 %v7565, 1e-05
      %v7570 = vadd.f32 %v7566, 1e-05
      %v7571 = vadd.f32 %v7567, 1e-05
      %v7572 = vrsqrt.pop %v7568
      %v7573 = vrsqrt.pop %v7569
      %v7574 = vrsqrt.pop %v7570
      %v7575 = vrsqrt.pop %v7571
      %v7576 = vmul.f32 %v7544, %v7572
      %v7577 = vmul.f32 %v7545, %v7573
      %v7578 = vmul.f32 %v7546, %v7574
      %v7579 = vmul.f32 %v7547, %v7575
      %v7581 = vlaneseq
      %v7582 = vshrl.u32 %v7581, 7
      %v7583 = vsub.s32 0, %v7582
      %v7584 = vrot.slane %v7526, %v7583
      %v7586 = vmul.f32 %v7576, %v7584
      %v7587 = vmul.f32 %v7577, %v7584
      %v7588 = vmul.f32 %v7578, %v7584
      %v7589 = vmul.f32 %v7579, %v7584
      %v7591 = vlaneseq
      %v7592 = vshrl.u32 %v7591, 7
      %v7593 = vsub.s32 0, %v7592
      %v7594 = vrot.slane %v7527, %v7593
      %v7596 = vadd.f32 %v7586, %v7594
      %v7597 = vadd.f32 %v7587, %v7594
      %v7598 = vadd.f32 %v7588, %v7594
      %v7599 = vadd.f32 %v7589, %v7594
      %7600 = vst.msk [vmem:[#allocation2] sm:$0xff] %vm757, %v7596
      %7601 = vst.msk [vmem:[#allocation2 + $0x8] sm:$0xff] %vm757, %v7597
      %7602 = vst.msk [vmem:[#allocation2 + $0x10] sm:$0xff] %vm757, %v7598
      %7603 = vst.msk [vmem:[#allocation2 + $0x18] sm:$0xff] %vm757, %v7599
      %p7604 = scmp.eq.s32.totalorder %s30, 1
      // Predicated region
      $region93: #{tpu_custom_call.1} parent=87 // pred_check
        %p7605 = pneg %p7604
      $region94: #{tpu_custom_call.1} parent=87 // pred_check_branch
        %7607 = sbr.rel (%p7605) target = $region96
      $region95: #{tpu_custom_call.1} parent=87 // pred_region
        %v7609 = vrot.slane %v7598, 7
        %vm7611 = vcmask 1040384
        %v7612 = vsel %vm7611, %v7596, %v7609
        %v7613 = vld [vmem:[%s13] sm:$0xff]
        %v7614 = vld [vmem:[%s13 + $0x8] sm:$0xff]
        %v7615 = vld [vmem:[%s13 + $0x10] sm:$0xff]
        %v7616 = vld [vmem:[%s13 + $0x18] sm:$0xff]
        %v7617 = vld [vmem:[%s14] sm:$0x1]
        %v7619 = vlaneseq
        %v7620 = vshrl.u32 %v7619, 7
        %v7621 = vsub.s32 0, %v7620
        %v7622 = vrot.slane %v7617, %v7621
        %v7625 = vsel %vm757, %v7612, 0
        %7627 = vmatprep.subr.mxu0 0.0
        %7628 = vmatpush1.msra.mxu0 %v7613
        %7629 = vmatprep.subr.mxu0 0.0
        %7630 = vmatpush1.msra.mxu0 %v7614
        %7631 = vmatprep.subr.mxu0 0.0
        %7632 = vmatpush1.msra.mxu0 %v7615
        %7633 = vmatprep.subr.mxu0 0.0
        %7634 = vmatpush1.msra.mxu0 %v7616
        %7635 = vmatprep.subr.mxu0 0.0
        %7636 = vmatpush1.msra.mxu0 0.0
        %7637 = vmatprep.subr.mxu0 0.0
        %7638 = vmatpush1.msra.mxu0 0.0
        %7639 = vmatprep.subr.mxu0 0.0
        %7640 = vmatpush1.msra.mxu0 0.0
        %7641 = vmatprep.subr.mxu0 0.0
        %7642 = vmatpush1.msra.mxu0 0.0
        %7643 = vmatprep.subr.mxu0 0.0
        %7644 = vmatpush1.msra.mxu0 0.0
        %7645 = vmatprep.subr.mxu0 0.0
        %7646 = vmatpush1.msra.mxu0 0.0
        %7647 = vmatprep.subr.mxu0 0.0
        %7648 = vmatpush1.msra.mxu0 0.0
        %7649 = vmatprep.subr.mxu0 0.0
        %7650 = vmatpush1.msra.mxu0 0.0
        %7651 = vmatprep.subr.mxu0 0.0
        %7652 = vmatpush1.msra.mxu0 0.0
        %7653 = vmatprep.subr.mxu0 0.0
        %7654 = vmatpush1.msra.mxu0 0.0
        %7655 = vmatprep.subr.mxu0 0.0
        %7656 = vmatpush1.msra.mxu0 0.0
        %7657 = vmatprep.subr.mxu0 0.0
        %7658 = vmatpush1.msra.mxu0 0.0
        %7659 = vmatprep.subr.mxu0 0.0
        %7660 = vmatpush1.msra.mxu0 0.0
        %7661 = vmatprep.subr.mxu0 0.0
        %7662 = vmatpush1.msra.mxu0 0.0
        %7663 = vmatprep.subr.mxu0 0.0
        %7664 = vmatpush1.msra.mxu0 0.0
        %7665 = vmatprep.subr.mxu0 0.0
        %7666 = vmatpush1.msra.mxu0 0.0
        %7667 = vmatprep.subr.mxu0 0.0
        %7668 = vmatpush1.msra.mxu0 0.0
        %7669 = vmatprep.subr.mxu0 0.0
        %7670 = vmatpush1.msra.mxu0 0.0
        %7671 = vmatprep.subr.mxu0 0.0
        %7672 = vmatpush1.msra.mxu0 0.0
        %7673 = vmatprep.subr.mxu0 0.0
        %7674 = vmatpush1.msra.mxu0 0.0
        %7675 = vmatprep.subr.mxu0 0.0
        %7676 = vmatpush1.msra.mxu0 0.0
        %7677 = vmatprep.subr.mxu0 0.0
        %7678 = vmatpush1.msra.mxu0 0.0
        %7679 = vmatprep.subr.mxu0 0.0
        %7680 = vmatpush1.msra.mxu0 0.0
        %7681 = vmatprep.subr.mxu0 0.0
        %7682 = vmatpush1.msra.mxu0 0.0
        %7683 = vmatprep.subr.mxu0 0.0
        %7684 = vmatpush1.msra.mxu0 0.0
        %7685 = vmatprep.subr.mxu0 0.0
        %7686 = vmatpush1.msra.mxu0 0.0
        %7687 = vmatprep.subr.mxu0 0.0
        %7688 = vmatpush1.msra.mxu0 0.0
        %7689 = vmatprep.subr.mxu0 0.0
        %7690 = vmatpush1.msra.mxu0 0.0
        %7691 = vmatprep.mubr.f32.mxu0 0.0
        %7692 = vmatmul.mubr.f32.gmra.mrb[0].mxu0 %v7625
        %v7693 = vpop.f32.mrb[0].mxu0
        %v7694 = vadd.f32 %v7622, %v7693
        %v7695 = vpop.f32.mrb[0].mxu0
        %7696 = vdwg.mxu0
        %v7697 = vtanh.pop %v7694
        %v7698 = vld [vmem:[%s15] sm:$0xff]
        %v7699 = vld [vmem:[%s15 + $0x8] sm:$0xff]
        %v7700 = vld [vmem:[%s15 + $0x10] sm:$0xff]
        %v7701 = vld [vmem:[%s15 + $0x18] sm:$0xff]
        %v7702 = vld [vmem:[#allocation3] sm:$0x1]
        %v7704 = vlaneseq
        %v7705 = vshrl.u32 %v7704, 7
        %v7706 = vsub.s32 0, %v7705
        %v7707 = vrot.slane %v7702, %v7706
        %v7710 = vsel %vm757, %v7697, 0
        %7712 = vmatprep.subr.mxu0 0.0
        %7713 = vmatpush1.msra.mxu0 %v7698
        %7714 = vmatprep.subr.mxu0 0.0
        %7715 = vmatpush1.msra.mxu0 %v7699
        %7716 = vmatprep.subr.mxu0 0.0
        %7717 = vmatpush1.msra.mxu0 %v7700
        %7718 = vmatprep.subr.mxu0 0.0
        %7719 = vmatpush1.msra.mxu0 %v7701
        %7720 = vmatprep.subr.mxu0 0.0
        %7721 = vmatpush1.msra.mxu0 0.0
        %7722 = vmatprep.subr.mxu0 0.0
        %7723 = vmatpush1.msra.mxu0 0.0
        %7724 = vmatprep.subr.mxu0 0.0
        %7725 = vmatpush1.msra.mxu0 0.0
        %7726 = vmatprep.subr.mxu0 0.0
        %7727 = vmatpush1.msra.mxu0 0.0
        %7728 = vmatprep.subr.mxu0 0.0
        %7729 = vmatpush1.msra.mxu0 0.0
        %7730 = vmatprep.subr.mxu0 0.0
        %7731 = vmatpush1.msra.mxu0 0.0
        %7732 = vmatprep.subr.mxu0 0.0
        %7733 = vmatpush1.msra.mxu0 0.0
        %7734 = vmatprep.subr.mxu0 0.0
        %7735 = vmatpush1.msra.mxu0 0.0
        %7736 = vmatprep.subr.mxu0 0.0
        %7737 = vmatpush1.msra.mxu0 0.0
        %7738 = vmatprep.subr.mxu0 0.0
        %7739 = vmatpush1.msra.mxu0 0.0
        %7740 = vmatprep.subr.mxu0 0.0
        %7741 = vmatpush1.msra.mxu0 0.0
        %7742 = vmatprep.subr.mxu0 0.0
        %7743 = vmatpush1.msra.mxu0 0.0
        %7744 = vmatprep.subr.mxu0 0.0
        %7745 = vmatpush1.msra.mxu0 0.0
        %7746 = vmatprep.subr.mxu0 0.0
        %7747 = vmatpush1.msra.mxu0 0.0
        %7748 = vmatprep.subr.mxu0 0.0
        %7749 = vmatpush1.msra.mxu0 0.0
        %7750 = vmatprep.subr.mxu0 0.0
        %7751 = vmatpush1.msra.mxu0 0.0
        %7752 = vmatprep.subr.mxu0 0.0
        %7753 = vmatpush1.msra.mxu0 0.0
        %7754 = vmatprep.subr.mxu0 0.0
        %7755 = vmatpush1.msra.mxu0 0.0
        %7756 = vmatprep.subr.mxu0 0.0
        %7757 = vmatpush1.msra.mxu0 0.0
        %7758 = vmatprep.subr.mxu0 0.0
        %7759 = vmatpush1.msra.mxu0 0.0
        %7760 = vmatprep.subr.mxu0 0.0
        %7761 = vmatpush1.msra.mxu0 0.0
        %7762 = vmatprep.subr.mxu0 0.0
        %7763 = vmatpush1.msra.mxu0 0.0
        %7764 = vmatprep.subr.mxu0 0.0
        %7765 = vmatpush1.msra.mxu0 0.0
        %7766 = vmatprep.subr.mxu0 0.0
        %7767 = vmatpush1.msra.mxu0 0.0
        %7768 = vmatprep.subr.mxu0 0.0
        %7769 = vmatpush1.msra.mxu0 0.0
        %7770 = vmatprep.subr.mxu0 0.0
        %7771 = vmatpush1.msra.mxu0 0.0
        %7772 = vmatprep.subr.mxu0 0.0
        %7773 = vmatpush1.msra.mxu0 0.0
        %7774 = vmatprep.subr.mxu0 0.0
        %7775 = vmatpush1.msra.mxu0 0.0
        %7776 = vmatprep.mubr.f32.mxu0 0.0
        %7777 = vmatmul.mubr.f32.gmra.mrb[0].mxu0 %v7710
        %v7778 = vpop.f32.mrb[0].mxu0
        %v7779 = vadd.f32 %v7707, %v7778
        %v7780 = vpop.f32.mrb[0].mxu0
        %7781 = vdwg.mxu0
        %vm7782 = vcmask 1024
        %7783 = vst.msk [vmem:[%s17] sm:$0x3] %vm7782, %v7779
      $region96: #{tpu_custom_call.1} parent=87 // pred_fallthru
        _
      // Predicated region
      $region97: #{tpu_custom_call.1} parent=87 // pred_check
        %p7784 = pneg %p460
      $region98: #{tpu_custom_call.1} parent=87 // pred_check_branch
        %7786 = sbr.rel (%p7784) target = $region100
      $region99: #{tpu_custom_call.1} parent=87 // pred_region
        _
      $region100: #{tpu_custom_call.1} parent=87 // pred_fallthru
        _
      // Predicated region
      $region101: #{tpu_custom_call.1} parent=87 // pred_check
        %p7787 = pneg %p460
      $region102: #{tpu_custom_call.1} parent=87 // pred_check_branch
        %7789 = sbr.rel (%p7787) target = $region104
      $region103: #{tpu_custom_call.1} parent=87 // pred_region
        _
      $region104: #{tpu_custom_call.1} parent=87 // pred_fallthru
        _
    $region88: #{tpu_custom_call.1} parent=5 // pred_fallthru
      _
    %p7790 = scmp.le.s32.totalorder 2, %s25
    // Predicated region
    $region105: #{tpu_custom_call.1} parent=5 // pred_check
      %p7791 = pneg %p7790
    $region106: #{tpu_custom_call.1} parent=5 // pred_check_branch
      %7793 = sbr.rel (%p7791) target = $region108
    $region107: #{tpu_custom_call.1} parent=5 // pred_region
      %s7794 = ssub.s32 %s25, 2
    $region108: #{tpu_custom_call.1} parent=5 // pred_fallthru
      _
  $region6: #{tpu_custom_call.1} parent=0 // loop_footer
    %s29 = sadd.s32 1, %s25
  $region7: #{tpu_custom_call.1} parent=0 // loop_footer_branch
    %24 = sbr.rel target = $region3
  $region8: #{tpu_custom_call.1} parent=0 // loop_exit
    _

</llo_original>
